<compile_context>
chip_gen: v7x
topology: tpu7x:2x2x1
jax: 0.10.0
libtpu: 0.0.40
codegen_flags: <defaults>
</compile_context>

<pallas_src>
import jax
import jax.numpy as jnp
import numpy as np
from jax.experimental import pallas as pl
from jax.experimental.pallas import tpu as pltpu

N = 64          # total points (2 batch segments of 32)
C = 32          # in_planes == planes (required by the residual add)
K = 16          # nsample
S = 8           # share_planes
CS = C // S     # planes // share_planes
EPS = 1e-5
GW = 2 * C + 3  # gather RHS width: [k | v | projected xyz]

# bf16 MXU operands for the dominant gather matmul (one-hot values are exact in bf16;
# k/v/xyz are rounded to ~2^-9 relative -> compare at 2e-3 instead of 1e-3 below).
GATHER_DTYPE = jnp.bfloat16

# rows of the packed `vecs` slab
(R_BN1_S, R_BN1_B, R_BQ, R_BG,
 R_PG0, R_PG1, R_PG2,
 R_WP1S_0, R_WP1S_1, R_WP1S_2,
 R_PSHIFT,
 R_WP2_0, R_WP2_1, R_WP2_2, R_BP2,
 R_BNW1_S, R_BNW1_B, R_BW1,
 R_BNW2_S, R_BNW2_B, R_BW2,
 R_BN2_S, R_BN2_B, R_BN3_S, R_BN3_B) = range(25)
VEC_ROWS = 32   # padded to a multiple of 8 sublanes


# ------------------------------ fused Bottleneck kernel ------------------------------
def _bottleneck_kernel(pointq_ref, featq_ref, idx_ref, point_ref, feat_ref,
                       wslab_ref, vecs_ref, o_ref):
    n = feat_ref.shape[0]          # all points (gather source)
    tq = featq_ref.shape[0]        # query rows handled by this program

    feat = feat_ref[...]           # (n, C)
    featq = featq_ref[...]         # (tq, C) residual identity + query rows
    pts = point_ref[...]           # (n, 3)
    ptsq = pointq_ref[...]         # (tq, 3)
    idxs = idx_ref[...]            # (tq*K, 1) int32 neighbor ids (query-major)
    wslab = wslab_ref[...]         # (2C, 128) packed weight matrices
    vecs = vecs_ref[...]           # (VEC_ROWS, 128) packed bias/affine rows

    w1 = wslab[0:C, 0:C]               # linear1
    wg = wslab[0:C, C:C + GW]          # f1 -> [k | v | 0_3] fused gather-RHS projection
    wq = wslab[C:2 * C, 0:C]           # linear_q
    ww1_t = wslab[C:2 * C, C:2 * C]    # linear_w[2], column-tiled to C lanes
    ww2_bd = wslab[C:2 * C, 2 * C:3 * C]   # linear_w[5], block-diagonal (S copies)
    w3 = wslab[C:2 * C, 3 * C:4 * C]   # linear3
    bn1_s = vecs[R_BN1_S, 0:C]
    bn1_b = vecs[R_BN1_B, 0:C]

    # ---- linear1 (no bias) + bn1 + relu: all points (k/v source) + query tile --------
    f1 = jnp.maximum(jnp.dot(feat, w1, preferred_element_type=jnp.float32)
                     * bn1_s + bn1_b, 0.0)                                         # (n, C)
    f1q = jnp.maximum(jnp.dot(featq, w1, preferred_element_type=jnp.float32)
                      * bn1_s + bn1_b, 0.0)                                        # (tq, C)

    # ---- query-side projections -------------------------------------------------------
    q = jnp.dot(f1q, wq, preferred_element_type=jnp.float32) + vecs[R_BQ, 0:C]     # (tq, C)
    ptsp_q = (ptsq[:, 0:1] * vecs[R_WP1S_0, 0:3]
              + ptsq[:, 1:2] * vecs[R_WP1S_1, 0:3]
              + ptsq[:, 2:3] * vecs[R_WP1S_2, 0:3])                                # (tq, 3)

    # ---- fused gather RHS: G = [k | v | xyz @ (wp1*bnp_s)] (k/v bias baked in) --------
    G = (jnp.dot(f1, wg, preferred_element_type=jnp.float32)
         + pts[:, 0:1] * vecs[R_PG0, 0:GW]
         + pts[:, 1:2] * vecs[R_PG1, 0:GW]
         + pts[:, 2:3] * vecs[R_PG2, 0:GW]
         + vecs[R_BG, 0:GW])                                                       # (n, GW)

    # ---- queryandgroup: one-hot gather, ONE bf16 MXU pass, f32 accumulate -------------
    col = jax.lax.broadcasted_iota(jnp.int32, (tq * K, n), 1)
    n_oh = (idxs == col).astype(GATHER_DTYPE)                                      # (tq*K, n)
    gath = jnp.dot(n_oh, G.astype(GATHER_DTYPE),
                   preferred_element_type=jnp.float32).reshape(tq, K, GW)
    gk = gath[:, :, 0:C]
    gv = gath[:, :, C:2 * C]
    gp = gath[:, :, 2 * C:GW]

    # ---- linear_p tail: (+shift from folded BN) -> relu -> Linear(3, C) ---------------
    p1 = jnp.maximum(gp - ptsp_q[:, None, :] + vecs[R_PSHIFT, 0:3], 0.0)           # (tq,K,3)
    pr = (p1[:, :, 0:1] * vecs[R_WP2_0, 0:C]
          + p1[:, :, 1:2] * vecs[R_WP2_1, 0:C]
          + p1[:, :, 2:3] * vecs[R_WP2_2, 0:C]
          + vecs[R_BP2, 0:C])                                                      # (tq,K,C)

    # ---- linear_w, widened to C lanes by host-side weight tiling -----------------------
    w = gk - q[:, None, :] + pr
    w = jnp.maximum(w * vecs[R_BNW1_S, 0:C] + vecs[R_BNW1_B, 0:C], 0.0)
    w = w.reshape(tq * K, C)
    w = jnp.dot(w, ww1_t, preferred_element_type=jnp.float32) + vecs[R_BW1, 0:C]
    w = jnp.maximum(w * vecs[R_BNW2_S, 0:C] + vecs[R_BNW2_B, 0:C], 0.0)
    w = jnp.dot(w, ww2_bd, preferred_element_type=jnp.float32) + vecs[R_BW2, 0:C]

    # ---- softmax over neighbors + weighted share-plane sum -----------------------------
    # (weights are already broadcast across share groups by the widened linear_w,
    #  so channel c carries the weight of attention column c % (C//S))
    logits = w.reshape(tq, K, C)
    e = jnp.exp(logits - jnp.max(logits, axis=1, keepdims=True))
    inv = pl.reciprocal(jnp.sum(e, axis=1), approx=True)                           # EUP slot
    out = jnp.sum((gv + pr) * e, axis=1) * inv                                     # (tq, C)

    # ---- bn2 + relu, linear3 (no bias) + bn3 + residual + relu -------------------------
    f2 = jnp.maximum(out * vecs[R_BN2_S, 0:C] + vecs[R_BN2_B, 0:C], 0.0)
    y = jnp.dot(f2, w3, preferred_element_type=jnp.float32)
    y = y * vecs[R_BN3_S, 0:C] + vecs[R_BN3_B, 0:C] + featq
    o_ref[...] = jnp.maximum(y, 0.0).astype(o_ref.dtype)


# ------------------------------- JAX glue (KNN) --------------------------------------
def knn_idx(points, row_splits, k):
    # brute-force per-segment KNN (includes the query point itself, like knn_search)
    n = points.shape[0]
    seg = jnp.searchsorted(row_splits, jnp.arange(n, dtype=row_splits.dtype),
                           side='right') - 1
    d2 = jnp.sum((points[:, None, :] - points[None, :, :]) ** 2, axis=-1)
    d2 = jnp.where(seg[:, None] == seg[None, :], d2, jnp.inf)
    _, idx = jax.lax.top_k(-d2, k)
    return idx


def _default_nq_tiles():
    # v7x has 2 TensorCores per chip: split the query rows over a parallel grid axis
    # there; keep a single tile on 1-TC chips (v5e/v6e) to avoid per-step overhead.
    try:
        kind = jax.devices()[0].device_kind.lower()
        if "v7" in kind or "7x" in kind:
            return 2
    except Exception:
        pass
    return 1


def bottleneck_forward(point, feat, row_splits, wslab, vecs, nq_tiles=1):
    n = feat.shape[0]
    assert n % nq_tiles == 0 and (n // nq_tiles) % 8 == 0
    tq = n // nq_tiles
    idx = knn_idx(point, row_splits, K).reshape(-1, 1).astype(jnp.int32)   # (n*K, 1)

    feat_out = pl.pallas_call(
        _bottleneck_kernel,
        out_shape=jax.ShapeDtypeStruct((n, C), jnp.float32),
        grid=(nq_tiles,),
        in_specs=[
            pl.BlockSpec((tq, 3), lambda i: (i, 0)),        # query-tile xyz
            pl.BlockSpec((tq, C), lambda i: (i, 0)),        # query-tile feats (residual+q)
            pl.BlockSpec((tq * K, 1), lambda i: (i, 0)),    # KNN ids for the tile
            pl.BlockSpec((n, 3), lambda i: (0, 0)),         # all xyz (gather source)
            pl.BlockSpec((n, C), lambda i: (0, 0)),         # all feats (k/v source)
            pl.BlockSpec((2 * C, 128), lambda i: (0, 0)),   # packed weight slab
            pl.BlockSpec((VEC_ROWS, 128), lambda i: (0, 0)),
        ],
        out_specs=pl.BlockSpec((tq, C), lambda i: (i, 0)),
        compiler_params=pltpu.CompilerParams(dimension_semantics=("parallel",)),
    )(point, feat, idx, point, feat, wslab, vecs)
    return [point, feat_out, row_splits]


# ------------------------------- parameter packing -----------------------------------
def _set_row(vecs, row, x):
    x = jnp.ravel(jnp.asarray(x, jnp.float32))
    return vecs.at[row, 0:x.shape[0]].set(x)


def pack_params(P):
    """Pack all weights into two lane-dense slabs consumed by the fused kernel."""
    wslab = jnp.zeros((2 * C, 128), jnp.float32)
    # row block 0: linear1 | fused gather-RHS projection f1 -> [k | v | 0_3]
    wslab = wslab.at[0:C, 0:C].set(P['w1'])
    wslab = wslab.at[0:C, C:3 * C].set(P['wqkv'][:, C:3 * C])       # [wk | wv]
    # row block 1: linear_q | widened linear_w[2] | block-diag linear_w[5] | linear3
    ww1_t = jnp.tile(P['ww1'], (1, S))                              # (C, C): col j -> j % CS
    ww2_bd = jnp.kron(jnp.eye(S, dtype=jnp.float32), P['ww2'])      # (C, C) block-diagonal
    wslab = wslab.at[C:2 * C, 0:C].set(P['wqkv'][:, 0:C])
    wslab = wslab.at[C:2 * C, C:2 * C].set(ww1_t)
    wslab = wslab.at[C:2 * C, 2 * C:3 * C].set(ww2_bd)
    wslab = wslab.at[C:2 * C, 3 * C:4 * C].set(P['w3'])

    wp1s = (P['wp1'] * P['bnp_s']).astype(jnp.float32)              # fold BN(3) scale
    pshift = P['bp1'] * P['bnp_s'] + P['bnp_b']                     # remaining BN(3) shift

    vecs = jnp.zeros((VEC_ROWS, 128), jnp.float32)
    vecs = _set_row(vecs, R_BN1_S, P['bn1_s'])
    vecs = _set_row(vecs, R_BN1_B, P['bn1_b'])
    vecs = _set_row(vecs, R_BQ, P['bqkv'][:, 0:C])
    vecs = _set_row(vecs, R_BG, P['bqkv'][:, C:3 * C])              # [bk | bv | 0_3]
    # P_g rows route xyz into G's last 3 lanes (gather RHS columns 2C:2C+3)
    for j, row in enumerate((R_PG0, R_PG1, R_PG2)):
        vecs = vecs.at[row, 2 * C:2 * C + 3].set(wp1s[j])
    # same wp1s rows again at lanes 0:3 for the query-side xyz projection
    for j, row in enumerate((R_WP1S_0, R_WP1S_1, R_WP1S_2)):
        vecs = vecs.at[row, 0:3].set(wp1s[j])
    vecs = _set_row(vecs, R_PSHIFT, pshift)
    vecs = _set_row(vecs, R_WP2_0, P['wp2'][0])
    vecs = _set_row(vecs, R_WP2_1, P['wp2'][1])
    vecs = _set_row(vecs, R_WP2_2, P['wp2'][2])
    vecs = _set_row(vecs, R_BP2, P['bp2'])
    vecs = _set_row(vecs, R_BNW1_S, P['bnw1_s'])
    vecs = _set_row(vecs, R_BNW1_B, P['bnw1_b'])
    vecs = _set_row(vecs, R_BW1, jnp.tile(jnp.ravel(P['bw1']), S))
    vecs = _set_row(vecs, R_BNW2_S, jnp.tile(jnp.ravel(P['bnw2_s']), S))
    vecs = _set_row(vecs, R_BNW2_B, jnp.tile(jnp.ravel(P['bnw2_b']), S))
    vecs = _set_row(vecs, R_BW2, jnp.tile(jnp.ravel(P['bw2']), S))
    vecs = _set_row(vecs, R_BN2_S, P['bn2_s'])
    vecs = _set_row(vecs, R_BN2_B, P['bn2_b'])
    vecs = _set_row(vecs, R_BN3_S, P['bn3_s'])
    vecs = _set_row(vecs, R_BN3_B, P['bn3_b'])
    return wslab, vecs


# ------------------------------- pure-JAX reference -----------------------------------
def bottleneck_ref(point, feat, row_splits, P):
    relu = jax.nn.relu
    f1 = relu((feat @ P['w1']) * P['bn1_s'] + P['bn1_b'])
    qkv = f1 @ P['wqkv'] + P['bqkv']
    q, kf, vf = qkv[:, :C], qkv[:, C:2 * C], qkv[:, 2 * C:]
    idx = knn_idx(point, row_splits, K)
    gxyz = point[idx] - point[:, None, :]
    gk, gv = kf[idx], vf[idx]
    pr = gxyz @ P['wp1'] + P['bp1']
    pr = relu(pr * P['bnp_s'] + P['bnp_b'])
    pr = pr @ P['wp2'] + P['bp2']
    w = gk - q[:, None, :] + pr
    w = relu(w * P['bnw1_s'] + P['bnw1_b'])
    w = w @ P['ww1'] + P['bw1']
    w = relu(w * P['bnw2_s'] + P['bnw2_b'])
    w = w @ P['ww2'] + P['bw2']
    w = jax.nn.softmax(w, axis=1)
    n = feat.shape[0]
    out = ((gv + pr).reshape(n, K, S, CS) * w[:, :, None, :]).sum(axis=1).reshape(n, C)
    f2 = relu(out * P['bn2_s'] + P['bn2_b'])
    f3 = relu((f2 @ P['w3']) * P['bn3_s'] + P['bn3_b'] + feat)
    return f3


# --------------------------------- parameter init -------------------------------------
def make_bn(key, c):
    k1, k2, k3, k4 = jax.random.split(key, 4)
    gamma = 1.0 + 0.1 * jax.random.normal(k1, (c,))
    beta = 0.1 * jax.random.normal(k2, (c,))
    mean = 0.1 * jax.random.normal(k3, (c,))
    var = 1.0 + 0.1 * jax.random.uniform(k4, (c,))
    scale = (gamma / jnp.sqrt(var + EPS)).astype(jnp.float32)
    shift = (beta - mean * scale).astype(jnp.float32)
    return scale.reshape(1, c), shift.reshape(1, c)


def init_params(key):
    keys = iter(jax.random.split(key, 32))
    nxt = lambda: next(keys)
    w = lambda shape: (0.1 * jax.random.normal(nxt(), shape)).astype(jnp.float32)
    P = {}
    P['w1'] = w((C, C))
    P['bn1_s'], P['bn1_b'] = make_bn(nxt(), C)
    P['wqkv'] = w((C, 3 * C))
    P['bqkv'] = w((1, 3 * C))
    P['wp1'] = w((3, 3)); P['bp1'] = w((1, 3))
    P['bnp_s'], P['bnp_b'] = make_bn(nxt(), 3)
    P['wp2'] = w((3, C)); P['bp2'] = w((1, C))
    P['bnw1_s'], P['bnw1_b'] = make_bn(nxt(), C)
    P['ww1'] = w((C, CS)); P['bw1'] = w((1, CS))
    P['bnw2_s'], P['bnw2_b'] = make_bn(nxt(), CS)
    P['ww2'] = w((CS, CS)); P['bw2'] = w((1, CS))
    P['bn2_s'], P['bn2_b'] = make_bn(nxt(), C)
    P['w3'] = w((C, C))
    P['bn3_s'], P['bn3_b'] = make_bn(nxt(), C)
    return P


if __name__ == "__main__":
    key = jax.random.PRNGKey(0)
    kpt, kft, kpr = jax.random.split(key, 3)
    point = jax.random.normal(kpt, (N, 3), jnp.float32)
    feat = jax.random.normal(kft, (N, C), jnp.float32)
    row_splits = jnp.array([0, N // 2, N], dtype=jnp.int32)
    P = init_params(kpr)
    wslab, vecs = pack_params(P)

    nq_tiles = _default_nq_tiles()
    point_out, feat_out, rs_out = bottleneck_forward(point, feat, row_splits, wslab,
                                                     vecs, nq_tiles=nq_tiles)
    feat_out = jax.block_until_ready(feat_out)

    ref = bottleneck_ref(point, feat, row_splits, P)
    # bf16 MXU operands on the gather path + approx reciprocal round k/v/xyz by
    # ~2^-9 relative, so compare slightly looser than the all-fp32 variant.
    if not np.allclose(np.asarray(feat_out), np.asarray(ref), rtol=2e-3, atol=2e-3):
        raise AssertionError("Pallas output does not match JAX reference")
    print("KERNEL_OK")
</pallas_src>

<mosaic_0001>
module attributes {stable_mosaic.version = 11 : i64} {
  func.func @_bottleneck_kernel(%arg0: i32, %arg1: memref<64x3xf32, #tpu.memory_space<vmem>>, %arg2: memref<64x32xf32, #tpu.memory_space<vmem>>, %arg3: memref<1024x1xi32, #tpu.memory_space<vmem>>, %arg4: memref<64x3xf32, #tpu.memory_space<vmem>>, %arg5: memref<64x32xf32, #tpu.memory_space<vmem>>, %arg6: memref<64x128xf32, #tpu.memory_space<vmem>>, %arg7: memref<32x128xf32, #tpu.memory_space<vmem>>, %arg8: memref<64x32xf32, #tpu.memory_space<vmem>>) attributes {dimension_semantics = [#tpu.dimension_semantics<parallel>], iteration_bounds = array<i64: 1>, scalar_prefetch = 0 : i64, scratch_operands = 0 : i64, tpu.core_type = #tpu.core_type<tc>, window_params = [{transform_indices = @transform_0, window_bounds = array<i64: 64, 3>}, {transform_indices = @transform_1, window_bounds = array<i64: 64, 32>}, {transform_indices = @transform_2, window_bounds = array<i64: 1024, 1>}, {pipeline_mode = #tpu.pipeline_mode<synchronous>, transform_indices = @transform_3, window_bounds = array<i64: 64, 3>}, {pipeline_mode = #tpu.pipeline_mode<synchronous>, transform_indices = @transform_4, window_bounds = array<i64: 64, 32>}, {pipeline_mode = #tpu.pipeline_mode<synchronous>, transform_indices = @transform_5, window_bounds = array<i64: 64, 128>}, {pipeline_mode = #tpu.pipeline_mode<synchronous>, transform_indices = @transform_6, window_bounds = array<i64: 32, 128>}, {transform_indices = @transform_7, window_bounds = array<i64: 64, 32>}]} {
    %c0 = arith.constant 0 : index
    %c0_0 = arith.constant 0 : index
    %0 = vector.load %arg5[%c0, %c0_0] : memref<64x32xf32, #tpu.memory_space<vmem>>, vector<64x32xf32>
    %c0_1 = arith.constant 0 : index
    %c0_2 = arith.constant 0 : index
    %1 = vector.load %arg2[%c0_1, %c0_2] : memref<64x32xf32, #tpu.memory_space<vmem>>, vector<64x32xf32>
    %c0_3 = arith.constant 0 : index
    %c0_4 = arith.constant 0 : index
    %2 = vector.load %arg4[%c0_3, %c0_4] : memref<64x3xf32, #tpu.memory_space<vmem>>, vector<64x3xf32>
    %c0_5 = arith.constant 0 : index
    %c0_6 = arith.constant 0 : index
    %3 = vector.load %arg1[%c0_5, %c0_6] : memref<64x3xf32, #tpu.memory_space<vmem>>, vector<64x3xf32>
    %c0_7 = arith.constant 0 : index
    %c0_8 = arith.constant 0 : index
    %4 = vector.load %arg3[%c0_7, %c0_8] : memref<1024x1xi32, #tpu.memory_space<vmem>>, vector<1024x1xi32>
    %c0_9 = arith.constant 0 : index
    %c0_10 = arith.constant 0 : index
    %5 = vector.load %arg6[%c0_9, %c0_10] : memref<64x128xf32, #tpu.memory_space<vmem>>, vector<64x128xf32>
    %c0_11 = arith.constant 0 : index
    %c0_12 = arith.constant 0 : index
    %6 = vector.load %arg7[%c0_11, %c0_12] : memref<32x128xf32, #tpu.memory_space<vmem>>, vector<32x128xf32>
    %7 = vector.extract_strided_slice %5 {offsets = [0, 0], sizes = [32, 32], strides = [1, 1]} : vector<64x128xf32> to vector<32x32xf32>
    %8 = vector.extract_strided_slice %5 {offsets = [0, 32], sizes = [32, 67], strides = [1, 1]} : vector<64x128xf32> to vector<32x67xf32>
    %9 = vector.extract_strided_slice %5 {offsets = [32, 0], sizes = [32, 32], strides = [1, 1]} : vector<64x128xf32> to vector<32x32xf32>
    %10 = vector.extract_strided_slice %5 {offsets = [32, 32], sizes = [32, 32], strides = [1, 1]} : vector<64x128xf32> to vector<32x32xf32>
    %11 = vector.extract_strided_slice %5 {offsets = [32, 64], sizes = [32, 32], strides = [1, 1]} : vector<64x128xf32> to vector<32x32xf32>
    %12 = vector.extract_strided_slice %5 {offsets = [32, 96], sizes = [32, 32], strides = [1, 1]} : vector<64x128xf32> to vector<32x32xf32>
    %13 = vector.extract_strided_slice %6 {offsets = [0, 0], sizes = [1, 32], strides = [1, 1]} : vector<32x128xf32> to vector<1x32xf32>
    %14 = vector.shape_cast %13 : vector<1x32xf32> to vector<32xf32>
    %15 = vector.extract_strided_slice %6 {offsets = [1, 0], sizes = [1, 32], strides = [1, 1]} : vector<32x128xf32> to vector<1x32xf32>
    %16 = vector.shape_cast %15 : vector<1x32xf32> to vector<32xf32>
    %cst = arith.constant dense<0.000000e+00> : vector<64x32xf32>
    %17 = tpu.matmul %0, %7, %cst {dimension_numbers = #tpu.dot_dimension_numbers<[1], [0], [0], [1], [0, 0, 1, 1], [], []>} : vector<64x32xf32>, vector<32x32xf32>, vector<64x32xf32> -> vector<64x32xf32>
    %18 = vector.shape_cast %14 : vector<32xf32> to vector<1x32xf32>
    %19 = vector.broadcast %18 : vector<1x32xf32> to vector<64x32xf32>
    %20 = arith.mulf %17, %19 : vector<64x32xf32>
    %21 = vector.shape_cast %16 : vector<32xf32> to vector<1x32xf32>
    %22 = vector.broadcast %21 : vector<1x32xf32> to vector<64x32xf32>
    %23 = arith.addf %20, %22 : vector<64x32xf32>
    %cst_13 = arith.constant 0.000000e+00 : f32
    %24 = vector.broadcast %cst_13 : f32 to vector<64x32xf32>
    %25 = arith.maximumf %23, %24 : vector<64x32xf32>
    %cst_14 = arith.constant dense<0.000000e+00> : vector<64x32xf32>
    %26 = tpu.matmul %1, %7, %cst_14 {dimension_numbers = #tpu.dot_dimension_numbers<[1], [0], [0], [1], [0, 0, 1, 1], [], []>} : vector<64x32xf32>, vector<32x32xf32>, vector<64x32xf32> -> vector<64x32xf32>
    %27 = vector.shape_cast %14 : vector<32xf32> to vector<1x32xf32>
    %28 = vector.broadcast %27 : vector<1x32xf32> to vector<64x32xf32>
    %29 = arith.mulf %26, %28 : vector<64x32xf32>
    %30 = vector.shape_cast %16 : vector<32xf32> to vector<1x32xf32>
    %31 = vector.broadcast %30 : vector<1x32xf32> to vector<64x32xf32>
    %32 = arith.addf %29, %31 : vector<64x32xf32>
    %cst_15 = arith.constant 0.000000e+00 : f32
    %33 = vector.broadcast %cst_15 : f32 to vector<64x32xf32>
    %34 = arith.maximumf %32, %33 : vector<64x32xf32>
    %cst_16 = arith.constant dense<0.000000e+00> : vector<64x32xf32>
    %35 = tpu.matmul %34, %9, %cst_16 {dimension_numbers = #tpu.dot_dimension_numbers<[1], [0], [0], [1], [0, 0, 1, 1], [], []>} : vector<64x32xf32>, vector<32x32xf32>, vector<64x32xf32> -> vector<64x32xf32>
    %36 = vector.extract_strided_slice %6 {offsets = [2, 0], sizes = [1, 32], strides = [1, 1]} : vector<32x128xf32> to vector<1x32xf32>
    %37 = vector.shape_cast %36 : vector<1x32xf32> to vector<32xf32>
    %38 = vector.shape_cast %37 : vector<32xf32> to vector<1x32xf32>
    %39 = vector.broadcast %38 : vector<1x32xf32> to vector<64x32xf32>
    %40 = arith.addf %35, %39 : vector<64x32xf32>
    %41 = vector.extract_strided_slice %3 {offsets = [0, 0], sizes = [64, 1], strides = [1, 1]} : vector<64x3xf32> to vector<64x1xf32>
    %42 = vector.extract_strided_slice %6 {offsets = [7, 0], sizes = [1, 3], strides = [1, 1]} : vector<32x128xf32> to vector<1x3xf32>
    %43 = vector.shape_cast %42 : vector<1x3xf32> to vector<3xf32>
    %44 = vector.shape_cast %43 : vector<3xf32> to vector<1x3xf32>
    %45 = vector.broadcast %41 : vector<64x1xf32> to vector<64x3xf32>
    %46 = vector.broadcast %44 : vector<1x3xf32> to vector<64x3xf32>
    %47 = arith.mulf %45, %46 : vector<64x3xf32>
    %48 = vector.extract_strided_slice %3 {offsets = [0, 1], sizes = [64, 1], strides = [1, 1]} : vector<64x3xf32> to vector<64x1xf32>
    %49 = vector.extract_strided_slice %6 {offsets = [8, 0], sizes = [1, 3], strides = [1, 1]} : vector<32x128xf32> to vector<1x3xf32>
    %50 = vector.shape_cast %49 : vector<1x3xf32> to vector<3xf32>
    %51 = vector.shape_cast %50 : vector<3xf32> to vector<1x3xf32>
    %52 = vector.broadcast %48 : vector<64x1xf32> to vector<64x3xf32>
    %53 = vector.broadcast %51 : vector<1x3xf32> to vector<64x3xf32>
    %54 = arith.mulf %52, %53 : vector<64x3xf32>
    %55 = arith.addf %47, %54 : vector<64x3xf32>
    %56 = vector.extract_strided_slice %3 {offsets = [0, 2], sizes = [64, 1], strides = [1, 1]} : vector<64x3xf32> to vector<64x1xf32>
    %57 = vector.extract_strided_slice %6 {offsets = [9, 0], sizes = [1, 3], strides = [1, 1]} : vector<32x128xf32> to vector<1x3xf32>
    %58 = vector.shape_cast %57 : vector<1x3xf32> to vector<3xf32>
    %59 = vector.shape_cast %58 : vector<3xf32> to vector<1x3xf32>
    %60 = vector.broadcast %56 : vector<64x1xf32> to vector<64x3xf32>
    %61 = vector.broadcast %59 : vector<1x3xf32> to vector<64x3xf32>
    %62 = arith.mulf %60, %61 : vector<64x3xf32>
    %63 = arith.addf %55, %62 : vector<64x3xf32>
    %cst_17 = arith.constant dense<0.000000e+00> : vector<64x67xf32>
    %64 = tpu.matmul %25, %8, %cst_17 {dimension_numbers = #tpu.dot_dimension_numbers<[1], [0], [0], [1], [0, 0, 1, 1], [], []>} : vector<64x32xf32>, vector<32x67xf32>, vector<64x67xf32> -> vector<64x67xf32>
    %65 = vector.extract_strided_slice %2 {offsets = [0, 0], sizes = [64, 1], strides = [1, 1]} : vector<64x3xf32> to vector<64x1xf32>
    %66 = vector.extract_strided_slice %6 {offsets = [4, 0], sizes = [1, 67], strides = [1, 1]} : vector<32x128xf32> to vector<1x67xf32>
    %67 = vector.shape_cast %66 : vector<1x67xf32> to vector<67xf32>
    %68 = vector.shape_cast %67 : vector<67xf32> to vector<1x67xf32>
    %69 = vector.broadcast %65 : vector<64x1xf32> to vector<64x67xf32>
    %70 = vector.broadcast %68 : vector<1x67xf32> to vector<64x67xf32>
    %71 = arith.mulf %69, %70 : vector<64x67xf32>
    %72 = arith.addf %64, %71 : vector<64x67xf32>
    %73 = vector.extract_strided_slice %2 {offsets = [0, 1], sizes = [64, 1], strides = [1, 1]} : vector<64x3xf32> to vector<64x1xf32>
    %74 = vector.extract_strided_slice %6 {offsets = [5, 0], sizes = [1, 67], strides = [1, 1]} : vector<32x128xf32> to vector<1x67xf32>
    %75 = vector.shape_cast %74 : vector<1x67xf32> to vector<67xf32>
    %76 = vector.shape_cast %75 : vector<67xf32> to vector<1x67xf32>
    %77 = vector.broadcast %73 : vector<64x1xf32> to vector<64x67xf32>
    %78 = vector.broadcast %76 : vector<1x67xf32> to vector<64x67xf32>
    %79 = arith.mulf %77, %78 : vector<64x67xf32>
    %80 = arith.addf %72, %79 : vector<64x67xf32>
    %81 = vector.extract_strided_slice %2 {offsets = [0, 2], sizes = [64, 1], strides = [1, 1]} : vector<64x3xf32> to vector<64x1xf32>
    %82 = vector.extract_strided_slice %6 {offsets = [6, 0], sizes = [1, 67], strides = [1, 1]} : vector<32x128xf32> to vector<1x67xf32>
    %83 = vector.shape_cast %82 : vector<1x67xf32> to vector<67xf32>
    %84 = vector.shape_cast %83 : vector<67xf32> to vector<1x67xf32>
    %85 = vector.broadcast %81 : vector<64x1xf32> to vector<64x67xf32>
    %86 = vector.broadcast %84 : vector<1x67xf32> to vector<64x67xf32>
    %87 = arith.mulf %85, %86 : vector<64x67xf32>
    %88 = arith.addf %80, %87 : vector<64x67xf32>
    %89 = vector.extract_strided_slice %6 {offsets = [3, 0], sizes = [1, 67], strides = [1, 1]} : vector<32x128xf32> to vector<1x67xf32>
    %90 = vector.shape_cast %89 : vector<1x67xf32> to vector<67xf32>
    %91 = vector.shape_cast %90 : vector<67xf32> to vector<1x67xf32>
    %92 = vector.broadcast %91 : vector<1x67xf32> to vector<64x67xf32>
    %93 = arith.addf %88, %92 : vector<64x67xf32>
    %94 = tpu.iota {dimensions = array<i32: 1>} : vector<1024x64xi32>
    %95 = vector.broadcast %4 : vector<1024x1xi32> to vector<1024x64xi32>
    %96 = arith.cmpi eq, %95, %94 : vector<1024x64xi32>
    %97 = arith.extui %96 : vector<1024x64xi1> to vector<1024x64xi32>
    %98 = arith.sitofp %97 : vector<1024x64xi32> to vector<1024x64xf32>
    %99 = arith.truncf %98 : vector<1024x64xf32> to vector<1024x64xbf16>
    %100 = arith.truncf %93 : vector<64x67xf32> to vector<64x67xbf16>
    %cst_18 = arith.constant dense<0.000000e+00> : vector<1024x67xf32>
    %101 = tpu.matmul %99, %100, %cst_18 {dimension_numbers = #tpu.dot_dimension_numbers<[1], [0], [0], [1], [0, 0, 1, 1], [], []>} : vector<1024x64xbf16>, vector<64x67xbf16>, vector<1024x67xf32> -> vector<1024x67xf32>
    %102 = vector.shape_cast %101 : vector<1024x67xf32> to vector<64x16x67xf32>
    %103 = vector.extract_strided_slice %102 {offsets = [0, 0, 0], sizes = [64, 16, 32], strides = [1, 1, 1]} : vector<64x16x67xf32> to vector<64x16x32xf32>
    %104 = vector.extract_strided_slice %102 {offsets = [0, 0, 32], sizes = [64, 16, 32], strides = [1, 1, 1]} : vector<64x16x67xf32> to vector<64x16x32xf32>
    %105 = vector.extract_strided_slice %102 {offsets = [0, 0, 64], sizes = [64, 16, 3], strides = [1, 1, 1]} : vector<64x16x67xf32> to vector<64x16x3xf32>
    %106 = vector.shape_cast %63 : vector<64x3xf32> to vector<64x1x3xf32>
    %107 = vector.broadcast %106 : vector<64x1x3xf32> to vector<64x16x3xf32>
    %108 = arith.subf %105, %107 : vector<64x16x3xf32>
    %109 = vector.extract_strided_slice %6 {offsets = [10, 0], sizes = [1, 3], strides = [1, 1]} : vector<32x128xf32> to vector<1x3xf32>
    %110 = vector.shape_cast %109 : vector<1x3xf32> to vector<3xf32>
    %111 = vector.shape_cast %110 : vector<3xf32> to vector<1x1x3xf32>
    %112 = vector.broadcast %111 : vector<1x1x3xf32> to vector<64x16x3xf32>
    %113 = arith.addf %108, %112 : vector<64x16x3xf32>
    %cst_19 = arith.constant 0.000000e+00 : f32
    %114 = vector.broadcast %cst_19 : f32 to vector<64x16x3xf32>
    %115 = arith.maximumf %113, %114 : vector<64x16x3xf32>
    %116 = vector.extract_strided_slice %115 {offsets = [0, 0, 0], sizes = [64, 16, 1], strides = [1, 1, 1]} : vector<64x16x3xf32> to vector<64x16x1xf32>
    %117 = vector.extract_strided_slice %6 {offsets = [11, 0], sizes = [1, 32], strides = [1, 1]} : vector<32x128xf32> to vector<1x32xf32>
    %118 = vector.shape_cast %117 : vector<1x32xf32> to vector<32xf32>
    %119 = vector.shape_cast %118 : vector<32xf32> to vector<1x1x32xf32>
    %120 = vector.broadcast %116 : vector<64x16x1xf32> to vector<64x16x32xf32>
    %121 = vector.broadcast %119 : vector<1x1x32xf32> to vector<64x16x32xf32>
    %122 = arith.mulf %120, %121 : vector<64x16x32xf32>
    %123 = vector.extract_strided_slice %115 {offsets = [0, 0, 1], sizes = [64, 16, 1], strides = [1, 1, 1]} : vector<64x16x3xf32> to vector<64x16x1xf32>
    %124 = vector.extract_strided_slice %6 {offsets = [12, 0], sizes = [1, 32], strides = [1, 1]} : vector<32x128xf32> to vector<1x32xf32>
    %125 = vector.shape_cast %124 : vector<1x32xf32> to vector<32xf32>
    %126 = vector.shape_cast %125 : vector<32xf32> to vector<1x1x32xf32>
    %127 = vector.broadcast %123 : vector<64x16x1xf32> to vector<64x16x32xf32>
    %128 = vector.broadcast %126 : vector<1x1x32xf32> to vector<64x16x32xf32>
    %129 = arith.mulf %127, %128 : vector<64x16x32xf32>
    %130 = arith.addf %122, %129 : vector<64x16x32xf32>
    %131 = vector.extract_strided_slice %115 {offsets = [0, 0, 2], sizes = [64, 16, 1], strides = [1, 1, 1]} : vector<64x16x3xf32> to vector<64x16x1xf32>
    %132 = vector.extract_strided_slice %6 {offsets = [13, 0], sizes = [1, 32], strides = [1, 1]} : vector<32x128xf32> to vector<1x32xf32>
    %133 = vector.shape_cast %132 : vector<1x32xf32> to vector<32xf32>
    %134 = vector.shape_cast %133 : vector<32xf32> to vector<1x1x32xf32>
    %135 = vector.broadcast %131 : vector<64x16x1xf32> to vector<64x16x32xf32>
    %136 = vector.broadcast %134 : vector<1x1x32xf32> to vector<64x16x32xf32>
    %137 = arith.mulf %135, %136 : vector<64x16x32xf32>
    %138 = arith.addf %130, %137 : vector<64x16x32xf32>
    %139 = vector.extract_strided_slice %6 {offsets = [14, 0], sizes = [1, 32], strides = [1, 1]} : vector<32x128xf32> to vector<1x32xf32>
    %140 = vector.shape_cast %139 : vector<1x32xf32> to vector<32xf32>
    %141 = vector.shape_cast %140 : vector<32xf32> to vector<1x1x32xf32>
    %142 = vector.broadcast %141 : vector<1x1x32xf32> to vector<64x16x32xf32>
    %143 = arith.addf %138, %142 : vector<64x16x32xf32>
    %144 = vector.shape_cast %40 : vector<64x32xf32> to vector<64x1x32xf32>
    %145 = vector.broadcast %144 : vector<64x1x32xf32> to vector<64x16x32xf32>
    %146 = arith.subf %103, %145 : vector<64x16x32xf32>
    %147 = arith.addf %146, %143 : vector<64x16x32xf32>
    %148 = vector.extract_strided_slice %6 {offsets = [15, 0], sizes = [1, 32], strides = [1, 1]} : vector<32x128xf32> to vector<1x32xf32>
    %149 = vector.shape_cast %148 : vector<1x32xf32> to vector<32xf32>
    %150 = vector.shape_cast %149 : vector<32xf32> to vector<1x1x32xf32>
    %151 = vector.broadcast %150 : vector<1x1x32xf32> to vector<64x16x32xf32>
    %152 = arith.mulf %147, %151 : vector<64x16x32xf32>
    %153 = vector.extract_strided_slice %6 {offsets = [16, 0], sizes = [1, 32], strides = [1, 1]} : vector<32x128xf32> to vector<1x32xf32>
    %154 = vector.shape_cast %153 : vector<1x32xf32> to vector<32xf32>
    %155 = vector.shape_cast %154 : vector<32xf32> to vector<1x1x32xf32>
    %156 = vector.broadcast %155 : vector<1x1x32xf32> to vector<64x16x32xf32>
    %157 = arith.addf %152, %156 : vector<64x16x32xf32>
    %cst_20 = arith.constant 0.000000e+00 : f32
    %158 = vector.broadcast %cst_20 : f32 to vector<64x16x32xf32>
    %159 = arith.maximumf %157, %158 : vector<64x16x32xf32>
    %160 = vector.shape_cast %159 : vector<64x16x32xf32> to vector<1024x32xf32>
    %cst_21 = arith.constant dense<0.000000e+00> : vector<1024x32xf32>
    %161 = tpu.matmul %160, %10, %cst_21 {dimension_numbers = #tpu.dot_dimension_numbers<[1], [0], [0], [1], [0, 0, 1, 1], [], []>} : vector<1024x32xf32>, vector<32x32xf32>, vector<1024x32xf32> -> vector<1024x32xf32>
    %162 = vector.extract_strided_slice %6 {offsets = [17, 0], sizes = [1, 32], strides = [1, 1]} : vector<32x128xf32> to vector<1x32xf32>
    %163 = vector.shape_cast %162 : vector<1x32xf32> to vector<32xf32>
    %164 = vector.shape_cast %163 : vector<32xf32> to vector<1x32xf32>
    %165 = vector.broadcast %164 : vector<1x32xf32> to vector<1024x32xf32>
    %166 = arith.addf %161, %165 : vector<1024x32xf32>
    %167 = vector.extract_strided_slice %6 {offsets = [18, 0], sizes = [1, 32], strides = [1, 1]} : vector<32x128xf32> to vector<1x32xf32>
    %168 = vector.shape_cast %167 : vector<1x32xf32> to vector<32xf32>
    %169 = vector.shape_cast %168 : vector<32xf32> to vector<1x32xf32>
    %170 = vector.broadcast %169 : vector<1x32xf32> to vector<1024x32xf32>
    %171 = arith.mulf %166, %170 : vector<1024x32xf32>
    %172 = vector.extract_strided_slice %6 {offsets = [19, 0], sizes = [1, 32], strides = [1, 1]} : vector<32x128xf32> to vector<1x32xf32>
    %173 = vector.shape_cast %172 : vector<1x32xf32> to vector<32xf32>
    %174 = vector.shape_cast %173 : vector<32xf32> to vector<1x32xf32>
    %175 = vector.broadcast %174 : vector<1x32xf32> to vector<1024x32xf32>
    %176 = arith.addf %171, %175 : vector<1024x32xf32>
    %cst_22 = arith.constant 0.000000e+00 : f32
    %177 = vector.broadcast %cst_22 : f32 to vector<1024x32xf32>
    %178 = arith.maximumf %176, %177 : vector<1024x32xf32>
    %cst_23 = arith.constant dense<0.000000e+00> : vector<1024x32xf32>
    %179 = tpu.matmul %178, %11, %cst_23 {dimension_numbers = #tpu.dot_dimension_numbers<[1], [0], [0], [1], [0, 0, 1, 1], [], []>} : vector<1024x32xf32>, vector<32x32xf32>, vector<1024x32xf32> -> vector<1024x32xf32>
    %180 = vector.extract_strided_slice %6 {offsets = [20, 0], sizes = [1, 32], strides = [1, 1]} : vector<32x128xf32> to vector<1x32xf32>
    %181 = vector.shape_cast %180 : vector<1x32xf32> to vector<32xf32>
    %182 = vector.shape_cast %181 : vector<32xf32> to vector<1x32xf32>
    %183 = vector.broadcast %182 : vector<1x32xf32> to vector<1024x32xf32>
    %184 = arith.addf %179, %183 : vector<1024x32xf32>
    %185 = vector.shape_cast %184 : vector<1024x32xf32> to vector<64x16x32xf32>
    %cst_24 = arith.constant dense<0xFF800000> : vector<64x32xf32>
    %186 = vector.multi_reduction <maximumf>, %185, %cst_24 [1] : vector<64x16x32xf32> to vector<64x32xf32>
    %187 = vector.shape_cast %186 : vector<64x32xf32> to vector<64x1x32xf32>
    %188 = vector.broadcast %187 : vector<64x1x32xf32> to vector<64x16x32xf32>
    %189 = arith.subf %185, %188 : vector<64x16x32xf32>
    %190 = math.exp %189 : vector<64x16x32xf32>
    %cst_25 = arith.constant dense<0.000000e+00> : vector<64x32xf32>
    %191 = vector.multi_reduction <add>, %190, %cst_25 [1] : vector<64x16x32xf32> to vector<64x32xf32>
    %192 = tpu.reciprocal %191 {approx = true} : vector<64x32xf32> -> vector<64x32xf32>
    %193 = arith.addf %104, %143 : vector<64x16x32xf32>
    %194 = arith.mulf %193, %190 : vector<64x16x32xf32>
    %cst_26 = arith.constant dense<0.000000e+00> : vector<64x32xf32>
    %195 = vector.multi_reduction <add>, %194, %cst_26 [1] : vector<64x16x32xf32> to vector<64x32xf32>
    %196 = arith.mulf %195, %192 : vector<64x32xf32>
    %197 = vector.extract_strided_slice %6 {offsets = [21, 0], sizes = [1, 32], strides = [1, 1]} : vector<32x128xf32> to vector<1x32xf32>
    %198 = vector.shape_cast %197 : vector<1x32xf32> to vector<32xf32>
    %199 = vector.shape_cast %198 : vector<32xf32> to vector<1x32xf32>
    %200 = vector.broadcast %199 : vector<1x32xf32> to vector<64x32xf32>
    %201 = arith.mulf %196, %200 : vector<64x32xf32>
    %202 = vector.extract_strided_slice %6 {offsets = [22, 0], sizes = [1, 32], strides = [1, 1]} : vector<32x128xf32> to vector<1x32xf32>
    %203 = vector.shape_cast %202 : vector<1x32xf32> to vector<32xf32>
    %204 = vector.shape_cast %203 : vector<32xf32> to vector<1x32xf32>
    %205 = vector.broadcast %204 : vector<1x32xf32> to vector<64x32xf32>
    %206 = arith.addf %201, %205 : vector<64x32xf32>
    %cst_27 = arith.constant 0.000000e+00 : f32
    %207 = vector.broadcast %cst_27 : f32 to vector<64x32xf32>
    %208 = arith.maximumf %206, %207 : vector<64x32xf32>
    %cst_28 = arith.constant dense<0.000000e+00> : vector<64x32xf32>
    %209 = tpu.matmul %208, %12, %cst_28 {dimension_numbers = #tpu.dot_dimension_numbers<[1], [0], [0], [1], [0, 0, 1, 1], [], []>} : vector<64x32xf32>, vector<32x32xf32>, vector<64x32xf32> -> vector<64x32xf32>
    %210 = vector.extract_strided_slice %6 {offsets = [23, 0], sizes = [1, 32], strides = [1, 1]} : vector<32x128xf32> to vector<1x32xf32>
    %211 = vector.shape_cast %210 : vector<1x32xf32> to vector<32xf32>
    %212 = vector.shape_cast %211 : vector<32xf32> to vector<1x32xf32>
    %213 = vector.broadcast %212 : vector<1x32xf32> to vector<64x32xf32>
    %214 = arith.mulf %209, %213 : vector<64x32xf32>
    %215 = vector.extract_strided_slice %6 {offsets = [24, 0], sizes = [1, 32], strides = [1, 1]} : vector<32x128xf32> to vector<1x32xf32>
    %216 = vector.shape_cast %215 : vector<1x32xf32> to vector<32xf32>
    %217 = vector.shape_cast %216 : vector<32xf32> to vector<1x32xf32>
    %218 = vector.broadcast %217 : vector<1x32xf32> to vector<64x32xf32>
    %219 = arith.addf %214, %218 : vector<64x32xf32>
    %220 = arith.addf %219, %1 : vector<64x32xf32>
    %cst_29 = arith.constant 0.000000e+00 : f32
    %221 = vector.broadcast %cst_29 : f32 to vector<64x32xf32>
    %222 = arith.maximumf %220, %221 : vector<64x32xf32>
    %c0_30 = arith.constant 0 : index
    %c0_31 = arith.constant 0 : index
    %223 = vector.load %arg8[%c0_30, %c0_31] : memref<64x32xf32, #tpu.memory_space<vmem>>, vector<64x32xf32>
    tpu.vector_store %arg8[%c0_30, %c0_31], %222 {strides = array<i32>} : memref<64x32xf32, #tpu.memory_space<vmem>>, vector<64x32xf32>,
    return
  }
  func.func @transform_0(%arg0: i32) -> (i32, i32) {
    %c0_i32 = arith.constant 0 : i32
    %c0_i32_0 = arith.constant 0 : i32
    return %arg0, %c0_i32 : i32, i32
  }
  func.func @transform_1(%arg0: i32) -> (i32, i32) {
    %c0_i32 = arith.constant 0 : i32
    %c0_i32_0 = arith.constant 0 : i32
    return %arg0, %c0_i32 : i32, i32
  }
  func.func @transform_2(%arg0: i32) -> (i32, i32) {
    %c0_i32 = arith.constant 0 : i32
    %c0_i32_0 = arith.constant 0 : i32
    return %arg0, %c0_i32 : i32, i32
  }
  func.func @transform_3(%arg0: i32) -> (i32, i32) {
    %c0_i32 = arith.constant 0 : i32
    %c0_i32_0 = arith.constant 0 : i32
    %c0_i32_1 = arith.constant 0 : i32
    return %c0_i32, %c0_i32_0 : i32, i32
  }
  func.func @transform_4(%arg0: i32) -> (i32, i32) {
    %c0_i32 = arith.constant 0 : i32
    %c0_i32_0 = arith.constant 0 : i32
    %c0_i32_1 = arith.constant 0 : i32
    return %c0_i32, %c0_i32_0 : i32, i32
  }
  func.func @transform_5(%arg0: i32) -> (i32, i32) {
    %c0_i32 = arith.constant 0 : i32
    %c0_i32_0 = arith.constant 0 : i32
    %c0_i32_1 = arith.constant 0 : i32
    return %c0_i32, %c0_i32_0 : i32, i32
  }
  func.func @transform_6(%arg0: i32) -> (i32, i32) {
    %c0_i32 = arith.constant 0 : i32
    %c0_i32_0 = arith.constant 0 : i32
    %c0_i32_1 = arith.constant 0 : i32
    return %c0_i32, %c0_i32_0 : i32, i32
  }
  func.func @transform_7(%arg0: i32) -> (i32, i32) {
    %c0_i32 = arith.constant 0 : i32
    %c0_i32_0 = arith.constant 0 : i32
    return %arg0, %c0_i32 : i32, i32
  }
}

</mosaic_0001>

<llo_original>
// kernel: tpu_custom_call.1
$region0: #{tpu_custom_call.1}
  #allocation0 [shape = 'u32[]', space=smem, size = 0x4, offset = 0x4, fixed_abs, tag = 'smem constant byte address 0x4 - core index']
  #allocation1 [shape = 'u32[144,128]{1,0:T(1,128)}', space=vmem, size = 0x12000, scoped, tag = 'internal scratch']
  %s0 = inlined_call_operand.vmem [shape: f32[64,3], index: 0, kind: input, shape index: {}]
  %s1 = inlined_call_operand.vmem [shape: f32[64,32], index: 1, kind: input, shape index: {}]
  %s2 = inlined_call_operand.vmem [shape: s32[1024,1], index: 2, kind: input, shape index: {}]
  %s3 = inlined_call_operand.vmem [shape: f32[64,3], index: 3, kind: input, shape index: {}]
  %s4 = inlined_call_operand.vmem [shape: f32[64,32], index: 4, kind: input, shape index: {}]
  %s5 = inlined_call_operand.vmem [shape: f32[64,128], index: 5, kind: input, shape index: {}]
  %s6 = inlined_call_operand.vmem [shape: f32[32,128], index: 6, kind: input, shape index: {}]
  %s7 = inlined_call_operand.vmem [shape: f32[64,32], index: 7, kind: output, shape index: {}]
  %s8 = sld [smem:[#allocation0]]
  $region38: #{tpu_custom_call.1} parent=0
    _
  %s10 = ssub.s32 1, %s8
  %s11 = scalar_select 0, %s10, %s8
  // Predicated region
  $region2: #{tpu_custom_call.1} parent=0 // pred_check
    _
  $region3: #{tpu_custom_call.1} parent=0 // pred_check_branch
    %13 = sbr.rel (0) target = $region5
  $region4: #{tpu_custom_call.1} parent=0 // pred_region
    _
  $region5: #{tpu_custom_call.1} parent=0 // pred_fallthru
    _
  // Predicated region
  $region6: #{tpu_custom_call.1} parent=0 // pred_check
    _
  $region7: #{tpu_custom_call.1} parent=0 // pred_check_branch
    %15 = sbr.rel (0) target = $region9
  $region8: #{tpu_custom_call.1} parent=0 // pred_region
    _
  $region9: #{tpu_custom_call.1} parent=0 // pred_fallthru
    _
  // Predicated region
  $region10: #{tpu_custom_call.1} parent=0 // pred_check
    _
  $region11: #{tpu_custom_call.1} parent=0 // pred_check_branch
    %17 = sbr.rel (0) target = $region13
  $region12: #{tpu_custom_call.1} parent=0 // pred_region
    _
  $region13: #{tpu_custom_call.1} parent=0 // pred_fallthru
    _
  // Predicated region
  $region14: #{tpu_custom_call.1} parent=0 // pred_check
    _
  $region15: #{tpu_custom_call.1} parent=0 // pred_check_branch
    %19 = sbr.rel (0) target = $region17
  $region16: #{tpu_custom_call.1} parent=0 // pred_region
    _
  $region17: #{tpu_custom_call.1} parent=0 // pred_fallthru
    _
  // Predicated region
  $region18: #{tpu_custom_call.1} parent=0 // pred_check
    _
  $region19: #{tpu_custom_call.1} parent=0 // pred_check_branch
    %21 = sbr.rel (0) target = $region21
  $region20: #{tpu_custom_call.1} parent=0 // pred_region
    _
  $region21: #{tpu_custom_call.1} parent=0 // pred_fallthru
    _
  // Predicated region
  $region22: #{tpu_custom_call.1} parent=0 // pred_check
    _
  $region23: #{tpu_custom_call.1} parent=0 // pred_check_branch
    %23 = sbr.rel (0) target = $region25
  $region24: #{tpu_custom_call.1} parent=0 // pred_region
    _
  $region25: #{tpu_custom_call.1} parent=0 // pred_fallthru
    _
  // Predicated region
  $region26: #{tpu_custom_call.1} parent=0 // pred_check
    _
  $region27: #{tpu_custom_call.1} parent=0 // pred_check_branch
    %25 = sbr.rel (0) target = $region29
  $region28: #{tpu_custom_call.1} parent=0 // pred_region
    _
  $region29: #{tpu_custom_call.1} parent=0 // pred_fallthru
    _
  %v27 = vld [vmem:[%s4] sm:$0xff]
  %v28 = vld [vmem:[%s4 + $0x8] sm:$0xff]
  %v29 = vld [vmem:[%s4 + $0x10] sm:$0xff]
  %v30 = vld [vmem:[%s4 + $0x18] sm:$0xff]
  %v31 = vld [vmem:[%s4 + $0x20] sm:$0xff]
  %v32 = vld [vmem:[%s4 + $0x28] sm:$0xff]
  %v33 = vld [vmem:[%s4 + $0x30] sm:$0xff]
  %v34 = vld [vmem:[%s4 + $0x38] sm:$0xff]
  %v35 = vld [vmem:[%s1] sm:$0xff]
  %v36 = vld [vmem:[%s1 + $0x8] sm:$0xff]
  %v37 = vld [vmem:[%s1 + $0x10] sm:$0xff]
  %v38 = vld [vmem:[%s1 + $0x18] sm:$0xff]
  %v39 = vld [vmem:[%s1 + $0x20] sm:$0xff]
  %v40 = vld [vmem:[%s1 + $0x28] sm:$0xff]
  %v41 = vld [vmem:[%s1 + $0x30] sm:$0xff]
  %v42 = vld [vmem:[%s1 + $0x38] sm:$0xff]
  %v43 = vld [vmem:[%s3] sm:$0xff]
  %v44 = vld [vmem:[%s3 + $0x8] sm:$0xff]
  %v45 = vld [vmem:[%s3 + $0x10] sm:$0xff]
  %v46 = vld [vmem:[%s3 + $0x18] sm:$0xff]
  %v47 = vld [vmem:[%s3 + $0x20] sm:$0xff]
  %v48 = vld [vmem:[%s3 + $0x28] sm:$0xff]
  %v49 = vld [vmem:[%s3 + $0x30] sm:$0xff]
  %v50 = vld [vmem:[%s3 + $0x38] sm:$0xff]
  %v51 = vld [vmem:[%s0] sm:$0xff]
  %v52 = vld [vmem:[%s0 + $0x8] sm:$0xff]
  %v53 = vld [vmem:[%s0 + $0x10] sm:$0xff]
  %v54 = vld [vmem:[%s0 + $0x18] sm:$0xff]
  %v55 = vld [vmem:[%s0 + $0x20] sm:$0xff]
  %v56 = vld [vmem:[%s0 + $0x28] sm:$0xff]
  %v57 = vld [vmem:[%s0 + $0x30] sm:$0xff]
  %v58 = vld [vmem:[%s0 + $0x38] sm:$0xff]
  %v59 = vld [vmem:[%s2] sm:$0xff]
  %v60 = vld [vmem:[%s2 + $0x8] sm:$0xff]
  %v61 = vld [vmem:[%s2 + $0x10] sm:$0xff]
  %v62 = vld [vmem:[%s2 + $0x18] sm:$0xff]
  %v63 = vld [vmem:[%s2 + $0x20] sm:$0xff]
  %v64 = vld [vmem:[%s2 + $0x28] sm:$0xff]
  %v65 = vld [vmem:[%s2 + $0x30] sm:$0xff]
  %v66 = vld [vmem:[%s2 + $0x38] sm:$0xff]
  %v67 = vld [vmem:[%s2 + $0x40] sm:$0xff]
  %v68 = vld [vmem:[%s2 + $0x48] sm:$0xff]
  %v69 = vld [vmem:[%s2 + $0x50] sm:$0xff]
  %v70 = vld [vmem:[%s2 + $0x58] sm:$0xff]
  %v71 = vld [vmem:[%s2 + $0x60] sm:$0xff]
  %v72 = vld [vmem:[%s2 + $0x68] sm:$0xff]
  %v73 = vld [vmem:[%s2 + $0x70] sm:$0xff]
  %v74 = vld [vmem:[%s2 + $0x78] sm:$0xff]
  %v75 = vld [vmem:[%s2 + $0x80] sm:$0xff]
  %v76 = vld [vmem:[%s2 + $0x88] sm:$0xff]
  %v77 = vld [vmem:[%s2 + $0x90] sm:$0xff]
  %v78 = vld [vmem:[%s2 + $0x98] sm:$0xff]
  %v79 = vld [vmem:[%s2 + $0xa0] sm:$0xff]
  %v80 = vld [vmem:[%s2 + $0xa8] sm:$0xff]
  %v81 = vld [vmem:[%s2 + $0xb0] sm:$0xff]
  %v82 = vld [vmem:[%s2 + $0xb8] sm:$0xff]
  %v83 = vld [vmem:[%s2 + $0xc0] sm:$0xff]
  %v84 = vld [vmem:[%s2 + $0xc8] sm:$0xff]
  %v85 = vld [vmem:[%s2 + $0xd0] sm:$0xff]
  %v86 = vld [vmem:[%s2 + $0xd8] sm:$0xff]
  %v87 = vld [vmem:[%s2 + $0xe0] sm:$0xff]
  %v88 = vld [vmem:[%s2 + $0xe8] sm:$0xff]
  %v89 = vld [vmem:[%s2 + $0xf0] sm:$0xff]
  %v90 = vld [vmem:[%s2 + $0xf8] sm:$0xff]
  %v91 = vld [vmem:[%s2 + $0x100] sm:$0xff]
  %v92 = vld [vmem:[%s2 + $0x108] sm:$0xff]
  %v93 = vld [vmem:[%s2 + $0x110] sm:$0xff]
  %v94 = vld [vmem:[%s2 + $0x118] sm:$0xff]
  %v95 = vld [vmem:[%s2 + $0x120] sm:$0xff]
  %v96 = vld [vmem:[%s2 + $0x128] sm:$0xff]
  %v97 = vld [vmem:[%s2 + $0x130] sm:$0xff]
  %v98 = vld [vmem:[%s2 + $0x138] sm:$0xff]
  %v99 = vld [vmem:[%s2 + $0x140] sm:$0xff]
  %v100 = vld [vmem:[%s2 + $0x148] sm:$0xff]
  %v101 = vld [vmem:[%s2 + $0x150] sm:$0xff]
  %v102 = vld [vmem:[%s2 + $0x158] sm:$0xff]
  %v103 = vld [vmem:[%s2 + $0x160] sm:$0xff]
  %v104 = vld [vmem:[%s2 + $0x168] sm:$0xff]
  %v105 = vld [vmem:[%s2 + $0x170] sm:$0xff]
  %v106 = vld [vmem:[%s2 + $0x178] sm:$0xff]
  %v107 = vld [vmem:[%s2 + $0x180] sm:$0xff]
  %v108 = vld [vmem:[%s2 + $0x188] sm:$0xff]
  %v109 = vld [vmem:[%s2 + $0x190] sm:$0xff]
  %v110 = vld [vmem:[%s2 + $0x198] sm:$0xff]
  %v111 = vld [vmem:[%s2 + $0x1a0] sm:$0xff]
  %v112 = vld [vmem:[%s2 + $0x1a8] sm:$0xff]
  %v113 = vld [vmem:[%s2 + $0x1b0] sm:$0xff]
  %v114 = vld [vmem:[%s2 + $0x1b8] sm:$0xff]
  %v115 = vld [vmem:[%s2 + $0x1c0] sm:$0xff]
  %v116 = vld [vmem:[%s2 + $0x1c8] sm:$0xff]
  %v117 = vld [vmem:[%s2 + $0x1d0] sm:$0xff]
  %v118 = vld [vmem:[%s2 + $0x1d8] sm:$0xff]
  %v119 = vld [vmem:[%s2 + $0x1e0] sm:$0xff]
  %v120 = vld [vmem:[%s2 + $0x1e8] sm:$0xff]
  %v121 = vld [vmem:[%s2 + $0x1f0] sm:$0xff]
  %v122 = vld [vmem:[%s2 + $0x1f8] sm:$0xff]
  %v123 = vld [vmem:[%s2 + $0x200] sm:$0xff]
  %v124 = vld [vmem:[%s2 + $0x208] sm:$0xff]
  %v125 = vld [vmem:[%s2 + $0x210] sm:$0xff]
  %v126 = vld [vmem:[%s2 + $0x218] sm:$0xff]
  %v127 = vld [vmem:[%s2 + $0x220] sm:$0xff]
  %v128 = vld [vmem:[%s2 + $0x228] sm:$0xff]
  %v129 = vld [vmem:[%s2 + $0x230] sm:$0xff]
  %v130 = vld [vmem:[%s2 + $0x238] sm:$0xff]
  %v131 = vld [vmem:[%s2 + $0x240] sm:$0xff]
  %v132 = vld [vmem:[%s2 + $0x248] sm:$0xff]
  %v133 = vld [vmem:[%s2 + $0x250] sm:$0xff]
  %v134 = vld [vmem:[%s2 + $0x258] sm:$0xff]
  %v135 = vld [vmem:[%s2 + $0x260] sm:$0xff]
  %v136 = vld [vmem:[%s2 + $0x268] sm:$0xff]
  %v137 = vld [vmem:[%s2 + $0x270] sm:$0xff]
  %v138 = vld [vmem:[%s2 + $0x278] sm:$0xff]
  %v139 = vld [vmem:[%s2 + $0x280] sm:$0xff]
  %v140 = vld [vmem:[%s2 + $0x288] sm:$0xff]
  %v141 = vld [vmem:[%s2 + $0x290] sm:$0xff]
  %v142 = vld [vmem:[%s2 + $0x298] sm:$0xff]
  %v143 = vld [vmem:[%s2 + $0x2a0] sm:$0xff]
  %v144 = vld [vmem:[%s2 + $0x2a8] sm:$0xff]
  %v145 = vld [vmem:[%s2 + $0x2b0] sm:$0xff]
  %v146 = vld [vmem:[%s2 + $0x2b8] sm:$0xff]
  %v147 = vld [vmem:[%s2 + $0x2c0] sm:$0xff]
  %v148 = vld [vmem:[%s2 + $0x2c8] sm:$0xff]
  %v149 = vld [vmem:[%s2 + $0x2d0] sm:$0xff]
  %v150 = vld [vmem:[%s2 + $0x2d8] sm:$0xff]
  %v151 = vld [vmem:[%s2 + $0x2e0] sm:$0xff]
  %v152 = vld [vmem:[%s2 + $0x2e8] sm:$0xff]
  %v153 = vld [vmem:[%s2 + $0x2f0] sm:$0xff]
  %v154 = vld [vmem:[%s2 + $0x2f8] sm:$0xff]
  %v155 = vld [vmem:[%s2 + $0x300] sm:$0xff]
  %v156 = vld [vmem:[%s2 + $0x308] sm:$0xff]
  %v157 = vld [vmem:[%s2 + $0x310] sm:$0xff]
  %v158 = vld [vmem:[%s2 + $0x318] sm:$0xff]
  %v159 = vld [vmem:[%s2 + $0x320] sm:$0xff]
  %v160 = vld [vmem:[%s2 + $0x328] sm:$0xff]
  %v161 = vld [vmem:[%s2 + $0x330] sm:$0xff]
  %v162 = vld [vmem:[%s2 + $0x338] sm:$0xff]
  %v163 = vld [vmem:[%s2 + $0x340] sm:$0xff]
  %v164 = vld [vmem:[%s2 + $0x348] sm:$0xff]
  %v165 = vld [vmem:[%s2 + $0x350] sm:$0xff]
  %v166 = vld [vmem:[%s2 + $0x358] sm:$0xff]
  %v167 = vld [vmem:[%s2 + $0x360] sm:$0xff]
  %v168 = vld [vmem:[%s2 + $0x368] sm:$0xff]
  %v169 = vld [vmem:[%s2 + $0x370] sm:$0xff]
  %v170 = vld [vmem:[%s2 + $0x378] sm:$0xff]
  %v171 = vld [vmem:[%s2 + $0x380] sm:$0xff]
  %v172 = vld [vmem:[%s2 + $0x388] sm:$0xff]
  %v173 = vld [vmem:[%s2 + $0x390] sm:$0xff]
  %v174 = vld [vmem:[%s2 + $0x398] sm:$0xff]
  %v175 = vld [vmem:[%s2 + $0x3a0] sm:$0xff]
  %v176 = vld [vmem:[%s2 + $0x3a8] sm:$0xff]
  %v177 = vld [vmem:[%s2 + $0x3b0] sm:$0xff]
  %v178 = vld [vmem:[%s2 + $0x3b8] sm:$0xff]
  %v179 = vld [vmem:[%s2 + $0x3c0] sm:$0xff]
  %v180 = vld [vmem:[%s2 + $0x3c8] sm:$0xff]
  %v181 = vld [vmem:[%s2 + $0x3d0] sm:$0xff]
  %v182 = vld [vmem:[%s2 + $0x3d8] sm:$0xff]
  %v183 = vld [vmem:[%s2 + $0x3e0] sm:$0xff]
  %v184 = vld [vmem:[%s2 + $0x3e8] sm:$0xff]
  %v185 = vld [vmem:[%s2 + $0x3f0] sm:$0xff]
  %v186 = vld [vmem:[%s2 + $0x3f8] sm:$0xff]
  %v187 = vld [vmem:[%s5] sm:$0xff]
  %v188 = vld [vmem:[%s5 + $0x8] sm:$0xff]
  %v189 = vld [vmem:[%s5 + $0x10] sm:$0xff]
  %v190 = vld [vmem:[%s5 + $0x18] sm:$0xff]
  %v191 = vld [vmem:[%s5 + $0x20] sm:$0xff]
  %v192 = vld [vmem:[%s5 + $0x28] sm:$0xff]
  %v193 = vld [vmem:[%s5 + $0x30] sm:$0xff]
  %v194 = vld [vmem:[%s5 + $0x38] sm:$0xff]
  %v195 = vld [vmem:[%s6] sm:$0xff]
  %v196 = vld [vmem:[%s6 + $0x8] sm:$0xff]
  %v197 = vld [vmem:[%s6 + $0x10] sm:$0xff]
  %v198 = vld [vmem:[%s6 + $0x18] sm:$0xff]
  %vm199 = vcmask 261120
  %v201 = vsel %vm199, %v27, 0
  %v204 = vsel %vm199, %v28, 0
  %v207 = vsel %vm199, %v29, 0
  %v210 = vsel %vm199, %v30, 0
  %v213 = vsel %vm199, %v31, 0
  %v216 = vsel %vm199, %v32, 0
  %v219 = vsel %vm199, %v33, 0
  %v222 = vsel %vm199, %v34, 0
  %224 = vmatprep.subr.mxu0 0.0
  %225 = vmatpush1.msra.mxu0 %v187
  %226 = vmatprep.subr.mxu0 0.0
  %227 = vmatpush1.msra.mxu0 %v188
  %228 = vmatprep.subr.mxu0 0.0
  %229 = vmatpush1.msra.mxu0 %v189
  %230 = vmatprep.subr.mxu0 0.0
  %231 = vmatpush1.msra.mxu0 %v190
  %232 = vmatprep.subr.mxu0 0.0
  %233 = vmatpush1.msra.mxu0 0.0
  %234 = vmatprep.subr.mxu0 0.0
  %235 = vmatpush1.msra.mxu0 0.0
  %236 = vmatprep.subr.mxu0 0.0
  %237 = vmatpush1.msra.mxu0 0.0
  %238 = vmatprep.subr.mxu0 0.0
  %239 = vmatpush1.msra.mxu0 0.0
  %240 = vmatprep.subr.mxu0 0.0
  %241 = vmatpush1.msra.mxu0 0.0
  %242 = vmatprep.subr.mxu0 0.0
  %243 = vmatpush1.msra.mxu0 0.0
  %244 = vmatprep.subr.mxu0 0.0
  %245 = vmatpush1.msra.mxu0 0.0
  %246 = vmatprep.subr.mxu0 0.0
  %247 = vmatpush1.msra.mxu0 0.0
  %248 = vmatprep.subr.mxu0 0.0
  %249 = vmatpush1.msra.mxu0 0.0
  %250 = vmatprep.subr.mxu0 0.0
  %251 = vmatpush1.msra.mxu0 0.0
  %252 = vmatprep.subr.mxu0 0.0
  %253 = vmatpush1.msra.mxu0 0.0
  %254 = vmatprep.subr.mxu0 0.0
  %255 = vmatpush1.msra.mxu0 0.0
  %256 = vmatprep.subr.mxu0 0.0
  %257 = vmatpush1.msra.mxu0 0.0
  %258 = vmatprep.subr.mxu0 0.0
  %259 = vmatpush1.msra.mxu0 0.0
  %260 = vmatprep.subr.mxu0 0.0
  %261 = vmatpush1.msra.mxu0 0.0
  %262 = vmatprep.subr.mxu0 0.0
  %263 = vmatpush1.msra.mxu0 0.0
  %264 = vmatprep.subr.mxu0 0.0
  %265 = vmatpush1.msra.mxu0 0.0
  %266 = vmatprep.subr.mxu0 0.0
  %267 = vmatpush1.msra.mxu0 0.0
  %268 = vmatprep.subr.mxu0 0.0
  %269 = vmatpush1.msra.mxu0 0.0
  %270 = vmatprep.subr.mxu0 0.0
  %271 = vmatpush1.msra.mxu0 0.0
  %272 = vmatprep.subr.mxu0 0.0
  %273 = vmatpush1.msra.mxu0 0.0
  %274 = vmatprep.subr.mxu0 0.0
  %275 = vmatpush1.msra.mxu0 0.0
  %276 = vmatprep.subr.mxu0 0.0
  %277 = vmatpush1.msra.mxu0 0.0
  %278 = vmatprep.subr.mxu0 0.0
  %279 = vmatpush1.msra.mxu0 0.0
  %280 = vmatprep.subr.mxu0 0.0
  %281 = vmatpush1.msra.mxu0 0.0
  %282 = vmatprep.subr.mxu0 0.0
  %283 = vmatpush1.msra.mxu0 0.0
  %284 = vmatprep.subr.mxu0 0.0
  %285 = vmatpush1.msra.mxu0 0.0
  %286 = vmatprep.subr.mxu0 0.0
  %287 = vmatpush1.msra.mxu0 0.0
  %288 = vmatprep.mubr.f32.mxu0 0.0
  %289 = vmatmul.mubr.f32.gmra.mrb[0].mxu0 %v201
  %v290 = vpop.f32.mrb[0].mxu0
  %v291 = vadd.f32 0.0, %v290
  %v292 = vpop.f32.mrb[0].mxu0
  %293 = vmatprep.mubr.f32.mxu0 0.0
  %294 = vmatmul.mubr.f32.gmra.mrb[0].mxu0 %v204
  %v295 = vpop.f32.mrb[0].mxu0
  %v296 = vadd.f32 0.0, %v295
  %v297 = vpop.f32.mrb[0].mxu0
  %298 = vmatprep.mubr.f32.mxu0 0.0
  %299 = vmatmul.mubr.f32.gmra.mrb[0].mxu0 %v207
  %v300 = vpop.f32.mrb[0].mxu0
  %v301 = vadd.f32 0.0, %v300
  %v302 = vpop.f32.mrb[0].mxu0
  %303 = vmatprep.mubr.f32.mxu0 0.0
  %304 = vmatmul.mubr.f32.gmra.mrb[0].mxu0 %v210
  %v305 = vpop.f32.mrb[0].mxu0
  %v306 = vadd.f32 0.0, %v305
  %v307 = vpop.f32.mrb[0].mxu0
  %308 = vmatprep.mubr.f32.mxu0 0.0
  %309 = vmatmul.mubr.f32.gmra.mrb[0].mxu0 %v213
  %v310 = vpop.f32.mrb[0].mxu0
  %v311 = vadd.f32 0.0, %v310
  %v312 = vpop.f32.mrb[0].mxu0
  %313 = vmatprep.mubr.f32.mxu0 0.0
  %314 = vmatmul.mubr.f32.gmra.mrb[0].mxu0 %v216
  %v315 = vpop.f32.mrb[0].mxu0
  %v316 = vadd.f32 0.0, %v315
  %v317 = vpop.f32.mrb[0].mxu0
  %318 = vmatprep.mubr.f32.mxu0 0.0
  %319 = vmatmul.mubr.f32.gmra.mrb[0].mxu0 %v219
  %v320 = vpop.f32.mrb[0].mxu0
  %v321 = vadd.f32 0.0, %v320
  %v322 = vpop.f32.mrb[0].mxu0
  %323 = vmatprep.mubr.f32.mxu0 0.0
  %324 = vmatmul.mubr.f32.gmra.mrb[0].mxu0 %v222
  %v325 = vpop.f32.mrb[0].mxu0
  %v326 = vadd.f32 0.0, %v325
  %v327 = vpop.f32.mrb[0].mxu0
  %328 = vdwg.mxu0
  %v329 = vlaneseq
  %v330 = vshrl.u32 %v329, 7
  %v331 = vsub.s32 0, %v330
  %v332 = vrot.slane %v195, %v331
  %v333 = vmul.f32 %v291, %v332
  %v334 = vmul.f32 %v296, %v332
  %v335 = vmul.f32 %v301, %v332
  %v336 = vmul.f32 %v306, %v332
  %v337 = vmul.f32 %v311, %v332
  %v338 = vmul.f32 %v316, %v332
  %v339 = vmul.f32 %v321, %v332
  %v340 = vmul.f32 %v326, %v332
  %v341 = vlaneseq
  %v342 = vshrl.u32 %v341, 7
  %v343 = vsub.s32 1, %v342
  %v344 = vrot.slane %v195, %v343
  %v345 = vadd.f32 %v333, %v344
  %v346 = vadd.f32 %v334, %v344
  %v347 = vadd.f32 %v335, %v344
  %v348 = vadd.f32 %v336, %v344
  %v349 = vadd.f32 %v337, %v344
  %v350 = vadd.f32 %v338, %v344
  %v351 = vadd.f32 %v339, %v344
  %v352 = vadd.f32 %v340, %v344
  %v353 = vmax.f32 %v345, 0.0
  %v354 = vmax.f32 %v346, 0.0
  %v355 = vmax.f32 %v347, 0.0
  %v356 = vmax.f32 %v348, 0.0
  %v357 = vmax.f32 %v349, 0.0
  %v358 = vmax.f32 %v350, 0.0
  %v359 = vmax.f32 %v351, 0.0
  %v360 = vmax.f32 %v352, 0.0
  %v362 = vsel %vm199, %v35, 0
  %v365 = vsel %vm199, %v36, 0
  %v368 = vsel %vm199, %v37, 0
  %v371 = vsel %vm199, %v38, 0
  %v374 = vsel %vm199, %v39, 0
  %v377 = vsel %vm199, %v40, 0
  %v380 = vsel %vm199, %v41, 0
  %v383 = vsel %vm199, %v42, 0
  %385 = vmatprep.subr.mxu0 0.0
  %386 = vmatpush1.msra.mxu0 %v187
  %387 = vmatprep.subr.mxu0 0.0
  %388 = vmatpush1.msra.mxu0 %v188
  %389 = vmatprep.subr.mxu0 0.0
  %390 = vmatpush1.msra.mxu0 %v189
  %391 = vmatprep.subr.mxu0 0.0
  %392 = vmatpush1.msra.mxu0 %v190
  %393 = vmatprep.subr.mxu0 0.0
  %394 = vmatpush1.msra.mxu0 0.0
  %395 = vmatprep.subr.mxu0 0.0
  %396 = vmatpush1.msra.mxu0 0.0
  %397 = vmatprep.subr.mxu0 0.0
  %398 = vmatpush1.msra.mxu0 0.0
  %399 = vmatprep.subr.mxu0 0.0
  %400 = vmatpush1.msra.mxu0 0.0
  %401 = vmatprep.subr.mxu0 0.0
  %402 = vmatpush1.msra.mxu0 0.0
  %403 = vmatprep.subr.mxu0 0.0
  %404 = vmatpush1.msra.mxu0 0.0
  %405 = vmatprep.subr.mxu0 0.0
  %406 = vmatpush1.msra.mxu0 0.0
  %407 = vmatprep.subr.mxu0 0.0
  %408 = vmatpush1.msra.mxu0 0.0
  %409 = vmatprep.subr.mxu0 0.0
  %410 = vmatpush1.msra.mxu0 0.0
  %411 = vmatprep.subr.mxu0 0.0
  %412 = vmatpush1.msra.mxu0 0.0
  %413 = vmatprep.subr.mxu0 0.0
  %414 = vmatpush1.msra.mxu0 0.0
  %415 = vmatprep.subr.mxu0 0.0
  %416 = vmatpush1.msra.mxu0 0.0
  %417 = vmatprep.subr.mxu0 0.0
  %418 = vmatpush1.msra.mxu0 0.0
  %419 = vmatprep.subr.mxu0 0.0
  %420 = vmatpush1.msra.mxu0 0.0
  %421 = vmatprep.subr.mxu0 0.0
  %422 = vmatpush1.msra.mxu0 0.0
  %423 = vmatprep.subr.mxu0 0.0
  %424 = vmatpush1.msra.mxu0 0.0
  %425 = vmatprep.subr.mxu0 0.0
  %426 = vmatpush1.msra.mxu0 0.0
  %427 = vmatprep.subr.mxu0 0.0
  %428 = vmatpush1.msra.mxu0 0.0
  %429 = vmatprep.subr.mxu0 0.0
  %430 = vmatpush1.msra.mxu0 0.0
  %431 = vmatprep.subr.mxu0 0.0
  %432 = vmatpush1.msra.mxu0 0.0
  %433 = vmatprep.subr.mxu0 0.0
  %434 = vmatpush1.msra.mxu0 0.0
  %435 = vmatprep.subr.mxu0 0.0
  %436 = vmatpush1.msra.mxu0 0.0
  %437 = vmatprep.subr.mxu0 0.0
  %438 = vmatpush1.msra.mxu0 0.0
  %439 = vmatprep.subr.mxu0 0.0
  %440 = vmatpush1.msra.mxu0 0.0
  %441 = vmatprep.subr.mxu0 0.0
  %442 = vmatpush1.msra.mxu0 0.0
  %443 = vmatprep.subr.mxu0 0.0
  %444 = vmatpush1.msra.mxu0 0.0
  %445 = vmatprep.subr.mxu0 0.0
  %446 = vmatpush1.msra.mxu0 0.0
  %447 = vmatprep.subr.mxu0 0.0
  %448 = vmatpush1.msra.mxu0 0.0
  %449 = vmatprep.mubr.f32.mxu0 0.0
  %450 = vmatmul.mubr.f32.gmra.mrb[0].mxu0 %v362
  %v451 = vpop.f32.mrb[0].mxu0
  %v452 = vadd.f32 0.0, %v451
  %v453 = vpop.f32.mrb[0].mxu0
  %454 = vmatprep.mubr.f32.mxu0 0.0
  %455 = vmatmul.mubr.f32.gmra.mrb[0].mxu0 %v365
  %v456 = vpop.f32.mrb[0].mxu0
  %v457 = vadd.f32 0.0, %v456
  %v458 = vpop.f32.mrb[0].mxu0
  %459 = vmatprep.mubr.f32.mxu0 0.0
  %460 = vmatmul.mubr.f32.gmra.mrb[0].mxu0 %v368
  %v461 = vpop.f32.mrb[0].mxu0
  %v462 = vadd.f32 0.0, %v461
  %v463 = vpop.f32.mrb[0].mxu0
  %464 = vmatprep.mubr.f32.mxu0 0.0
  %465 = vmatmul.mubr.f32.gmra.mrb[0].mxu0 %v371
  %v466 = vpop.f32.mrb[0].mxu0
  %v467 = vadd.f32 0.0, %v466
  %v468 = vpop.f32.mrb[0].mxu0
  %469 = vmatprep.mubr.f32.mxu0 0.0
  %470 = vmatmul.mubr.f32.gmra.mrb[0].mxu0 %v374
  %v471 = vpop.f32.mrb[0].mxu0
  %v472 = vadd.f32 0.0, %v471
  %v473 = vpop.f32.mrb[0].mxu0
  %474 = vmatprep.mubr.f32.mxu0 0.0
  %475 = vmatmul.mubr.f32.gmra.mrb[0].mxu0 %v377
  %v476 = vpop.f32.mrb[0].mxu0
  %v477 = vadd.f32 0.0, %v476
  %v478 = vpop.f32.mrb[0].mxu0
  %479 = vmatprep.mubr.f32.mxu0 0.0
  %480 = vmatmul.mubr.f32.gmra.mrb[0].mxu0 %v380
  %v481 = vpop.f32.mrb[0].mxu0
  %v482 = vadd.f32 0.0, %v481
  %v483 = vpop.f32.mrb[0].mxu0
  %484 = vmatprep.mubr.f32.mxu0 0.0
  %485 = vmatmul.mubr.f32.gmra.mrb[0].mxu0 %v383
  %v486 = vpop.f32.mrb[0].mxu0
  %v487 = vadd.f32 0.0, %v486
  %v488 = vpop.f32.mrb[0].mxu0
  %489 = vdwg.mxu0
  %v490 = vmul.f32 %v452, %v332
  %v491 = vmul.f32 %v457, %v332
  %v492 = vmul.f32 %v462, %v332
  %v493 = vmul.f32 %v467, %v332
  %v494 = vmul.f32 %v472, %v332
  %v495 = vmul.f32 %v477, %v332
  %v496 = vmul.f32 %v482, %v332
  %v497 = vmul.f32 %v487, %v332
  %v498 = vadd.f32 %v490, %v344
  %v499 = vadd.f32 %v491, %v344
  %v500 = vadd.f32 %v492, %v344
  %v501 = vadd.f32 %v493, %v344
  %v502 = vadd.f32 %v494, %v344
  %v503 = vadd.f32 %v495, %v344
  %v504 = vadd.f32 %v496, %v344
  %v505 = vadd.f32 %v497, %v344
  %v506 = vmax.f32 %v498, 0.0
  %v507 = vmax.f32 %v499, 0.0
  %v508 = vmax.f32 %v500, 0.0
  %v509 = vmax.f32 %v501, 0.0
  %v510 = vmax.f32 %v502, 0.0
  %v511 = vmax.f32 %v503, 0.0
  %v512 = vmax.f32 %v504, 0.0
  %v513 = vmax.f32 %v505, 0.0
  %v514 = vlaneseq
  %v515 = vshrl.u32 %v514, 7
  %v516 = vsub.s32 2, %v515
  %v517 = vrot.slane %v195, %v516
  %v519 = vsel %vm199, %v506, 0
  %v522 = vsel %vm199, %v507, 0
  %v525 = vsel %vm199, %v508, 0
  %v528 = vsel %vm199, %v509, 0
  %v531 = vsel %vm199, %v510, 0
  %v534 = vsel %vm199, %v511, 0
  %v537 = vsel %vm199, %v512, 0
  %v540 = vsel %vm199, %v513, 0
  %542 = vmatprep.subr.mxu0 0.0
  %543 = vmatpush1.msra.mxu0 %v191
  %544 = vmatprep.subr.mxu0 0.0
  %545 = vmatpush1.msra.mxu0 %v192
  %546 = vmatprep.subr.mxu0 0.0
  %547 = vmatpush1.msra.mxu0 %v193
  %548 = vmatprep.subr.mxu0 0.0
  %549 = vmatpush1.msra.mxu0 %v194
  %550 = vmatprep.subr.mxu0 0.0
  %551 = vmatpush1.msra.mxu0 0.0
  %552 = vmatprep.subr.mxu0 0.0
  %553 = vmatpush1.msra.mxu0 0.0
  %554 = vmatprep.subr.mxu0 0.0
  %555 = vmatpush1.msra.mxu0 0.0
  %556 = vmatprep.subr.mxu0 0.0
  %557 = vmatpush1.msra.mxu0 0.0
  %558 = vmatprep.subr.mxu0 0.0
  %559 = vmatpush1.msra.mxu0 0.0
  %560 = vmatprep.subr.mxu0 0.0
  %561 = vmatpush1.msra.mxu0 0.0
  %562 = vmatprep.subr.mxu0 0.0
  %563 = vmatpush1.msra.mxu0 0.0
  %564 = vmatprep.subr.mxu0 0.0
  %565 = vmatpush1.msra.mxu0 0.0
  %566 = vmatprep.subr.mxu0 0.0
  %567 = vmatpush1.msra.mxu0 0.0
  %568 = vmatprep.subr.mxu0 0.0
  %569 = vmatpush1.msra.mxu0 0.0
  %570 = vmatprep.subr.mxu0 0.0
  %571 = vmatpush1.msra.mxu0 0.0
  %572 = vmatprep.subr.mxu0 0.0
  %573 = vmatpush1.msra.mxu0 0.0
  %574 = vmatprep.subr.mxu0 0.0
  %575 = vmatpush1.msra.mxu0 0.0
  %576 = vmatprep.subr.mxu0 0.0
  %577 = vmatpush1.msra.mxu0 0.0
  %578 = vmatprep.subr.mxu0 0.0
  %579 = vmatpush1.msra.mxu0 0.0
  %580 = vmatprep.subr.mxu0 0.0
  %581 = vmatpush1.msra.mxu0 0.0
  %582 = vmatprep.subr.mxu0 0.0
  %583 = vmatpush1.msra.mxu0 0.0
  %584 = vmatprep.subr.mxu0 0.0
  %585 = vmatpush1.msra.mxu0 0.0
  %586 = vmatprep.subr.mxu0 0.0
  %587 = vmatpush1.msra.mxu0 0.0
  %588 = vmatprep.subr.mxu0 0.0
  %589 = vmatpush1.msra.mxu0 0.0
  %590 = vmatprep.subr.mxu0 0.0
  %591 = vmatpush1.msra.mxu0 0.0
  %592 = vmatprep.subr.mxu0 0.0
  %593 = vmatpush1.msra.mxu0 0.0
  %594 = vmatprep.subr.mxu0 0.0
  %595 = vmatpush1.msra.mxu0 0.0
  %596 = vmatprep.subr.mxu0 0.0
  %597 = vmatpush1.msra.mxu0 0.0
  %598 = vmatprep.subr.mxu0 0.0
  %599 = vmatpush1.msra.mxu0 0.0
  %600 = vmatprep.subr.mxu0 0.0
  %601 = vmatpush1.msra.mxu0 0.0
  %602 = vmatprep.subr.mxu0 0.0
  %603 = vmatpush1.msra.mxu0 0.0
  %604 = vmatprep.subr.mxu0 0.0
  %605 = vmatpush1.msra.mxu0 0.0
  %606 = vmatprep.mubr.f32.mxu0 0.0
  %607 = vmatmul.mubr.f32.gmra.mrb[0].mxu0 %v519
  %v608 = vpop.f32.mrb[0].mxu0
  %v609 = vadd.f32 %v517, %v608
  %v610 = vpop.f32.mrb[0].mxu0
  %611 = vmatprep.mubr.f32.mxu0 0.0
  %612 = vmatmul.mubr.f32.gmra.mrb[0].mxu0 %v522
  %v613 = vpop.f32.mrb[0].mxu0
  %v614 = vadd.f32 %v517, %v613
  %v615 = vpop.f32.mrb[0].mxu0
  %616 = vmatprep.mubr.f32.mxu0 0.0
  %617 = vmatmul.mubr.f32.gmra.mrb[0].mxu0 %v525
  %v618 = vpop.f32.mrb[0].mxu0
  %v619 = vadd.f32 %v517, %v618
  %v620 = vpop.f32.mrb[0].mxu0
  %621 = vmatprep.mubr.f32.mxu0 0.0
  %622 = vmatmul.mubr.f32.gmra.mrb[0].mxu0 %v528
  %v623 = vpop.f32.mrb[0].mxu0
  %v624 = vadd.f32 %v517, %v623
  %v625 = vpop.f32.mrb[0].mxu0
  %626 = vmatprep.mubr.f32.mxu0 0.0
  %627 = vmatmul.mubr.f32.gmra.mrb[0].mxu0 %v531
  %v628 = vpop.f32.mrb[0].mxu0
  %v629 = vadd.f32 %v517, %v628
  %v630 = vpop.f32.mrb[0].mxu0
  %631 = vmatprep.mubr.f32.mxu0 0.0
  %632 = vmatmul.mubr.f32.gmra.mrb[0].mxu0 %v534
  %v633 = vpop.f32.mrb[0].mxu0
  %v634 = vadd.f32 %v517, %v633
  %v635 = vpop.f32.mrb[0].mxu0
  %636 = vmatprep.mubr.f32.mxu0 0.0
  %637 = vmatmul.mubr.f32.gmra.mrb[0].mxu0 %v537
  %v638 = vpop.f32.mrb[0].mxu0
  %v639 = vadd.f32 %v517, %v638
  %v640 = vpop.f32.mrb[0].mxu0
  %641 = vmatprep.mubr.f32.mxu0 0.0
  %642 = vmatmul.mubr.f32.gmra.mrb[0].mxu0 %v540
  %v643 = vpop.f32.mrb[0].mxu0
  %v644 = vadd.f32 %v517, %v643
  %v645 = vpop.f32.mrb[0].mxu0
  %646 = vdwg.mxu0
  %648 = vset.pattern.permute.xlu0 0
  %649 = vperm.xlu0 %648, %v51
  %v650 = vpop.permute.xlu0 %649
  %653 = vset.pattern.permute.xlu0 0
  %654 = vperm.xlu0 %653, %v52
  %v655 = vpop.permute.xlu0 %654
  %658 = vset.pattern.permute.xlu0 0
  %659 = vperm.xlu0 %658, %v53
  %v660 = vpop.permute.xlu0 %659
  %663 = vset.pattern.permute.xlu0 0
  %664 = vperm.xlu0 %663, %v54
  %v665 = vpop.permute.xlu0 %664
  %668 = vset.pattern.permute.xlu0 0
  %669 = vperm.xlu0 %668, %v55
  %v670 = vpop.permute.xlu0 %669
  %673 = vset.pattern.permute.xlu0 0
  %674 = vperm.xlu0 %673, %v56
  %v675 = vpop.permute.xlu0 %674
  %678 = vset.pattern.permute.xlu0 0
  %679 = vperm.xlu0 %678, %v57
  %v680 = vpop.permute.xlu0 %679
  %683 = vset.pattern.permute.xlu0 0
  %684 = vperm.xlu0 %683, %v58
  %v685 = vpop.permute.xlu0 %684
  %v687 = vlaneseq
  %v688 = vshrl.u32 %v687, 7
  %v689 = vsub.s32 7, %v688
  %v690 = vrot.slane %v195, %v689
  %v691 = vmul.f32 %v650, %v690
  %v692 = vmul.f32 %v655, %v690
  %v693 = vmul.f32 %v660, %v690
  %v694 = vmul.f32 %v665, %v690
  %v695 = vmul.f32 %v670, %v690
  %v696 = vmul.f32 %v675, %v690
  %v697 = vmul.f32 %v680, %v690
  %v698 = vmul.f32 %v685, %v690
  %699 = vset.pattern.permute.xlu0 1
  %700 = vperm.xlu0 %699, %v51
  %v701 = vpop.permute.xlu0 %700
  %703 = vset.pattern.permute.xlu0 1
  %704 = vperm.xlu0 %703, %v52
  %v705 = vpop.permute.xlu0 %704
  %707 = vset.pattern.permute.xlu0 1
  %708 = vperm.xlu0 %707, %v53
  %v709 = vpop.permute.xlu0 %708
  %711 = vset.pattern.permute.xlu0 1
  %712 = vperm.xlu0 %711, %v54
  %v713 = vpop.permute.xlu0 %712
  %715 = vset.pattern.permute.xlu0 1
  %716 = vperm.xlu0 %715, %v55
  %v717 = vpop.permute.xlu0 %716
  %719 = vset.pattern.permute.xlu0 1
  %720 = vperm.xlu0 %719, %v56
  %v721 = vpop.permute.xlu0 %720
  %723 = vset.pattern.permute.xlu0 1
  %724 = vperm.xlu0 %723, %v57
  %v725 = vpop.permute.xlu0 %724
  %727 = vset.pattern.permute.xlu0 1
  %728 = vperm.xlu0 %727, %v58
  %v729 = vpop.permute.xlu0 %728
  %v731 = vlaneseq
  %v732 = vshrl.u32 %v731, 7
  %v733 = vsub.s32 0, %v732
  %v734 = vrot.slane %v196, %v733
  %v735 = vmul.f32 %v701, %v734
  %v736 = vmul.f32 %v705, %v734
  %v737 = vmul.f32 %v709, %v734
  %v738 = vmul.f32 %v713, %v734
  %v739 = vmul.f32 %v717, %v734
  %v740 = vmul.f32 %v721, %v734
  %v741 = vmul.f32 %v725, %v734
  %v742 = vmul.f32 %v729, %v734
  %v743 = vadd.f32 %v691, %v735
  %v744 = vadd.f32 %v692, %v736
  %v745 = vadd.f32 %v693, %v737
  %v746 = vadd.f32 %v694, %v738
  %v747 = vadd.f32 %v695, %v739
  %v748 = vadd.f32 %v696, %v740
  %v749 = vadd.f32 %v697, %v741
  %v750 = vadd.f32 %v698, %v742
  %751 = vset.pattern.permute.xlu0 2
  %752 = vperm.xlu0 %751, %v51
  %v753 = vpop.permute.xlu0 %752
  %755 = vset.pattern.permute.xlu0 2
  %756 = vperm.xlu0 %755, %v52
  %v757 = vpop.permute.xlu0 %756
  %759 = vset.pattern.permute.xlu0 2
  %760 = vperm.xlu0 %759, %v53
  %v761 = vpop.permute.xlu0 %760
  %763 = vset.pattern.permute.xlu0 2
  %764 = vperm.xlu0 %763, %v54
  %v765 = vpop.permute.xlu0 %764
  %767 = vset.pattern.permute.xlu0 2
  %768 = vperm.xlu0 %767, %v55
  %v769 = vpop.permute.xlu0 %768
  %771 = vset.pattern.permute.xlu0 2
  %772 = vperm.xlu0 %771, %v56
  %v773 = vpop.permute.xlu0 %772
  %775 = vset.pattern.permute.xlu0 2
  %776 = vperm.xlu0 %775, %v57
  %v777 = vpop.permute.xlu0 %776
  %779 = vset.pattern.permute.xlu0 2
  %780 = vperm.xlu0 %779, %v58
  %v781 = vpop.permute.xlu0 %780
  %v783 = vlaneseq
  %v784 = vshrl.u32 %v783, 7
  %v785 = vsub.s32 1, %v784
  %v786 = vrot.slane %v196, %v785
  %v787 = vmul.f32 %v753, %v786
  %v788 = vmul.f32 %v757, %v786
  %v789 = vmul.f32 %v761, %v786
  %v790 = vmul.f32 %v765, %v786
  %v791 = vmul.f32 %v769, %v786
  %v792 = vmul.f32 %v773, %v786
  %v793 = vmul.f32 %v777, %v786
  %v794 = vmul.f32 %v781, %v786
  %v795 = vadd.f32 %v743, %v787
  %v796 = vadd.f32 %v744, %v788
  %v797 = vadd.f32 %v745, %v789
  %v798 = vadd.f32 %v746, %v790
  %v799 = vadd.f32 %v747, %v791
  %v800 = vadd.f32 %v748, %v792
  %v801 = vadd.f32 %v749, %v793
  %v802 = vadd.f32 %v750, %v794
  %804 = vset.pattern.permute.xlu0 0
  %805 = vperm.xlu0 %804, %v43
  %v806 = vpop.permute.xlu0 %805
  %809 = vset.pattern.permute.xlu0 0
  %810 = vperm.xlu0 %809, %v44
  %v811 = vpop.permute.xlu0 %810
  %814 = vset.pattern.permute.xlu0 0
  %815 = vperm.xlu0 %814, %v45
  %v816 = vpop.permute.xlu0 %815
  %819 = vset.pattern.permute.xlu0 0
  %820 = vperm.xlu0 %819, %v46
  %v821 = vpop.permute.xlu0 %820
  %824 = vset.pattern.permute.xlu0 0
  %825 = vperm.xlu0 %824, %v47
  %v826 = vpop.permute.xlu0 %825
  %829 = vset.pattern.permute.xlu0 0
  %830 = vperm.xlu0 %829, %v48
  %v831 = vpop.permute.xlu0 %830
  %834 = vset.pattern.permute.xlu0 0
  %835 = vperm.xlu0 %834, %v49
  %v836 = vpop.permute.xlu0 %835
  %839 = vset.pattern.permute.xlu0 0
  %840 = vperm.xlu0 %839, %v50
  %v841 = vpop.permute.xlu0 %840
  %v843 = vlaneseq
  %v844 = vshrl.u32 %v843, 7
  %v845 = vsub.s32 4, %v844
  %v846 = vrot.slane %v195, %v845
  %v847 = vmul.f32 %v806, %v846
  %v848 = vmul.f32 %v811, %v846
  %v849 = vmul.f32 %v816, %v846
  %v850 = vmul.f32 %v821, %v846
  %v851 = vmul.f32 %v826, %v846
  %v852 = vmul.f32 %v831, %v846
  %v853 = vmul.f32 %v836, %v846
  %v854 = vmul.f32 %v841, %v846
  %859 = vrot.lane.b32.xlu0 %v187, 96
  %v860 = vpop.permute.xlu0 %859
  %861 = vrot.lane.b32.xlu0 %v188, 96
  %v862 = vpop.permute.xlu0 %861
  %863 = vrot.lane.b32.xlu0 %v189, 96
  %v864 = vpop.permute.xlu0 %863
  %865 = vrot.lane.b32.xlu0 %v190, 96
  %v866 = vpop.permute.xlu0 %865
  %v872 = vsel %vm199, %v353, 0
  %v875 = vsel %vm199, %v354, 0
  %v878 = vsel %vm199, %v355, 0
  %v881 = vsel %vm199, %v356, 0
  %v884 = vsel %vm199, %v357, 0
  %v887 = vsel %vm199, %v358, 0
  %v890 = vsel %vm199, %v359, 0
  %v893 = vsel %vm199, %v360, 0
  %895 = vmatprep.subr.mxu0 0.0
  %896 = vmatpush1.msra.mxu0 %v860
  %897 = vmatprep.subr.mxu0 0.0
  %898 = vmatpush1.msra.mxu0 %v862
  %899 = vmatprep.subr.mxu0 0.0
  %900 = vmatpush1.msra.mxu0 %v864
  %901 = vmatprep.subr.mxu0 0.0
  %902 = vmatpush1.msra.mxu0 %v866
  %903 = vmatprep.subr.mxu0 0.0
  %904 = vmatpush1.msra.mxu0 0.0
  %905 = vmatprep.subr.mxu0 0.0
  %906 = vmatpush1.msra.mxu0 0.0
  %907 = vmatprep.subr.mxu0 0.0
  %908 = vmatpush1.msra.mxu0 0.0
  %909 = vmatprep.subr.mxu0 0.0
  %910 = vmatpush1.msra.mxu0 0.0
  %911 = vmatprep.subr.mxu0 0.0
  %912 = vmatpush1.msra.mxu0 0.0
  %913 = vmatprep.subr.mxu0 0.0
  %914 = vmatpush1.msra.mxu0 0.0
  %915 = vmatprep.subr.mxu0 0.0
  %916 = vmatpush1.msra.mxu0 0.0
  %917 = vmatprep.subr.mxu0 0.0
  %918 = vmatpush1.msra.mxu0 0.0
  %919 = vmatprep.subr.mxu0 0.0
  %920 = vmatpush1.msra.mxu0 0.0
  %921 = vmatprep.subr.mxu0 0.0
  %922 = vmatpush1.msra.mxu0 0.0
  %923 = vmatprep.subr.mxu0 0.0
  %924 = vmatpush1.msra.mxu0 0.0
  %925 = vmatprep.subr.mxu0 0.0
  %926 = vmatpush1.msra.mxu0 0.0
  %927 = vmatprep.subr.mxu0 0.0
  %928 = vmatpush1.msra.mxu0 0.0
  %929 = vmatprep.subr.mxu0 0.0
  %930 = vmatpush1.msra.mxu0 0.0
  %931 = vmatprep.subr.mxu0 0.0
  %932 = vmatpush1.msra.mxu0 0.0
  %933 = vmatprep.subr.mxu0 0.0
  %934 = vmatpush1.msra.mxu0 0.0
  %935 = vmatprep.subr.mxu0 0.0
  %936 = vmatpush1.msra.mxu0 0.0
  %937 = vmatprep.subr.mxu0 0.0
  %938 = vmatpush1.msra.mxu0 0.0
  %939 = vmatprep.subr.mxu0 0.0
  %940 = vmatpush1.msra.mxu0 0.0
  %941 = vmatprep.subr.mxu0 0.0
  %942 = vmatpush1.msra.mxu0 0.0
  %943 = vmatprep.subr.mxu0 0.0
  %944 = vmatpush1.msra.mxu0 0.0
  %945 = vmatprep.subr.mxu0 0.0
  %946 = vmatpush1.msra.mxu0 0.0
  %947 = vmatprep.subr.mxu0 0.0
  %948 = vmatpush1.msra.mxu0 0.0
  %949 = vmatprep.subr.mxu0 0.0
  %950 = vmatpush1.msra.mxu0 0.0
  %951 = vmatprep.subr.mxu0 0.0
  %952 = vmatpush1.msra.mxu0 0.0
  %953 = vmatprep.subr.mxu0 0.0
  %954 = vmatpush1.msra.mxu0 0.0
  %955 = vmatprep.subr.mxu0 0.0
  %956 = vmatpush1.msra.mxu0 0.0
  %957 = vmatprep.subr.mxu0 0.0
  %958 = vmatpush1.msra.mxu0 0.0
  %959 = vmatprep.mubr.f32.mxu0 0.0
  %960 = vmatmul.mubr.f32.gmra.mrb[0].mxu0 %v872
  %v961 = vpop.f32.mrb[0].mxu0
  %v962 = vadd.f32 %v847, %v961
  %v963 = vpop.f32.mrb[0].mxu0
  %964 = vmatprep.mubr.f32.mxu0 0.0
  %965 = vmatmul.mubr.f32.gmra.mrb[0].mxu0 %v875
  %v966 = vpop.f32.mrb[0].mxu0
  %v967 = vadd.f32 %v848, %v966
  %v968 = vpop.f32.mrb[0].mxu0
  %969 = vmatprep.mubr.f32.mxu0 0.0
  %970 = vmatmul.mubr.f32.gmra.mrb[0].mxu0 %v878
  %v971 = vpop.f32.mrb[0].mxu0
  %v972 = vadd.f32 %v849, %v971
  %v973 = vpop.f32.mrb[0].mxu0
  %974 = vmatprep.mubr.f32.mxu0 0.0
  %975 = vmatmul.mubr.f32.gmra.mrb[0].mxu0 %v881
  %v976 = vpop.f32.mrb[0].mxu0
  %v977 = vadd.f32 %v850, %v976
  %v978 = vpop.f32.mrb[0].mxu0
  %979 = vmatprep.mubr.f32.mxu0 0.0
  %980 = vmatmul.mubr.f32.gmra.mrb[0].mxu0 %v884
  %v981 = vpop.f32.mrb[0].mxu0
  %v982 = vadd.f32 %v851, %v981
  %v983 = vpop.f32.mrb[0].mxu0
  %984 = vmatprep.mubr.f32.mxu0 0.0
  %985 = vmatmul.mubr.f32.gmra.mrb[0].mxu0 %v887
  %v986 = vpop.f32.mrb[0].mxu0
  %v987 = vadd.f32 %v852, %v986
  %v988 = vpop.f32.mrb[0].mxu0
  %989 = vmatprep.mubr.f32.mxu0 0.0
  %990 = vmatmul.mubr.f32.gmra.mrb[0].mxu0 %v890
  %v991 = vpop.f32.mrb[0].mxu0
  %v992 = vadd.f32 %v853, %v991
  %v993 = vpop.f32.mrb[0].mxu0
  %994 = vmatprep.mubr.f32.mxu0 0.0
  %995 = vmatmul.mubr.f32.gmra.mrb[0].mxu0 %v893
  %v996 = vpop.f32.mrb[0].mxu0
  %v997 = vadd.f32 %v854, %v996
  %v998 = vpop.f32.mrb[0].mxu0
  %999 = vdwg.mxu0
  %1000 = vset.pattern.permute.xlu0 1
  %1001 = vperm.xlu0 %1000, %v43
  %v1002 = vpop.permute.xlu0 %1001
  %1004 = vset.pattern.permute.xlu0 1
  %1005 = vperm.xlu0 %1004, %v44
  %v1006 = vpop.permute.xlu0 %1005
  %1008 = vset.pattern.permute.xlu0 1
  %1009 = vperm.xlu0 %1008, %v45
  %v1010 = vpop.permute.xlu0 %1009
  %1012 = vset.pattern.permute.xlu0 1
  %1013 = vperm.xlu0 %1012, %v46
  %v1014 = vpop.permute.xlu0 %1013
  %1016 = vset.pattern.permute.xlu0 1
  %1017 = vperm.xlu0 %1016, %v47
  %v1018 = vpop.permute.xlu0 %1017
  %1020 = vset.pattern.permute.xlu0 1
  %1021 = vperm.xlu0 %1020, %v48
  %v1022 = vpop.permute.xlu0 %1021
  %1024 = vset.pattern.permute.xlu0 1
  %1025 = vperm.xlu0 %1024, %v49
  %v1026 = vpop.permute.xlu0 %1025
  %1028 = vset.pattern.permute.xlu0 1
  %1029 = vperm.xlu0 %1028, %v50
  %v1030 = vpop.permute.xlu0 %1029
  %v1032 = vlaneseq
  %v1033 = vshrl.u32 %v1032, 7
  %v1034 = vsub.s32 5, %v1033
  %v1035 = vrot.slane %v195, %v1034
  %v1036 = vmul.f32 %v1002, %v1035
  %v1037 = vmul.f32 %v1006, %v1035
  %v1038 = vmul.f32 %v1010, %v1035
  %v1039 = vmul.f32 %v1014, %v1035
  %v1040 = vmul.f32 %v1018, %v1035
  %v1041 = vmul.f32 %v1022, %v1035
  %v1042 = vmul.f32 %v1026, %v1035
  %v1043 = vmul.f32 %v1030, %v1035
  %v1044 = vadd.f32 %v962, %v1036
  %v1045 = vadd.f32 %v967, %v1037
  %v1046 = vadd.f32 %v972, %v1038
  %v1047 = vadd.f32 %v977, %v1039
  %v1048 = vadd.f32 %v982, %v1040
  %v1049 = vadd.f32 %v987, %v1041
  %v1050 = vadd.f32 %v992, %v1042
  %v1051 = vadd.f32 %v997, %v1043
  %1052 = vset.pattern.permute.xlu0 2
  %1053 = vperm.xlu0 %1052, %v43
  %v1054 = vpop.permute.xlu0 %1053
  %1056 = vset.pattern.permute.xlu0 2
  %1057 = vperm.xlu0 %1056, %v44
  %v1058 = vpop.permute.xlu0 %1057
  %1060 = vset.pattern.permute.xlu0 2
  %1061 = vperm.xlu0 %1060, %v45
  %v1062 = vpop.permute.xlu0 %1061
  %1064 = vset.pattern.permute.xlu0 2
  %1065 = vperm.xlu0 %1064, %v46
  %v1066 = vpop.permute.xlu0 %1065
  %1068 = vset.pattern.permute.xlu0 2
  %1069 = vperm.xlu0 %1068, %v47
  %v1070 = vpop.permute.xlu0 %1069
  %1072 = vset.pattern.permute.xlu0 2
  %1073 = vperm.xlu0 %1072, %v48
  %v1074 = vpop.permute.xlu0 %1073
  %1076 = vset.pattern.permute.xlu0 2
  %1077 = vperm.xlu0 %1076, %v49
  %v1078 = vpop.permute.xlu0 %1077
  %1080 = vset.pattern.permute.xlu0 2
  %1081 = vperm.xlu0 %1080, %v50
  %v1082 = vpop.permute.xlu0 %1081
  %v1084 = vlaneseq
  %v1085 = vshrl.u32 %v1084, 7
  %v1086 = vsub.s32 6, %v1085
  %v1087 = vrot.slane %v195, %v1086
  %v1088 = vmul.f32 %v1054, %v1087
  %v1089 = vmul.f32 %v1058, %v1087
  %v1090 = vmul.f32 %v1062, %v1087
  %v1091 = vmul.f32 %v1066, %v1087
  %v1092 = vmul.f32 %v1070, %v1087
  %v1093 = vmul.f32 %v1074, %v1087
  %v1094 = vmul.f32 %v1078, %v1087
  %v1095 = vmul.f32 %v1082, %v1087
  %v1096 = vadd.f32 %v1044, %v1088
  %v1097 = vadd.f32 %v1045, %v1089
  %v1098 = vadd.f32 %v1046, %v1090
  %v1099 = vadd.f32 %v1047, %v1091
  %v1100 = vadd.f32 %v1048, %v1092
  %v1101 = vadd.f32 %v1049, %v1093
  %v1102 = vadd.f32 %v1050, %v1094
  %v1103 = vadd.f32 %v1051, %v1095
  %v1104 = vlaneseq
  %v1105 = vshrl.u32 %v1104, 7
  %v1106 = vsub.s32 3, %v1105
  %v1107 = vrot.slane %v195, %v1106
  %v1108 = vadd.f32 %v1096, %v1107
  %v1109 = vadd.f32 %v1097, %v1107
  %v1110 = vadd.f32 %v1098, %v1107
  %v1111 = vadd.f32 %v1099, %v1107
  %v1112 = vadd.f32 %v1100, %v1107
  %v1113 = vadd.f32 %v1101, %v1107
  %v1114 = vadd.f32 %v1102, %v1107
  %v1115 = vadd.f32 %v1103, %v1107
  %v1116 = vlaneseq
  %v1117 = vand.u32 %v1116, 127
  %1118 = vset.pattern.permute.xlu0 0
  %1119 = vperm.xlu0 %1118, %v59
  %v1120 = vpop.permute.xlu0 %1119
  %1121 = vset.pattern.permute.xlu0 0
  %1122 = vperm.xlu0 %1121, %v60
  %v1123 = vpop.permute.xlu0 %1122
  %1124 = vset.pattern.permute.xlu0 0
  %1125 = vperm.xlu0 %1124, %v61
  %v1126 = vpop.permute.xlu0 %1125
  %1127 = vset.pattern.permute.xlu0 0
  %1128 = vperm.xlu0 %1127, %v62
  %v1129 = vpop.permute.xlu0 %1128
  %1130 = vset.pattern.permute.xlu0 0
  %1131 = vperm.xlu0 %1130, %v63
  %v1132 = vpop.permute.xlu0 %1131
  %1133 = vset.pattern.permute.xlu0 0
  %1134 = vperm.xlu0 %1133, %v64
  %v1135 = vpop.permute.xlu0 %1134
  %1136 = vset.pattern.permute.xlu0 0
  %1137 = vperm.xlu0 %1136, %v65
  %v1138 = vpop.permute.xlu0 %1137
  %1139 = vset.pattern.permute.xlu0 0
  %1140 = vperm.xlu0 %1139, %v66
  %v1141 = vpop.permute.xlu0 %1140
  %1142 = vset.pattern.permute.xlu0 0
  %1143 = vperm.xlu0 %1142, %v67
  %v1144 = vpop.permute.xlu0 %1143
  %1145 = vset.pattern.permute.xlu0 0
  %1146 = vperm.xlu0 %1145, %v68
  %v1147 = vpop.permute.xlu0 %1146
  %1148 = vset.pattern.permute.xlu0 0
  %1149 = vperm.xlu0 %1148, %v69
  %v1150 = vpop.permute.xlu0 %1149
  %1151 = vset.pattern.permute.xlu0 0
  %1152 = vperm.xlu0 %1151, %v70
  %v1153 = vpop.permute.xlu0 %1152
  %1154 = vset.pattern.permute.xlu0 0
  %1155 = vperm.xlu0 %1154, %v71
  %v1156 = vpop.permute.xlu0 %1155
  %1157 = vset.pattern.permute.xlu0 0
  %1158 = vperm.xlu0 %1157, %v72
  %v1159 = vpop.permute.xlu0 %1158
  %1160 = vset.pattern.permute.xlu0 0
  %1161 = vperm.xlu0 %1160, %v73
  %v1162 = vpop.permute.xlu0 %1161
  %1163 = vset.pattern.permute.xlu0 0
  %1164 = vperm.xlu0 %1163, %v74
  %v1165 = vpop.permute.xlu0 %1164
  %1166 = vset.pattern.permute.xlu0 0
  %1167 = vperm.xlu0 %1166, %v75
  %v1168 = vpop.permute.xlu0 %1167
  %1169 = vset.pattern.permute.xlu0 0
  %1170 = vperm.xlu0 %1169, %v76
  %v1171 = vpop.permute.xlu0 %1170
  %1172 = vset.pattern.permute.xlu0 0
  %1173 = vperm.xlu0 %1172, %v77
  %v1174 = vpop.permute.xlu0 %1173
  %1175 = vset.pattern.permute.xlu0 0
  %1176 = vperm.xlu0 %1175, %v78
  %v1177 = vpop.permute.xlu0 %1176
  %1178 = vset.pattern.permute.xlu0 0
  %1179 = vperm.xlu0 %1178, %v79
  %v1180 = vpop.permute.xlu0 %1179
  %1181 = vset.pattern.permute.xlu0 0
  %1182 = vperm.xlu0 %1181, %v80
  %v1183 = vpop.permute.xlu0 %1182
  %1184 = vset.pattern.permute.xlu0 0
  %1185 = vperm.xlu0 %1184, %v81
  %v1186 = vpop.permute.xlu0 %1185
  %1187 = vset.pattern.permute.xlu0 0
  %1188 = vperm.xlu0 %1187, %v82
  %v1189 = vpop.permute.xlu0 %1188
  %1190 = vset.pattern.permute.xlu0 0
  %1191 = vperm.xlu0 %1190, %v83
  %v1192 = vpop.permute.xlu0 %1191
  %1193 = vset.pattern.permute.xlu0 0
  %1194 = vperm.xlu0 %1193, %v84
  %v1195 = vpop.permute.xlu0 %1194
  %1196 = vset.pattern.permute.xlu0 0
  %1197 = vperm.xlu0 %1196, %v85
  %v1198 = vpop.permute.xlu0 %1197
  %1199 = vset.pattern.permute.xlu0 0
  %1200 = vperm.xlu0 %1199, %v86
  %v1201 = vpop.permute.xlu0 %1200
  %1202 = vset.pattern.permute.xlu0 0
  %1203 = vperm.xlu0 %1202, %v87
  %v1204 = vpop.permute.xlu0 %1203
  %1205 = vset.pattern.permute.xlu0 0
  %1206 = vperm.xlu0 %1205, %v88
  %v1207 = vpop.permute.xlu0 %1206
  %1208 = vset.pattern.permute.xlu0 0
  %1209 = vperm.xlu0 %1208, %v89
  %v1210 = vpop.permute.xlu0 %1209
  %1211 = vset.pattern.permute.xlu0 0
  %1212 = vperm.xlu0 %1211, %v90
  %v1213 = vpop.permute.xlu0 %1212
  %1214 = vset.pattern.permute.xlu0 0
  %1215 = vperm.xlu0 %1214, %v91
  %v1216 = vpop.permute.xlu0 %1215
  %1217 = vset.pattern.permute.xlu0 0
  %1218 = vperm.xlu0 %1217, %v92
  %v1219 = vpop.permute.xlu0 %1218
  %1220 = vset.pattern.permute.xlu0 0
  %1221 = vperm.xlu0 %1220, %v93
  %v1222 = vpop.permute.xlu0 %1221
  %1223 = vset.pattern.permute.xlu0 0
  %1224 = vperm.xlu0 %1223, %v94
  %v1225 = vpop.permute.xlu0 %1224
  %1226 = vset.pattern.permute.xlu0 0
  %1227 = vperm.xlu0 %1226, %v95
  %v1228 = vpop.permute.xlu0 %1227
  %1229 = vset.pattern.permute.xlu0 0
  %1230 = vperm.xlu0 %1229, %v96
  %v1231 = vpop.permute.xlu0 %1230
  %1232 = vset.pattern.permute.xlu0 0
  %1233 = vperm.xlu0 %1232, %v97
  %v1234 = vpop.permute.xlu0 %1233
  %1235 = vset.pattern.permute.xlu0 0
  %1236 = vperm.xlu0 %1235, %v98
  %v1237 = vpop.permute.xlu0 %1236
  %1238 = vset.pattern.permute.xlu0 0
  %1239 = vperm.xlu0 %1238, %v99
  %v1240 = vpop.permute.xlu0 %1239
  %1241 = vset.pattern.permute.xlu0 0
  %1242 = vperm.xlu0 %1241, %v100
  %v1243 = vpop.permute.xlu0 %1242
  %1244 = vset.pattern.permute.xlu0 0
  %1245 = vperm.xlu0 %1244, %v101
  %v1246 = vpop.permute.xlu0 %1245
  %1247 = vset.pattern.permute.xlu0 0
  %1248 = vperm.xlu0 %1247, %v102
  %v1249 = vpop.permute.xlu0 %1248
  %1250 = vset.pattern.permute.xlu0 0
  %1251 = vperm.xlu0 %1250, %v103
  %v1252 = vpop.permute.xlu0 %1251
  %1253 = vset.pattern.permute.xlu0 0
  %1254 = vperm.xlu0 %1253, %v104
  %v1255 = vpop.permute.xlu0 %1254
  %1256 = vset.pattern.permute.xlu0 0
  %1257 = vperm.xlu0 %1256, %v105
  %v1258 = vpop.permute.xlu0 %1257
  %1259 = vset.pattern.permute.xlu0 0
  %1260 = vperm.xlu0 %1259, %v106
  %v1261 = vpop.permute.xlu0 %1260
  %1262 = vset.pattern.permute.xlu0 0
  %1263 = vperm.xlu0 %1262, %v107
  %v1264 = vpop.permute.xlu0 %1263
  %1265 = vset.pattern.permute.xlu0 0
  %1266 = vperm.xlu0 %1265, %v108
  %v1267 = vpop.permute.xlu0 %1266
  %1268 = vset.pattern.permute.xlu0 0
  %1269 = vperm.xlu0 %1268, %v109
  %v1270 = vpop.permute.xlu0 %1269
  %1271 = vset.pattern.permute.xlu0 0
  %1272 = vperm.xlu0 %1271, %v110
  %v1273 = vpop.permute.xlu0 %1272
  %1274 = vset.pattern.permute.xlu0 0
  %1275 = vperm.xlu0 %1274, %v111
  %v1276 = vpop.permute.xlu0 %1275
  %1277 = vset.pattern.permute.xlu0 0
  %1278 = vperm.xlu0 %1277, %v112
  %v1279 = vpop.permute.xlu0 %1278
  %1280 = vset.pattern.permute.xlu0 0
  %1281 = vperm.xlu0 %1280, %v113
  %v1282 = vpop.permute.xlu0 %1281
  %1283 = vset.pattern.permute.xlu0 0
  %1284 = vperm.xlu0 %1283, %v114
  %v1285 = vpop.permute.xlu0 %1284
  %1286 = vset.pattern.permute.xlu0 0
  %1287 = vperm.xlu0 %1286, %v115
  %v1288 = vpop.permute.xlu0 %1287
  %1289 = vset.pattern.permute.xlu0 0
  %1290 = vperm.xlu0 %1289, %v116
  %v1291 = vpop.permute.xlu0 %1290
  %1292 = vset.pattern.permute.xlu0 0
  %1293 = vperm.xlu0 %1292, %v117
  %v1294 = vpop.permute.xlu0 %1293
  %1295 = vset.pattern.permute.xlu0 0
  %1296 = vperm.xlu0 %1295, %v118
  %v1297 = vpop.permute.xlu0 %1296
  %1298 = vset.pattern.permute.xlu0 0
  %1299 = vperm.xlu0 %1298, %v119
  %v1300 = vpop.permute.xlu0 %1299
  %1301 = vset.pattern.permute.xlu0 0
  %1302 = vperm.xlu0 %1301, %v120
  %v1303 = vpop.permute.xlu0 %1302
  %1304 = vset.pattern.permute.xlu0 0
  %1305 = vperm.xlu0 %1304, %v121
  %v1306 = vpop.permute.xlu0 %1305
  %1307 = vset.pattern.permute.xlu0 0
  %1308 = vperm.xlu0 %1307, %v122
  %v1309 = vpop.permute.xlu0 %1308
  %1310 = vset.pattern.permute.xlu0 0
  %1311 = vperm.xlu0 %1310, %v123
  %v1312 = vpop.permute.xlu0 %1311
  %1313 = vset.pattern.permute.xlu0 0
  %1314 = vperm.xlu0 %1313, %v124
  %v1315 = vpop.permute.xlu0 %1314
  %1316 = vset.pattern.permute.xlu0 0
  %1317 = vperm.xlu0 %1316, %v125
  %v1318 = vpop.permute.xlu0 %1317
  %1319 = vset.pattern.permute.xlu0 0
  %1320 = vperm.xlu0 %1319, %v126
  %v1321 = vpop.permute.xlu0 %1320
  %1322 = vset.pattern.permute.xlu0 0
  %1323 = vperm.xlu0 %1322, %v127
  %v1324 = vpop.permute.xlu0 %1323
  %1325 = vset.pattern.permute.xlu0 0
  %1326 = vperm.xlu0 %1325, %v128
  %v1327 = vpop.permute.xlu0 %1326
  %1328 = vset.pattern.permute.xlu0 0
  %1329 = vperm.xlu0 %1328, %v129
  %v1330 = vpop.permute.xlu0 %1329
  %1331 = vset.pattern.permute.xlu0 0
  %1332 = vperm.xlu0 %1331, %v130
  %v1333 = vpop.permute.xlu0 %1332
  %1334 = vset.pattern.permute.xlu0 0
  %1335 = vperm.xlu0 %1334, %v131
  %v1336 = vpop.permute.xlu0 %1335
  %1337 = vset.pattern.permute.xlu0 0
  %1338 = vperm.xlu0 %1337, %v132
  %v1339 = vpop.permute.xlu0 %1338
  %1340 = vset.pattern.permute.xlu0 0
  %1341 = vperm.xlu0 %1340, %v133
  %v1342 = vpop.permute.xlu0 %1341
  %1343 = vset.pattern.permute.xlu0 0
  %1344 = vperm.xlu0 %1343, %v134
  %v1345 = vpop.permute.xlu0 %1344
  %1346 = vset.pattern.permute.xlu0 0
  %1347 = vperm.xlu0 %1346, %v135
  %v1348 = vpop.permute.xlu0 %1347
  %1349 = vset.pattern.permute.xlu0 0
  %1350 = vperm.xlu0 %1349, %v136
  %v1351 = vpop.permute.xlu0 %1350
  %1352 = vset.pattern.permute.xlu0 0
  %1353 = vperm.xlu0 %1352, %v137
  %v1354 = vpop.permute.xlu0 %1353
  %1355 = vset.pattern.permute.xlu0 0
  %1356 = vperm.xlu0 %1355, %v138
  %v1357 = vpop.permute.xlu0 %1356
  %1358 = vset.pattern.permute.xlu0 0
  %1359 = vperm.xlu0 %1358, %v139
  %v1360 = vpop.permute.xlu0 %1359
  %1361 = vset.pattern.permute.xlu0 0
  %1362 = vperm.xlu0 %1361, %v140
  %v1363 = vpop.permute.xlu0 %1362
  %1364 = vset.pattern.permute.xlu0 0
  %1365 = vperm.xlu0 %1364, %v141
  %v1366 = vpop.permute.xlu0 %1365
  %1367 = vset.pattern.permute.xlu0 0
  %1368 = vperm.xlu0 %1367, %v142
  %v1369 = vpop.permute.xlu0 %1368
  %1370 = vset.pattern.permute.xlu0 0
  %1371 = vperm.xlu0 %1370, %v143
  %v1372 = vpop.permute.xlu0 %1371
  %1373 = vset.pattern.permute.xlu0 0
  %1374 = vperm.xlu0 %1373, %v144
  %v1375 = vpop.permute.xlu0 %1374
  %1376 = vset.pattern.permute.xlu0 0
  %1377 = vperm.xlu0 %1376, %v145
  %v1378 = vpop.permute.xlu0 %1377
  %1379 = vset.pattern.permute.xlu0 0
  %1380 = vperm.xlu0 %1379, %v146
  %v1381 = vpop.permute.xlu0 %1380
  %1382 = vset.pattern.permute.xlu0 0
  %1383 = vperm.xlu0 %1382, %v147
  %v1384 = vpop.permute.xlu0 %1383
  %1385 = vset.pattern.permute.xlu0 0
  %1386 = vperm.xlu0 %1385, %v148
  %v1387 = vpop.permute.xlu0 %1386
  %1388 = vset.pattern.permute.xlu0 0
  %1389 = vperm.xlu0 %1388, %v149
  %v1390 = vpop.permute.xlu0 %1389
  %1391 = vset.pattern.permute.xlu0 0
  %1392 = vperm.xlu0 %1391, %v150
  %v1393 = vpop.permute.xlu0 %1392
  %1394 = vset.pattern.permute.xlu0 0
  %1395 = vperm.xlu0 %1394, %v151
  %v1396 = vpop.permute.xlu0 %1395
  %1397 = vset.pattern.permute.xlu0 0
  %1398 = vperm.xlu0 %1397, %v152
  %v1399 = vpop.permute.xlu0 %1398
  %1400 = vset.pattern.permute.xlu0 0
  %1401 = vperm.xlu0 %1400, %v153
  %v1402 = vpop.permute.xlu0 %1401
  %1403 = vset.pattern.permute.xlu0 0
  %1404 = vperm.xlu0 %1403, %v154
  %v1405 = vpop.permute.xlu0 %1404
  %1406 = vset.pattern.permute.xlu0 0
  %1407 = vperm.xlu0 %1406, %v155
  %v1408 = vpop.permute.xlu0 %1407
  %1409 = vset.pattern.permute.xlu0 0
  %1410 = vperm.xlu0 %1409, %v156
  %v1411 = vpop.permute.xlu0 %1410
  %1412 = vset.pattern.permute.xlu0 0
  %1413 = vperm.xlu0 %1412, %v157
  %v1414 = vpop.permute.xlu0 %1413
  %1415 = vset.pattern.permute.xlu0 0
  %1416 = vperm.xlu0 %1415, %v158
  %v1417 = vpop.permute.xlu0 %1416
  %1418 = vset.pattern.permute.xlu0 0
  %1419 = vperm.xlu0 %1418, %v159
  %v1420 = vpop.permute.xlu0 %1419
  %1421 = vset.pattern.permute.xlu0 0
  %1422 = vperm.xlu0 %1421, %v160
  %v1423 = vpop.permute.xlu0 %1422
  %1424 = vset.pattern.permute.xlu0 0
  %1425 = vperm.xlu0 %1424, %v161
  %v1426 = vpop.permute.xlu0 %1425
  %1427 = vset.pattern.permute.xlu0 0
  %1428 = vperm.xlu0 %1427, %v162
  %v1429 = vpop.permute.xlu0 %1428
  %1430 = vset.pattern.permute.xlu0 0
  %1431 = vperm.xlu0 %1430, %v163
  %v1432 = vpop.permute.xlu0 %1431
  %1433 = vset.pattern.permute.xlu0 0
  %1434 = vperm.xlu0 %1433, %v164
  %v1435 = vpop.permute.xlu0 %1434
  %1436 = vset.pattern.permute.xlu0 0
  %1437 = vperm.xlu0 %1436, %v165
  %v1438 = vpop.permute.xlu0 %1437
  %1439 = vset.pattern.permute.xlu0 0
  %1440 = vperm.xlu0 %1439, %v166
  %v1441 = vpop.permute.xlu0 %1440
  %1442 = vset.pattern.permute.xlu0 0
  %1443 = vperm.xlu0 %1442, %v167
  %v1444 = vpop.permute.xlu0 %1443
  %1445 = vset.pattern.permute.xlu0 0
  %1446 = vperm.xlu0 %1445, %v168
  %v1447 = vpop.permute.xlu0 %1446
  %1448 = vset.pattern.permute.xlu0 0
  %1449 = vperm.xlu0 %1448, %v169
  %v1450 = vpop.permute.xlu0 %1449
  %1451 = vset.pattern.permute.xlu0 0
  %1452 = vperm.xlu0 %1451, %v170
  %v1453 = vpop.permute.xlu0 %1452
  %1454 = vset.pattern.permute.xlu0 0
  %1455 = vperm.xlu0 %1454, %v171
  %v1456 = vpop.permute.xlu0 %1455
  %1457 = vset.pattern.permute.xlu0 0
  %1458 = vperm.xlu0 %1457, %v172
  %v1459 = vpop.permute.xlu0 %1458
  %1460 = vset.pattern.permute.xlu0 0
  %1461 = vperm.xlu0 %1460, %v173
  %v1462 = vpop.permute.xlu0 %1461
  %1463 = vset.pattern.permute.xlu0 0
  %1464 = vperm.xlu0 %1463, %v174
  %v1465 = vpop.permute.xlu0 %1464
  %1466 = vset.pattern.permute.xlu0 0
  %1467 = vperm.xlu0 %1466, %v175
  %v1468 = vpop.permute.xlu0 %1467
  %1469 = vset.pattern.permute.xlu0 0
  %1470 = vperm.xlu0 %1469, %v176
  %v1471 = vpop.permute.xlu0 %1470
  %1472 = vset.pattern.permute.xlu0 0
  %1473 = vperm.xlu0 %1472, %v177
  %v1474 = vpop.permute.xlu0 %1473
  %1475 = vset.pattern.permute.xlu0 0
  %1476 = vperm.xlu0 %1475, %v178
  %v1477 = vpop.permute.xlu0 %1476
  %1478 = vset.pattern.permute.xlu0 0
  %1479 = vperm.xlu0 %1478, %v179
  %v1480 = vpop.permute.xlu0 %1479
  %1481 = vset.pattern.permute.xlu0 0
  %1482 = vperm.xlu0 %1481, %v180
  %v1483 = vpop.permute.xlu0 %1482
  %1484 = vset.pattern.permute.xlu0 0
  %1485 = vperm.xlu0 %1484, %v181
  %v1486 = vpop.permute.xlu0 %1485
  %1487 = vset.pattern.permute.xlu0 0
  %1488 = vperm.xlu0 %1487, %v182
  %v1489 = vpop.permute.xlu0 %1488
  %1490 = vset.pattern.permute.xlu0 0
  %1491 = vperm.xlu0 %1490, %v183
  %v1492 = vpop.permute.xlu0 %1491
  %1493 = vset.pattern.permute.xlu0 0
  %1494 = vperm.xlu0 %1493, %v184
  %v1495 = vpop.permute.xlu0 %1494
  %1496 = vset.pattern.permute.xlu0 0
  %1497 = vperm.xlu0 %1496, %v185
  %v1498 = vpop.permute.xlu0 %1497
  %1499 = vset.pattern.permute.xlu0 0
  %1500 = vperm.xlu0 %1499, %v186
  %v1501 = vpop.permute.xlu0 %1500
  %vm1502 = vcmp.eq.s32.totalorder %v1120, %v1117
  %vm1503 = vcmp.eq.s32.totalorder %v1123, %v1117
  %vm1504 = vcmp.eq.s32.totalorder %v1126, %v1117
  %vm1505 = vcmp.eq.s32.totalorder %v1129, %v1117
  %vm1506 = vcmp.eq.s32.totalorder %v1132, %v1117
  %vm1507 = vcmp.eq.s32.totalorder %v1135, %v1117
  %vm1508 = vcmp.eq.s32.totalorder %v1138, %v1117
  %vm1509 = vcmp.eq.s32.totalorder %v1141, %v1117
  %vm1510 = vcmp.eq.s32.totalorder %v1144, %v1117
  %vm1511 = vcmp.eq.s32.totalorder %v1147, %v1117
  %vm1512 = vcmp.eq.s32.totalorder %v1150, %v1117
  %vm1513 = vcmp.eq.s32.totalorder %v1153, %v1117
  %vm1514 = vcmp.eq.s32.totalorder %v1156, %v1117
  %vm1515 = vcmp.eq.s32.totalorder %v1159, %v1117
  %vm1516 = vcmp.eq.s32.totalorder %v1162, %v1117
  %vm1517 = vcmp.eq.s32.totalorder %v1165, %v1117
  %vm1518 = vcmp.eq.s32.totalorder %v1168, %v1117
  %vm1519 = vcmp.eq.s32.totalorder %v1171, %v1117
  %vm1520 = vcmp.eq.s32.totalorder %v1174, %v1117
  %vm1521 = vcmp.eq.s32.totalorder %v1177, %v1117
  %vm1522 = vcmp.eq.s32.totalorder %v1180, %v1117
  %vm1523 = vcmp.eq.s32.totalorder %v1183, %v1117
  %vm1524 = vcmp.eq.s32.totalorder %v1186, %v1117
  %vm1525 = vcmp.eq.s32.totalorder %v1189, %v1117
  %vm1526 = vcmp.eq.s32.totalorder %v1192, %v1117
  %vm1527 = vcmp.eq.s32.totalorder %v1195, %v1117
  %vm1528 = vcmp.eq.s32.totalorder %v1198, %v1117
  %vm1529 = vcmp.eq.s32.totalorder %v1201, %v1117
  %vm1530 = vcmp.eq.s32.totalorder %v1204, %v1117
  %vm1531 = vcmp.eq.s32.totalorder %v1207, %v1117
  %vm1532 = vcmp.eq.s32.totalorder %v1210, %v1117
  %vm1533 = vcmp.eq.s32.totalorder %v1213, %v1117
  %vm1534 = vcmp.eq.s32.totalorder %v1216, %v1117
  %vm1535 = vcmp.eq.s32.totalorder %v1219, %v1117
  %vm1536 = vcmp.eq.s32.totalorder %v1222, %v1117
  %vm1537 = vcmp.eq.s32.totalorder %v1225, %v1117
  %vm1538 = vcmp.eq.s32.totalorder %v1228, %v1117
  %vm1539 = vcmp.eq.s32.totalorder %v1231, %v1117
  %vm1540 = vcmp.eq.s32.totalorder %v1234, %v1117
  %vm1541 = vcmp.eq.s32.totalorder %v1237, %v1117
  %vm1542 = vcmp.eq.s32.totalorder %v1240, %v1117
  %vm1543 = vcmp.eq.s32.totalorder %v1243, %v1117
  %vm1544 = vcmp.eq.s32.totalorder %v1246, %v1117
  %vm1545 = vcmp.eq.s32.totalorder %v1249, %v1117
  %vm1546 = vcmp.eq.s32.totalorder %v1252, %v1117
  %vm1547 = vcmp.eq.s32.totalorder %v1255, %v1117
  %vm1548 = vcmp.eq.s32.totalorder %v1258, %v1117
  %vm1549 = vcmp.eq.s32.totalorder %v1261, %v1117
  %vm1550 = vcmp.eq.s32.totalorder %v1264, %v1117
  %vm1551 = vcmp.eq.s32.totalorder %v1267, %v1117
  %vm1552 = vcmp.eq.s32.totalorder %v1270, %v1117
  %vm1553 = vcmp.eq.s32.totalorder %v1273, %v1117
  %vm1554 = vcmp.eq.s32.totalorder %v1276, %v1117
  %vm1555 = vcmp.eq.s32.totalorder %v1279, %v1117
  %vm1556 = vcmp.eq.s32.totalorder %v1282, %v1117
  %vm1557 = vcmp.eq.s32.totalorder %v1285, %v1117
  %vm1558 = vcmp.eq.s32.totalorder %v1288, %v1117
  %vm1559 = vcmp.eq.s32.totalorder %v1291, %v1117
  %vm1560 = vcmp.eq.s32.totalorder %v1294, %v1117
  %vm1561 = vcmp.eq.s32.totalorder %v1297, %v1117
  %vm1562 = vcmp.eq.s32.totalorder %v1300, %v1117
  %vm1563 = vcmp.eq.s32.totalorder %v1303, %v1117
  %vm1564 = vcmp.eq.s32.totalorder %v1306, %v1117
  %vm1565 = vcmp.eq.s32.totalorder %v1309, %v1117
  %vm1566 = vcmp.eq.s32.totalorder %v1312, %v1117
  %vm1567 = vcmp.eq.s32.totalorder %v1315, %v1117
  %vm1568 = vcmp.eq.s32.totalorder %v1318, %v1117
  %vm1569 = vcmp.eq.s32.totalorder %v1321, %v1117
  %vm1570 = vcmp.eq.s32.totalorder %v1324, %v1117
  %vm1571 = vcmp.eq.s32.totalorder %v1327, %v1117
  %vm1572 = vcmp.eq.s32.totalorder %v1330, %v1117
  %vm1573 = vcmp.eq.s32.totalorder %v1333, %v1117
  %vm1574 = vcmp.eq.s32.totalorder %v1336, %v1117
  %vm1575 = vcmp.eq.s32.totalorder %v1339, %v1117
  %vm1576 = vcmp.eq.s32.totalorder %v1342, %v1117
  %vm1577 = vcmp.eq.s32.totalorder %v1345, %v1117
  %vm1578 = vcmp.eq.s32.totalorder %v1348, %v1117
  %vm1579 = vcmp.eq.s32.totalorder %v1351, %v1117
  %vm1580 = vcmp.eq.s32.totalorder %v1354, %v1117
  %vm1581 = vcmp.eq.s32.totalorder %v1357, %v1117
  %vm1582 = vcmp.eq.s32.totalorder %v1360, %v1117
  %vm1583 = vcmp.eq.s32.totalorder %v1363, %v1117
  %vm1584 = vcmp.eq.s32.totalorder %v1366, %v1117
  %vm1585 = vcmp.eq.s32.totalorder %v1369, %v1117
  %vm1586 = vcmp.eq.s32.totalorder %v1372, %v1117
  %vm1587 = vcmp.eq.s32.totalorder %v1375, %v1117
  %vm1588 = vcmp.eq.s32.totalorder %v1378, %v1117
  %vm1589 = vcmp.eq.s32.totalorder %v1381, %v1117
  %vm1590 = vcmp.eq.s32.totalorder %v1384, %v1117
  %vm1591 = vcmp.eq.s32.totalorder %v1387, %v1117
  %vm1592 = vcmp.eq.s32.totalorder %v1390, %v1117
  %vm1593 = vcmp.eq.s32.totalorder %v1393, %v1117
  %vm1594 = vcmp.eq.s32.totalorder %v1396, %v1117
  %vm1595 = vcmp.eq.s32.totalorder %v1399, %v1117
  %vm1596 = vcmp.eq.s32.totalorder %v1402, %v1117
  %vm1597 = vcmp.eq.s32.totalorder %v1405, %v1117
  %vm1598 = vcmp.eq.s32.totalorder %v1408, %v1117
  %vm1599 = vcmp.eq.s32.totalorder %v1411, %v1117
  %vm1600 = vcmp.eq.s32.totalorder %v1414, %v1117
  %vm1601 = vcmp.eq.s32.totalorder %v1417, %v1117
  %vm1602 = vcmp.eq.s32.totalorder %v1420, %v1117
  %vm1603 = vcmp.eq.s32.totalorder %v1423, %v1117
  %vm1604 = vcmp.eq.s32.totalorder %v1426, %v1117
  %vm1605 = vcmp.eq.s32.totalorder %v1429, %v1117
  %vm1606 = vcmp.eq.s32.totalorder %v1432, %v1117
  %vm1607 = vcmp.eq.s32.totalorder %v1435, %v1117
  %vm1608 = vcmp.eq.s32.totalorder %v1438, %v1117
  %vm1609 = vcmp.eq.s32.totalorder %v1441, %v1117
  %vm1610 = vcmp.eq.s32.totalorder %v1444, %v1117
  %vm1611 = vcmp.eq.s32.totalorder %v1447, %v1117
  %vm1612 = vcmp.eq.s32.totalorder %v1450, %v1117
  %vm1613 = vcmp.eq.s32.totalorder %v1453, %v1117
  %vm1614 = vcmp.eq.s32.totalorder %v1456, %v1117
  %vm1615 = vcmp.eq.s32.totalorder %v1459, %v1117
  %vm1616 = vcmp.eq.s32.totalorder %v1462, %v1117
  %vm1617 = vcmp.eq.s32.totalorder %v1465, %v1117
  %vm1618 = vcmp.eq.s32.totalorder %v1468, %v1117
  %vm1619 = vcmp.eq.s32.totalorder %v1471, %v1117
  %vm1620 = vcmp.eq.s32.totalorder %v1474, %v1117
  %vm1621 = vcmp.eq.s32.totalorder %v1477, %v1117
  %vm1622 = vcmp.eq.s32.totalorder %v1480, %v1117
  %vm1623 = vcmp.eq.s32.totalorder %v1483, %v1117
  %vm1624 = vcmp.eq.s32.totalorder %v1486, %v1117
  %vm1625 = vcmp.eq.s32.totalorder %v1489, %v1117
  %vm1626 = vcmp.eq.s32.totalorder %v1492, %v1117
  %vm1627 = vcmp.eq.s32.totalorder %v1495, %v1117
  %vm1628 = vcmp.eq.s32.totalorder %v1498, %v1117
  %vm1629 = vcmp.eq.s32.totalorder %v1501, %v1117
  %v1630 = vsel %vm1502, 1, 0
  %v1631 = vsel %vm1503, 1, 0
  %v1632 = vsel %vm1504, 1, 0
  %v1633 = vsel %vm1505, 1, 0
  %v1634 = vsel %vm1506, 1, 0
  %v1635 = vsel %vm1507, 1, 0
  %v1636 = vsel %vm1508, 1, 0
  %v1637 = vsel %vm1509, 1, 0
  %v1638 = vsel %vm1510, 1, 0
  %v1639 = vsel %vm1511, 1, 0
  %v1640 = vsel %vm1512, 1, 0
  %v1641 = vsel %vm1513, 1, 0
  %v1642 = vsel %vm1514, 1, 0
  %v1643 = vsel %vm1515, 1, 0
  %v1644 = vsel %vm1516, 1, 0
  %v1645 = vsel %vm1517, 1, 0
  %v1646 = vsel %vm1518, 1, 0
  %v1647 = vsel %vm1519, 1, 0
  %v1648 = vsel %vm1520, 1, 0
  %v1649 = vsel %vm1521, 1, 0
  %v1650 = vsel %vm1522, 1, 0
  %v1651 = vsel %vm1523, 1, 0
  %v1652 = vsel %vm1524, 1, 0
  %v1653 = vsel %vm1525, 1, 0
  %v1654 = vsel %vm1526, 1, 0
  %v1655 = vsel %vm1527, 1, 0
  %v1656 = vsel %vm1528, 1, 0
  %v1657 = vsel %vm1529, 1, 0
  %v1658 = vsel %vm1530, 1, 0
  %v1659 = vsel %vm1531, 1, 0
  %v1660 = vsel %vm1532, 1, 0
  %v1661 = vsel %vm1533, 1, 0
  %v1662 = vsel %vm1534, 1, 0
  %v1663 = vsel %vm1535, 1, 0
  %v1664 = vsel %vm1536, 1, 0
  %v1665 = vsel %vm1537, 1, 0
  %v1666 = vsel %vm1538, 1, 0
  %v1667 = vsel %vm1539, 1, 0
  %v1668 = vsel %vm1540, 1, 0
  %v1669 = vsel %vm1541, 1, 0
  %v1670 = vsel %vm1542, 1, 0
  %v1671 = vsel %vm1543, 1, 0
  %v1672 = vsel %vm1544, 1, 0
  %v1673 = vsel %vm1545, 1, 0
  %v1674 = vsel %vm1546, 1, 0
  %v1675 = vsel %vm1547, 1, 0
  %v1676 = vsel %vm1548, 1, 0
  %v1677 = vsel %vm1549, 1, 0
  %v1678 = vsel %vm1550, 1, 0
  %v1679 = vsel %vm1551, 1, 0
  %v1680 = vsel %vm1552, 1, 0
  %v1681 = vsel %vm1553, 1, 0
  %v1682 = vsel %vm1554, 1, 0
  %v1683 = vsel %vm1555, 1, 0
  %v1684 = vsel %vm1556, 1, 0
  %v1685 = vsel %vm1557, 1, 0
  %v1686 = vsel %vm1558, 1, 0
  %v1687 = vsel %vm1559, 1, 0
  %v1688 = vsel %vm1560, 1, 0
  %v1689 = vsel %vm1561, 1, 0
  %v1690 = vsel %vm1562, 1, 0
  %v1691 = vsel %vm1563, 1, 0
  %v1692 = vsel %vm1564, 1, 0
  %v1693 = vsel %vm1565, 1, 0
  %v1694 = vsel %vm1566, 1, 0
  %v1695 = vsel %vm1567, 1, 0
  %v1696 = vsel %vm1568, 1, 0
  %v1697 = vsel %vm1569, 1, 0
  %v1698 = vsel %vm1570, 1, 0
  %v1699 = vsel %vm1571, 1, 0
  %v1700 = vsel %vm1572, 1, 0
  %v1701 = vsel %vm1573, 1, 0
  %v1702 = vsel %vm1574, 1, 0
  %v1703 = vsel %vm1575, 1, 0
  %v1704 = vsel %vm1576, 1, 0
  %v1705 = vsel %vm1577, 1, 0
  %v1706 = vsel %vm1578, 1, 0
  %v1707 = vsel %vm1579, 1, 0
  %v1708 = vsel %vm1580, 1, 0
  %v1709 = vsel %vm1581, 1, 0
  %v1710 = vsel %vm1582, 1, 0
  %v1711 = vsel %vm1583, 1, 0
  %v1712 = vsel %vm1584, 1, 0
  %v1713 = vsel %vm1585, 1, 0
  %v1714 = vsel %vm1586, 1, 0
  %v1715 = vsel %vm1587, 1, 0
  %v1716 = vsel %vm1588, 1, 0
  %v1717 = vsel %vm1589, 1, 0
  %v1718 = vsel %vm1590, 1, 0
  %v1719 = vsel %vm1591, 1, 0
  %v1720 = vsel %vm1592, 1, 0
  %v1721 = vsel %vm1593, 1, 0
  %v1722 = vsel %vm1594, 1, 0
  %v1723 = vsel %vm1595, 1, 0
  %v1724 = vsel %vm1596, 1, 0
  %v1725 = vsel %vm1597, 1, 0
  %v1726 = vsel %vm1598, 1, 0
  %v1727 = vsel %vm1599, 1, 0
  %v1728 = vsel %vm1600, 1, 0
  %v1729 = vsel %vm1601, 1, 0
  %v1730 = vsel %vm1602, 1, 0
  %v1731 = vsel %vm1603, 1, 0
  %v1732 = vsel %vm1604, 1, 0
  %v1733 = vsel %vm1605, 1, 0
  %v1734 = vsel %vm1606, 1, 0
  %v1735 = vsel %vm1607, 1, 0
  %v1736 = vsel %vm1608, 1, 0
  %v1737 = vsel %vm1609, 1, 0
  %v1738 = vsel %vm1610, 1, 0
  %v1739 = vsel %vm1611, 1, 0
  %v1740 = vsel %vm1612, 1, 0
  %v1741 = vsel %vm1613, 1, 0
  %v1742 = vsel %vm1614, 1, 0
  %v1743 = vsel %vm1615, 1, 0
  %v1744 = vsel %vm1616, 1, 0
  %v1745 = vsel %vm1617, 1, 0
  %v1746 = vsel %vm1618, 1, 0
  %v1747 = vsel %vm1619, 1, 0
  %v1748 = vsel %vm1620, 1, 0
  %v1749 = vsel %vm1621, 1, 0
  %v1750 = vsel %vm1622, 1, 0
  %v1751 = vsel %vm1623, 1, 0
  %v1752 = vsel %vm1624, 1, 0
  %v1753 = vsel %vm1625, 1, 0
  %v1754 = vsel %vm1626, 1, 0
  %v1755 = vsel %vm1627, 1, 0
  %v1756 = vsel %vm1628, 1, 0
  %v1757 = vsel %vm1629, 1, 0
  %v1758 = vcvt.s32.f32 %v1630
  %v1759 = vcvt.s32.f32 %v1631
  %v1760 = vcvt.s32.f32 %v1632
  %v1761 = vcvt.s32.f32 %v1633
  %v1762 = vcvt.s32.f32 %v1634
  %v1763 = vcvt.s32.f32 %v1635
  %v1764 = vcvt.s32.f32 %v1636
  %v1765 = vcvt.s32.f32 %v1637
  %v1766 = vcvt.s32.f32 %v1638
  %v1767 = vcvt.s32.f32 %v1639
  %v1768 = vcvt.s32.f32 %v1640
  %v1769 = vcvt.s32.f32 %v1641
  %v1770 = vcvt.s32.f32 %v1642
  %v1771 = vcvt.s32.f32 %v1643
  %v1772 = vcvt.s32.f32 %v1644
  %v1773 = vcvt.s32.f32 %v1645
  %v1774 = vcvt.s32.f32 %v1646
  %v1775 = vcvt.s32.f32 %v1647
  %v1776 = vcvt.s32.f32 %v1648
  %v1777 = vcvt.s32.f32 %v1649
  %v1778 = vcvt.s32.f32 %v1650
  %v1779 = vcvt.s32.f32 %v1651
  %v1780 = vcvt.s32.f32 %v1652
  %v1781 = vcvt.s32.f32 %v1653
  %v1782 = vcvt.s32.f32 %v1654
  %v1783 = vcvt.s32.f32 %v1655
  %v1784 = vcvt.s32.f32 %v1656
  %v1785 = vcvt.s32.f32 %v1657
  %v1786 = vcvt.s32.f32 %v1658
  %v1787 = vcvt.s32.f32 %v1659
  %v1788 = vcvt.s32.f32 %v1660
  %v1789 = vcvt.s32.f32 %v1661
  %v1790 = vcvt.s32.f32 %v1662
  %v1791 = vcvt.s32.f32 %v1663
  %v1792 = vcvt.s32.f32 %v1664
  %v1793 = vcvt.s32.f32 %v1665
  %v1794 = vcvt.s32.f32 %v1666
  %v1795 = vcvt.s32.f32 %v1667
  %v1796 = vcvt.s32.f32 %v1668
  %v1797 = vcvt.s32.f32 %v1669
  %v1798 = vcvt.s32.f32 %v1670
  %v1799 = vcvt.s32.f32 %v1671
  %v1800 = vcvt.s32.f32 %v1672
  %v1801 = vcvt.s32.f32 %v1673
  %v1802 = vcvt.s32.f32 %v1674
  %v1803 = vcvt.s32.f32 %v1675
  %v1804 = vcvt.s32.f32 %v1676
  %v1805 = vcvt.s32.f32 %v1677
  %v1806 = vcvt.s32.f32 %v1678
  %v1807 = vcvt.s32.f32 %v1679
  %v1808 = vcvt.s32.f32 %v1680
  %v1809 = vcvt.s32.f32 %v1681
  %v1810 = vcvt.s32.f32 %v1682
  %v1811 = vcvt.s32.f32 %v1683
  %v1812 = vcvt.s32.f32 %v1684
  %v1813 = vcvt.s32.f32 %v1685
  %v1814 = vcvt.s32.f32 %v1686
  %v1815 = vcvt.s32.f32 %v1687
  %v1816 = vcvt.s32.f32 %v1688
  %v1817 = vcvt.s32.f32 %v1689
  %v1818 = vcvt.s32.f32 %v1690
  %v1819 = vcvt.s32.f32 %v1691
  %v1820 = vcvt.s32.f32 %v1692
  %v1821 = vcvt.s32.f32 %v1693
  %v1822 = vcvt.s32.f32 %v1694
  %v1823 = vcvt.s32.f32 %v1695
  %v1824 = vcvt.s32.f32 %v1696
  %v1825 = vcvt.s32.f32 %v1697
  %v1826 = vcvt.s32.f32 %v1698
  %v1827 = vcvt.s32.f32 %v1699
  %v1828 = vcvt.s32.f32 %v1700
  %v1829 = vcvt.s32.f32 %v1701
  %v1830 = vcvt.s32.f32 %v1702
  %v1831 = vcvt.s32.f32 %v1703
  %v1832 = vcvt.s32.f32 %v1704
  %v1833 = vcvt.s32.f32 %v1705
  %v1834 = vcvt.s32.f32 %v1706
  %v1835 = vcvt.s32.f32 %v1707
  %v1836 = vcvt.s32.f32 %v1708
  %v1837 = vcvt.s32.f32 %v1709
  %v1838 = vcvt.s32.f32 %v1710
  %v1839 = vcvt.s32.f32 %v1711
  %v1840 = vcvt.s32.f32 %v1712
  %v1841 = vcvt.s32.f32 %v1713
  %v1842 = vcvt.s32.f32 %v1714
  %v1843 = vcvt.s32.f32 %v1715
  %v1844 = vcvt.s32.f32 %v1716
  %v1845 = vcvt.s32.f32 %v1717
  %v1846 = vcvt.s32.f32 %v1718
  %v1847 = vcvt.s32.f32 %v1719
  %v1848 = vcvt.s32.f32 %v1720
  %v1849 = vcvt.s32.f32 %v1721
  %v1850 = vcvt.s32.f32 %v1722
  %v1851 = vcvt.s32.f32 %v1723
  %v1852 = vcvt.s32.f32 %v1724
  %v1853 = vcvt.s32.f32 %v1725
  %v1854 = vcvt.s32.f32 %v1726
  %v1855 = vcvt.s32.f32 %v1727
  %v1856 = vcvt.s32.f32 %v1728
  %v1857 = vcvt.s32.f32 %v1729
  %v1858 = vcvt.s32.f32 %v1730
  %v1859 = vcvt.s32.f32 %v1731
  %v1860 = vcvt.s32.f32 %v1732
  %v1861 = vcvt.s32.f32 %v1733
  %v1862 = vcvt.s32.f32 %v1734
  %v1863 = vcvt.s32.f32 %v1735
  %v1864 = vcvt.s32.f32 %v1736
  %v1865 = vcvt.s32.f32 %v1737
  %v1866 = vcvt.s32.f32 %v1738
  %v1867 = vcvt.s32.f32 %v1739
  %v1868 = vcvt.s32.f32 %v1740
  %v1869 = vcvt.s32.f32 %v1741
  %v1870 = vcvt.s32.f32 %v1742
  %v1871 = vcvt.s32.f32 %v1743
  %v1872 = vcvt.s32.f32 %v1744
  %v1873 = vcvt.s32.f32 %v1745
  %v1874 = vcvt.s32.f32 %v1746
  %v1875 = vcvt.s32.f32 %v1747
  %v1876 = vcvt.s32.f32 %v1748
  %v1877 = vcvt.s32.f32 %v1749
  %v1878 = vcvt.s32.f32 %v1750
  %v1879 = vcvt.s32.f32 %v1751
  %v1880 = vcvt.s32.f32 %v1752
  %v1881 = vcvt.s32.f32 %v1753
  %v1882 = vcvt.s32.f32 %v1754
  %v1883 = vcvt.s32.f32 %v1755
  %v1884 = vcvt.s32.f32 %v1756
  %v1885 = vcvt.s32.f32 %v1757
  %v1886 = vpack.c.bf16 %v1759, %v1758
  %v1887 = vpack.c.bf16 %v1761, %v1760
  %v1888 = vpack.c.bf16 %v1763, %v1762
  %v1889 = vpack.c.bf16 %v1765, %v1764
  %v1890 = vpack.c.bf16 %v1767, %v1766
  %v1891 = vpack.c.bf16 %v1769, %v1768
  %v1892 = vpack.c.bf16 %v1771, %v1770
  %v1893 = vpack.c.bf16 %v1773, %v1772
  %v1894 = vpack.c.bf16 %v1775, %v1774
  %v1895 = vpack.c.bf16 %v1777, %v1776
  %v1896 = vpack.c.bf16 %v1779, %v1778
  %v1897 = vpack.c.bf16 %v1781, %v1780
  %v1898 = vpack.c.bf16 %v1783, %v1782
  %v1899 = vpack.c.bf16 %v1785, %v1784
  %v1900 = vpack.c.bf16 %v1787, %v1786
  %v1901 = vpack.c.bf16 %v1789, %v1788
  %v1902 = vpack.c.bf16 %v1791, %v1790
  %v1903 = vpack.c.bf16 %v1793, %v1792
  %v1904 = vpack.c.bf16 %v1795, %v1794
  %v1905 = vpack.c.bf16 %v1797, %v1796
  %v1906 = vpack.c.bf16 %v1799, %v1798
  %v1907 = vpack.c.bf16 %v1801, %v1800
  %v1908 = vpack.c.bf16 %v1803, %v1802
  %v1909 = vpack.c.bf16 %v1805, %v1804
  %v1910 = vpack.c.bf16 %v1807, %v1806
  %v1911 = vpack.c.bf16 %v1809, %v1808
  %v1912 = vpack.c.bf16 %v1811, %v1810
  %v1913 = vpack.c.bf16 %v1813, %v1812
  %v1914 = vpack.c.bf16 %v1815, %v1814
  %v1915 = vpack.c.bf16 %v1817, %v1816
  %v1916 = vpack.c.bf16 %v1819, %v1818
  %v1917 = vpack.c.bf16 %v1821, %v1820
  %v1918 = vpack.c.bf16 %v1823, %v1822
  %v1919 = vpack.c.bf16 %v1825, %v1824
  %v1920 = vpack.c.bf16 %v1827, %v1826
  %v1921 = vpack.c.bf16 %v1829, %v1828
  %v1922 = vpack.c.bf16 %v1831, %v1830
  %v1923 = vpack.c.bf16 %v1833, %v1832
  %v1924 = vpack.c.bf16 %v1835, %v1834
  %v1925 = vpack.c.bf16 %v1837, %v1836
  %v1926 = vpack.c.bf16 %v1839, %v1838
  %v1927 = vpack.c.bf16 %v1841, %v1840
  %v1928 = vpack.c.bf16 %v1843, %v1842
  %v1929 = vpack.c.bf16 %v1845, %v1844
  %v1930 = vpack.c.bf16 %v1847, %v1846
  %v1931 = vpack.c.bf16 %v1849, %v1848
  %v1932 = vpack.c.bf16 %v1851, %v1850
  %v1933 = vpack.c.bf16 %v1853, %v1852
  %v1934 = vpack.c.bf16 %v1855, %v1854
  %v1935 = vpack.c.bf16 %v1857, %v1856
  %v1936 = vpack.c.bf16 %v1859, %v1858
  %v1937 = vpack.c.bf16 %v1861, %v1860
  %v1938 = vpack.c.bf16 %v1863, %v1862
  %v1939 = vpack.c.bf16 %v1865, %v1864
  %v1940 = vpack.c.bf16 %v1867, %v1866
  %v1941 = vpack.c.bf16 %v1869, %v1868
  %v1942 = vpack.c.bf16 %v1871, %v1870
  %v1943 = vpack.c.bf16 %v1873, %v1872
  %v1944 = vpack.c.bf16 %v1875, %v1874
  %v1945 = vpack.c.bf16 %v1877, %v1876
  %v1946 = vpack.c.bf16 %v1879, %v1878
  %v1947 = vpack.c.bf16 %v1881, %v1880
  %v1948 = vpack.c.bf16 %v1883, %v1882
  %v1949 = vpack.c.bf16 %v1885, %v1884
  %v1950 = vpack.c.bf16 %v1109, %v1108
  %v1951 = vpack.c.bf16 %v1111, %v1110
  %v1952 = vpack.c.bf16 %v1113, %v1112
  %v1953 = vpack.c.bf16 %v1115, %v1114
  %vm1954 = vcmask 523264
  %v1956 = vsel %vm1954, %v1886, 0
  %v1959 = vsel %vm1954, %v1887, 0
  %v1962 = vsel %vm1954, %v1888, 0
  %v1965 = vsel %vm1954, %v1889, 0
  %v1968 = vsel %vm1954, %v1890, 0
  %v1971 = vsel %vm1954, %v1891, 0
  %v1974 = vsel %vm1954, %v1892, 0
  %v1977 = vsel %vm1954, %v1893, 0
  %v1980 = vsel %vm1954, %v1894, 0
  %v1983 = vsel %vm1954, %v1895, 0
  %v1986 = vsel %vm1954, %v1896, 0
  %v1989 = vsel %vm1954, %v1897, 0
  %v1992 = vsel %vm1954, %v1898, 0
  %v1995 = vsel %vm1954, %v1899, 0
  %v1998 = vsel %vm1954, %v1900, 0
  %v2001 = vsel %vm1954, %v1901, 0
  %v2004 = vsel %vm1954, %v1902, 0
  %v2007 = vsel %vm1954, %v1903, 0
  %v2010 = vsel %vm1954, %v1904, 0
  %v2013 = vsel %vm1954, %v1905, 0
  %v2016 = vsel %vm1954, %v1906, 0
  %v2019 = vsel %vm1954, %v1907, 0
  %v2022 = vsel %vm1954, %v1908, 0
  %v2025 = vsel %vm1954, %v1909, 0
  %v2028 = vsel %vm1954, %v1910, 0
  %v2031 = vsel %vm1954, %v1911, 0
  %v2034 = vsel %vm1954, %v1912, 0
  %v2037 = vsel %vm1954, %v1913, 0
  %v2040 = vsel %vm1954, %v1914, 0
  %v2043 = vsel %vm1954, %v1915, 0
  %v2046 = vsel %vm1954, %v1916, 0
  %v2049 = vsel %vm1954, %v1917, 0
  %v2052 = vsel %vm1954, %v1918, 0
  %v2055 = vsel %vm1954, %v1919, 0
  %v2058 = vsel %vm1954, %v1920, 0
  %v2061 = vsel %vm1954, %v1921, 0
  %v2064 = vsel %vm1954, %v1922, 0
  %v2067 = vsel %vm1954, %v1923, 0
  %v2070 = vsel %vm1954, %v1924, 0
  %v2073 = vsel %vm1954, %v1925, 0
  %v2076 = vsel %vm1954, %v1926, 0
  %v2079 = vsel %vm1954, %v1927, 0
  %v2082 = vsel %vm1954, %v1928, 0
  %v2085 = vsel %vm1954, %v1929, 0
  %v2088 = vsel %vm1954, %v1930, 0
  %v2091 = vsel %vm1954, %v1931, 0
  %v2094 = vsel %vm1954, %v1932, 0
  %v2097 = vsel %vm1954, %v1933, 0
  %v2100 = vsel %vm1954, %v1934, 0
  %v2103 = vsel %vm1954, %v1935, 0
  %v2106 = vsel %vm1954, %v1936, 0
  %v2109 = vsel %vm1954, %v1937, 0
  %v2112 = vsel %vm1954, %v1938, 0
  %v2115 = vsel %vm1954, %v1939, 0
  %v2118 = vsel %vm1954, %v1940, 0
  %v2121 = vsel %vm1954, %v1941, 0
  %v2124 = vsel %vm1954, %v1942, 0
  %v2127 = vsel %vm1954, %v1943, 0
  %v2130 = vsel %vm1954, %v1944, 0
  %v2133 = vsel %vm1954, %v1945, 0
  %v2136 = vsel %vm1954, %v1946, 0
  %v2139 = vsel %vm1954, %v1947, 0
  %v2142 = vsel %vm1954, %v1948, 0
  %v2145 = vsel %vm1954, %v1949, 0
  %2147 = vmatprep.subr.bf16.mxu0 0
  %2148 = vmatpush1.bf16.msra.mxu0 %v1950
  %2149 = vmatprep.subr.bf16.mxu0 0
  %2150 = vmatpush1.bf16.msra.mxu0 %v1951
  %2151 = vmatprep.subr.bf16.mxu0 0
  %2152 = vmatpush1.bf16.msra.mxu0 %v1952
  %2153 = vmatprep.subr.bf16.mxu0 0
  %2154 = vmatpush1.bf16.msra.mxu0 %v1953
  %2155 = vmatprep.subr.bf16.mxu0 0
  %2156 = vmatpush1.bf16.msra.mxu0 0
  %2157 = vmatprep.subr.bf16.mxu0 0
  %2158 = vmatpush1.bf16.msra.mxu0 0
  %2159 = vmatprep.subr.bf16.mxu0 0
  %2160 = vmatpush1.bf16.msra.mxu0 0
  %2161 = vmatprep.subr.bf16.mxu0 0
  %2162 = vmatpush1.bf16.msra.mxu0 0
  %2163 = vmatprep.subr.bf16.mxu0 0
  %2164 = vmatpush1.bf16.msra.mxu0 0
  %2165 = vmatprep.subr.bf16.mxu0 0
  %2166 = vmatpush1.bf16.msra.mxu0 0
  %2167 = vmatprep.subr.bf16.mxu0 0
  %2168 = vmatpush1.bf16.msra.mxu0 0
  %2169 = vmatprep.subr.bf16.mxu0 0
  %2170 = vmatpush1.bf16.msra.mxu0 0
  %2171 = vmatprep.subr.bf16.mxu0 0
  %2172 = vmatpush1.bf16.msra.mxu0 0
  %2173 = vmatprep.subr.bf16.mxu0 0
  %2174 = vmatpush1.bf16.msra.mxu0 0
  %2175 = vmatprep.subr.bf16.mxu0 0
  %2176 = vmatpush1.bf16.msra.mxu0 0
  %2177 = vmatprep.subr.bf16.mxu0 0
  %2178 = vmatpush1.bf16.msra.mxu0 0
  %2179 = vmatprep.mubr.bf16.mxu0 0
  %2180 = vmatmul.mubr.bf16.gmra.mrb[0].mxu0 %v1956
  %v2181 = vpop.f32.mrb[0].mxu0
  %v2182 = vadd.f32 0.0, %v2181
  %v2183 = vpop.f32.mrb[0].mxu0
  %v2184 = vpop.f32.mrb[0].mxu0
  %v2185 = vadd.f32 0.0, %v2184
  %v2186 = vpop.f32.mrb[0].mxu0
  %2187 = vmatprep.mubr.bf16.mxu0 0
  %2188 = vmatmul.mubr.bf16.gmra.mrb[0].mxu0 %v1959
  %v2189 = vpop.f32.mrb[0].mxu0
  %v2190 = vadd.f32 0.0, %v2189
  %v2191 = vpop.f32.mrb[0].mxu0
  %v2192 = vpop.f32.mrb[0].mxu0
  %v2193 = vadd.f32 0.0, %v2192
  %v2194 = vpop.f32.mrb[0].mxu0
  %2195 = vmatprep.mubr.bf16.mxu0 0
  %2196 = vmatmul.mubr.bf16.gmra.mrb[0].mxu0 %v1962
  %v2197 = vpop.f32.mrb[0].mxu0
  %v2198 = vadd.f32 0.0, %v2197
  %v2199 = vpop.f32.mrb[0].mxu0
  %v2200 = vpop.f32.mrb[0].mxu0
  %v2201 = vadd.f32 0.0, %v2200
  %v2202 = vpop.f32.mrb[0].mxu0
  %2203 = vmatprep.mubr.bf16.mxu0 0
  %2204 = vmatmul.mubr.bf16.gmra.mrb[0].mxu0 %v1965
  %v2205 = vpop.f32.mrb[0].mxu0
  %v2206 = vadd.f32 0.0, %v2205
  %v2207 = vpop.f32.mrb[0].mxu0
  %v2208 = vpop.f32.mrb[0].mxu0
  %v2209 = vadd.f32 0.0, %v2208
  %v2210 = vpop.f32.mrb[0].mxu0
  %2211 = vmatprep.mubr.bf16.mxu0 0
  %2212 = vmatmul.mubr.bf16.gmra.mrb[0].mxu0 %v1968
  %v2213 = vpop.f32.mrb[0].mxu0
  %v2214 = vadd.f32 0.0, %v2213
  %v2215 = vpop.f32.mrb[0].mxu0
  %v2216 = vpop.f32.mrb[0].mxu0
  %v2217 = vadd.f32 0.0, %v2216
  %v2218 = vpop.f32.mrb[0].mxu0
  %2219 = vmatprep.mubr.bf16.mxu0 0
  %2220 = vmatmul.mubr.bf16.gmra.mrb[0].mxu0 %v1971
  %v2221 = vpop.f32.mrb[0].mxu0
  %v2222 = vadd.f32 0.0, %v2221
  %v2223 = vpop.f32.mrb[0].mxu0
  %v2224 = vpop.f32.mrb[0].mxu0
  %v2225 = vadd.f32 0.0, %v2224
  %v2226 = vpop.f32.mrb[0].mxu0
  %2227 = vmatprep.mubr.bf16.mxu0 0
  %2228 = vmatmul.mubr.bf16.gmra.mrb[0].mxu0 %v1974
  %v2229 = vpop.f32.mrb[0].mxu0
  %v2230 = vadd.f32 0.0, %v2229
  %v2231 = vpop.f32.mrb[0].mxu0
  %v2232 = vpop.f32.mrb[0].mxu0
  %v2233 = vadd.f32 0.0, %v2232
  %v2234 = vpop.f32.mrb[0].mxu0
  %2235 = vmatprep.mubr.bf16.mxu0 0
  %2236 = vmatmul.mubr.bf16.gmra.mrb[0].mxu0 %v1977
  %v2237 = vpop.f32.mrb[0].mxu0
  %v2238 = vadd.f32 0.0, %v2237
  %v2239 = vpop.f32.mrb[0].mxu0
  %v2240 = vpop.f32.mrb[0].mxu0
  %v2241 = vadd.f32 0.0, %v2240
  %v2242 = vpop.f32.mrb[0].mxu0
  %2243 = vmatprep.mubr.bf16.mxu0 0
  %2244 = vmatmul.mubr.bf16.gmra.mrb[0].mxu0 %v1980
  %v2245 = vpop.f32.mrb[0].mxu0
  %v2246 = vadd.f32 0.0, %v2245
  %v2247 = vpop.f32.mrb[0].mxu0
  %v2248 = vpop.f32.mrb[0].mxu0
  %v2249 = vadd.f32 0.0, %v2248
  %v2250 = vpop.f32.mrb[0].mxu0
  %2251 = vmatprep.mubr.bf16.mxu0 0
  %2252 = vmatmul.mubr.bf16.gmra.mrb[0].mxu0 %v1983
  %v2253 = vpop.f32.mrb[0].mxu0
  %v2254 = vadd.f32 0.0, %v2253
  %v2255 = vpop.f32.mrb[0].mxu0
  %v2256 = vpop.f32.mrb[0].mxu0
  %v2257 = vadd.f32 0.0, %v2256
  %v2258 = vpop.f32.mrb[0].mxu0
  %2259 = vmatprep.mubr.bf16.mxu0 0
  %2260 = vmatmul.mubr.bf16.gmra.mrb[0].mxu0 %v1986
  %v2261 = vpop.f32.mrb[0].mxu0
  %v2262 = vadd.f32 0.0, %v2261
  %v2263 = vpop.f32.mrb[0].mxu0
  %v2264 = vpop.f32.mrb[0].mxu0
  %v2265 = vadd.f32 0.0, %v2264
  %v2266 = vpop.f32.mrb[0].mxu0
  %2267 = vmatprep.mubr.bf16.mxu0 0
  %2268 = vmatmul.mubr.bf16.gmra.mrb[0].mxu0 %v1989
  %v2269 = vpop.f32.mrb[0].mxu0
  %v2270 = vadd.f32 0.0, %v2269
  %v2271 = vpop.f32.mrb[0].mxu0
  %v2272 = vpop.f32.mrb[0].mxu0
  %v2273 = vadd.f32 0.0, %v2272
  %v2274 = vpop.f32.mrb[0].mxu0
  %2275 = vmatprep.mubr.bf16.mxu0 0
  %2276 = vmatmul.mubr.bf16.gmra.mrb[0].mxu0 %v1992
  %v2277 = vpop.f32.mrb[0].mxu0
  %v2278 = vadd.f32 0.0, %v2277
  %v2279 = vpop.f32.mrb[0].mxu0
  %v2280 = vpop.f32.mrb[0].mxu0
  %v2281 = vadd.f32 0.0, %v2280
  %v2282 = vpop.f32.mrb[0].mxu0
  %2283 = vmatprep.mubr.bf16.mxu0 0
  %2284 = vmatmul.mubr.bf16.gmra.mrb[0].mxu0 %v1995
  %v2285 = vpop.f32.mrb[0].mxu0
  %v2286 = vadd.f32 0.0, %v2285
  %v2287 = vpop.f32.mrb[0].mxu0
  %v2288 = vpop.f32.mrb[0].mxu0
  %v2289 = vadd.f32 0.0, %v2288
  %v2290 = vpop.f32.mrb[0].mxu0
  %2291 = vmatprep.mubr.bf16.mxu0 0
  %2292 = vmatmul.mubr.bf16.gmra.mrb[0].mxu0 %v1998
  %v2293 = vpop.f32.mrb[0].mxu0
  %v2294 = vadd.f32 0.0, %v2293
  %v2295 = vpop.f32.mrb[0].mxu0
  %v2296 = vpop.f32.mrb[0].mxu0
  %v2297 = vadd.f32 0.0, %v2296
  %v2298 = vpop.f32.mrb[0].mxu0
  %2299 = vmatprep.mubr.bf16.mxu0 0
  %2300 = vmatmul.mubr.bf16.gmra.mrb[0].mxu0 %v2001
  %v2301 = vpop.f32.mrb[0].mxu0
  %v2302 = vadd.f32 0.0, %v2301
  %v2303 = vpop.f32.mrb[0].mxu0
  %v2304 = vpop.f32.mrb[0].mxu0
  %v2305 = vadd.f32 0.0, %v2304
  %v2306 = vpop.f32.mrb[0].mxu0
  %2307 = vmatprep.mubr.bf16.mxu0 0
  %2308 = vmatmul.mubr.bf16.gmra.mrb[0].mxu0 %v2004
  %v2309 = vpop.f32.mrb[0].mxu0
  %v2310 = vadd.f32 0.0, %v2309
  %v2311 = vpop.f32.mrb[0].mxu0
  %v2312 = vpop.f32.mrb[0].mxu0
  %v2313 = vadd.f32 0.0, %v2312
  %v2314 = vpop.f32.mrb[0].mxu0
  %2315 = vmatprep.mubr.bf16.mxu0 0
  %2316 = vmatmul.mubr.bf16.gmra.mrb[0].mxu0 %v2007
  %v2317 = vpop.f32.mrb[0].mxu0
  %v2318 = vadd.f32 0.0, %v2317
  %v2319 = vpop.f32.mrb[0].mxu0
  %v2320 = vpop.f32.mrb[0].mxu0
  %v2321 = vadd.f32 0.0, %v2320
  %v2322 = vpop.f32.mrb[0].mxu0
  %2323 = vmatprep.mubr.bf16.mxu0 0
  %2324 = vmatmul.mubr.bf16.gmra.mrb[0].mxu0 %v2010
  %v2325 = vpop.f32.mrb[0].mxu0
  %v2326 = vadd.f32 0.0, %v2325
  %v2327 = vpop.f32.mrb[0].mxu0
  %v2328 = vpop.f32.mrb[0].mxu0
  %v2329 = vadd.f32 0.0, %v2328
  %v2330 = vpop.f32.mrb[0].mxu0
  %2331 = vmatprep.mubr.bf16.mxu0 0
  %2332 = vmatmul.mubr.bf16.gmra.mrb[0].mxu0 %v2013
  %v2333 = vpop.f32.mrb[0].mxu0
  %v2334 = vadd.f32 0.0, %v2333
  %v2335 = vpop.f32.mrb[0].mxu0
  %v2336 = vpop.f32.mrb[0].mxu0
  %v2337 = vadd.f32 0.0, %v2336
  %v2338 = vpop.f32.mrb[0].mxu0
  %2339 = vmatprep.mubr.bf16.mxu0 0
  %2340 = vmatmul.mubr.bf16.gmra.mrb[0].mxu0 %v2016
  %v2341 = vpop.f32.mrb[0].mxu0
  %v2342 = vadd.f32 0.0, %v2341
  %v2343 = vpop.f32.mrb[0].mxu0
  %v2344 = vpop.f32.mrb[0].mxu0
  %v2345 = vadd.f32 0.0, %v2344
  %v2346 = vpop.f32.mrb[0].mxu0
  %2347 = vmatprep.mubr.bf16.mxu0 0
  %2348 = vmatmul.mubr.bf16.gmra.mrb[0].mxu0 %v2019
  %v2349 = vpop.f32.mrb[0].mxu0
  %v2350 = vadd.f32 0.0, %v2349
  %v2351 = vpop.f32.mrb[0].mxu0
  %v2352 = vpop.f32.mrb[0].mxu0
  %v2353 = vadd.f32 0.0, %v2352
  %v2354 = vpop.f32.mrb[0].mxu0
  %2355 = vmatprep.mubr.bf16.mxu0 0
  %2356 = vmatmul.mubr.bf16.gmra.mrb[0].mxu0 %v2022
  %v2357 = vpop.f32.mrb[0].mxu0
  %v2358 = vadd.f32 0.0, %v2357
  %v2359 = vpop.f32.mrb[0].mxu0
  %v2360 = vpop.f32.mrb[0].mxu0
  %v2361 = vadd.f32 0.0, %v2360
  %v2362 = vpop.f32.mrb[0].mxu0
  %2363 = vmatprep.mubr.bf16.mxu0 0
  %2364 = vmatmul.mubr.bf16.gmra.mrb[0].mxu0 %v2025
  %v2365 = vpop.f32.mrb[0].mxu0
  %v2366 = vadd.f32 0.0, %v2365
  %v2367 = vpop.f32.mrb[0].mxu0
  %v2368 = vpop.f32.mrb[0].mxu0
  %v2369 = vadd.f32 0.0, %v2368
  %v2370 = vpop.f32.mrb[0].mxu0
  %2371 = vmatprep.mubr.bf16.mxu0 0
  %2372 = vmatmul.mubr.bf16.gmra.mrb[0].mxu0 %v2028
  %v2373 = vpop.f32.mrb[0].mxu0
  %v2374 = vadd.f32 0.0, %v2373
  %v2375 = vpop.f32.mrb[0].mxu0
  %v2376 = vpop.f32.mrb[0].mxu0
  %v2377 = vadd.f32 0.0, %v2376
  %v2378 = vpop.f32.mrb[0].mxu0
  %2379 = vmatprep.mubr.bf16.mxu0 0
  %2380 = vmatmul.mubr.bf16.gmra.mrb[0].mxu0 %v2031
  %v2381 = vpop.f32.mrb[0].mxu0
  %v2382 = vadd.f32 0.0, %v2381
  %v2383 = vpop.f32.mrb[0].mxu0
  %v2384 = vpop.f32.mrb[0].mxu0
  %v2385 = vadd.f32 0.0, %v2384
  %v2386 = vpop.f32.mrb[0].mxu0
  %2387 = vmatprep.mubr.bf16.mxu0 0
  %2388 = vmatmul.mubr.bf16.gmra.mrb[0].mxu0 %v2034
  %v2389 = vpop.f32.mrb[0].mxu0
  %v2390 = vadd.f32 0.0, %v2389
  %v2391 = vpop.f32.mrb[0].mxu0
  %v2392 = vpop.f32.mrb[0].mxu0
  %v2393 = vadd.f32 0.0, %v2392
  %v2394 = vpop.f32.mrb[0].mxu0
  %2395 = vmatprep.mubr.bf16.mxu0 0
  %2396 = vmatmul.mubr.bf16.gmra.mrb[0].mxu0 %v2037
  %v2397 = vpop.f32.mrb[0].mxu0
  %v2398 = vadd.f32 0.0, %v2397
  %v2399 = vpop.f32.mrb[0].mxu0
  %v2400 = vpop.f32.mrb[0].mxu0
  %v2401 = vadd.f32 0.0, %v2400
  %v2402 = vpop.f32.mrb[0].mxu0
  %2403 = vmatprep.mubr.bf16.mxu0 0
  %2404 = vmatmul.mubr.bf16.gmra.mrb[0].mxu0 %v2040
  %v2405 = vpop.f32.mrb[0].mxu0
  %v2406 = vadd.f32 0.0, %v2405
  %v2407 = vpop.f32.mrb[0].mxu0
  %v2408 = vpop.f32.mrb[0].mxu0
  %v2409 = vadd.f32 0.0, %v2408
  %v2410 = vpop.f32.mrb[0].mxu0
  %2411 = vmatprep.mubr.bf16.mxu0 0
  %2412 = vmatmul.mubr.bf16.gmra.mrb[0].mxu0 %v2043
  %v2413 = vpop.f32.mrb[0].mxu0
  %v2414 = vadd.f32 0.0, %v2413
  %v2415 = vpop.f32.mrb[0].mxu0
  %v2416 = vpop.f32.mrb[0].mxu0
  %v2417 = vadd.f32 0.0, %v2416
  %v2418 = vpop.f32.mrb[0].mxu0
  %2419 = vmatprep.mubr.bf16.mxu0 0
  %2420 = vmatmul.mubr.bf16.gmra.mrb[0].mxu0 %v2046
  %v2421 = vpop.f32.mrb[0].mxu0
  %v2422 = vadd.f32 0.0, %v2421
  %v2423 = vpop.f32.mrb[0].mxu0
  %v2424 = vpop.f32.mrb[0].mxu0
  %v2425 = vadd.f32 0.0, %v2424
  %v2426 = vpop.f32.mrb[0].mxu0
  %2427 = vmatprep.mubr.bf16.mxu0 0
  %2428 = vmatmul.mubr.bf16.gmra.mrb[0].mxu0 %v2049
  %v2429 = vpop.f32.mrb[0].mxu0
  %v2430 = vadd.f32 0.0, %v2429
  %v2431 = vpop.f32.mrb[0].mxu0
  %v2432 = vpop.f32.mrb[0].mxu0
  %v2433 = vadd.f32 0.0, %v2432
  %v2434 = vpop.f32.mrb[0].mxu0
  %2435 = vmatprep.mubr.bf16.mxu0 0
  %2436 = vmatmul.mubr.bf16.gmra.mrb[0].mxu0 %v2052
  %v2437 = vpop.f32.mrb[0].mxu0
  %v2438 = vadd.f32 0.0, %v2437
  %v2439 = vpop.f32.mrb[0].mxu0
  %v2440 = vpop.f32.mrb[0].mxu0
  %v2441 = vadd.f32 0.0, %v2440
  %v2442 = vpop.f32.mrb[0].mxu0
  %2443 = vmatprep.mubr.bf16.mxu0 0
  %2444 = vmatmul.mubr.bf16.gmra.mrb[0].mxu0 %v2055
  %v2445 = vpop.f32.mrb[0].mxu0
  %v2446 = vadd.f32 0.0, %v2445
  %v2447 = vpop.f32.mrb[0].mxu0
  %v2448 = vpop.f32.mrb[0].mxu0
  %v2449 = vadd.f32 0.0, %v2448
  %v2450 = vpop.f32.mrb[0].mxu0
  %2451 = vmatprep.mubr.bf16.mxu0 0
  %2452 = vmatmul.mubr.bf16.gmra.mrb[0].mxu0 %v2058
  %v2453 = vpop.f32.mrb[0].mxu0
  %v2454 = vadd.f32 0.0, %v2453
  %v2455 = vpop.f32.mrb[0].mxu0
  %v2456 = vpop.f32.mrb[0].mxu0
  %v2457 = vadd.f32 0.0, %v2456
  %v2458 = vpop.f32.mrb[0].mxu0
  %2459 = vmatprep.mubr.bf16.mxu0 0
  %2460 = vmatmul.mubr.bf16.gmra.mrb[0].mxu0 %v2061
  %v2461 = vpop.f32.mrb[0].mxu0
  %v2462 = vadd.f32 0.0, %v2461
  %v2463 = vpop.f32.mrb[0].mxu0
  %v2464 = vpop.f32.mrb[0].mxu0
  %v2465 = vadd.f32 0.0, %v2464
  %v2466 = vpop.f32.mrb[0].mxu0
  %2467 = vmatprep.mubr.bf16.mxu0 0
  %2468 = vmatmul.mubr.bf16.gmra.mrb[0].mxu0 %v2064
  %v2469 = vpop.f32.mrb[0].mxu0
  %v2470 = vadd.f32 0.0, %v2469
  %v2471 = vpop.f32.mrb[0].mxu0
  %v2472 = vpop.f32.mrb[0].mxu0
  %v2473 = vadd.f32 0.0, %v2472
  %v2474 = vpop.f32.mrb[0].mxu0
  %2475 = vmatprep.mubr.bf16.mxu0 0
  %2476 = vmatmul.mubr.bf16.gmra.mrb[0].mxu0 %v2067
  %v2477 = vpop.f32.mrb[0].mxu0
  %v2478 = vadd.f32 0.0, %v2477
  %v2479 = vpop.f32.mrb[0].mxu0
  %v2480 = vpop.f32.mrb[0].mxu0
  %v2481 = vadd.f32 0.0, %v2480
  %v2482 = vpop.f32.mrb[0].mxu0
  %2483 = vmatprep.mubr.bf16.mxu0 0
  %2484 = vmatmul.mubr.bf16.gmra.mrb[0].mxu0 %v2070
  %v2485 = vpop.f32.mrb[0].mxu0
  %v2486 = vadd.f32 0.0, %v2485
  %v2487 = vpop.f32.mrb[0].mxu0
  %v2488 = vpop.f32.mrb[0].mxu0
  %v2489 = vadd.f32 0.0, %v2488
  %v2490 = vpop.f32.mrb[0].mxu0
  %2491 = vmatprep.mubr.bf16.mxu0 0
  %2492 = vmatmul.mubr.bf16.gmra.mrb[0].mxu0 %v2073
  %v2493 = vpop.f32.mrb[0].mxu0
  %v2494 = vadd.f32 0.0, %v2493
  %v2495 = vpop.f32.mrb[0].mxu0
  %v2496 = vpop.f32.mrb[0].mxu0
  %v2497 = vadd.f32 0.0, %v2496
  %v2498 = vpop.f32.mrb[0].mxu0
  %2499 = vmatprep.mubr.bf16.mxu0 0
  %2500 = vmatmul.mubr.bf16.gmra.mrb[0].mxu0 %v2076
  %v2501 = vpop.f32.mrb[0].mxu0
  %v2502 = vadd.f32 0.0, %v2501
  %v2503 = vpop.f32.mrb[0].mxu0
  %v2504 = vpop.f32.mrb[0].mxu0
  %v2505 = vadd.f32 0.0, %v2504
  %v2506 = vpop.f32.mrb[0].mxu0
  %2507 = vmatprep.mubr.bf16.mxu0 0
  %2508 = vmatmul.mubr.bf16.gmra.mrb[0].mxu0 %v2079
  %v2509 = vpop.f32.mrb[0].mxu0
  %v2510 = vadd.f32 0.0, %v2509
  %v2511 = vpop.f32.mrb[0].mxu0
  %v2512 = vpop.f32.mrb[0].mxu0
  %v2513 = vadd.f32 0.0, %v2512
  %v2514 = vpop.f32.mrb[0].mxu0
  %2515 = vmatprep.mubr.bf16.mxu0 0
  %2516 = vmatmul.mubr.bf16.gmra.mrb[0].mxu0 %v2082
  %v2517 = vpop.f32.mrb[0].mxu0
  %v2518 = vadd.f32 0.0, %v2517
  %v2519 = vpop.f32.mrb[0].mxu0
  %v2520 = vpop.f32.mrb[0].mxu0
  %v2521 = vadd.f32 0.0, %v2520
  %v2522 = vpop.f32.mrb[0].mxu0
  %2523 = vmatprep.mubr.bf16.mxu0 0
  %2524 = vmatmul.mubr.bf16.gmra.mrb[0].mxu0 %v2085
  %v2525 = vpop.f32.mrb[0].mxu0
  %v2526 = vadd.f32 0.0, %v2525
  %v2527 = vpop.f32.mrb[0].mxu0
  %v2528 = vpop.f32.mrb[0].mxu0
  %v2529 = vadd.f32 0.0, %v2528
  %v2530 = vpop.f32.mrb[0].mxu0
  %2531 = vmatprep.mubr.bf16.mxu0 0
  %2532 = vmatmul.mubr.bf16.gmra.mrb[0].mxu0 %v2088
  %v2533 = vpop.f32.mrb[0].mxu0
  %v2534 = vadd.f32 0.0, %v2533
  %v2535 = vpop.f32.mrb[0].mxu0
  %v2536 = vpop.f32.mrb[0].mxu0
  %v2537 = vadd.f32 0.0, %v2536
  %v2538 = vpop.f32.mrb[0].mxu0
  %2539 = vmatprep.mubr.bf16.mxu0 0
  %2540 = vmatmul.mubr.bf16.gmra.mrb[0].mxu0 %v2091
  %v2541 = vpop.f32.mrb[0].mxu0
  %v2542 = vadd.f32 0.0, %v2541
  %v2543 = vpop.f32.mrb[0].mxu0
  %v2544 = vpop.f32.mrb[0].mxu0
  %v2545 = vadd.f32 0.0, %v2544
  %v2546 = vpop.f32.mrb[0].mxu0
  %2547 = vmatprep.mubr.bf16.mxu0 0
  %2548 = vmatmul.mubr.bf16.gmra.mrb[0].mxu0 %v2094
  %v2549 = vpop.f32.mrb[0].mxu0
  %v2550 = vadd.f32 0.0, %v2549
  %v2551 = vpop.f32.mrb[0].mxu0
  %v2552 = vpop.f32.mrb[0].mxu0
  %v2553 = vadd.f32 0.0, %v2552
  %v2554 = vpop.f32.mrb[0].mxu0
  %2555 = vmatprep.mubr.bf16.mxu0 0
  %2556 = vmatmul.mubr.bf16.gmra.mrb[0].mxu0 %v2097
  %v2557 = vpop.f32.mrb[0].mxu0
  %v2558 = vadd.f32 0.0, %v2557
  %v2559 = vpop.f32.mrb[0].mxu0
  %v2560 = vpop.f32.mrb[0].mxu0
  %v2561 = vadd.f32 0.0, %v2560
  %v2562 = vpop.f32.mrb[0].mxu0
  %2563 = vmatprep.mubr.bf16.mxu0 0
  %2564 = vmatmul.mubr.bf16.gmra.mrb[0].mxu0 %v2100
  %v2565 = vpop.f32.mrb[0].mxu0
  %v2566 = vadd.f32 0.0, %v2565
  %v2567 = vpop.f32.mrb[0].mxu0
  %v2568 = vpop.f32.mrb[0].mxu0
  %v2569 = vadd.f32 0.0, %v2568
  %v2570 = vpop.f32.mrb[0].mxu0
  %2571 = vmatprep.mubr.bf16.mxu0 0
  %2572 = vmatmul.mubr.bf16.gmra.mrb[0].mxu0 %v2103
  %v2573 = vpop.f32.mrb[0].mxu0
  %v2574 = vadd.f32 0.0, %v2573
  %v2575 = vpop.f32.mrb[0].mxu0
  %v2576 = vpop.f32.mrb[0].mxu0
  %v2577 = vadd.f32 0.0, %v2576
  %v2578 = vpop.f32.mrb[0].mxu0
  %2579 = vmatprep.mubr.bf16.mxu0 0
  %2580 = vmatmul.mubr.bf16.gmra.mrb[0].mxu0 %v2106
  %v2581 = vpop.f32.mrb[0].mxu0
  %v2582 = vadd.f32 0.0, %v2581
  %v2583 = vpop.f32.mrb[0].mxu0
  %v2584 = vpop.f32.mrb[0].mxu0
  %v2585 = vadd.f32 0.0, %v2584
  %v2586 = vpop.f32.mrb[0].mxu0
  %2587 = vmatprep.mubr.bf16.mxu0 0
  %2588 = vmatmul.mubr.bf16.gmra.mrb[0].mxu0 %v2109
  %v2589 = vpop.f32.mrb[0].mxu0
  %v2590 = vadd.f32 0.0, %v2589
  %v2591 = vpop.f32.mrb[0].mxu0
  %v2592 = vpop.f32.mrb[0].mxu0
  %v2593 = vadd.f32 0.0, %v2592
  %v2594 = vpop.f32.mrb[0].mxu0
  %2595 = vmatprep.mubr.bf16.mxu0 0
  %2596 = vmatmul.mubr.bf16.gmra.mrb[0].mxu0 %v2112
  %v2597 = vpop.f32.mrb[0].mxu0
  %v2598 = vadd.f32 0.0, %v2597
  %v2599 = vpop.f32.mrb[0].mxu0
  %v2600 = vpop.f32.mrb[0].mxu0
  %v2601 = vadd.f32 0.0, %v2600
  %v2602 = vpop.f32.mrb[0].mxu0
  %2603 = vmatprep.mubr.bf16.mxu0 0
  %2604 = vmatmul.mubr.bf16.gmra.mrb[0].mxu0 %v2115
  %v2605 = vpop.f32.mrb[0].mxu0
  %v2606 = vadd.f32 0.0, %v2605
  %v2607 = vpop.f32.mrb[0].mxu0
  %v2608 = vpop.f32.mrb[0].mxu0
  %v2609 = vadd.f32 0.0, %v2608
  %v2610 = vpop.f32.mrb[0].mxu0
  %2611 = vmatprep.mubr.bf16.mxu0 0
  %2612 = vmatmul.mubr.bf16.gmra.mrb[0].mxu0 %v2118
  %v2613 = vpop.f32.mrb[0].mxu0
  %v2614 = vadd.f32 0.0, %v2613
  %v2615 = vpop.f32.mrb[0].mxu0
  %v2616 = vpop.f32.mrb[0].mxu0
  %v2617 = vadd.f32 0.0, %v2616
  %v2618 = vpop.f32.mrb[0].mxu0
  %2619 = vmatprep.mubr.bf16.mxu0 0
  %2620 = vmatmul.mubr.bf16.gmra.mrb[0].mxu0 %v2121
  %v2621 = vpop.f32.mrb[0].mxu0
  %v2622 = vadd.f32 0.0, %v2621
  %v2623 = vpop.f32.mrb[0].mxu0
  %v2624 = vpop.f32.mrb[0].mxu0
  %v2625 = vadd.f32 0.0, %v2624
  %v2626 = vpop.f32.mrb[0].mxu0
  %2627 = vmatprep.mubr.bf16.mxu0 0
  %2628 = vmatmul.mubr.bf16.gmra.mrb[0].mxu0 %v2124
  %v2629 = vpop.f32.mrb[0].mxu0
  %v2630 = vadd.f32 0.0, %v2629
  %v2631 = vpop.f32.mrb[0].mxu0
  %v2632 = vpop.f32.mrb[0].mxu0
  %v2633 = vadd.f32 0.0, %v2632
  %v2634 = vpop.f32.mrb[0].mxu0
  %2635 = vmatprep.mubr.bf16.mxu0 0
  %2636 = vmatmul.mubr.bf16.gmra.mrb[0].mxu0 %v2127
  %v2637 = vpop.f32.mrb[0].mxu0
  %v2638 = vadd.f32 0.0, %v2637
  %v2639 = vpop.f32.mrb[0].mxu0
  %v2640 = vpop.f32.mrb[0].mxu0
  %v2641 = vadd.f32 0.0, %v2640
  %v2642 = vpop.f32.mrb[0].mxu0
  %2643 = vmatprep.mubr.bf16.mxu0 0
  %2644 = vmatmul.mubr.bf16.gmra.mrb[0].mxu0 %v2130
  %v2645 = vpop.f32.mrb[0].mxu0
  %v2646 = vadd.f32 0.0, %v2645
  %v2647 = vpop.f32.mrb[0].mxu0
  %v2648 = vpop.f32.mrb[0].mxu0
  %v2649 = vadd.f32 0.0, %v2648
  %v2650 = vpop.f32.mrb[0].mxu0
  %2651 = vmatprep.mubr.bf16.mxu0 0
  %2652 = vmatmul.mubr.bf16.gmra.mrb[0].mxu0 %v2133
  %v2653 = vpop.f32.mrb[0].mxu0
  %v2654 = vadd.f32 0.0, %v2653
  %v2655 = vpop.f32.mrb[0].mxu0
  %v2656 = vpop.f32.mrb[0].mxu0
  %v2657 = vadd.f32 0.0, %v2656
  %v2658 = vpop.f32.mrb[0].mxu0
  %2659 = vmatprep.mubr.bf16.mxu0 0
  %2660 = vmatmul.mubr.bf16.gmra.mrb[0].mxu0 %v2136
  %v2661 = vpop.f32.mrb[0].mxu0
  %v2662 = vadd.f32 0.0, %v2661
  %v2663 = vpop.f32.mrb[0].mxu0
  %v2664 = vpop.f32.mrb[0].mxu0
  %v2665 = vadd.f32 0.0, %v2664
  %v2666 = vpop.f32.mrb[0].mxu0
  %2667 = vmatprep.mubr.bf16.mxu0 0
  %2668 = vmatmul.mubr.bf16.gmra.mrb[0].mxu0 %v2139
  %v2669 = vpop.f32.mrb[0].mxu0
  %v2670 = vadd.f32 0.0, %v2669
  %v2671 = vpop.f32.mrb[0].mxu0
  %v2672 = vpop.f32.mrb[0].mxu0
  %v2673 = vadd.f32 0.0, %v2672
  %v2674 = vpop.f32.mrb[0].mxu0
  %2675 = vmatprep.mubr.bf16.mxu0 0
  %2676 = vmatmul.mubr.bf16.gmra.mrb[0].mxu0 %v2142
  %v2677 = vpop.f32.mrb[0].mxu0
  %v2678 = vadd.f32 0.0, %v2677
  %v2679 = vpop.f32.mrb[0].mxu0
  %v2680 = vpop.f32.mrb[0].mxu0
  %v2681 = vadd.f32 0.0, %v2680
  %v2682 = vpop.f32.mrb[0].mxu0
  %2683 = vmatprep.mubr.bf16.mxu0 0
  %2684 = vmatmul.mubr.bf16.gmra.mrb[0].mxu0 %v2145
  %v2685 = vpop.f32.mrb[0].mxu0
  %v2686 = vadd.f32 0.0, %v2685
  %v2687 = vpop.f32.mrb[0].mxu0
  %v2688 = vpop.f32.mrb[0].mxu0
  %v2689 = vadd.f32 0.0, %v2688
  %v2690 = vpop.f32.mrb[0].mxu0
  %2691 = vdwg.mxu0
  %v2700 = vcombine.high %v795, %v795
  %v2702 = vunpack.c.l.s4 1966171168
  %v2703 = vunpack.c.0.s8 %v2702
  %v2704 = vlaneseq
  %v2705 = vshrl.u32 %v2704, 7
  %v2706 = vsub.s32 %v2703, %v2705
  %v2707 = vrot.slane %v795, %v2706
  %v2709 = vunpack.c.l.s4 1966171168
  %v2710 = vunpack.c.0.s8 %v2709
  %v2711 = vlaneseq
  %v2712 = vshrl.u32 %v2711, 7
  %v2713 = vsub.s32 %v2710, %v2712
  %v2714 = vrot.slane %v2700, %v2713
  %v2715 = vcombine.high %v2707, %v2707
  %v2716 = vcombine.high %v2714, %v2714
  %v2718 = vunpack.c.l.s4 1966171168
  %v2719 = vunpack.c.0.s8 %v2718
  %v2720 = vlaneseq
  %v2721 = vshrl.u32 %v2720, 7
  %v2722 = vsub.s32 %v2719, %v2721
  %v2723 = vrot.slane %v2707, %v2722
  %v2725 = vunpack.c.l.s4 1966171168
  %v2726 = vunpack.c.0.s8 %v2725
  %v2727 = vlaneseq
  %v2728 = vshrl.u32 %v2727, 7
  %v2729 = vsub.s32 %v2726, %v2728
  %v2730 = vrot.slane %v2714, %v2729
  %v2732 = vunpack.c.l.s4 1966171168
  %v2733 = vunpack.c.0.s8 %v2732
  %v2734 = vlaneseq
  %v2735 = vshrl.u32 %v2734, 7
  %v2736 = vsub.s32 %v2733, %v2735
  %v2737 = vrot.slane %v2715, %v2736
  %v2739 = vunpack.c.l.s4 1966171168
  %v2740 = vunpack.c.0.s8 %v2739
  %v2741 = vlaneseq
  %v2742 = vshrl.u32 %v2741, 7
  %v2743 = vsub.s32 %v2740, %v2742
  %v2744 = vrot.slane %v2716, %v2743
  %v2745 = vcombine.high %v2723, %v2723
  %v2746 = vcombine.high %v2730, %v2730
  %v2747 = vcombine.high %v2737, %v2737
  %v2748 = vcombine.high %v2744, %v2744
  %v2749 = vcombine.high %v796, %v796
  %v2751 = vunpack.c.l.s4 1966171168
  %v2752 = vunpack.c.0.s8 %v2751
  %v2753 = vlaneseq
  %v2754 = vshrl.u32 %v2753, 7
  %v2755 = vsub.s32 %v2752, %v2754
  %v2756 = vrot.slane %v796, %v2755
  %v2758 = vunpack.c.l.s4 1966171168
  %v2759 = vunpack.c.0.s8 %v2758
  %v2760 = vlaneseq
  %v2761 = vshrl.u32 %v2760, 7
  %v2762 = vsub.s32 %v2759, %v2761
  %v2763 = vrot.slane %v2749, %v2762
  %v2764 = vcombine.high %v2756, %v2756
  %v2765 = vcombine.high %v2763, %v2763
  %v2767 = vunpack.c.l.s4 1966171168
  %v2768 = vunpack.c.0.s8 %v2767
  %v2769 = vlaneseq
  %v2770 = vshrl.u32 %v2769, 7
  %v2771 = vsub.s32 %v2768, %v2770
  %v2772 = vrot.slane %v2756, %v2771
  %v2774 = vunpack.c.l.s4 1966171168
  %v2775 = vunpack.c.0.s8 %v2774
  %v2776 = vlaneseq
  %v2777 = vshrl.u32 %v2776, 7
  %v2778 = vsub.s32 %v2775, %v2777
  %v2779 = vrot.slane %v2763, %v2778
  %v2781 = vunpack.c.l.s4 1966171168
  %v2782 = vunpack.c.0.s8 %v2781
  %v2783 = vlaneseq
  %v2784 = vshrl.u32 %v2783, 7
  %v2785 = vsub.s32 %v2782, %v2784
  %v2786 = vrot.slane %v2764, %v2785
  %v2788 = vunpack.c.l.s4 1966171168
  %v2789 = vunpack.c.0.s8 %v2788
  %v2790 = vlaneseq
  %v2791 = vshrl.u32 %v2790, 7
  %v2792 = vsub.s32 %v2789, %v2791
  %v2793 = vrot.slane %v2765, %v2792
  %v2794 = vcombine.high %v2772, %v2772
  %v2795 = vcombine.high %v2779, %v2779
  %v2796 = vcombine.high %v2786, %v2786
  %v2797 = vcombine.high %v2793, %v2793
  %v2798 = vcombine.high %v797, %v797
  %v2800 = vunpack.c.l.s4 1966171168
  %v2801 = vunpack.c.0.s8 %v2800
  %v2802 = vlaneseq
  %v2803 = vshrl.u32 %v2802, 7
  %v2804 = vsub.s32 %v2801, %v2803
  %v2805 = vrot.slane %v797, %v2804
  %v2807 = vunpack.c.l.s4 1966171168
  %v2808 = vunpack.c.0.s8 %v2807
  %v2809 = vlaneseq
  %v2810 = vshrl.u32 %v2809, 7
  %v2811 = vsub.s32 %v2808, %v2810
  %v2812 = vrot.slane %v2798, %v2811
  %v2813 = vcombine.high %v2805, %v2805
  %v2814 = vcombine.high %v2812, %v2812
  %v2816 = vunpack.c.l.s4 1966171168
  %v2817 = vunpack.c.0.s8 %v2816
  %v2818 = vlaneseq
  %v2819 = vshrl.u32 %v2818, 7
  %v2820 = vsub.s32 %v2817, %v2819
  %v2821 = vrot.slane %v2805, %v2820
  %v2823 = vunpack.c.l.s4 1966171168
  %v2824 = vunpack.c.0.s8 %v2823
  %v2825 = vlaneseq
  %v2826 = vshrl.u32 %v2825, 7
  %v2827 = vsub.s32 %v2824, %v2826
  %v2828 = vrot.slane %v2812, %v2827
  %v2830 = vunpack.c.l.s4 1966171168
  %v2831 = vunpack.c.0.s8 %v2830
  %v2832 = vlaneseq
  %v2833 = vshrl.u32 %v2832, 7
  %v2834 = vsub.s32 %v2831, %v2833
  %v2835 = vrot.slane %v2813, %v2834
  %v2837 = vunpack.c.l.s4 1966171168
  %v2838 = vunpack.c.0.s8 %v2837
  %v2839 = vlaneseq
  %v2840 = vshrl.u32 %v2839, 7
  %v2841 = vsub.s32 %v2838, %v2840
  %v2842 = vrot.slane %v2814, %v2841
  %v2843 = vcombine.high %v2821, %v2821
  %v2844 = vcombine.high %v2828, %v2828
  %v2845 = vcombine.high %v2835, %v2835
  %v2846 = vcombine.high %v2842, %v2842
  %v2847 = vcombine.high %v798, %v798
  %v2849 = vunpack.c.l.s4 1966171168
  %v2850 = vunpack.c.0.s8 %v2849
  %v2851 = vlaneseq
  %v2852 = vshrl.u32 %v2851, 7
  %v2853 = vsub.s32 %v2850, %v2852
  %v2854 = vrot.slane %v798, %v2853
  %v2856 = vunpack.c.l.s4 1966171168
  %v2857 = vunpack.c.0.s8 %v2856
  %v2858 = vlaneseq
  %v2859 = vshrl.u32 %v2858, 7
  %v2860 = vsub.s32 %v2857, %v2859
  %v2861 = vrot.slane %v2847, %v2860
  %v2862 = vcombine.high %v2854, %v2854
  %v2863 = vcombine.high %v2861, %v2861
  %v2865 = vunpack.c.l.s4 1966171168
  %v2866 = vunpack.c.0.s8 %v2865
  %v2867 = vlaneseq
  %v2868 = vshrl.u32 %v2867, 7
  %v2869 = vsub.s32 %v2866, %v2868
  %v2870 = vrot.slane %v2854, %v2869
  %v2872 = vunpack.c.l.s4 1966171168
  %v2873 = vunpack.c.0.s8 %v2872
  %v2874 = vlaneseq
  %v2875 = vshrl.u32 %v2874, 7
  %v2876 = vsub.s32 %v2873, %v2875
  %v2877 = vrot.slane %v2861, %v2876
  %v2879 = vunpack.c.l.s4 1966171168
  %v2880 = vunpack.c.0.s8 %v2879
  %v2881 = vlaneseq
  %v2882 = vshrl.u32 %v2881, 7
  %v2883 = vsub.s32 %v2880, %v2882
  %v2884 = vrot.slane %v2862, %v2883
  %v2886 = vunpack.c.l.s4 1966171168
  %v2887 = vunpack.c.0.s8 %v2886
  %v2888 = vlaneseq
  %v2889 = vshrl.u32 %v2888, 7
  %v2890 = vsub.s32 %v2887, %v2889
  %v2891 = vrot.slane %v2863, %v2890
  %v2892 = vcombine.high %v2870, %v2870
  %v2893 = vcombine.high %v2877, %v2877
  %v2894 = vcombine.high %v2884, %v2884
  %v2895 = vcombine.high %v2891, %v2891
  %v2896 = vcombine.high %v799, %v799
  %v2898 = vunpack.c.l.s4 1966171168
  %v2899 = vunpack.c.0.s8 %v2898
  %v2900 = vlaneseq
  %v2901 = vshrl.u32 %v2900, 7
  %v2902 = vsub.s32 %v2899, %v2901
  %v2903 = vrot.slane %v799, %v2902
  %v2905 = vunpack.c.l.s4 1966171168
  %v2906 = vunpack.c.0.s8 %v2905
  %v2907 = vlaneseq
  %v2908 = vshrl.u32 %v2907, 7
  %v2909 = vsub.s32 %v2906, %v2908
  %v2910 = vrot.slane %v2896, %v2909
  %v2911 = vcombine.high %v2903, %v2903
  %v2912 = vcombine.high %v2910, %v2910
  %v2914 = vunpack.c.l.s4 1966171168
  %v2915 = vunpack.c.0.s8 %v2914
  %v2916 = vlaneseq
  %v2917 = vshrl.u32 %v2916, 7
  %v2918 = vsub.s32 %v2915, %v2917
  %v2919 = vrot.slane %v2903, %v2918
  %v2921 = vunpack.c.l.s4 1966171168
  %v2922 = vunpack.c.0.s8 %v2921
  %v2923 = vlaneseq
  %v2924 = vshrl.u32 %v2923, 7
  %v2925 = vsub.s32 %v2922, %v2924
  %v2926 = vrot.slane %v2910, %v2925
  %v2928 = vunpack.c.l.s4 1966171168
  %v2929 = vunpack.c.0.s8 %v2928
  %v2930 = vlaneseq
  %v2931 = vshrl.u32 %v2930, 7
  %v2932 = vsub.s32 %v2929, %v2931
  %v2933 = vrot.slane %v2911, %v2932
  %v2935 = vunpack.c.l.s4 1966171168
  %v2936 = vunpack.c.0.s8 %v2935
  %v2937 = vlaneseq
  %v2938 = vshrl.u32 %v2937, 7
  %v2939 = vsub.s32 %v2936, %v2938
  %v2940 = vrot.slane %v2912, %v2939
  %v2941 = vcombine.high %v2919, %v2919
  %v2942 = vcombine.high %v2926, %v2926
  %v2943 = vcombine.high %v2933, %v2933
  %v2944 = vcombine.high %v2940, %v2940
  %v2945 = vcombine.high %v800, %v800
  %v2947 = vunpack.c.l.s4 1966171168
  %v2948 = vunpack.c.0.s8 %v2947
  %v2949 = vlaneseq
  %v2950 = vshrl.u32 %v2949, 7
  %v2951 = vsub.s32 %v2948, %v2950
  %v2952 = vrot.slane %v800, %v2951
  %v2954 = vunpack.c.l.s4 1966171168
  %v2955 = vunpack.c.0.s8 %v2954
  %v2956 = vlaneseq
  %v2957 = vshrl.u32 %v2956, 7
  %v2958 = vsub.s32 %v2955, %v2957
  %v2959 = vrot.slane %v2945, %v2958
  %v2960 = vcombine.high %v2952, %v2952
  %v2961 = vcombine.high %v2959, %v2959
  %v2963 = vunpack.c.l.s4 1966171168
  %v2964 = vunpack.c.0.s8 %v2963
  %v2965 = vlaneseq
  %v2966 = vshrl.u32 %v2965, 7
  %v2967 = vsub.s32 %v2964, %v2966
  %v2968 = vrot.slane %v2952, %v2967
  %v2970 = vunpack.c.l.s4 1966171168
  %v2971 = vunpack.c.0.s8 %v2970
  %v2972 = vlaneseq
  %v2973 = vshrl.u32 %v2972, 7
  %v2974 = vsub.s32 %v2971, %v2973
  %v2975 = vrot.slane %v2959, %v2974
  %v2977 = vunpack.c.l.s4 1966171168
  %v2978 = vunpack.c.0.s8 %v2977
  %v2979 = vlaneseq
  %v2980 = vshrl.u32 %v2979, 7
  %v2981 = vsub.s32 %v2978, %v2980
  %v2982 = vrot.slane %v2960, %v2981
  %v2984 = vunpack.c.l.s4 1966171168
  %v2985 = vunpack.c.0.s8 %v2984
  %v2986 = vlaneseq
  %v2987 = vshrl.u32 %v2986, 7
  %v2988 = vsub.s32 %v2985, %v2987
  %v2989 = vrot.slane %v2961, %v2988
  %v2990 = vcombine.high %v2968, %v2968
  %v2991 = vcombine.high %v2975, %v2975
  %v2992 = vcombine.high %v2982, %v2982
  %v2993 = vcombine.high %v2989, %v2989
  %v2994 = vcombine.high %v801, %v801
  %v2996 = vunpack.c.l.s4 1966171168
  %v2997 = vunpack.c.0.s8 %v2996
  %v2998 = vlaneseq
  %v2999 = vshrl.u32 %v2998, 7
  %v3000 = vsub.s32 %v2997, %v2999
  %v3001 = vrot.slane %v801, %v3000
  %v3003 = vunpack.c.l.s4 1966171168
  %v3004 = vunpack.c.0.s8 %v3003
  %v3005 = vlaneseq
  %v3006 = vshrl.u32 %v3005, 7
  %v3007 = vsub.s32 %v3004, %v3006
  %v3008 = vrot.slane %v2994, %v3007
  %v3009 = vcombine.high %v3001, %v3001
  %v3010 = vcombine.high %v3008, %v3008
  %v3012 = vunpack.c.l.s4 1966171168
  %v3013 = vunpack.c.0.s8 %v3012
  %v3014 = vlaneseq
  %v3015 = vshrl.u32 %v3014, 7
  %v3016 = vsub.s32 %v3013, %v3015
  %v3017 = vrot.slane %v3001, %v3016
  %v3019 = vunpack.c.l.s4 1966171168
  %v3020 = vunpack.c.0.s8 %v3019
  %v3021 = vlaneseq
  %v3022 = vshrl.u32 %v3021, 7
  %v3023 = vsub.s32 %v3020, %v3022
  %v3024 = vrot.slane %v3008, %v3023
  %v3026 = vunpack.c.l.s4 1966171168
  %v3027 = vunpack.c.0.s8 %v3026
  %v3028 = vlaneseq
  %v3029 = vshrl.u32 %v3028, 7
  %v3030 = vsub.s32 %v3027, %v3029
  %v3031 = vrot.slane %v3009, %v3030
  %v3033 = vunpack.c.l.s4 1966171168
  %v3034 = vunpack.c.0.s8 %v3033
  %v3035 = vlaneseq
  %v3036 = vshrl.u32 %v3035, 7
  %v3037 = vsub.s32 %v3034, %v3036
  %v3038 = vrot.slane %v3010, %v3037
  %v3039 = vcombine.high %v3017, %v3017
  %v3040 = vcombine.high %v3024, %v3024
  %v3041 = vcombine.high %v3031, %v3031
  %v3042 = vcombine.high %v3038, %v3038
  %v3043 = vcombine.high %v802, %v802
  %v3045 = vunpack.c.l.s4 1966171168
  %v3046 = vunpack.c.0.s8 %v3045
  %v3047 = vlaneseq
  %v3048 = vshrl.u32 %v3047, 7
  %v3049 = vsub.s32 %v3046, %v3048
  %v3050 = vrot.slane %v802, %v3049
  %v3052 = vunpack.c.l.s4 1966171168
  %v3053 = vunpack.c.0.s8 %v3052
  %v3054 = vlaneseq
  %v3055 = vshrl.u32 %v3054, 7
  %v3056 = vsub.s32 %v3053, %v3055
  %v3057 = vrot.slane %v3043, %v3056
  %v3058 = vcombine.high %v3050, %v3050
  %v3059 = vcombine.high %v3057, %v3057
  %v3061 = vunpack.c.l.s4 1966171168
  %v3062 = vunpack.c.0.s8 %v3061
  %v3063 = vlaneseq
  %v3064 = vshrl.u32 %v3063, 7
  %v3065 = vsub.s32 %v3062, %v3064
  %v3066 = vrot.slane %v3050, %v3065
  %v3068 = vunpack.c.l.s4 1966171168
  %v3069 = vunpack.c.0.s8 %v3068
  %v3070 = vlaneseq
  %v3071 = vshrl.u32 %v3070, 7
  %v3072 = vsub.s32 %v3069, %v3071
  %v3073 = vrot.slane %v3057, %v3072
  %v3075 = vunpack.c.l.s4 1966171168
  %v3076 = vunpack.c.0.s8 %v3075
  %v3077 = vlaneseq
  %v3078 = vshrl.u32 %v3077, 7
  %v3079 = vsub.s32 %v3076, %v3078
  %v3080 = vrot.slane %v3058, %v3079
  %v3082 = vunpack.c.l.s4 1966171168
  %v3083 = vunpack.c.0.s8 %v3082
  %v3084 = vlaneseq
  %v3085 = vshrl.u32 %v3084, 7
  %v3086 = vsub.s32 %v3083, %v3085
  %v3087 = vrot.slane %v3059, %v3086
  %v3088 = vcombine.high %v3066, %v3066
  %v3089 = vcombine.high %v3073, %v3073
  %v3090 = vcombine.high %v3080, %v3080
  %v3091 = vcombine.high %v3087, %v3087
  %v3092 = vlaneseq
  %v3093 = vshrl.u32 %v3092, 7
  %v3094 = vsub.s32 0, %v3093
  %v3095 = vrot.slane %v2723, %v3094
  %v3096 = vlaneseq
  %v3097 = vshrl.u32 %v3096, 7
  %v3098 = vsub.s32 0, %v3097
  %v3099 = vrot.slane %v2737, %v3098
  %v3100 = vlaneseq
  %v3101 = vshrl.u32 %v3100, 7
  %v3102 = vsub.s32 0, %v3101
  %v3103 = vrot.slane %v2745, %v3102
  %v3104 = vlaneseq
  %v3105 = vshrl.u32 %v3104, 7
  %v3106 = vsub.s32 0, %v3105
  %v3107 = vrot.slane %v2747, %v3106
  %v3108 = vlaneseq
  %v3109 = vshrl.u32 %v3108, 7
  %v3110 = vsub.s32 0, %v3109
  %v3111 = vrot.slane %v2730, %v3110
  %v3112 = vlaneseq
  %v3113 = vshrl.u32 %v3112, 7
  %v3114 = vsub.s32 0, %v3113
  %v3115 = vrot.slane %v2744, %v3114
  %v3116 = vlaneseq
  %v3117 = vshrl.u32 %v3116, 7
  %v3118 = vsub.s32 0, %v3117
  %v3119 = vrot.slane %v2746, %v3118
  %v3120 = vlaneseq
  %v3121 = vshrl.u32 %v3120, 7
  %v3122 = vsub.s32 0, %v3121
  %v3123 = vrot.slane %v2748, %v3122
  %v3124 = vlaneseq
  %v3125 = vshrl.u32 %v3124, 7
  %v3126 = vsub.s32 0, %v3125
  %v3127 = vrot.slane %v2772, %v3126
  %v3128 = vlaneseq
  %v3129 = vshrl.u32 %v3128, 7
  %v3130 = vsub.s32 0, %v3129
  %v3131 = vrot.slane %v2786, %v3130
  %v3132 = vlaneseq
  %v3133 = vshrl.u32 %v3132, 7
  %v3134 = vsub.s32 0, %v3133
  %v3135 = vrot.slane %v2794, %v3134
  %v3136 = vlaneseq
  %v3137 = vshrl.u32 %v3136, 7
  %v3138 = vsub.s32 0, %v3137
  %v3139 = vrot.slane %v2796, %v3138
  %v3140 = vlaneseq
  %v3141 = vshrl.u32 %v3140, 7
  %v3142 = vsub.s32 0, %v3141
  %v3143 = vrot.slane %v2779, %v3142
  %v3144 = vlaneseq
  %v3145 = vshrl.u32 %v3144, 7
  %v3146 = vsub.s32 0, %v3145
  %v3147 = vrot.slane %v2793, %v3146
  %v3148 = vlaneseq
  %v3149 = vshrl.u32 %v3148, 7
  %v3150 = vsub.s32 0, %v3149
  %v3151 = vrot.slane %v2795, %v3150
  %v3152 = vlaneseq
  %v3153 = vshrl.u32 %v3152, 7
  %v3154 = vsub.s32 0, %v3153
  %v3155 = vrot.slane %v2797, %v3154
  %v3156 = vlaneseq
  %v3157 = vshrl.u32 %v3156, 7
  %v3158 = vsub.s32 0, %v3157
  %v3159 = vrot.slane %v2821, %v3158
  %v3160 = vlaneseq
  %v3161 = vshrl.u32 %v3160, 7
  %v3162 = vsub.s32 0, %v3161
  %v3163 = vrot.slane %v2835, %v3162
  %v3164 = vlaneseq
  %v3165 = vshrl.u32 %v3164, 7
  %v3166 = vsub.s32 0, %v3165
  %v3167 = vrot.slane %v2843, %v3166
  %v3168 = vlaneseq
  %v3169 = vshrl.u32 %v3168, 7
  %v3170 = vsub.s32 0, %v3169
  %v3171 = vrot.slane %v2845, %v3170
  %v3172 = vlaneseq
  %v3173 = vshrl.u32 %v3172, 7
  %v3174 = vsub.s32 0, %v3173
  %v3175 = vrot.slane %v2828, %v3174
  %v3176 = vlaneseq
  %v3177 = vshrl.u32 %v3176, 7
  %v3178 = vsub.s32 0, %v3177
  %v3179 = vrot.slane %v2842, %v3178
  %v3180 = vlaneseq
  %v3181 = vshrl.u32 %v3180, 7
  %v3182 = vsub.s32 0, %v3181
  %v3183 = vrot.slane %v2844, %v3182
  %v3184 = vlaneseq
  %v3185 = vshrl.u32 %v3184, 7
  %v3186 = vsub.s32 0, %v3185
  %v3187 = vrot.slane %v2846, %v3186
  %v3188 = vlaneseq
  %v3189 = vshrl.u32 %v3188, 7
  %v3190 = vsub.s32 0, %v3189
  %v3191 = vrot.slane %v2870, %v3190
  %v3192 = vlaneseq
  %v3193 = vshrl.u32 %v3192, 7
  %v3194 = vsub.s32 0, %v3193
  %v3195 = vrot.slane %v2884, %v3194
  %v3196 = vlaneseq
  %v3197 = vshrl.u32 %v3196, 7
  %v3198 = vsub.s32 0, %v3197
  %v3199 = vrot.slane %v2892, %v3198
  %v3200 = vlaneseq
  %v3201 = vshrl.u32 %v3200, 7
  %v3202 = vsub.s32 0, %v3201
  %v3203 = vrot.slane %v2894, %v3202
  %v3204 = vlaneseq
  %v3205 = vshrl.u32 %v3204, 7
  %v3206 = vsub.s32 0, %v3205
  %v3207 = vrot.slane %v2877, %v3206
  %v3208 = vlaneseq
  %v3209 = vshrl.u32 %v3208, 7
  %v3210 = vsub.s32 0, %v3209
  %v3211 = vrot.slane %v2891, %v3210
  %v3212 = vlaneseq
  %v3213 = vshrl.u32 %v3212, 7
  %v3214 = vsub.s32 0, %v3213
  %v3215 = vrot.slane %v2893, %v3214
  %v3216 = vlaneseq
  %v3217 = vshrl.u32 %v3216, 7
  %v3218 = vsub.s32 0, %v3217
  %v3219 = vrot.slane %v2895, %v3218
  %v3220 = vlaneseq
  %v3221 = vshrl.u32 %v3220, 7
  %v3222 = vsub.s32 0, %v3221
  %v3223 = vrot.slane %v2919, %v3222
  %v3224 = vlaneseq
  %v3225 = vshrl.u32 %v3224, 7
  %v3226 = vsub.s32 0, %v3225
  %v3227 = vrot.slane %v2933, %v3226
  %v3228 = vlaneseq
  %v3229 = vshrl.u32 %v3228, 7
  %v3230 = vsub.s32 0, %v3229
  %v3231 = vrot.slane %v2941, %v3230
  %v3232 = vlaneseq
  %v3233 = vshrl.u32 %v3232, 7
  %v3234 = vsub.s32 0, %v3233
  %v3235 = vrot.slane %v2943, %v3234
  %v3236 = vlaneseq
  %v3237 = vshrl.u32 %v3236, 7
  %v3238 = vsub.s32 0, %v3237
  %v3239 = vrot.slane %v2926, %v3238
  %v3240 = vlaneseq
  %v3241 = vshrl.u32 %v3240, 7
  %v3242 = vsub.s32 0, %v3241
  %v3243 = vrot.slane %v2940, %v3242
  %v3244 = vlaneseq
  %v3245 = vshrl.u32 %v3244, 7
  %v3246 = vsub.s32 0, %v3245
  %v3247 = vrot.slane %v2942, %v3246
  %v3248 = vlaneseq
  %v3249 = vshrl.u32 %v3248, 7
  %v3250 = vsub.s32 0, %v3249
  %v3251 = vrot.slane %v2944, %v3250
  %v3252 = vlaneseq
  %v3253 = vshrl.u32 %v3252, 7
  %v3254 = vsub.s32 0, %v3253
  %v3255 = vrot.slane %v2968, %v3254
  %v3256 = vlaneseq
  %v3257 = vshrl.u32 %v3256, 7
  %v3258 = vsub.s32 0, %v3257
  %v3259 = vrot.slane %v2982, %v3258
  %v3260 = vlaneseq
  %v3261 = vshrl.u32 %v3260, 7
  %v3262 = vsub.s32 0, %v3261
  %v3263 = vrot.slane %v2990, %v3262
  %v3264 = vlaneseq
  %v3265 = vshrl.u32 %v3264, 7
  %v3266 = vsub.s32 0, %v3265
  %v3267 = vrot.slane %v2992, %v3266
  %v3268 = vlaneseq
  %v3269 = vshrl.u32 %v3268, 7
  %v3270 = vsub.s32 0, %v3269
  %v3271 = vrot.slane %v2975, %v3270
  %v3272 = vlaneseq
  %v3273 = vshrl.u32 %v3272, 7
  %v3274 = vsub.s32 0, %v3273
  %v3275 = vrot.slane %v2989, %v3274
  %v3276 = vlaneseq
  %v3277 = vshrl.u32 %v3276, 7
  %v3278 = vsub.s32 0, %v3277
  %v3279 = vrot.slane %v2991, %v3278
  %v3280 = vlaneseq
  %v3281 = vshrl.u32 %v3280, 7
  %v3282 = vsub.s32 0, %v3281
  %v3283 = vrot.slane %v2993, %v3282
  %v3284 = vlaneseq
  %v3285 = vshrl.u32 %v3284, 7
  %v3286 = vsub.s32 0, %v3285
  %v3287 = vrot.slane %v3017, %v3286
  %v3288 = vlaneseq
  %v3289 = vshrl.u32 %v3288, 7
  %v3290 = vsub.s32 0, %v3289
  %v3291 = vrot.slane %v3031, %v3290
  %v3292 = vlaneseq
  %v3293 = vshrl.u32 %v3292, 7
  %v3294 = vsub.s32 0, %v3293
  %v3295 = vrot.slane %v3039, %v3294
  %v3296 = vlaneseq
  %v3297 = vshrl.u32 %v3296, 7
  %v3298 = vsub.s32 0, %v3297
  %v3299 = vrot.slane %v3041, %v3298
  %v3300 = vlaneseq
  %v3301 = vshrl.u32 %v3300, 7
  %v3302 = vsub.s32 0, %v3301
  %v3303 = vrot.slane %v3024, %v3302
  %v3304 = vlaneseq
  %v3305 = vshrl.u32 %v3304, 7
  %v3306 = vsub.s32 0, %v3305
  %v3307 = vrot.slane %v3038, %v3306
  %v3308 = vlaneseq
  %v3309 = vshrl.u32 %v3308, 7
  %v3310 = vsub.s32 0, %v3309
  %v3311 = vrot.slane %v3040, %v3310
  %v3312 = vlaneseq
  %v3313 = vshrl.u32 %v3312, 7
  %v3314 = vsub.s32 0, %v3313
  %v3315 = vrot.slane %v3042, %v3314
  %v3316 = vlaneseq
  %v3317 = vshrl.u32 %v3316, 7
  %v3318 = vsub.s32 0, %v3317
  %v3319 = vrot.slane %v3066, %v3318
  %v3320 = vlaneseq
  %v3321 = vshrl.u32 %v3320, 7
  %v3322 = vsub.s32 0, %v3321
  %v3323 = vrot.slane %v3080, %v3322
  %v3324 = vlaneseq
  %v3325 = vshrl.u32 %v3324, 7
  %v3326 = vsub.s32 0, %v3325
  %v3327 = vrot.slane %v3088, %v3326
  %v3328 = vlaneseq
  %v3329 = vshrl.u32 %v3328, 7
  %v3330 = vsub.s32 0, %v3329
  %v3331 = vrot.slane %v3090, %v3330
  %v3332 = vlaneseq
  %v3333 = vshrl.u32 %v3332, 7
  %v3334 = vsub.s32 0, %v3333
  %v3335 = vrot.slane %v3073, %v3334
  %v3336 = vlaneseq
  %v3337 = vshrl.u32 %v3336, 7
  %v3338 = vsub.s32 0, %v3337
  %v3339 = vrot.slane %v3087, %v3338
  %v3340 = vlaneseq
  %v3341 = vshrl.u32 %v3340, 7
  %v3342 = vsub.s32 0, %v3341
  %v3343 = vrot.slane %v3089, %v3342
  %v3344 = vlaneseq
  %v3345 = vshrl.u32 %v3344, 7
  %v3346 = vsub.s32 0, %v3345
  %v3347 = vrot.slane %v3091, %v3346
  %3348 = vrot.lane.b32.xlu0 %v3095, 64
  %v3349 = vpop.permute.xlu0 %3348
  %3350 = vrot.lane.b32.xlu0 %v3099, 64
  %v3351 = vpop.permute.xlu0 %3350
  %3352 = vrot.lane.b32.xlu0 %v3103, 64
  %v3353 = vpop.permute.xlu0 %3352
  %3354 = vrot.lane.b32.xlu0 %v3107, 64
  %v3355 = vpop.permute.xlu0 %3354
  %3356 = vrot.lane.b32.xlu0 %v3111, 64
  %v3357 = vpop.permute.xlu0 %3356
  %3358 = vrot.lane.b32.xlu0 %v3115, 64
  %v3359 = vpop.permute.xlu0 %3358
  %3360 = vrot.lane.b32.xlu0 %v3119, 64
  %v3361 = vpop.permute.xlu0 %3360
  %3362 = vrot.lane.b32.xlu0 %v3123, 64
  %v3363 = vpop.permute.xlu0 %3362
  %3364 = vrot.lane.b32.xlu0 %v3127, 64
  %v3365 = vpop.permute.xlu0 %3364
  %3366 = vrot.lane.b32.xlu0 %v3131, 64
  %v3367 = vpop.permute.xlu0 %3366
  %3368 = vrot.lane.b32.xlu0 %v3135, 64
  %v3369 = vpop.permute.xlu0 %3368
  %3370 = vrot.lane.b32.xlu0 %v3139, 64
  %v3371 = vpop.permute.xlu0 %3370
  %3372 = vrot.lane.b32.xlu0 %v3143, 64
  %v3373 = vpop.permute.xlu0 %3372
  %3374 = vrot.lane.b32.xlu0 %v3147, 64
  %v3375 = vpop.permute.xlu0 %3374
  %3376 = vrot.lane.b32.xlu0 %v3151, 64
  %v3377 = vpop.permute.xlu0 %3376
  %3378 = vrot.lane.b32.xlu0 %v3155, 64
  %v3379 = vpop.permute.xlu0 %3378
  %3380 = vrot.lane.b32.xlu0 %v3159, 64
  %v3381 = vpop.permute.xlu0 %3380
  %3382 = vrot.lane.b32.xlu0 %v3163, 64
  %v3383 = vpop.permute.xlu0 %3382
  %3384 = vrot.lane.b32.xlu0 %v3167, 64
  %v3385 = vpop.permute.xlu0 %3384
  %3386 = vrot.lane.b32.xlu0 %v3171, 64
  %v3387 = vpop.permute.xlu0 %3386
  %3388 = vrot.lane.b32.xlu0 %v3175, 64
  %v3389 = vpop.permute.xlu0 %3388
  %3390 = vrot.lane.b32.xlu0 %v3179, 64
  %v3391 = vpop.permute.xlu0 %3390
  %3392 = vrot.lane.b32.xlu0 %v3183, 64
  %v3393 = vpop.permute.xlu0 %3392
  %3394 = vrot.lane.b32.xlu0 %v3187, 64
  %v3395 = vpop.permute.xlu0 %3394
  %3396 = vrot.lane.b32.xlu0 %v3191, 64
  %v3397 = vpop.permute.xlu0 %3396
  %3398 = vrot.lane.b32.xlu0 %v3195, 64
  %v3399 = vpop.permute.xlu0 %3398
  %3400 = vrot.lane.b32.xlu0 %v3199, 64
  %v3401 = vpop.permute.xlu0 %3400
  %3402 = vrot.lane.b32.xlu0 %v3203, 64
  %v3403 = vpop.permute.xlu0 %3402
  %3404 = vrot.lane.b32.xlu0 %v3207, 64
  %v3405 = vpop.permute.xlu0 %3404
  %3406 = vrot.lane.b32.xlu0 %v3211, 64
  %v3407 = vpop.permute.xlu0 %3406
  %3408 = vrot.lane.b32.xlu0 %v3215, 64
  %v3409 = vpop.permute.xlu0 %3408
  %3410 = vrot.lane.b32.xlu0 %v3219, 64
  %v3411 = vpop.permute.xlu0 %3410
  %3412 = vrot.lane.b32.xlu0 %v3223, 64
  %v3413 = vpop.permute.xlu0 %3412
  %3414 = vrot.lane.b32.xlu0 %v3227, 64
  %v3415 = vpop.permute.xlu0 %3414
  %3416 = vrot.lane.b32.xlu0 %v3231, 64
  %v3417 = vpop.permute.xlu0 %3416
  %3418 = vrot.lane.b32.xlu0 %v3235, 64
  %v3419 = vpop.permute.xlu0 %3418
  %3420 = vrot.lane.b32.xlu0 %v3239, 64
  %v3421 = vpop.permute.xlu0 %3420
  %3422 = vrot.lane.b32.xlu0 %v3243, 64
  %v3423 = vpop.permute.xlu0 %3422
  %3424 = vrot.lane.b32.xlu0 %v3247, 64
  %v3425 = vpop.permute.xlu0 %3424
  %3426 = vrot.lane.b32.xlu0 %v3251, 64
  %v3427 = vpop.permute.xlu0 %3426
  %3428 = vrot.lane.b32.xlu0 %v3255, 64
  %v3429 = vpop.permute.xlu0 %3428
  %3430 = vrot.lane.b32.xlu0 %v3259, 64
  %v3431 = vpop.permute.xlu0 %3430
  %3432 = vrot.lane.b32.xlu0 %v3263, 64
  %v3433 = vpop.permute.xlu0 %3432
  %3434 = vrot.lane.b32.xlu0 %v3267, 64
  %v3435 = vpop.permute.xlu0 %3434
  %3436 = vrot.lane.b32.xlu0 %v3271, 64
  %v3437 = vpop.permute.xlu0 %3436
  %3438 = vrot.lane.b32.xlu0 %v3275, 64
  %v3439 = vpop.permute.xlu0 %3438
  %3440 = vrot.lane.b32.xlu0 %v3279, 64
  %v3441 = vpop.permute.xlu0 %3440
  %3442 = vrot.lane.b32.xlu0 %v3283, 64
  %v3443 = vpop.permute.xlu0 %3442
  %3444 = vrot.lane.b32.xlu0 %v3287, 64
  %v3445 = vpop.permute.xlu0 %3444
  %3446 = vrot.lane.b32.xlu0 %v3291, 64
  %v3447 = vpop.permute.xlu0 %3446
  %3448 = vrot.lane.b32.xlu0 %v3295, 64
  %v3449 = vpop.permute.xlu0 %3448
  %3450 = vrot.lane.b32.xlu0 %v3299, 64
  %v3451 = vpop.permute.xlu0 %3450
  %3452 = vrot.lane.b32.xlu0 %v3303, 64
  %v3453 = vpop.permute.xlu0 %3452
  %3454 = vrot.lane.b32.xlu0 %v3307, 64
  %v3455 = vpop.permute.xlu0 %3454
  %3456 = vrot.lane.b32.xlu0 %v3311, 64
  %v3457 = vpop.permute.xlu0 %3456
  %3458 = vrot.lane.b32.xlu0 %v3315, 64
  %v3459 = vpop.permute.xlu0 %3458
  %3460 = vrot.lane.b32.xlu0 %v3319, 64
  %v3461 = vpop.permute.xlu0 %3460
  %3462 = vrot.lane.b32.xlu0 %v3323, 64
  %v3463 = vpop.permute.xlu0 %3462
  %3464 = vrot.lane.b32.xlu0 %v3327, 64
  %v3465 = vpop.permute.xlu0 %3464
  %3466 = vrot.lane.b32.xlu0 %v3331, 64
  %v3467 = vpop.permute.xlu0 %3466
  %3468 = vrot.lane.b32.xlu0 %v3335, 64
  %v3469 = vpop.permute.xlu0 %3468
  %3470 = vrot.lane.b32.xlu0 %v3339, 64
  %v3471 = vpop.permute.xlu0 %3470
  %3472 = vrot.lane.b32.xlu0 %v3343, 64
  %v3473 = vpop.permute.xlu0 %3472
  %3474 = vrot.lane.b32.xlu0 %v3347, 64
  %v3475 = vpop.permute.xlu0 %3474
  %v3540 = vsub.f32 %v2182, %v3349
  %v3541 = vsub.f32 %v2185, %v3349
  %v3542 = vsub.f32 %v2190, %v3351
  %v3543 = vsub.f32 %v2193, %v3351
  %v3544 = vsub.f32 %v2198, %v3353
  %v3545 = vsub.f32 %v2201, %v3353
  %v3546 = vsub.f32 %v2206, %v3355
  %v3547 = vsub.f32 %v2209, %v3355
  %v3548 = vsub.f32 %v2214, %v3357
  %v3549 = vsub.f32 %v2217, %v3357
  %v3550 = vsub.f32 %v2222, %v3359
  %v3551 = vsub.f32 %v2225, %v3359
  %v3552 = vsub.f32 %v2230, %v3361
  %v3553 = vsub.f32 %v2233, %v3361
  %v3554 = vsub.f32 %v2238, %v3363
  %v3555 = vsub.f32 %v2241, %v3363
  %v3556 = vsub.f32 %v2246, %v3365
  %v3557 = vsub.f32 %v2249, %v3365
  %v3558 = vsub.f32 %v2254, %v3367
  %v3559 = vsub.f32 %v2257, %v3367
  %v3560 = vsub.f32 %v2262, %v3369
  %v3561 = vsub.f32 %v2265, %v3369
  %v3562 = vsub.f32 %v2270, %v3371
  %v3563 = vsub.f32 %v2273, %v3371
  %v3564 = vsub.f32 %v2278, %v3373
  %v3565 = vsub.f32 %v2281, %v3373
  %v3566 = vsub.f32 %v2286, %v3375
  %v3567 = vsub.f32 %v2289, %v3375
  %v3568 = vsub.f32 %v2294, %v3377
  %v3569 = vsub.f32 %v2297, %v3377
  %v3570 = vsub.f32 %v2302, %v3379
  %v3571 = vsub.f32 %v2305, %v3379
  %v3572 = vsub.f32 %v2310, %v3381
  %v3573 = vsub.f32 %v2313, %v3381
  %v3574 = vsub.f32 %v2318, %v3383
  %v3575 = vsub.f32 %v2321, %v3383
  %v3576 = vsub.f32 %v2326, %v3385
  %v3577 = vsub.f32 %v2329, %v3385
  %v3578 = vsub.f32 %v2334, %v3387
  %v3579 = vsub.f32 %v2337, %v3387
  %v3580 = vsub.f32 %v2342, %v3389
  %v3581 = vsub.f32 %v2345, %v3389
  %v3582 = vsub.f32 %v2350, %v3391
  %v3583 = vsub.f32 %v2353, %v3391
  %v3584 = vsub.f32 %v2358, %v3393
  %v3585 = vsub.f32 %v2361, %v3393
  %v3586 = vsub.f32 %v2366, %v3395
  %v3587 = vsub.f32 %v2369, %v3395
  %v3588 = vsub.f32 %v2374, %v3397
  %v3589 = vsub.f32 %v2377, %v3397
  %v3590 = vsub.f32 %v2382, %v3399
  %v3591 = vsub.f32 %v2385, %v3399
  %v3592 = vsub.f32 %v2390, %v3401
  %v3593 = vsub.f32 %v2393, %v3401
  %v3594 = vsub.f32 %v2398, %v3403
  %v3595 = vsub.f32 %v2401, %v3403
  %v3596 = vsub.f32 %v2406, %v3405
  %v3597 = vsub.f32 %v2409, %v3405
  %v3598 = vsub.f32 %v2414, %v3407
  %v3599 = vsub.f32 %v2417, %v3407
  %v3600 = vsub.f32 %v2422, %v3409
  %v3601 = vsub.f32 %v2425, %v3409
  %v3602 = vsub.f32 %v2430, %v3411
  %v3603 = vsub.f32 %v2433, %v3411
  %v3604 = vsub.f32 %v2438, %v3413
  %v3605 = vsub.f32 %v2441, %v3413
  %v3606 = vsub.f32 %v2446, %v3415
  %v3607 = vsub.f32 %v2449, %v3415
  %v3608 = vsub.f32 %v2454, %v3417
  %v3609 = vsub.f32 %v2457, %v3417
  %v3610 = vsub.f32 %v2462, %v3419
  %v3611 = vsub.f32 %v2465, %v3419
  %v3612 = vsub.f32 %v2470, %v3421
  %v3613 = vsub.f32 %v2473, %v3421
  %v3614 = vsub.f32 %v2478, %v3423
  %v3615 = vsub.f32 %v2481, %v3423
  %v3616 = vsub.f32 %v2486, %v3425
  %v3617 = vsub.f32 %v2489, %v3425
  %v3618 = vsub.f32 %v2494, %v3427
  %v3619 = vsub.f32 %v2497, %v3427
  %v3620 = vsub.f32 %v2502, %v3429
  %v3621 = vsub.f32 %v2505, %v3429
  %v3622 = vsub.f32 %v2510, %v3431
  %v3623 = vsub.f32 %v2513, %v3431
  %v3624 = vsub.f32 %v2518, %v3433
  %v3625 = vsub.f32 %v2521, %v3433
  %v3626 = vsub.f32 %v2526, %v3435
  %v3627 = vsub.f32 %v2529, %v3435
  %v3628 = vsub.f32 %v2534, %v3437
  %v3629 = vsub.f32 %v2537, %v3437
  %v3630 = vsub.f32 %v2542, %v3439
  %v3631 = vsub.f32 %v2545, %v3439
  %v3632 = vsub.f32 %v2550, %v3441
  %v3633 = vsub.f32 %v2553, %v3441
  %v3634 = vsub.f32 %v2558, %v3443
  %v3635 = vsub.f32 %v2561, %v3443
  %v3636 = vsub.f32 %v2566, %v3445
  %v3637 = vsub.f32 %v2569, %v3445
  %v3638 = vsub.f32 %v2574, %v3447
  %v3639 = vsub.f32 %v2577, %v3447
  %v3640 = vsub.f32 %v2582, %v3449
  %v3641 = vsub.f32 %v2585, %v3449
  %v3642 = vsub.f32 %v2590, %v3451
  %v3643 = vsub.f32 %v2593, %v3451
  %v3644 = vsub.f32 %v2598, %v3453
  %v3645 = vsub.f32 %v2601, %v3453
  %v3646 = vsub.f32 %v2606, %v3455
  %v3647 = vsub.f32 %v2609, %v3455
  %v3648 = vsub.f32 %v2614, %v3457
  %v3649 = vsub.f32 %v2617, %v3457
  %v3650 = vsub.f32 %v2622, %v3459
  %v3651 = vsub.f32 %v2625, %v3459
  %v3652 = vsub.f32 %v2630, %v3461
  %v3653 = vsub.f32 %v2633, %v3461
  %v3654 = vsub.f32 %v2638, %v3463
  %v3655 = vsub.f32 %v2641, %v3463
  %v3656 = vsub.f32 %v2646, %v3465
  %v3657 = vsub.f32 %v2649, %v3465
  %v3658 = vsub.f32 %v2654, %v3467
  %v3659 = vsub.f32 %v2657, %v3467
  %v3660 = vsub.f32 %v2662, %v3469
  %v3661 = vsub.f32 %v2665, %v3469
  %v3662 = vsub.f32 %v2670, %v3471
  %v3663 = vsub.f32 %v2673, %v3471
  %v3664 = vsub.f32 %v2678, %v3473
  %v3665 = vsub.f32 %v2681, %v3473
  %v3666 = vsub.f32 %v2686, %v3475
  %v3667 = vsub.f32 %v2689, %v3475
  %v3668 = vlaneseq
  %v3669 = vshrl.u32 %v3668, 7
  %v3670 = vsub.s32 2, %v3669
  %v3671 = vrot.slane %v196, %v3670
  %3673 = vrot.lane.b32.xlu0 %v3671, 64
  %v3674 = vpop.permute.xlu0 %3673
  %v3676 = vadd.f32 %v3540, %v3674
  %v3677 = vadd.f32 %v3541, %v3674
  %v3678 = vadd.f32 %v3542, %v3674
  %v3679 = vadd.f32 %v3543, %v3674
  %v3680 = vadd.f32 %v3544, %v3674
  %v3681 = vadd.f32 %v3545, %v3674
  %v3682 = vadd.f32 %v3546, %v3674
  %v3683 = vadd.f32 %v3547, %v3674
  %v3684 = vadd.f32 %v3548, %v3674
  %v3685 = vadd.f32 %v3549, %v3674
  %v3686 = vadd.f32 %v3550, %v3674
  %v3687 = vadd.f32 %v3551, %v3674
  %v3688 = vadd.f32 %v3552, %v3674
  %v3689 = vadd.f32 %v3553, %v3674
  %v3690 = vadd.f32 %v3554, %v3674
  %v3691 = vadd.f32 %v3555, %v3674
  %v3692 = vadd.f32 %v3556, %v3674
  %v3693 = vadd.f32 %v3557, %v3674
  %v3694 = vadd.f32 %v3558, %v3674
  %v3695 = vadd.f32 %v3559, %v3674
  %v3696 = vadd.f32 %v3560, %v3674
  %v3697 = vadd.f32 %v3561, %v3674
  %v3698 = vadd.f32 %v3562, %v3674
  %v3699 = vadd.f32 %v3563, %v3674
  %v3700 = vadd.f32 %v3564, %v3674
  %v3701 = vadd.f32 %v3565, %v3674
  %v3702 = vadd.f32 %v3566, %v3674
  %v3703 = vadd.f32 %v3567, %v3674
  %v3704 = vadd.f32 %v3568, %v3674
  %v3705 = vadd.f32 %v3569, %v3674
  %v3706 = vadd.f32 %v3570, %v3674
  %v3707 = vadd.f32 %v3571, %v3674
  %v3708 = vadd.f32 %v3572, %v3674
  %v3709 = vadd.f32 %v3573, %v3674
  %v3710 = vadd.f32 %v3574, %v3674
  %v3711 = vadd.f32 %v3575, %v3674
  %v3712 = vadd.f32 %v3576, %v3674
  %v3713 = vadd.f32 %v3577, %v3674
  %v3714 = vadd.f32 %v3578, %v3674
  %v3715 = vadd.f32 %v3579, %v3674
  %v3716 = vadd.f32 %v3580, %v3674
  %v3717 = vadd.f32 %v3581, %v3674
  %v3718 = vadd.f32 %v3582, %v3674
  %v3719 = vadd.f32 %v3583, %v3674
  %v3720 = vadd.f32 %v3584, %v3674
  %v3721 = vadd.f32 %v3585, %v3674
  %v3722 = vadd.f32 %v3586, %v3674
  %v3723 = vadd.f32 %v3587, %v3674
  %v3724 = vadd.f32 %v3588, %v3674
  %v3725 = vadd.f32 %v3589, %v3674
  %v3726 = vadd.f32 %v3590, %v3674
  %v3727 = vadd.f32 %v3591, %v3674
  %v3728 = vadd.f32 %v3592, %v3674
  %v3729 = vadd.f32 %v3593, %v3674
  %v3730 = vadd.f32 %v3594, %v3674
  %v3731 = vadd.f32 %v3595, %v3674
  %v3732 = vadd.f32 %v3596, %v3674
  %v3733 = vadd.f32 %v3597, %v3674
  %v3734 = vadd.f32 %v3598, %v3674
  %v3735 = vadd.f32 %v3599, %v3674
  %v3736 = vadd.f32 %v3600, %v3674
  %v3737 = vadd.f32 %v3601, %v3674
  %v3738 = vadd.f32 %v3602, %v3674
  %v3739 = vadd.f32 %v3603, %v3674
  %v3740 = vadd.f32 %v3604, %v3674
  %v3741 = vadd.f32 %v3605, %v3674
  %v3742 = vadd.f32 %v3606, %v3674
  %v3743 = vadd.f32 %v3607, %v3674
  %v3744 = vadd.f32 %v3608, %v3674
  %v3745 = vadd.f32 %v3609, %v3674
  %v3746 = vadd.f32 %v3610, %v3674
  %v3747 = vadd.f32 %v3611, %v3674
  %v3748 = vadd.f32 %v3612, %v3674
  %v3749 = vadd.f32 %v3613, %v3674
  %v3750 = vadd.f32 %v3614, %v3674
  %v3751 = vadd.f32 %v3615, %v3674
  %v3752 = vadd.f32 %v3616, %v3674
  %v3753 = vadd.f32 %v3617, %v3674
  %v3754 = vadd.f32 %v3618, %v3674
  %v3755 = vadd.f32 %v3619, %v3674
  %v3756 = vadd.f32 %v3620, %v3674
  %v3757 = vadd.f32 %v3621, %v3674
  %v3758 = vadd.f32 %v3622, %v3674
  %v3759 = vadd.f32 %v3623, %v3674
  %v3760 = vadd.f32 %v3624, %v3674
  %v3761 = vadd.f32 %v3625, %v3674
  %v3762 = vadd.f32 %v3626, %v3674
  %v3763 = vadd.f32 %v3627, %v3674
  %v3764 = vadd.f32 %v3628, %v3674
  %v3765 = vadd.f32 %v3629, %v3674
  %v3766 = vadd.f32 %v3630, %v3674
  %v3767 = vadd.f32 %v3631, %v3674
  %v3768 = vadd.f32 %v3632, %v3674
  %v3769 = vadd.f32 %v3633, %v3674
  %v3770 = vadd.f32 %v3634, %v3674
  %v3771 = vadd.f32 %v3635, %v3674
  %v3772 = vadd.f32 %v3636, %v3674
  %v3773 = vadd.f32 %v3637, %v3674
  %v3774 = vadd.f32 %v3638, %v3674
  %v3775 = vadd.f32 %v3639, %v3674
  %v3776 = vadd.f32 %v3640, %v3674
  %v3777 = vadd.f32 %v3641, %v3674
  %v3778 = vadd.f32 %v3642, %v3674
  %v3779 = vadd.f32 %v3643, %v3674
  %v3780 = vadd.f32 %v3644, %v3674
  %v3781 = vadd.f32 %v3645, %v3674
  %v3782 = vadd.f32 %v3646, %v3674
  %v3783 = vadd.f32 %v3647, %v3674
  %v3784 = vadd.f32 %v3648, %v3674
  %v3785 = vadd.f32 %v3649, %v3674
  %v3786 = vadd.f32 %v3650, %v3674
  %v3787 = vadd.f32 %v3651, %v3674
  %v3788 = vadd.f32 %v3652, %v3674
  %v3789 = vadd.f32 %v3653, %v3674
  %v3790 = vadd.f32 %v3654, %v3674
  %v3791 = vadd.f32 %v3655, %v3674
  %v3792 = vadd.f32 %v3656, %v3674
  %v3793 = vadd.f32 %v3657, %v3674
  %v3794 = vadd.f32 %v3658, %v3674
  %v3795 = vadd.f32 %v3659, %v3674
  %v3796 = vadd.f32 %v3660, %v3674
  %v3797 = vadd.f32 %v3661, %v3674
  %v3798 = vadd.f32 %v3662, %v3674
  %v3799 = vadd.f32 %v3663, %v3674
  %v3800 = vadd.f32 %v3664, %v3674
  %v3801 = vadd.f32 %v3665, %v3674
  %v3802 = vadd.f32 %v3666, %v3674
  %v3803 = vadd.f32 %v3667, %v3674
  %v3804 = vmax.f32 %v3676, 0.0
  %v3805 = vmax.f32 %v3677, 0.0
  %v3806 = vmax.f32 %v3678, 0.0
  %v3807 = vmax.f32 %v3679, 0.0
  %v3808 = vmax.f32 %v3680, 0.0
  %v3809 = vmax.f32 %v3681, 0.0
  %v3810 = vmax.f32 %v3682, 0.0
  %v3811 = vmax.f32 %v3683, 0.0
  %v3812 = vmax.f32 %v3684, 0.0
  %v3813 = vmax.f32 %v3685, 0.0
  %v3814 = vmax.f32 %v3686, 0.0
  %v3815 = vmax.f32 %v3687, 0.0
  %v3816 = vmax.f32 %v3688, 0.0
  %v3817 = vmax.f32 %v3689, 0.0
  %v3818 = vmax.f32 %v3690, 0.0
  %v3819 = vmax.f32 %v3691, 0.0
  %v3820 = vmax.f32 %v3692, 0.0
  %v3821 = vmax.f32 %v3693, 0.0
  %v3822 = vmax.f32 %v3694, 0.0
  %v3823 = vmax.f32 %v3695, 0.0
  %v3824 = vmax.f32 %v3696, 0.0
  %v3825 = vmax.f32 %v3697, 0.0
  %v3826 = vmax.f32 %v3698, 0.0
  %v3827 = vmax.f32 %v3699, 0.0
  %v3828 = vmax.f32 %v3700, 0.0
  %v3829 = vmax.f32 %v3701, 0.0
  %v3830 = vmax.f32 %v3702, 0.0
  %v3831 = vmax.f32 %v3703, 0.0
  %v3832 = vmax.f32 %v3704, 0.0
  %v3833 = vmax.f32 %v3705, 0.0
  %v3834 = vmax.f32 %v3706, 0.0
  %v3835 = vmax.f32 %v3707, 0.0
  %v3836 = vmax.f32 %v3708, 0.0
  %v3837 = vmax.f32 %v3709, 0.0
  %v3838 = vmax.f32 %v3710, 0.0
  %v3839 = vmax.f32 %v3711, 0.0
  %v3840 = vmax.f32 %v3712, 0.0
  %v3841 = vmax.f32 %v3713, 0.0
  %v3842 = vmax.f32 %v3714, 0.0
  %v3843 = vmax.f32 %v3715, 0.0
  %v3844 = vmax.f32 %v3716, 0.0
  %v3845 = vmax.f32 %v3717, 0.0
  %v3846 = vmax.f32 %v3718, 0.0
  %v3847 = vmax.f32 %v3719, 0.0
  %v3848 = vmax.f32 %v3720, 0.0
  %v3849 = vmax.f32 %v3721, 0.0
  %v3850 = vmax.f32 %v3722, 0.0
  %v3851 = vmax.f32 %v3723, 0.0
  %v3852 = vmax.f32 %v3724, 0.0
  %v3853 = vmax.f32 %v3725, 0.0
  %v3854 = vmax.f32 %v3726, 0.0
  %v3855 = vmax.f32 %v3727, 0.0
  %v3856 = vmax.f32 %v3728, 0.0
  %v3857 = vmax.f32 %v3729, 0.0
  %v3858 = vmax.f32 %v3730, 0.0
  %v3859 = vmax.f32 %v3731, 0.0
  %v3860 = vmax.f32 %v3732, 0.0
  %v3861 = vmax.f32 %v3733, 0.0
  %v3862 = vmax.f32 %v3734, 0.0
  %v3863 = vmax.f32 %v3735, 0.0
  %v3864 = vmax.f32 %v3736, 0.0
  %v3865 = vmax.f32 %v3737, 0.0
  %v3866 = vmax.f32 %v3738, 0.0
  %v3867 = vmax.f32 %v3739, 0.0
  %v3868 = vmax.f32 %v3740, 0.0
  %v3869 = vmax.f32 %v3741, 0.0
  %v3870 = vmax.f32 %v3742, 0.0
  %v3871 = vmax.f32 %v3743, 0.0
  %v3872 = vmax.f32 %v3744, 0.0
  %v3873 = vmax.f32 %v3745, 0.0
  %v3874 = vmax.f32 %v3746, 0.0
  %v3875 = vmax.f32 %v3747, 0.0
  %v3876 = vmax.f32 %v3748, 0.0
  %v3877 = vmax.f32 %v3749, 0.0
  %v3878 = vmax.f32 %v3750, 0.0
  %v3879 = vmax.f32 %v3751, 0.0
  %v3880 = vmax.f32 %v3752, 0.0
  %v3881 = vmax.f32 %v3753, 0.0
  %v3882 = vmax.f32 %v3754, 0.0
  %v3883 = vmax.f32 %v3755, 0.0
  %v3884 = vmax.f32 %v3756, 0.0
  %v3885 = vmax.f32 %v3757, 0.0
  %v3886 = vmax.f32 %v3758, 0.0
  %v3887 = vmax.f32 %v3759, 0.0
  %v3888 = vmax.f32 %v3760, 0.0
  %v3889 = vmax.f32 %v3761, 0.0
  %v3890 = vmax.f32 %v3762, 0.0
  %v3891 = vmax.f32 %v3763, 0.0
  %v3892 = vmax.f32 %v3764, 0.0
  %v3893 = vmax.f32 %v3765, 0.0
  %v3894 = vmax.f32 %v3766, 0.0
  %v3895 = vmax.f32 %v3767, 0.0
  %v3896 = vmax.f32 %v3768, 0.0
  %v3897 = vmax.f32 %v3769, 0.0
  %v3898 = vmax.f32 %v3770, 0.0
  %v3899 = vmax.f32 %v3771, 0.0
  %v3900 = vmax.f32 %v3772, 0.0
  %v3901 = vmax.f32 %v3773, 0.0
  %v3902 = vmax.f32 %v3774, 0.0
  %v3903 = vmax.f32 %v3775, 0.0
  %v3904 = vmax.f32 %v3776, 0.0
  %v3905 = vmax.f32 %v3777, 0.0
  %v3906 = vmax.f32 %v3778, 0.0
  %v3907 = vmax.f32 %v3779, 0.0
  %v3908 = vmax.f32 %v3780, 0.0
  %v3909 = vmax.f32 %v3781, 0.0
  %v3910 = vmax.f32 %v3782, 0.0
  %v3911 = vmax.f32 %v3783, 0.0
  %v3912 = vmax.f32 %v3784, 0.0
  %v3913 = vmax.f32 %v3785, 0.0
  %v3914 = vmax.f32 %v3786, 0.0
  %v3915 = vmax.f32 %v3787, 0.0
  %v3916 = vmax.f32 %v3788, 0.0
  %v3917 = vmax.f32 %v3789, 0.0
  %v3918 = vmax.f32 %v3790, 0.0
  %v3919 = vmax.f32 %v3791, 0.0
  %v3920 = vmax.f32 %v3792, 0.0
  %v3921 = vmax.f32 %v3793, 0.0
  %v3922 = vmax.f32 %v3794, 0.0
  %v3923 = vmax.f32 %v3795, 0.0
  %v3924 = vmax.f32 %v3796, 0.0
  %v3925 = vmax.f32 %v3797, 0.0
  %v3926 = vmax.f32 %v3798, 0.0
  %v3927 = vmax.f32 %v3799, 0.0
  %v3928 = vmax.f32 %v3800, 0.0
  %v3929 = vmax.f32 %v3801, 0.0
  %v3930 = vmax.f32 %v3802, 0.0
  %v3931 = vmax.f32 %v3803, 0.0
  %3933 = vset.pattern.permute.xlu0 64
  %3934 = vperm.xlu0 %3933, %v3804
  %v3935 = vpop.permute.xlu0 %3934
  %3938 = vset.pattern.permute.xlu0 64
  %3939 = vperm.xlu0 %3938, %v3805
  %v3940 = vpop.permute.xlu0 %3939
  %3943 = vset.pattern.permute.xlu0 64
  %3944 = vperm.xlu0 %3943, %v3806
  %v3945 = vpop.permute.xlu0 %3944
  %3948 = vset.pattern.permute.xlu0 64
  %3949 = vperm.xlu0 %3948, %v3807
  %v3950 = vpop.permute.xlu0 %3949
  %3953 = vset.pattern.permute.xlu0 64
  %3954 = vperm.xlu0 %3953, %v3808
  %v3955 = vpop.permute.xlu0 %3954
  %3958 = vset.pattern.permute.xlu0 64
  %3959 = vperm.xlu0 %3958, %v3809
  %v3960 = vpop.permute.xlu0 %3959
  %3963 = vset.pattern.permute.xlu0 64
  %3964 = vperm.xlu0 %3963, %v3810
  %v3965 = vpop.permute.xlu0 %3964
  %3968 = vset.pattern.permute.xlu0 64
  %3969 = vperm.xlu0 %3968, %v3811
  %v3970 = vpop.permute.xlu0 %3969
  %3973 = vset.pattern.permute.xlu0 64
  %3974 = vperm.xlu0 %3973, %v3812
  %v3975 = vpop.permute.xlu0 %3974
  %3978 = vset.pattern.permute.xlu0 64
  %3979 = vperm.xlu0 %3978, %v3813
  %v3980 = vpop.permute.xlu0 %3979
  %3983 = vset.pattern.permute.xlu0 64
  %3984 = vperm.xlu0 %3983, %v3814
  %v3985 = vpop.permute.xlu0 %3984
  %3988 = vset.pattern.permute.xlu0 64
  %3989 = vperm.xlu0 %3988, %v3815
  %v3990 = vpop.permute.xlu0 %3989
  %3993 = vset.pattern.permute.xlu0 64
  %3994 = vperm.xlu0 %3993, %v3816
  %v3995 = vpop.permute.xlu0 %3994
  %3998 = vset.pattern.permute.xlu0 64
  %3999 = vperm.xlu0 %3998, %v3817
  %v4000 = vpop.permute.xlu0 %3999
  %4003 = vset.pattern.permute.xlu0 64
  %4004 = vperm.xlu0 %4003, %v3818
  %v4005 = vpop.permute.xlu0 %4004
  %4008 = vset.pattern.permute.xlu0 64
  %4009 = vperm.xlu0 %4008, %v3819
  %v4010 = vpop.permute.xlu0 %4009
  %4013 = vset.pattern.permute.xlu0 64
  %4014 = vperm.xlu0 %4013, %v3820
  %v4015 = vpop.permute.xlu0 %4014
  %4018 = vset.pattern.permute.xlu0 64
  %4019 = vperm.xlu0 %4018, %v3821
  %v4020 = vpop.permute.xlu0 %4019
  %4023 = vset.pattern.permute.xlu0 64
  %4024 = vperm.xlu0 %4023, %v3822
  %v4025 = vpop.permute.xlu0 %4024
  %4028 = vset.pattern.permute.xlu0 64
  %4029 = vperm.xlu0 %4028, %v3823
  %v4030 = vpop.permute.xlu0 %4029
  %4033 = vset.pattern.permute.xlu0 64
  %4034 = vperm.xlu0 %4033, %v3824
  %v4035 = vpop.permute.xlu0 %4034
  %4038 = vset.pattern.permute.xlu0 64
  %4039 = vperm.xlu0 %4038, %v3825
  %v4040 = vpop.permute.xlu0 %4039
  %4043 = vset.pattern.permute.xlu0 64
  %4044 = vperm.xlu0 %4043, %v3826
  %v4045 = vpop.permute.xlu0 %4044
  %4048 = vset.pattern.permute.xlu0 64
  %4049 = vperm.xlu0 %4048, %v3827
  %v4050 = vpop.permute.xlu0 %4049
  %4053 = vset.pattern.permute.xlu0 64
  %4054 = vperm.xlu0 %4053, %v3828
  %v4055 = vpop.permute.xlu0 %4054
  %4058 = vset.pattern.permute.xlu0 64
  %4059 = vperm.xlu0 %4058, %v3829
  %v4060 = vpop.permute.xlu0 %4059
  %4063 = vset.pattern.permute.xlu0 64
  %4064 = vperm.xlu0 %4063, %v3830
  %v4065 = vpop.permute.xlu0 %4064
  %4068 = vset.pattern.permute.xlu0 64
  %4069 = vperm.xlu0 %4068, %v3831
  %v4070 = vpop.permute.xlu0 %4069
  %4073 = vset.pattern.permute.xlu0 64
  %4074 = vperm.xlu0 %4073, %v3832
  %v4075 = vpop.permute.xlu0 %4074
  %4078 = vset.pattern.permute.xlu0 64
  %4079 = vperm.xlu0 %4078, %v3833
  %v4080 = vpop.permute.xlu0 %4079
  %4083 = vset.pattern.permute.xlu0 64
  %4084 = vperm.xlu0 %4083, %v3834
  %v4085 = vpop.permute.xlu0 %4084
  %4088 = vset.pattern.permute.xlu0 64
  %4089 = vperm.xlu0 %4088, %v3835
  %v4090 = vpop.permute.xlu0 %4089
  %4093 = vset.pattern.permute.xlu0 64
  %4094 = vperm.xlu0 %4093, %v3836
  %v4095 = vpop.permute.xlu0 %4094
  %4098 = vset.pattern.permute.xlu0 64
  %4099 = vperm.xlu0 %4098, %v3837
  %v4100 = vpop.permute.xlu0 %4099
  %4103 = vset.pattern.permute.xlu0 64
  %4104 = vperm.xlu0 %4103, %v3838
  %v4105 = vpop.permute.xlu0 %4104
  %4108 = vset.pattern.permute.xlu0 64
  %4109 = vperm.xlu0 %4108, %v3839
  %v4110 = vpop.permute.xlu0 %4109
  %4113 = vset.pattern.permute.xlu0 64
  %4114 = vperm.xlu0 %4113, %v3840
  %v4115 = vpop.permute.xlu0 %4114
  %4118 = vset.pattern.permute.xlu0 64
  %4119 = vperm.xlu0 %4118, %v3841
  %v4120 = vpop.permute.xlu0 %4119
  %4123 = vset.pattern.permute.xlu0 64
  %4124 = vperm.xlu0 %4123, %v3842
  %v4125 = vpop.permute.xlu0 %4124
  %4128 = vset.pattern.permute.xlu0 64
  %4129 = vperm.xlu0 %4128, %v3843
  %v4130 = vpop.permute.xlu0 %4129
  %4133 = vset.pattern.permute.xlu0 64
  %4134 = vperm.xlu0 %4133, %v3844
  %v4135 = vpop.permute.xlu0 %4134
  %4138 = vset.pattern.permute.xlu0 64
  %4139 = vperm.xlu0 %4138, %v3845
  %v4140 = vpop.permute.xlu0 %4139
  %4143 = vset.pattern.permute.xlu0 64
  %4144 = vperm.xlu0 %4143, %v3846
  %v4145 = vpop.permute.xlu0 %4144
  %4148 = vset.pattern.permute.xlu0 64
  %4149 = vperm.xlu0 %4148, %v3847
  %v4150 = vpop.permute.xlu0 %4149
  %4153 = vset.pattern.permute.xlu0 64
  %4154 = vperm.xlu0 %4153, %v3848
  %v4155 = vpop.permute.xlu0 %4154
  %4158 = vset.pattern.permute.xlu0 64
  %4159 = vperm.xlu0 %4158, %v3849
  %v4160 = vpop.permute.xlu0 %4159
  %4163 = vset.pattern.permute.xlu0 64
  %4164 = vperm.xlu0 %4163, %v3850
  %v4165 = vpop.permute.xlu0 %4164
  %4168 = vset.pattern.permute.xlu0 64
  %4169 = vperm.xlu0 %4168, %v3851
  %v4170 = vpop.permute.xlu0 %4169
  %4173 = vset.pattern.permute.xlu0 64
  %4174 = vperm.xlu0 %4173, %v3852
  %v4175 = vpop.permute.xlu0 %4174
  %4178 = vset.pattern.permute.xlu0 64
  %4179 = vperm.xlu0 %4178, %v3853
  %v4180 = vpop.permute.xlu0 %4179
  %4183 = vset.pattern.permute.xlu0 64
  %4184 = vperm.xlu0 %4183, %v3854
  %v4185 = vpop.permute.xlu0 %4184
  %4188 = vset.pattern.permute.xlu0 64
  %4189 = vperm.xlu0 %4188, %v3855
  %v4190 = vpop.permute.xlu0 %4189
  %4193 = vset.pattern.permute.xlu0 64
  %4194 = vperm.xlu0 %4193, %v3856
  %v4195 = vpop.permute.xlu0 %4194
  %4198 = vset.pattern.permute.xlu0 64
  %4199 = vperm.xlu0 %4198, %v3857
  %v4200 = vpop.permute.xlu0 %4199
  %4203 = vset.pattern.permute.xlu0 64
  %4204 = vperm.xlu0 %4203, %v3858
  %v4205 = vpop.permute.xlu0 %4204
  %4208 = vset.pattern.permute.xlu0 64
  %4209 = vperm.xlu0 %4208, %v3859
  %v4210 = vpop.permute.xlu0 %4209
  %4213 = vset.pattern.permute.xlu0 64
  %4214 = vperm.xlu0 %4213, %v3860
  %v4215 = vpop.permute.xlu0 %4214
  %4218 = vset.pattern.permute.xlu0 64
  %4219 = vperm.xlu0 %4218, %v3861
  %v4220 = vpop.permute.xlu0 %4219
  %4223 = vset.pattern.permute.xlu0 64
  %4224 = vperm.xlu0 %4223, %v3862
  %v4225 = vpop.permute.xlu0 %4224
  %4228 = vset.pattern.permute.xlu0 64
  %4229 = vperm.xlu0 %4228, %v3863
  %v4230 = vpop.permute.xlu0 %4229
  %4233 = vset.pattern.permute.xlu0 64
  %4234 = vperm.xlu0 %4233, %v3864
  %v4235 = vpop.permute.xlu0 %4234
  %4238 = vset.pattern.permute.xlu0 64
  %4239 = vperm.xlu0 %4238, %v3865
  %v4240 = vpop.permute.xlu0 %4239
  %4243 = vset.pattern.permute.xlu0 64
  %4244 = vperm.xlu0 %4243, %v3866
  %v4245 = vpop.permute.xlu0 %4244
  %4248 = vset.pattern.permute.xlu0 64
  %4249 = vperm.xlu0 %4248, %v3867
  %v4250 = vpop.permute.xlu0 %4249
  %4253 = vset.pattern.permute.xlu0 64
  %4254 = vperm.xlu0 %4253, %v3868
  %v4255 = vpop.permute.xlu0 %4254
  %4258 = vset.pattern.permute.xlu0 64
  %4259 = vperm.xlu0 %4258, %v3869
  %v4260 = vpop.permute.xlu0 %4259
  %4263 = vset.pattern.permute.xlu0 64
  %4264 = vperm.xlu0 %4263, %v3870
  %v4265 = vpop.permute.xlu0 %4264
  %4268 = vset.pattern.permute.xlu0 64
  %4269 = vperm.xlu0 %4268, %v3871
  %v4270 = vpop.permute.xlu0 %4269
  %4273 = vset.pattern.permute.xlu0 64
  %4274 = vperm.xlu0 %4273, %v3872
  %v4275 = vpop.permute.xlu0 %4274
  %4278 = vset.pattern.permute.xlu0 64
  %4279 = vperm.xlu0 %4278, %v3873
  %v4280 = vpop.permute.xlu0 %4279
  %4283 = vset.pattern.permute.xlu0 64
  %4284 = vperm.xlu0 %4283, %v3874
  %v4285 = vpop.permute.xlu0 %4284
  %4288 = vset.pattern.permute.xlu0 64
  %4289 = vperm.xlu0 %4288, %v3875
  %v4290 = vpop.permute.xlu0 %4289
  %4293 = vset.pattern.permute.xlu0 64
  %4294 = vperm.xlu0 %4293, %v3876
  %v4295 = vpop.permute.xlu0 %4294
  %4298 = vset.pattern.permute.xlu0 64
  %4299 = vperm.xlu0 %4298, %v3877
  %v4300 = vpop.permute.xlu0 %4299
  %4303 = vset.pattern.permute.xlu0 64
  %4304 = vperm.xlu0 %4303, %v3878
  %v4305 = vpop.permute.xlu0 %4304
  %4308 = vset.pattern.permute.xlu0 64
  %4309 = vperm.xlu0 %4308, %v3879
  %v4310 = vpop.permute.xlu0 %4309
  %4313 = vset.pattern.permute.xlu0 64
  %4314 = vperm.xlu0 %4313, %v3880
  %v4315 = vpop.permute.xlu0 %4314
  %4318 = vset.pattern.permute.xlu0 64
  %4319 = vperm.xlu0 %4318, %v3881
  %v4320 = vpop.permute.xlu0 %4319
  %4323 = vset.pattern.permute.xlu0 64
  %4324 = vperm.xlu0 %4323, %v3882
  %v4325 = vpop.permute.xlu0 %4324
  %4328 = vset.pattern.permute.xlu0 64
  %4329 = vperm.xlu0 %4328, %v3883
  %v4330 = vpop.permute.xlu0 %4329
  %4333 = vset.pattern.permute.xlu0 64
  %4334 = vperm.xlu0 %4333, %v3884
  %v4335 = vpop.permute.xlu0 %4334
  %4338 = vset.pattern.permute.xlu0 64
  %4339 = vperm.xlu0 %4338, %v3885
  %v4340 = vpop.permute.xlu0 %4339
  %4343 = vset.pattern.permute.xlu0 64
  %4344 = vperm.xlu0 %4343, %v3886
  %v4345 = vpop.permute.xlu0 %4344
  %4348 = vset.pattern.permute.xlu0 64
  %4349 = vperm.xlu0 %4348, %v3887
  %v4350 = vpop.permute.xlu0 %4349
  %4353 = vset.pattern.permute.xlu0 64
  %4354 = vperm.xlu0 %4353, %v3888
  %v4355 = vpop.permute.xlu0 %4354
  %4358 = vset.pattern.permute.xlu0 64
  %4359 = vperm.xlu0 %4358, %v3889
  %v4360 = vpop.permute.xlu0 %4359
  %4363 = vset.pattern.permute.xlu0 64
  %4364 = vperm.xlu0 %4363, %v3890
  %v4365 = vpop.permute.xlu0 %4364
  %4368 = vset.pattern.permute.xlu0 64
  %4369 = vperm.xlu0 %4368, %v3891
  %v4370 = vpop.permute.xlu0 %4369
  %4373 = vset.pattern.permute.xlu0 64
  %4374 = vperm.xlu0 %4373, %v3892
  %v4375 = vpop.permute.xlu0 %4374
  %4378 = vset.pattern.permute.xlu0 64
  %4379 = vperm.xlu0 %4378, %v3893
  %v4380 = vpop.permute.xlu0 %4379
  %4383 = vset.pattern.permute.xlu0 64
  %4384 = vperm.xlu0 %4383, %v3894
  %v4385 = vpop.permute.xlu0 %4384
  %4388 = vset.pattern.permute.xlu0 64
  %4389 = vperm.xlu0 %4388, %v3895
  %v4390 = vpop.permute.xlu0 %4389
  %4393 = vset.pattern.permute.xlu0 64
  %4394 = vperm.xlu0 %4393, %v3896
  %v4395 = vpop.permute.xlu0 %4394
  %4398 = vset.pattern.permute.xlu0 64
  %4399 = vperm.xlu0 %4398, %v3897
  %v4400 = vpop.permute.xlu0 %4399
  %4403 = vset.pattern.permute.xlu0 64
  %4404 = vperm.xlu0 %4403, %v3898
  %v4405 = vpop.permute.xlu0 %4404
  %4408 = vset.pattern.permute.xlu0 64
  %4409 = vperm.xlu0 %4408, %v3899
  %v4410 = vpop.permute.xlu0 %4409
  %4413 = vset.pattern.permute.xlu0 64
  %4414 = vperm.xlu0 %4413, %v3900
  %v4415 = vpop.permute.xlu0 %4414
  %4418 = vset.pattern.permute.xlu0 64
  %4419 = vperm.xlu0 %4418, %v3901
  %v4420 = vpop.permute.xlu0 %4419
  %4423 = vset.pattern.permute.xlu0 64
  %4424 = vperm.xlu0 %4423, %v3902
  %v4425 = vpop.permute.xlu0 %4424
  %4428 = vset.pattern.permute.xlu0 64
  %4429 = vperm.xlu0 %4428, %v3903
  %v4430 = vpop.permute.xlu0 %4429
  %4433 = vset.pattern.permute.xlu0 64
  %4434 = vperm.xlu0 %4433, %v3904
  %v4435 = vpop.permute.xlu0 %4434
  %4438 = vset.pattern.permute.xlu0 64
  %4439 = vperm.xlu0 %4438, %v3905
  %v4440 = vpop.permute.xlu0 %4439
  %4443 = vset.pattern.permute.xlu0 64
  %4444 = vperm.xlu0 %4443, %v3906
  %v4445 = vpop.permute.xlu0 %4444
  %4448 = vset.pattern.permute.xlu0 64
  %4449 = vperm.xlu0 %4448, %v3907
  %v4450 = vpop.permute.xlu0 %4449
  %4453 = vset.pattern.permute.xlu0 64
  %4454 = vperm.xlu0 %4453, %v3908
  %v4455 = vpop.permute.xlu0 %4454
  %4458 = vset.pattern.permute.xlu0 64
  %4459 = vperm.xlu0 %4458, %v3909
  %v4460 = vpop.permute.xlu0 %4459
  %4463 = vset.pattern.permute.xlu0 64
  %4464 = vperm.xlu0 %4463, %v3910
  %v4465 = vpop.permute.xlu0 %4464
  %4468 = vset.pattern.permute.xlu0 64
  %4469 = vperm.xlu0 %4468, %v3911
  %v4470 = vpop.permute.xlu0 %4469
  %4473 = vset.pattern.permute.xlu0 64
  %4474 = vperm.xlu0 %4473, %v3912
  %v4475 = vpop.permute.xlu0 %4474
  %4478 = vset.pattern.permute.xlu0 64
  %4479 = vperm.xlu0 %4478, %v3913
  %v4480 = vpop.permute.xlu0 %4479
  %4483 = vset.pattern.permute.xlu0 64
  %4484 = vperm.xlu0 %4483, %v3914
  %v4485 = vpop.permute.xlu0 %4484
  %4488 = vset.pattern.permute.xlu0 64
  %4489 = vperm.xlu0 %4488, %v3915
  %v4490 = vpop.permute.xlu0 %4489
  %4493 = vset.pattern.permute.xlu0 64
  %4494 = vperm.xlu0 %4493, %v3916
  %v4495 = vpop.permute.xlu0 %4494
  %4498 = vset.pattern.permute.xlu0 64
  %4499 = vperm.xlu0 %4498, %v3917
  %v4500 = vpop.permute.xlu0 %4499
  %4503 = vset.pattern.permute.xlu0 64
  %4504 = vperm.xlu0 %4503, %v3918
  %v4505 = vpop.permute.xlu0 %4504
  %4508 = vset.pattern.permute.xlu0 64
  %4509 = vperm.xlu0 %4508, %v3919
  %v4510 = vpop.permute.xlu0 %4509
  %4513 = vset.pattern.permute.xlu0 64
  %4514 = vperm.xlu0 %4513, %v3920
  %v4515 = vpop.permute.xlu0 %4514
  %4518 = vset.pattern.permute.xlu0 64
  %4519 = vperm.xlu0 %4518, %v3921
  %v4520 = vpop.permute.xlu0 %4519
  %4523 = vset.pattern.permute.xlu0 64
  %4524 = vperm.xlu0 %4523, %v3922
  %v4525 = vpop.permute.xlu0 %4524
  %4528 = vset.pattern.permute.xlu0 64
  %4529 = vperm.xlu0 %4528, %v3923
  %v4530 = vpop.permute.xlu0 %4529
  %4533 = vset.pattern.permute.xlu0 64
  %4534 = vperm.xlu0 %4533, %v3924
  %v4535 = vpop.permute.xlu0 %4534
  %4538 = vset.pattern.permute.xlu0 64
  %4539 = vperm.xlu0 %4538, %v3925
  %v4540 = vpop.permute.xlu0 %4539
  %4543 = vset.pattern.permute.xlu0 64
  %4544 = vperm.xlu0 %4543, %v3926
  %v4545 = vpop.permute.xlu0 %4544
  %4548 = vset.pattern.permute.xlu0 64
  %4549 = vperm.xlu0 %4548, %v3927
  %v4550 = vpop.permute.xlu0 %4549
  %4553 = vset.pattern.permute.xlu0 64
  %4554 = vperm.xlu0 %4553, %v3928
  %v4555 = vpop.permute.xlu0 %4554
  %4558 = vset.pattern.permute.xlu0 64
  %4559 = vperm.xlu0 %4558, %v3929
  %v4560 = vpop.permute.xlu0 %4559
  %4563 = vset.pattern.permute.xlu0 64
  %4564 = vperm.xlu0 %4563, %v3930
  %v4565 = vpop.permute.xlu0 %4564
  %4568 = vset.pattern.permute.xlu0 64
  %4569 = vperm.xlu0 %4568, %v3931
  %v4570 = vpop.permute.xlu0 %4569
  %v4572 = vlaneseq
  %v4573 = vshrl.u32 %v4572, 7
  %v4574 = vsub.s32 3, %v4573
  %v4575 = vrot.slane %v196, %v4574
  %v4576 = vmul.f32 %v3935, %v4575
  %v4577 = vmul.f32 %v3940, %v4575
  %v4578 = vmul.f32 %v3945, %v4575
  %v4579 = vmul.f32 %v3950, %v4575
  %v4580 = vmul.f32 %v3955, %v4575
  %v4581 = vmul.f32 %v3960, %v4575
  %v4582 = vmul.f32 %v3965, %v4575
  %v4583 = vmul.f32 %v3970, %v4575
  %v4584 = vmul.f32 %v3975, %v4575
  %v4585 = vmul.f32 %v3980, %v4575
  %v4586 = vmul.f32 %v3985, %v4575
  %v4587 = vmul.f32 %v3990, %v4575
  %v4588 = vmul.f32 %v3995, %v4575
  %v4589 = vmul.f32 %v4000, %v4575
  %v4590 = vmul.f32 %v4005, %v4575
  %v4591 = vmul.f32 %v4010, %v4575
  %v4592 = vmul.f32 %v4015, %v4575
  %v4593 = vmul.f32 %v4020, %v4575
  %v4594 = vmul.f32 %v4025, %v4575
  %v4595 = vmul.f32 %v4030, %v4575
  %v4596 = vmul.f32 %v4035, %v4575
  %v4597 = vmul.f32 %v4040, %v4575
  %v4598 = vmul.f32 %v4045, %v4575
  %v4599 = vmul.f32 %v4050, %v4575
  %v4600 = vmul.f32 %v4055, %v4575
  %v4601 = vmul.f32 %v4060, %v4575
  %v4602 = vmul.f32 %v4065, %v4575
  %v4603 = vmul.f32 %v4070, %v4575
  %v4604 = vmul.f32 %v4075, %v4575
  %v4605 = vmul.f32 %v4080, %v4575
  %v4606 = vmul.f32 %v4085, %v4575
  %v4607 = vmul.f32 %v4090, %v4575
  %v4608 = vmul.f32 %v4095, %v4575
  %v4609 = vmul.f32 %v4100, %v4575
  %v4610 = vmul.f32 %v4105, %v4575
  %v4611 = vmul.f32 %v4110, %v4575
  %v4612 = vmul.f32 %v4115, %v4575
  %v4613 = vmul.f32 %v4120, %v4575
  %v4614 = vmul.f32 %v4125, %v4575
  %v4615 = vmul.f32 %v4130, %v4575
  %v4616 = vmul.f32 %v4135, %v4575
  %v4617 = vmul.f32 %v4140, %v4575
  %v4618 = vmul.f32 %v4145, %v4575
  %v4619 = vmul.f32 %v4150, %v4575
  %v4620 = vmul.f32 %v4155, %v4575
  %v4621 = vmul.f32 %v4160, %v4575
  %v4622 = vmul.f32 %v4165, %v4575
  %v4623 = vmul.f32 %v4170, %v4575
  %v4624 = vmul.f32 %v4175, %v4575
  %v4625 = vmul.f32 %v4180, %v4575
  %v4626 = vmul.f32 %v4185, %v4575
  %v4627 = vmul.f32 %v4190, %v4575
  %v4628 = vmul.f32 %v4195, %v4575
  %v4629 = vmul.f32 %v4200, %v4575
  %v4630 = vmul.f32 %v4205, %v4575
  %v4631 = vmul.f32 %v4210, %v4575
  %v4632 = vmul.f32 %v4215, %v4575
  %v4633 = vmul.f32 %v4220, %v4575
  %v4634 = vmul.f32 %v4225, %v4575
  %v4635 = vmul.f32 %v4230, %v4575
  %v4636 = vmul.f32 %v4235, %v4575
  %v4637 = vmul.f32 %v4240, %v4575
  %v4638 = vmul.f32 %v4245, %v4575
  %v4639 = vmul.f32 %v4250, %v4575
  %v4640 = vmul.f32 %v4255, %v4575
  %v4641 = vmul.f32 %v4260, %v4575
  %v4642 = vmul.f32 %v4265, %v4575
  %v4643 = vmul.f32 %v4270, %v4575
  %v4644 = vmul.f32 %v4275, %v4575
  %v4645 = vmul.f32 %v4280, %v4575
  %v4646 = vmul.f32 %v4285, %v4575
  %v4647 = vmul.f32 %v4290, %v4575
  %v4648 = vmul.f32 %v4295, %v4575
  %v4649 = vmul.f32 %v4300, %v4575
  %v4650 = vmul.f32 %v4305, %v4575
  %v4651 = vmul.f32 %v4310, %v4575
  %v4652 = vmul.f32 %v4315, %v4575
  %v4653 = vmul.f32 %v4320, %v4575
  %v4654 = vmul.f32 %v4325, %v4575
  %v4655 = vmul.f32 %v4330, %v4575
  %v4656 = vmul.f32 %v4335, %v4575
  %v4657 = vmul.f32 %v4340, %v4575
  %v4658 = vmul.f32 %v4345, %v4575
  %v4659 = vmul.f32 %v4350, %v4575
  %v4660 = vmul.f32 %v4355, %v4575
  %v4661 = vmul.f32 %v4360, %v4575
  %v4662 = vmul.f32 %v4365, %v4575
  %v4663 = vmul.f32 %v4370, %v4575
  %v4664 = vmul.f32 %v4375, %v4575
  %v4665 = vmul.f32 %v4380, %v4575
  %v4666 = vmul.f32 %v4385, %v4575
  %v4667 = vmul.f32 %v4390, %v4575
  %v4668 = vmul.f32 %v4395, %v4575
  %v4669 = vmul.f32 %v4400, %v4575
  %v4670 = vmul.f32 %v4405, %v4575
  %v4671 = vmul.f32 %v4410, %v4575
  %v4672 = vmul.f32 %v4415, %v4575
  %v4673 = vmul.f32 %v4420, %v4575
  %v4674 = vmul.f32 %v4425, %v4575
  %v4675 = vmul.f32 %v4430, %v4575
  %v4676 = vmul.f32 %v4435, %v4575
  %v4677 = vmul.f32 %v4440, %v4575
  %v4678 = vmul.f32 %v4445, %v4575
  %v4679 = vmul.f32 %v4450, %v4575
  %v4680 = vmul.f32 %v4455, %v4575
  %v4681 = vmul.f32 %v4460, %v4575
  %v4682 = vmul.f32 %v4465, %v4575
  %v4683 = vmul.f32 %v4470, %v4575
  %v4684 = vmul.f32 %v4475, %v4575
  %v4685 = vmul.f32 %v4480, %v4575
  %v4686 = vmul.f32 %v4485, %v4575
  %v4687 = vmul.f32 %v4490, %v4575
  %v4688 = vmul.f32 %v4495, %v4575
  %v4689 = vmul.f32 %v4500, %v4575
  %v4690 = vmul.f32 %v4505, %v4575
  %v4691 = vmul.f32 %v4510, %v4575
  %v4692 = vmul.f32 %v4515, %v4575
  %v4693 = vmul.f32 %v4520, %v4575
  %v4694 = vmul.f32 %v4525, %v4575
  %v4695 = vmul.f32 %v4530, %v4575
  %v4696 = vmul.f32 %v4535, %v4575
  %v4697 = vmul.f32 %v4540, %v4575
  %v4698 = vmul.f32 %v4545, %v4575
  %v4699 = vmul.f32 %v4550, %v4575
  %v4700 = vmul.f32 %v4555, %v4575
  %v4701 = vmul.f32 %v4560, %v4575
  %v4702 = vmul.f32 %v4565, %v4575
  %v4703 = vmul.f32 %v4570, %v4575
  %4704 = vset.pattern.permute.xlu0 65
  %4705 = vperm.xlu0 %4704, %v3804
  %v4706 = vpop.permute.xlu0 %4705
  %4708 = vset.pattern.permute.xlu0 65
  %4709 = vperm.xlu0 %4708, %v3805
  %v4710 = vpop.permute.xlu0 %4709
  %4712 = vset.pattern.permute.xlu0 65
  %4713 = vperm.xlu0 %4712, %v3806
  %v4714 = vpop.permute.xlu0 %4713
  %4716 = vset.pattern.permute.xlu0 65
  %4717 = vperm.xlu0 %4716, %v3807
  %v4718 = vpop.permute.xlu0 %4717
  %4720 = vset.pattern.permute.xlu0 65
  %4721 = vperm.xlu0 %4720, %v3808
  %v4722 = vpop.permute.xlu0 %4721
  %4724 = vset.pattern.permute.xlu0 65
  %4725 = vperm.xlu0 %4724, %v3809
  %v4726 = vpop.permute.xlu0 %4725
  %4728 = vset.pattern.permute.xlu0 65
  %4729 = vperm.xlu0 %4728, %v3810
  %v4730 = vpop.permute.xlu0 %4729
  %4732 = vset.pattern.permute.xlu0 65
  %4733 = vperm.xlu0 %4732, %v3811
  %v4734 = vpop.permute.xlu0 %4733
  %4736 = vset.pattern.permute.xlu0 65
  %4737 = vperm.xlu0 %4736, %v3812
  %v4738 = vpop.permute.xlu0 %4737
  %4740 = vset.pattern.permute.xlu0 65
  %4741 = vperm.xlu0 %4740, %v3813
  %v4742 = vpop.permute.xlu0 %4741
  %4744 = vset.pattern.permute.xlu0 65
  %4745 = vperm.xlu0 %4744, %v3814
  %v4746 = vpop.permute.xlu0 %4745
  %4748 = vset.pattern.permute.xlu0 65
  %4749 = vperm.xlu0 %4748, %v3815
  %v4750 = vpop.permute.xlu0 %4749
  %4752 = vset.pattern.permute.xlu0 65
  %4753 = vperm.xlu0 %4752, %v3816
  %v4754 = vpop.permute.xlu0 %4753
  %4756 = vset.pattern.permute.xlu0 65
  %4757 = vperm.xlu0 %4756, %v3817
  %v4758 = vpop.permute.xlu0 %4757
  %4760 = vset.pattern.permute.xlu0 65
  %4761 = vperm.xlu0 %4760, %v3818
  %v4762 = vpop.permute.xlu0 %4761
  %4764 = vset.pattern.permute.xlu0 65
  %4765 = vperm.xlu0 %4764, %v3819
  %v4766 = vpop.permute.xlu0 %4765
  %4768 = vset.pattern.permute.xlu0 65
  %4769 = vperm.xlu0 %4768, %v3820
  %v4770 = vpop.permute.xlu0 %4769
  %4772 = vset.pattern.permute.xlu0 65
  %4773 = vperm.xlu0 %4772, %v3821
  %v4774 = vpop.permute.xlu0 %4773
  %4776 = vset.pattern.permute.xlu0 65
  %4777 = vperm.xlu0 %4776, %v3822
  %v4778 = vpop.permute.xlu0 %4777
  %4780 = vset.pattern.permute.xlu0 65
  %4781 = vperm.xlu0 %4780, %v3823
  %v4782 = vpop.permute.xlu0 %4781
  %4784 = vset.pattern.permute.xlu0 65
  %4785 = vperm.xlu0 %4784, %v3824
  %v4786 = vpop.permute.xlu0 %4785
  %4788 = vset.pattern.permute.xlu0 65
  %4789 = vperm.xlu0 %4788, %v3825
  %v4790 = vpop.permute.xlu0 %4789
  %4792 = vset.pattern.permute.xlu0 65
  %4793 = vperm.xlu0 %4792, %v3826
  %v4794 = vpop.permute.xlu0 %4793
  %4796 = vset.pattern.permute.xlu0 65
  %4797 = vperm.xlu0 %4796, %v3827
  %v4798 = vpop.permute.xlu0 %4797
  %4800 = vset.pattern.permute.xlu0 65
  %4801 = vperm.xlu0 %4800, %v3828
  %v4802 = vpop.permute.xlu0 %4801
  %4804 = vset.pattern.permute.xlu0 65
  %4805 = vperm.xlu0 %4804, %v3829
  %v4806 = vpop.permute.xlu0 %4805
  %4808 = vset.pattern.permute.xlu0 65
  %4809 = vperm.xlu0 %4808, %v3830
  %v4810 = vpop.permute.xlu0 %4809
  %4812 = vset.pattern.permute.xlu0 65
  %4813 = vperm.xlu0 %4812, %v3831
  %v4814 = vpop.permute.xlu0 %4813
  %4816 = vset.pattern.permute.xlu0 65
  %4817 = vperm.xlu0 %4816, %v3832
  %v4818 = vpop.permute.xlu0 %4817
  %4820 = vset.pattern.permute.xlu0 65
  %4821 = vperm.xlu0 %4820, %v3833
  %v4822 = vpop.permute.xlu0 %4821
  %4824 = vset.pattern.permute.xlu0 65
  %4825 = vperm.xlu0 %4824, %v3834
  %v4826 = vpop.permute.xlu0 %4825
  %4828 = vset.pattern.permute.xlu0 65
  %4829 = vperm.xlu0 %4828, %v3835
  %v4830 = vpop.permute.xlu0 %4829
  %4832 = vset.pattern.permute.xlu0 65
  %4833 = vperm.xlu0 %4832, %v3836
  %v4834 = vpop.permute.xlu0 %4833
  %4836 = vset.pattern.permute.xlu0 65
  %4837 = vperm.xlu0 %4836, %v3837
  %v4838 = vpop.permute.xlu0 %4837
  %4840 = vset.pattern.permute.xlu0 65
  %4841 = vperm.xlu0 %4840, %v3838
  %v4842 = vpop.permute.xlu0 %4841
  %4844 = vset.pattern.permute.xlu0 65
  %4845 = vperm.xlu0 %4844, %v3839
  %v4846 = vpop.permute.xlu0 %4845
  %4848 = vset.pattern.permute.xlu0 65
  %4849 = vperm.xlu0 %4848, %v3840
  %v4850 = vpop.permute.xlu0 %4849
  %4852 = vset.pattern.permute.xlu0 65
  %4853 = vperm.xlu0 %4852, %v3841
  %v4854 = vpop.permute.xlu0 %4853
  %4856 = vset.pattern.permute.xlu0 65
  %4857 = vperm.xlu0 %4856, %v3842
  %v4858 = vpop.permute.xlu0 %4857
  %4860 = vset.pattern.permute.xlu0 65
  %4861 = vperm.xlu0 %4860, %v3843
  %v4862 = vpop.permute.xlu0 %4861
  %4864 = vset.pattern.permute.xlu0 65
  %4865 = vperm.xlu0 %4864, %v3844
  %v4866 = vpop.permute.xlu0 %4865
  %4868 = vset.pattern.permute.xlu0 65
  %4869 = vperm.xlu0 %4868, %v3845
  %v4870 = vpop.permute.xlu0 %4869
  %4872 = vset.pattern.permute.xlu0 65
  %4873 = vperm.xlu0 %4872, %v3846
  %v4874 = vpop.permute.xlu0 %4873
  %4876 = vset.pattern.permute.xlu0 65
  %4877 = vperm.xlu0 %4876, %v3847
  %v4878 = vpop.permute.xlu0 %4877
  %4880 = vset.pattern.permute.xlu0 65
  %4881 = vperm.xlu0 %4880, %v3848
  %v4882 = vpop.permute.xlu0 %4881
  %4884 = vset.pattern.permute.xlu0 65
  %4885 = vperm.xlu0 %4884, %v3849
  %v4886 = vpop.permute.xlu0 %4885
  %4888 = vset.pattern.permute.xlu0 65
  %4889 = vperm.xlu0 %4888, %v3850
  %v4890 = vpop.permute.xlu0 %4889
  %4892 = vset.pattern.permute.xlu0 65
  %4893 = vperm.xlu0 %4892, %v3851
  %v4894 = vpop.permute.xlu0 %4893
  %4896 = vset.pattern.permute.xlu0 65
  %4897 = vperm.xlu0 %4896, %v3852
  %v4898 = vpop.permute.xlu0 %4897
  %4900 = vset.pattern.permute.xlu0 65
  %4901 = vperm.xlu0 %4900, %v3853
  %v4902 = vpop.permute.xlu0 %4901
  %4904 = vset.pattern.permute.xlu0 65
  %4905 = vperm.xlu0 %4904, %v3854
  %v4906 = vpop.permute.xlu0 %4905
  %4908 = vset.pattern.permute.xlu0 65
  %4909 = vperm.xlu0 %4908, %v3855
  %v4910 = vpop.permute.xlu0 %4909
  %4912 = vset.pattern.permute.xlu0 65
  %4913 = vperm.xlu0 %4912, %v3856
  %v4914 = vpop.permute.xlu0 %4913
  %4916 = vset.pattern.permute.xlu0 65
  %4917 = vperm.xlu0 %4916, %v3857
  %v4918 = vpop.permute.xlu0 %4917
  %4920 = vset.pattern.permute.xlu0 65
  %4921 = vperm.xlu0 %4920, %v3858
  %v4922 = vpop.permute.xlu0 %4921
  %4924 = vset.pattern.permute.xlu0 65
  %4925 = vperm.xlu0 %4924, %v3859
  %v4926 = vpop.permute.xlu0 %4925
  %4928 = vset.pattern.permute.xlu0 65
  %4929 = vperm.xlu0 %4928, %v3860
  %v4930 = vpop.permute.xlu0 %4929
  %4932 = vset.pattern.permute.xlu0 65
  %4933 = vperm.xlu0 %4932, %v3861
  %v4934 = vpop.permute.xlu0 %4933
  %4936 = vset.pattern.permute.xlu0 65
  %4937 = vperm.xlu0 %4936, %v3862
  %v4938 = vpop.permute.xlu0 %4937
  %4940 = vset.pattern.permute.xlu0 65
  %4941 = vperm.xlu0 %4940, %v3863
  %v4942 = vpop.permute.xlu0 %4941
  %4944 = vset.pattern.permute.xlu0 65
  %4945 = vperm.xlu0 %4944, %v3864
  %v4946 = vpop.permute.xlu0 %4945
  %4948 = vset.pattern.permute.xlu0 65
  %4949 = vperm.xlu0 %4948, %v3865
  %v4950 = vpop.permute.xlu0 %4949
  %4952 = vset.pattern.permute.xlu0 65
  %4953 = vperm.xlu0 %4952, %v3866
  %v4954 = vpop.permute.xlu0 %4953
  %4956 = vset.pattern.permute.xlu0 65
  %4957 = vperm.xlu0 %4956, %v3867
  %v4958 = vpop.permute.xlu0 %4957
  %4960 = vset.pattern.permute.xlu0 65
  %4961 = vperm.xlu0 %4960, %v3868
  %v4962 = vpop.permute.xlu0 %4961
  %4964 = vset.pattern.permute.xlu0 65
  %4965 = vperm.xlu0 %4964, %v3869
  %v4966 = vpop.permute.xlu0 %4965
  %4968 = vset.pattern.permute.xlu0 65
  %4969 = vperm.xlu0 %4968, %v3870
  %v4970 = vpop.permute.xlu0 %4969
  %4972 = vset.pattern.permute.xlu0 65
  %4973 = vperm.xlu0 %4972, %v3871
  %v4974 = vpop.permute.xlu0 %4973
  %4976 = vset.pattern.permute.xlu0 65
  %4977 = vperm.xlu0 %4976, %v3872
  %v4978 = vpop.permute.xlu0 %4977
  %4980 = vset.pattern.permute.xlu0 65
  %4981 = vperm.xlu0 %4980, %v3873
  %v4982 = vpop.permute.xlu0 %4981
  %4984 = vset.pattern.permute.xlu0 65
  %4985 = vperm.xlu0 %4984, %v3874
  %v4986 = vpop.permute.xlu0 %4985
  %4988 = vset.pattern.permute.xlu0 65
  %4989 = vperm.xlu0 %4988, %v3875
  %v4990 = vpop.permute.xlu0 %4989
  %4992 = vset.pattern.permute.xlu0 65
  %4993 = vperm.xlu0 %4992, %v3876
  %v4994 = vpop.permute.xlu0 %4993
  %4996 = vset.pattern.permute.xlu0 65
  %4997 = vperm.xlu0 %4996, %v3877
  %v4998 = vpop.permute.xlu0 %4997
  %5000 = vset.pattern.permute.xlu0 65
  %5001 = vperm.xlu0 %5000, %v3878
  %v5002 = vpop.permute.xlu0 %5001
  %5004 = vset.pattern.permute.xlu0 65
  %5005 = vperm.xlu0 %5004, %v3879
  %v5006 = vpop.permute.xlu0 %5005
  %5008 = vset.pattern.permute.xlu0 65
  %5009 = vperm.xlu0 %5008, %v3880
  %v5010 = vpop.permute.xlu0 %5009
  %5012 = vset.pattern.permute.xlu0 65
  %5013 = vperm.xlu0 %5012, %v3881
  %v5014 = vpop.permute.xlu0 %5013
  %5016 = vset.pattern.permute.xlu0 65
  %5017 = vperm.xlu0 %5016, %v3882
  %v5018 = vpop.permute.xlu0 %5017
  %5020 = vset.pattern.permute.xlu0 65
  %5021 = vperm.xlu0 %5020, %v3883
  %v5022 = vpop.permute.xlu0 %5021
  %5024 = vset.pattern.permute.xlu0 65
  %5025 = vperm.xlu0 %5024, %v3884
  %v5026 = vpop.permute.xlu0 %5025
  %5028 = vset.pattern.permute.xlu0 65
  %5029 = vperm.xlu0 %5028, %v3885
  %v5030 = vpop.permute.xlu0 %5029
  %5032 = vset.pattern.permute.xlu0 65
  %5033 = vperm.xlu0 %5032, %v3886
  %v5034 = vpop.permute.xlu0 %5033
  %5036 = vset.pattern.permute.xlu0 65
  %5037 = vperm.xlu0 %5036, %v3887
  %v5038 = vpop.permute.xlu0 %5037
  %5040 = vset.pattern.permute.xlu0 65
  %5041 = vperm.xlu0 %5040, %v3888
  %v5042 = vpop.permute.xlu0 %5041
  %5044 = vset.pattern.permute.xlu0 65
  %5045 = vperm.xlu0 %5044, %v3889
  %v5046 = vpop.permute.xlu0 %5045
  %5048 = vset.pattern.permute.xlu0 65
  %5049 = vperm.xlu0 %5048, %v3890
  %v5050 = vpop.permute.xlu0 %5049
  %5052 = vset.pattern.permute.xlu0 65
  %5053 = vperm.xlu0 %5052, %v3891
  %v5054 = vpop.permute.xlu0 %5053
  %5056 = vset.pattern.permute.xlu0 65
  %5057 = vperm.xlu0 %5056, %v3892
  %v5058 = vpop.permute.xlu0 %5057
  %5060 = vset.pattern.permute.xlu0 65
  %5061 = vperm.xlu0 %5060, %v3893
  %v5062 = vpop.permute.xlu0 %5061
  %5064 = vset.pattern.permute.xlu0 65
  %5065 = vperm.xlu0 %5064, %v3894
  %v5066 = vpop.permute.xlu0 %5065
  %5068 = vset.pattern.permute.xlu0 65
  %5069 = vperm.xlu0 %5068, %v3895
  %v5070 = vpop.permute.xlu0 %5069
  %5072 = vset.pattern.permute.xlu0 65
  %5073 = vperm.xlu0 %5072, %v3896
  %v5074 = vpop.permute.xlu0 %5073
  %5076 = vset.pattern.permute.xlu0 65
  %5077 = vperm.xlu0 %5076, %v3897
  %v5078 = vpop.permute.xlu0 %5077
  %5080 = vset.pattern.permute.xlu0 65
  %5081 = vperm.xlu0 %5080, %v3898
  %v5082 = vpop.permute.xlu0 %5081
  %5084 = vset.pattern.permute.xlu0 65
  %5085 = vperm.xlu0 %5084, %v3899
  %v5086 = vpop.permute.xlu0 %5085
  %5088 = vset.pattern.permute.xlu0 65
  %5089 = vperm.xlu0 %5088, %v3900
  %v5090 = vpop.permute.xlu0 %5089
  %5092 = vset.pattern.permute.xlu0 65
  %5093 = vperm.xlu0 %5092, %v3901
  %v5094 = vpop.permute.xlu0 %5093
  %5096 = vset.pattern.permute.xlu0 65
  %5097 = vperm.xlu0 %5096, %v3902
  %v5098 = vpop.permute.xlu0 %5097
  %5100 = vset.pattern.permute.xlu0 65
  %5101 = vperm.xlu0 %5100, %v3903
  %v5102 = vpop.permute.xlu0 %5101
  %5104 = vset.pattern.permute.xlu0 65
  %5105 = vperm.xlu0 %5104, %v3904
  %v5106 = vpop.permute.xlu0 %5105
  %5108 = vset.pattern.permute.xlu0 65
  %5109 = vperm.xlu0 %5108, %v3905
  %v5110 = vpop.permute.xlu0 %5109
  %5112 = vset.pattern.permute.xlu0 65
  %5113 = vperm.xlu0 %5112, %v3906
  %v5114 = vpop.permute.xlu0 %5113
  %5116 = vset.pattern.permute.xlu0 65
  %5117 = vperm.xlu0 %5116, %v3907
  %v5118 = vpop.permute.xlu0 %5117
  %5120 = vset.pattern.permute.xlu0 65
  %5121 = vperm.xlu0 %5120, %v3908
  %v5122 = vpop.permute.xlu0 %5121
  %5124 = vset.pattern.permute.xlu0 65
  %5125 = vperm.xlu0 %5124, %v3909
  %v5126 = vpop.permute.xlu0 %5125
  %5128 = vset.pattern.permute.xlu0 65
  %5129 = vperm.xlu0 %5128, %v3910
  %v5130 = vpop.permute.xlu0 %5129
  %5132 = vset.pattern.permute.xlu0 65
  %5133 = vperm.xlu0 %5132, %v3911
  %v5134 = vpop.permute.xlu0 %5133
  %5136 = vset.pattern.permute.xlu0 65
  %5137 = vperm.xlu0 %5136, %v3912
  %v5138 = vpop.permute.xlu0 %5137
  %5140 = vset.pattern.permute.xlu0 65
  %5141 = vperm.xlu0 %5140, %v3913
  %v5142 = vpop.permute.xlu0 %5141
  %5144 = vset.pattern.permute.xlu0 65
  %5145 = vperm.xlu0 %5144, %v3914
  %v5146 = vpop.permute.xlu0 %5145
  %5148 = vset.pattern.permute.xlu0 65
  %5149 = vperm.xlu0 %5148, %v3915
  %v5150 = vpop.permute.xlu0 %5149
  %5152 = vset.pattern.permute.xlu0 65
  %5153 = vperm.xlu0 %5152, %v3916
  %v5154 = vpop.permute.xlu0 %5153
  %5156 = vset.pattern.permute.xlu0 65
  %5157 = vperm.xlu0 %5156, %v3917
  %v5158 = vpop.permute.xlu0 %5157
  %5160 = vset.pattern.permute.xlu0 65
  %5161 = vperm.xlu0 %5160, %v3918
  %v5162 = vpop.permute.xlu0 %5161
  %5164 = vset.pattern.permute.xlu0 65
  %5165 = vperm.xlu0 %5164, %v3919
  %v5166 = vpop.permute.xlu0 %5165
  %5168 = vset.pattern.permute.xlu0 65
  %5169 = vperm.xlu0 %5168, %v3920
  %v5170 = vpop.permute.xlu0 %5169
  %5172 = vset.pattern.permute.xlu0 65
  %5173 = vperm.xlu0 %5172, %v3921
  %v5174 = vpop.permute.xlu0 %5173
  %5176 = vset.pattern.permute.xlu0 65
  %5177 = vperm.xlu0 %5176, %v3922
  %v5178 = vpop.permute.xlu0 %5177
  %5180 = vset.pattern.permute.xlu0 65
  %5181 = vperm.xlu0 %5180, %v3923
  %v5182 = vpop.permute.xlu0 %5181
  %5184 = vset.pattern.permute.xlu0 65
  %5185 = vperm.xlu0 %5184, %v3924
  %v5186 = vpop.permute.xlu0 %5185
  %5188 = vset.pattern.permute.xlu0 65
  %5189 = vperm.xlu0 %5188, %v3925
  %v5190 = vpop.permute.xlu0 %5189
  %5192 = vset.pattern.permute.xlu0 65
  %5193 = vperm.xlu0 %5192, %v3926
  %v5194 = vpop.permute.xlu0 %5193
  %5196 = vset.pattern.permute.xlu0 65
  %5197 = vperm.xlu0 %5196, %v3927
  %v5198 = vpop.permute.xlu0 %5197
  %5200 = vset.pattern.permute.xlu0 65
  %5201 = vperm.xlu0 %5200, %v3928
  %v5202 = vpop.permute.xlu0 %5201
  %5204 = vset.pattern.permute.xlu0 65
  %5205 = vperm.xlu0 %5204, %v3929
  %v5206 = vpop.permute.xlu0 %5205
  %5208 = vset.pattern.permute.xlu0 65
  %5209 = vperm.xlu0 %5208, %v3930
  %v5210 = vpop.permute.xlu0 %5209
  %5212 = vset.pattern.permute.xlu0 65
  %5213 = vperm.xlu0 %5212, %v3931
  %v5214 = vpop.permute.xlu0 %5213
  %v5216 = vlaneseq
  %v5217 = vshrl.u32 %v5216, 7
  %v5218 = vsub.s32 4, %v5217
  %v5219 = vrot.slane %v196, %v5218
  %v5220 = vmul.f32 %v4706, %v5219
  %v5221 = vmul.f32 %v4710, %v5219
  %v5222 = vmul.f32 %v4714, %v5219
  %v5223 = vmul.f32 %v4718, %v5219
  %v5224 = vmul.f32 %v4722, %v5219
  %v5225 = vmul.f32 %v4726, %v5219
  %v5226 = vmul.f32 %v4730, %v5219
  %v5227 = vmul.f32 %v4734, %v5219
  %v5228 = vmul.f32 %v4738, %v5219
  %v5229 = vmul.f32 %v4742, %v5219
  %v5230 = vmul.f32 %v4746, %v5219
  %v5231 = vmul.f32 %v4750, %v5219
  %v5232 = vmul.f32 %v4754, %v5219
  %v5233 = vmul.f32 %v4758, %v5219
  %v5234 = vmul.f32 %v4762, %v5219
  %v5235 = vmul.f32 %v4766, %v5219
  %v5236 = vmul.f32 %v4770, %v5219
  %v5237 = vmul.f32 %v4774, %v5219
  %v5238 = vmul.f32 %v4778, %v5219
  %v5239 = vmul.f32 %v4782, %v5219
  %v5240 = vmul.f32 %v4786, %v5219
  %v5241 = vmul.f32 %v4790, %v5219
  %v5242 = vmul.f32 %v4794, %v5219
  %v5243 = vmul.f32 %v4798, %v5219
  %v5244 = vmul.f32 %v4802, %v5219
  %v5245 = vmul.f32 %v4806, %v5219
  %v5246 = vmul.f32 %v4810, %v5219
  %v5247 = vmul.f32 %v4814, %v5219
  %v5248 = vmul.f32 %v4818, %v5219
  %v5249 = vmul.f32 %v4822, %v5219
  %v5250 = vmul.f32 %v4826, %v5219
  %v5251 = vmul.f32 %v4830, %v5219
  %v5252 = vmul.f32 %v4834, %v5219
  %v5253 = vmul.f32 %v4838, %v5219
  %v5254 = vmul.f32 %v4842, %v5219
  %v5255 = vmul.f32 %v4846, %v5219
  %v5256 = vmul.f32 %v4850, %v5219
  %v5257 = vmul.f32 %v4854, %v5219
  %v5258 = vmul.f32 %v4858, %v5219
  %v5259 = vmul.f32 %v4862, %v5219
  %v5260 = vmul.f32 %v4866, %v5219
  %v5261 = vmul.f32 %v4870, %v5219
  %v5262 = vmul.f32 %v4874, %v5219
  %v5263 = vmul.f32 %v4878, %v5219
  %v5264 = vmul.f32 %v4882, %v5219
  %v5265 = vmul.f32 %v4886, %v5219
  %v5266 = vmul.f32 %v4890, %v5219
  %v5267 = vmul.f32 %v4894, %v5219
  %v5268 = vmul.f32 %v4898, %v5219
  %v5269 = vmul.f32 %v4902, %v5219
  %v5270 = vmul.f32 %v4906, %v5219
  %v5271 = vmul.f32 %v4910, %v5219
  %v5272 = vmul.f32 %v4914, %v5219
  %v5273 = vmul.f32 %v4918, %v5219
  %v5274 = vmul.f32 %v4922, %v5219
  %v5275 = vmul.f32 %v4926, %v5219
  %v5276 = vmul.f32 %v4930, %v5219
  %v5277 = vmul.f32 %v4934, %v5219
  %v5278 = vmul.f32 %v4938, %v5219
  %v5279 = vmul.f32 %v4942, %v5219
  %v5280 = vmul.f32 %v4946, %v5219
  %v5281 = vmul.f32 %v4950, %v5219
  %v5282 = vmul.f32 %v4954, %v5219
  %v5283 = vmul.f32 %v4958, %v5219
  %v5284 = vmul.f32 %v4962, %v5219
  %v5285 = vmul.f32 %v4966, %v5219
  %v5286 = vmul.f32 %v4970, %v5219
  %v5287 = vmul.f32 %v4974, %v5219
  %v5288 = vmul.f32 %v4978, %v5219
  %v5289 = vmul.f32 %v4982, %v5219
  %v5290 = vmul.f32 %v4986, %v5219
  %v5291 = vmul.f32 %v4990, %v5219
  %v5292 = vmul.f32 %v4994, %v5219
  %v5293 = vmul.f32 %v4998, %v5219
  %v5294 = vmul.f32 %v5002, %v5219
  %v5295 = vmul.f32 %v5006, %v5219
  %v5296 = vmul.f32 %v5010, %v5219
  %v5297 = vmul.f32 %v5014, %v5219
  %v5298 = vmul.f32 %v5018, %v5219
  %v5299 = vmul.f32 %v5022, %v5219
  %v5300 = vmul.f32 %v5026, %v5219
  %v5301 = vmul.f32 %v5030, %v5219
  %v5302 = vmul.f32 %v5034, %v5219
  %v5303 = vmul.f32 %v5038, %v5219
  %v5304 = vmul.f32 %v5042, %v5219
  %v5305 = vmul.f32 %v5046, %v5219
  %v5306 = vmul.f32 %v5050, %v5219
  %v5307 = vmul.f32 %v5054, %v5219
  %v5308 = vmul.f32 %v5058, %v5219
  %v5309 = vmul.f32 %v5062, %v5219
  %v5310 = vmul.f32 %v5066, %v5219
  %v5311 = vmul.f32 %v5070, %v5219
  %v5312 = vmul.f32 %v5074, %v5219
  %v5313 = vmul.f32 %v5078, %v5219
  %v5314 = vmul.f32 %v5082, %v5219
  %v5315 = vmul.f32 %v5086, %v5219
  %v5316 = vmul.f32 %v5090, %v5219
  %v5317 = vmul.f32 %v5094, %v5219
  %v5318 = vmul.f32 %v5098, %v5219
  %v5319 = vmul.f32 %v5102, %v5219
  %v5320 = vmul.f32 %v5106, %v5219
  %v5321 = vmul.f32 %v5110, %v5219
  %v5322 = vmul.f32 %v5114, %v5219
  %v5323 = vmul.f32 %v5118, %v5219
  %v5324 = vmul.f32 %v5122, %v5219
  %v5325 = vmul.f32 %v5126, %v5219
  %v5326 = vmul.f32 %v5130, %v5219
  %v5327 = vmul.f32 %v5134, %v5219
  %v5328 = vmul.f32 %v5138, %v5219
  %v5329 = vmul.f32 %v5142, %v5219
  %v5330 = vmul.f32 %v5146, %v5219
  %v5331 = vmul.f32 %v5150, %v5219
  %v5332 = vmul.f32 %v5154, %v5219
  %v5333 = vmul.f32 %v5158, %v5219
  %v5334 = vmul.f32 %v5162, %v5219
  %v5335 = vmul.f32 %v5166, %v5219
  %v5336 = vmul.f32 %v5170, %v5219
  %v5337 = vmul.f32 %v5174, %v5219
  %v5338 = vmul.f32 %v5178, %v5219
  %v5339 = vmul.f32 %v5182, %v5219
  %v5340 = vmul.f32 %v5186, %v5219
  %v5341 = vmul.f32 %v5190, %v5219
  %v5342 = vmul.f32 %v5194, %v5219
  %v5343 = vmul.f32 %v5198, %v5219
  %v5344 = vmul.f32 %v5202, %v5219
  %v5345 = vmul.f32 %v5206, %v5219
  %v5346 = vmul.f32 %v5210, %v5219
  %v5347 = vmul.f32 %v5214, %v5219
  %v5348 = vadd.f32 %v4576, %v5220
  %v5349 = vadd.f32 %v4577, %v5221
  %v5350 = vadd.f32 %v4578, %v5222
  %v5351 = vadd.f32 %v4579, %v5223
  %v5352 = vadd.f32 %v4580, %v5224
  %v5353 = vadd.f32 %v4581, %v5225
  %v5354 = vadd.f32 %v4582, %v5226
  %v5355 = vadd.f32 %v4583, %v5227
  %v5356 = vadd.f32 %v4584, %v5228
  %v5357 = vadd.f32 %v4585, %v5229
  %v5358 = vadd.f32 %v4586, %v5230
  %v5359 = vadd.f32 %v4587, %v5231
  %v5360 = vadd.f32 %v4588, %v5232
  %v5361 = vadd.f32 %v4589, %v5233
  %v5362 = vadd.f32 %v4590, %v5234
  %v5363 = vadd.f32 %v4591, %v5235
  %v5364 = vadd.f32 %v4592, %v5236
  %v5365 = vadd.f32 %v4593, %v5237
  %v5366 = vadd.f32 %v4594, %v5238
  %v5367 = vadd.f32 %v4595, %v5239
  %v5368 = vadd.f32 %v4596, %v5240
  %v5369 = vadd.f32 %v4597, %v5241
  %v5370 = vadd.f32 %v4598, %v5242
  %v5371 = vadd.f32 %v4599, %v5243
  %v5372 = vadd.f32 %v4600, %v5244
  %v5373 = vadd.f32 %v4601, %v5245
  %v5374 = vadd.f32 %v4602, %v5246
  %v5375 = vadd.f32 %v4603, %v5247
  %v5376 = vadd.f32 %v4604, %v5248
  %v5377 = vadd.f32 %v4605, %v5249
  %v5378 = vadd.f32 %v4606, %v5250
  %v5379 = vadd.f32 %v4607, %v5251
  %v5380 = vadd.f32 %v4608, %v5252
  %v5381 = vadd.f32 %v4609, %v5253
  %v5382 = vadd.f32 %v4610, %v5254
  %v5383 = vadd.f32 %v4611, %v5255
  %v5384 = vadd.f32 %v4612, %v5256
  %v5385 = vadd.f32 %v4613, %v5257
  %v5386 = vadd.f32 %v4614, %v5258
  %v5387 = vadd.f32 %v4615, %v5259
  %v5388 = vadd.f32 %v4616, %v5260
  %v5389 = vadd.f32 %v4617, %v5261
  %v5390 = vadd.f32 %v4618, %v5262
  %v5391 = vadd.f32 %v4619, %v5263
  %v5392 = vadd.f32 %v4620, %v5264
  %v5393 = vadd.f32 %v4621, %v5265
  %v5394 = vadd.f32 %v4622, %v5266
  %v5395 = vadd.f32 %v4623, %v5267
  %v5396 = vadd.f32 %v4624, %v5268
  %v5397 = vadd.f32 %v4625, %v5269
  %v5398 = vadd.f32 %v4626, %v5270
  %v5399 = vadd.f32 %v4627, %v5271
  %v5400 = vadd.f32 %v4628, %v5272
  %v5401 = vadd.f32 %v4629, %v5273
  %v5402 = vadd.f32 %v4630, %v5274
  %v5403 = vadd.f32 %v4631, %v5275
  %v5404 = vadd.f32 %v4632, %v5276
  %v5405 = vadd.f32 %v4633, %v5277
  %v5406 = vadd.f32 %v4634, %v5278
  %v5407 = vadd.f32 %v4635, %v5279
  %v5408 = vadd.f32 %v4636, %v5280
  %v5409 = vadd.f32 %v4637, %v5281
  %v5410 = vadd.f32 %v4638, %v5282
  %v5411 = vadd.f32 %v4639, %v5283
  %v5412 = vadd.f32 %v4640, %v5284
  %v5413 = vadd.f32 %v4641, %v5285
  %v5414 = vadd.f32 %v4642, %v5286
  %v5415 = vadd.f32 %v4643, %v5287
  %v5416 = vadd.f32 %v4644, %v5288
  %v5417 = vadd.f32 %v4645, %v5289
  %v5418 = vadd.f32 %v4646, %v5290
  %v5419 = vadd.f32 %v4647, %v5291
  %v5420 = vadd.f32 %v4648, %v5292
  %v5421 = vadd.f32 %v4649, %v5293
  %v5422 = vadd.f32 %v4650, %v5294
  %v5423 = vadd.f32 %v4651, %v5295
  %v5424 = vadd.f32 %v4652, %v5296
  %v5425 = vadd.f32 %v4653, %v5297
  %v5426 = vadd.f32 %v4654, %v5298
  %v5427 = vadd.f32 %v4655, %v5299
  %v5428 = vadd.f32 %v4656, %v5300
  %v5429 = vadd.f32 %v4657, %v5301
  %v5430 = vadd.f32 %v4658, %v5302
  %v5431 = vadd.f32 %v4659, %v5303
  %v5432 = vadd.f32 %v4660, %v5304
  %v5433 = vadd.f32 %v4661, %v5305
  %v5434 = vadd.f32 %v4662, %v5306
  %v5435 = vadd.f32 %v4663, %v5307
  %v5436 = vadd.f32 %v4664, %v5308
  %v5437 = vadd.f32 %v4665, %v5309
  %v5438 = vadd.f32 %v4666, %v5310
  %v5439 = vadd.f32 %v4667, %v5311
  %v5440 = vadd.f32 %v4668, %v5312
  %v5441 = vadd.f32 %v4669, %v5313
  %v5442 = vadd.f32 %v4670, %v5314
  %v5443 = vadd.f32 %v4671, %v5315
  %v5444 = vadd.f32 %v4672, %v5316
  %v5445 = vadd.f32 %v4673, %v5317
  %v5446 = vadd.f32 %v4674, %v5318
  %v5447 = vadd.f32 %v4675, %v5319
  %v5448 = vadd.f32 %v4676, %v5320
  %v5449 = vadd.f32 %v4677, %v5321
  %v5450 = vadd.f32 %v4678, %v5322
  %v5451 = vadd.f32 %v4679, %v5323
  %v5452 = vadd.f32 %v4680, %v5324
  %v5453 = vadd.f32 %v4681, %v5325
  %v5454 = vadd.f32 %v4682, %v5326
  %v5455 = vadd.f32 %v4683, %v5327
  %v5456 = vadd.f32 %v4684, %v5328
  %v5457 = vadd.f32 %v4685, %v5329
  %v5458 = vadd.f32 %v4686, %v5330
  %v5459 = vadd.f32 %v4687, %v5331
  %v5460 = vadd.f32 %v4688, %v5332
  %v5461 = vadd.f32 %v4689, %v5333
  %v5462 = vadd.f32 %v4690, %v5334
  %v5463 = vadd.f32 %v4691, %v5335
  %v5464 = vadd.f32 %v4692, %v5336
  %v5465 = vadd.f32 %v4693, %v5337
  %v5466 = vadd.f32 %v4694, %v5338
  %v5467 = vadd.f32 %v4695, %v5339
  %v5468 = vadd.f32 %v4696, %v5340
  %v5469 = vadd.f32 %v4697, %v5341
  %v5470 = vadd.f32 %v4698, %v5342
  %v5471 = vadd.f32 %v4699, %v5343
  %v5472 = vadd.f32 %v4700, %v5344
  %v5473 = vadd.f32 %v4701, %v5345
  %v5474 = vadd.f32 %v4702, %v5346
  %v5475 = vadd.f32 %v4703, %v5347
  %5476 = vset.pattern.permute.xlu0 66
  %5477 = vperm.xlu0 %5476, %v3804
  %v5478 = vpop.permute.xlu0 %5477
  %5480 = vset.pattern.permute.xlu0 66
  %5481 = vperm.xlu0 %5480, %v3805
  %v5482 = vpop.permute.xlu0 %5481
  %5484 = vset.pattern.permute.xlu0 66
  %5485 = vperm.xlu0 %5484, %v3806
  %v5486 = vpop.permute.xlu0 %5485
  %5488 = vset.pattern.permute.xlu0 66
  %5489 = vperm.xlu0 %5488, %v3807
  %v5490 = vpop.permute.xlu0 %5489
  %5492 = vset.pattern.permute.xlu0 66
  %5493 = vperm.xlu0 %5492, %v3808
  %v5494 = vpop.permute.xlu0 %5493
  %5496 = vset.pattern.permute.xlu0 66
  %5497 = vperm.xlu0 %5496, %v3809
  %v5498 = vpop.permute.xlu0 %5497
  %5500 = vset.pattern.permute.xlu0 66
  %5501 = vperm.xlu0 %5500, %v3810
  %v5502 = vpop.permute.xlu0 %5501
  %5504 = vset.pattern.permute.xlu0 66
  %5505 = vperm.xlu0 %5504, %v3811
  %v5506 = vpop.permute.xlu0 %5505
  %5508 = vset.pattern.permute.xlu0 66
  %5509 = vperm.xlu0 %5508, %v3812
  %v5510 = vpop.permute.xlu0 %5509
  %5512 = vset.pattern.permute.xlu0 66
  %5513 = vperm.xlu0 %5512, %v3813
  %v5514 = vpop.permute.xlu0 %5513
  %5516 = vset.pattern.permute.xlu0 66
  %5517 = vperm.xlu0 %5516, %v3814
  %v5518 = vpop.permute.xlu0 %5517
  %5520 = vset.pattern.permute.xlu0 66
  %5521 = vperm.xlu0 %5520, %v3815
  %v5522 = vpop.permute.xlu0 %5521
  %5524 = vset.pattern.permute.xlu0 66
  %5525 = vperm.xlu0 %5524, %v3816
  %v5526 = vpop.permute.xlu0 %5525
  %5528 = vset.pattern.permute.xlu0 66
  %5529 = vperm.xlu0 %5528, %v3817
  %v5530 = vpop.permute.xlu0 %5529
  %5532 = vset.pattern.permute.xlu0 66
  %5533 = vperm.xlu0 %5532, %v3818
  %v5534 = vpop.permute.xlu0 %5533
  %5536 = vset.pattern.permute.xlu0 66
  %5537 = vperm.xlu0 %5536, %v3819
  %v5538 = vpop.permute.xlu0 %5537
  %5540 = vset.pattern.permute.xlu0 66
  %5541 = vperm.xlu0 %5540, %v3820
  %v5542 = vpop.permute.xlu0 %5541
  %5544 = vset.pattern.permute.xlu0 66
  %5545 = vperm.xlu0 %5544, %v3821
  %v5546 = vpop.permute.xlu0 %5545
  %5548 = vset.pattern.permute.xlu0 66
  %5549 = vperm.xlu0 %5548, %v3822
  %v5550 = vpop.permute.xlu0 %5549
  %5552 = vset.pattern.permute.xlu0 66
  %5553 = vperm.xlu0 %5552, %v3823
  %v5554 = vpop.permute.xlu0 %5553
  %5556 = vset.pattern.permute.xlu0 66
  %5557 = vperm.xlu0 %5556, %v3824
  %v5558 = vpop.permute.xlu0 %5557
  %5560 = vset.pattern.permute.xlu0 66
  %5561 = vperm.xlu0 %5560, %v3825
  %v5562 = vpop.permute.xlu0 %5561
  %5564 = vset.pattern.permute.xlu0 66
  %5565 = vperm.xlu0 %5564, %v3826
  %v5566 = vpop.permute.xlu0 %5565
  %5568 = vset.pattern.permute.xlu0 66
  %5569 = vperm.xlu0 %5568, %v3827
  %v5570 = vpop.permute.xlu0 %5569
  %5572 = vset.pattern.permute.xlu0 66
  %5573 = vperm.xlu0 %5572, %v3828
  %v5574 = vpop.permute.xlu0 %5573
  %5576 = vset.pattern.permute.xlu0 66
  %5577 = vperm.xlu0 %5576, %v3829
  %v5578 = vpop.permute.xlu0 %5577
  %5580 = vset.pattern.permute.xlu0 66
  %5581 = vperm.xlu0 %5580, %v3830
  %v5582 = vpop.permute.xlu0 %5581
  %5584 = vset.pattern.permute.xlu0 66
  %5585 = vperm.xlu0 %5584, %v3831
  %v5586 = vpop.permute.xlu0 %5585
  %5588 = vset.pattern.permute.xlu0 66
  %5589 = vperm.xlu0 %5588, %v3832
  %v5590 = vpop.permute.xlu0 %5589
  %5592 = vset.pattern.permute.xlu0 66
  %5593 = vperm.xlu0 %5592, %v3833
  %v5594 = vpop.permute.xlu0 %5593
  %5596 = vset.pattern.permute.xlu0 66
  %5597 = vperm.xlu0 %5596, %v3834
  %v5598 = vpop.permute.xlu0 %5597
  %5600 = vset.pattern.permute.xlu0 66
  %5601 = vperm.xlu0 %5600, %v3835
  %v5602 = vpop.permute.xlu0 %5601
  %5604 = vset.pattern.permute.xlu0 66
  %5605 = vperm.xlu0 %5604, %v3836
  %v5606 = vpop.permute.xlu0 %5605
  %5608 = vset.pattern.permute.xlu0 66
  %5609 = vperm.xlu0 %5608, %v3837
  %v5610 = vpop.permute.xlu0 %5609
  %5612 = vset.pattern.permute.xlu0 66
  %5613 = vperm.xlu0 %5612, %v3838
  %v5614 = vpop.permute.xlu0 %5613
  %5616 = vset.pattern.permute.xlu0 66
  %5617 = vperm.xlu0 %5616, %v3839
  %v5618 = vpop.permute.xlu0 %5617
  %5620 = vset.pattern.permute.xlu0 66
  %5621 = vperm.xlu0 %5620, %v3840
  %v5622 = vpop.permute.xlu0 %5621
  %5624 = vset.pattern.permute.xlu0 66
  %5625 = vperm.xlu0 %5624, %v3841
  %v5626 = vpop.permute.xlu0 %5625
  %5628 = vset.pattern.permute.xlu0 66
  %5629 = vperm.xlu0 %5628, %v3842
  %v5630 = vpop.permute.xlu0 %5629
  %5632 = vset.pattern.permute.xlu0 66
  %5633 = vperm.xlu0 %5632, %v3843
  %v5634 = vpop.permute.xlu0 %5633
  %5636 = vset.pattern.permute.xlu0 66
  %5637 = vperm.xlu0 %5636, %v3844
  %v5638 = vpop.permute.xlu0 %5637
  %5640 = vset.pattern.permute.xlu0 66
  %5641 = vperm.xlu0 %5640, %v3845
  %v5642 = vpop.permute.xlu0 %5641
  %5644 = vset.pattern.permute.xlu0 66
  %5645 = vperm.xlu0 %5644, %v3846
  %v5646 = vpop.permute.xlu0 %5645
  %5648 = vset.pattern.permute.xlu0 66
  %5649 = vperm.xlu0 %5648, %v3847
  %v5650 = vpop.permute.xlu0 %5649
  %5652 = vset.pattern.permute.xlu0 66
  %5653 = vperm.xlu0 %5652, %v3848
  %v5654 = vpop.permute.xlu0 %5653
  %5656 = vset.pattern.permute.xlu0 66
  %5657 = vperm.xlu0 %5656, %v3849
  %v5658 = vpop.permute.xlu0 %5657
  %5660 = vset.pattern.permute.xlu0 66
  %5661 = vperm.xlu0 %5660, %v3850
  %v5662 = vpop.permute.xlu0 %5661
  %5664 = vset.pattern.permute.xlu0 66
  %5665 = vperm.xlu0 %5664, %v3851
  %v5666 = vpop.permute.xlu0 %5665
  %5668 = vset.pattern.permute.xlu0 66
  %5669 = vperm.xlu0 %5668, %v3852
  %v5670 = vpop.permute.xlu0 %5669
  %5672 = vset.pattern.permute.xlu0 66
  %5673 = vperm.xlu0 %5672, %v3853
  %v5674 = vpop.permute.xlu0 %5673
  %5676 = vset.pattern.permute.xlu0 66
  %5677 = vperm.xlu0 %5676, %v3854
  %v5678 = vpop.permute.xlu0 %5677
  %5680 = vset.pattern.permute.xlu0 66
  %5681 = vperm.xlu0 %5680, %v3855
  %v5682 = vpop.permute.xlu0 %5681
  %5684 = vset.pattern.permute.xlu0 66
  %5685 = vperm.xlu0 %5684, %v3856
  %v5686 = vpop.permute.xlu0 %5685
  %5688 = vset.pattern.permute.xlu0 66
  %5689 = vperm.xlu0 %5688, %v3857
  %v5690 = vpop.permute.xlu0 %5689
  %5692 = vset.pattern.permute.xlu0 66
  %5693 = vperm.xlu0 %5692, %v3858
  %v5694 = vpop.permute.xlu0 %5693
  %5696 = vset.pattern.permute.xlu0 66
  %5697 = vperm.xlu0 %5696, %v3859
  %v5698 = vpop.permute.xlu0 %5697
  %5700 = vset.pattern.permute.xlu0 66
  %5701 = vperm.xlu0 %5700, %v3860
  %v5702 = vpop.permute.xlu0 %5701
  %5704 = vset.pattern.permute.xlu0 66
  %5705 = vperm.xlu0 %5704, %v3861
  %v5706 = vpop.permute.xlu0 %5705
  %5708 = vset.pattern.permute.xlu0 66
  %5709 = vperm.xlu0 %5708, %v3862
  %v5710 = vpop.permute.xlu0 %5709
  %5712 = vset.pattern.permute.xlu0 66
  %5713 = vperm.xlu0 %5712, %v3863
  %v5714 = vpop.permute.xlu0 %5713
  %5716 = vset.pattern.permute.xlu0 66
  %5717 = vperm.xlu0 %5716, %v3864
  %v5718 = vpop.permute.xlu0 %5717
  %5720 = vset.pattern.permute.xlu0 66
  %5721 = vperm.xlu0 %5720, %v3865
  %v5722 = vpop.permute.xlu0 %5721
  %5724 = vset.pattern.permute.xlu0 66
  %5725 = vperm.xlu0 %5724, %v3866
  %v5726 = vpop.permute.xlu0 %5725
  %5728 = vset.pattern.permute.xlu0 66
  %5729 = vperm.xlu0 %5728, %v3867
  %v5730 = vpop.permute.xlu0 %5729
  %5732 = vset.pattern.permute.xlu0 66
  %5733 = vperm.xlu0 %5732, %v3868
  %v5734 = vpop.permute.xlu0 %5733
  %5736 = vset.pattern.permute.xlu0 66
  %5737 = vperm.xlu0 %5736, %v3869
  %v5738 = vpop.permute.xlu0 %5737
  %5740 = vset.pattern.permute.xlu0 66
  %5741 = vperm.xlu0 %5740, %v3870
  %v5742 = vpop.permute.xlu0 %5741
  %5744 = vset.pattern.permute.xlu0 66
  %5745 = vperm.xlu0 %5744, %v3871
  %v5746 = vpop.permute.xlu0 %5745
  %5748 = vset.pattern.permute.xlu0 66
  %5749 = vperm.xlu0 %5748, %v3872
  %v5750 = vpop.permute.xlu0 %5749
  %5752 = vset.pattern.permute.xlu0 66
  %5753 = vperm.xlu0 %5752, %v3873
  %v5754 = vpop.permute.xlu0 %5753
  %5756 = vset.pattern.permute.xlu0 66
  %5757 = vperm.xlu0 %5756, %v3874
  %v5758 = vpop.permute.xlu0 %5757
  %5760 = vset.pattern.permute.xlu0 66
  %5761 = vperm.xlu0 %5760, %v3875
  %v5762 = vpop.permute.xlu0 %5761
  %5764 = vset.pattern.permute.xlu0 66
  %5765 = vperm.xlu0 %5764, %v3876
  %v5766 = vpop.permute.xlu0 %5765
  %5768 = vset.pattern.permute.xlu0 66
  %5769 = vperm.xlu0 %5768, %v3877
  %v5770 = vpop.permute.xlu0 %5769
  %5772 = vset.pattern.permute.xlu0 66
  %5773 = vperm.xlu0 %5772, %v3878
  %v5774 = vpop.permute.xlu0 %5773
  %5776 = vset.pattern.permute.xlu0 66
  %5777 = vperm.xlu0 %5776, %v3879
  %v5778 = vpop.permute.xlu0 %5777
  %5780 = vset.pattern.permute.xlu0 66
  %5781 = vperm.xlu0 %5780, %v3880
  %v5782 = vpop.permute.xlu0 %5781
  %5784 = vset.pattern.permute.xlu0 66
  %5785 = vperm.xlu0 %5784, %v3881
  %v5786 = vpop.permute.xlu0 %5785
  %5788 = vset.pattern.permute.xlu0 66
  %5789 = vperm.xlu0 %5788, %v3882
  %v5790 = vpop.permute.xlu0 %5789
  %5792 = vset.pattern.permute.xlu0 66
  %5793 = vperm.xlu0 %5792, %v3883
  %v5794 = vpop.permute.xlu0 %5793
  %5796 = vset.pattern.permute.xlu0 66
  %5797 = vperm.xlu0 %5796, %v3884
  %v5798 = vpop.permute.xlu0 %5797
  %5800 = vset.pattern.permute.xlu0 66
  %5801 = vperm.xlu0 %5800, %v3885
  %v5802 = vpop.permute.xlu0 %5801
  %5804 = vset.pattern.permute.xlu0 66
  %5805 = vperm.xlu0 %5804, %v3886
  %v5806 = vpop.permute.xlu0 %5805
  %5808 = vset.pattern.permute.xlu0 66
  %5809 = vperm.xlu0 %5808, %v3887
  %v5810 = vpop.permute.xlu0 %5809
  %5812 = vset.pattern.permute.xlu0 66
  %5813 = vperm.xlu0 %5812, %v3888
  %v5814 = vpop.permute.xlu0 %5813
  %5816 = vset.pattern.permute.xlu0 66
  %5817 = vperm.xlu0 %5816, %v3889
  %v5818 = vpop.permute.xlu0 %5817
  %5820 = vset.pattern.permute.xlu0 66
  %5821 = vperm.xlu0 %5820, %v3890
  %v5822 = vpop.permute.xlu0 %5821
  %5824 = vset.pattern.permute.xlu0 66
  %5825 = vperm.xlu0 %5824, %v3891
  %v5826 = vpop.permute.xlu0 %5825
  %5828 = vset.pattern.permute.xlu0 66
  %5829 = vperm.xlu0 %5828, %v3892
  %v5830 = vpop.permute.xlu0 %5829
  %5832 = vset.pattern.permute.xlu0 66
  %5833 = vperm.xlu0 %5832, %v3893
  %v5834 = vpop.permute.xlu0 %5833
  %5836 = vset.pattern.permute.xlu0 66
  %5837 = vperm.xlu0 %5836, %v3894
  %v5838 = vpop.permute.xlu0 %5837
  %5840 = vset.pattern.permute.xlu0 66
  %5841 = vperm.xlu0 %5840, %v3895
  %v5842 = vpop.permute.xlu0 %5841
  %5844 = vset.pattern.permute.xlu0 66
  %5845 = vperm.xlu0 %5844, %v3896
  %v5846 = vpop.permute.xlu0 %5845
  %5848 = vset.pattern.permute.xlu0 66
  %5849 = vperm.xlu0 %5848, %v3897
  %v5850 = vpop.permute.xlu0 %5849
  %5852 = vset.pattern.permute.xlu0 66
  %5853 = vperm.xlu0 %5852, %v3898
  %v5854 = vpop.permute.xlu0 %5853
  %5856 = vset.pattern.permute.xlu0 66
  %5857 = vperm.xlu0 %5856, %v3899
  %v5858 = vpop.permute.xlu0 %5857
  %5860 = vset.pattern.permute.xlu0 66
  %5861 = vperm.xlu0 %5860, %v3900
  %v5862 = vpop.permute.xlu0 %5861
  %5864 = vset.pattern.permute.xlu0 66
  %5865 = vperm.xlu0 %5864, %v3901
  %v5866 = vpop.permute.xlu0 %5865
  %5868 = vset.pattern.permute.xlu0 66
  %5869 = vperm.xlu0 %5868, %v3902
  %v5870 = vpop.permute.xlu0 %5869
  %5872 = vset.pattern.permute.xlu0 66
  %5873 = vperm.xlu0 %5872, %v3903
  %v5874 = vpop.permute.xlu0 %5873
  %5876 = vset.pattern.permute.xlu0 66
  %5877 = vperm.xlu0 %5876, %v3904
  %v5878 = vpop.permute.xlu0 %5877
  %5880 = vset.pattern.permute.xlu0 66
  %5881 = vperm.xlu0 %5880, %v3905
  %v5882 = vpop.permute.xlu0 %5881
  %5884 = vset.pattern.permute.xlu0 66
  %5885 = vperm.xlu0 %5884, %v3906
  %v5886 = vpop.permute.xlu0 %5885
  %5888 = vset.pattern.permute.xlu0 66
  %5889 = vperm.xlu0 %5888, %v3907
  %v5890 = vpop.permute.xlu0 %5889
  %5892 = vset.pattern.permute.xlu0 66
  %5893 = vperm.xlu0 %5892, %v3908
  %v5894 = vpop.permute.xlu0 %5893
  %5896 = vset.pattern.permute.xlu0 66
  %5897 = vperm.xlu0 %5896, %v3909
  %v5898 = vpop.permute.xlu0 %5897
  %5900 = vset.pattern.permute.xlu0 66
  %5901 = vperm.xlu0 %5900, %v3910
  %v5902 = vpop.permute.xlu0 %5901
  %5904 = vset.pattern.permute.xlu0 66
  %5905 = vperm.xlu0 %5904, %v3911
  %v5906 = vpop.permute.xlu0 %5905
  %5908 = vset.pattern.permute.xlu0 66
  %5909 = vperm.xlu0 %5908, %v3912
  %v5910 = vpop.permute.xlu0 %5909
  %5912 = vset.pattern.permute.xlu0 66
  %5913 = vperm.xlu0 %5912, %v3913
  %v5914 = vpop.permute.xlu0 %5913
  %5916 = vset.pattern.permute.xlu0 66
  %5917 = vperm.xlu0 %5916, %v3914
  %v5918 = vpop.permute.xlu0 %5917
  %5920 = vset.pattern.permute.xlu0 66
  %5921 = vperm.xlu0 %5920, %v3915
  %v5922 = vpop.permute.xlu0 %5921
  %5924 = vset.pattern.permute.xlu0 66
  %5925 = vperm.xlu0 %5924, %v3916
  %v5926 = vpop.permute.xlu0 %5925
  %5928 = vset.pattern.permute.xlu0 66
  %5929 = vperm.xlu0 %5928, %v3917
  %v5930 = vpop.permute.xlu0 %5929
  %5932 = vset.pattern.permute.xlu0 66
  %5933 = vperm.xlu0 %5932, %v3918
  %v5934 = vpop.permute.xlu0 %5933
  %5936 = vset.pattern.permute.xlu0 66
  %5937 = vperm.xlu0 %5936, %v3919
  %v5938 = vpop.permute.xlu0 %5937
  %5940 = vset.pattern.permute.xlu0 66
  %5941 = vperm.xlu0 %5940, %v3920
  %v5942 = vpop.permute.xlu0 %5941
  %5944 = vset.pattern.permute.xlu0 66
  %5945 = vperm.xlu0 %5944, %v3921
  %v5946 = vpop.permute.xlu0 %5945
  %5948 = vset.pattern.permute.xlu0 66
  %5949 = vperm.xlu0 %5948, %v3922
  %v5950 = vpop.permute.xlu0 %5949
  %5952 = vset.pattern.permute.xlu0 66
  %5953 = vperm.xlu0 %5952, %v3923
  %v5954 = vpop.permute.xlu0 %5953
  %5956 = vset.pattern.permute.xlu0 66
  %5957 = vperm.xlu0 %5956, %v3924
  %v5958 = vpop.permute.xlu0 %5957
  %5960 = vset.pattern.permute.xlu0 66
  %5961 = vperm.xlu0 %5960, %v3925
  %v5962 = vpop.permute.xlu0 %5961
  %5964 = vset.pattern.permute.xlu0 66
  %5965 = vperm.xlu0 %5964, %v3926
  %v5966 = vpop.permute.xlu0 %5965
  %5968 = vset.pattern.permute.xlu0 66
  %5969 = vperm.xlu0 %5968, %v3927
  %v5970 = vpop.permute.xlu0 %5969
  %5972 = vset.pattern.permute.xlu0 66
  %5973 = vperm.xlu0 %5972, %v3928
  %v5974 = vpop.permute.xlu0 %5973
  %5976 = vset.pattern.permute.xlu0 66
  %5977 = vperm.xlu0 %5976, %v3929
  %v5978 = vpop.permute.xlu0 %5977
  %5980 = vset.pattern.permute.xlu0 66
  %5981 = vperm.xlu0 %5980, %v3930
  %v5982 = vpop.permute.xlu0 %5981
  %5984 = vset.pattern.permute.xlu0 66
  %5985 = vperm.xlu0 %5984, %v3931
  %v5986 = vpop.permute.xlu0 %5985
  %v5988 = vlaneseq
  %v5989 = vshrl.u32 %v5988, 7
  %v5990 = vsub.s32 5, %v5989
  %v5991 = vrot.slane %v196, %v5990
  %v5992 = vmul.f32 %v5478, %v5991
  %v5993 = vmul.f32 %v5482, %v5991
  %v5994 = vmul.f32 %v5486, %v5991
  %v5995 = vmul.f32 %v5490, %v5991
  %v5996 = vmul.f32 %v5494, %v5991
  %v5997 = vmul.f32 %v5498, %v5991
  %v5998 = vmul.f32 %v5502, %v5991
  %v5999 = vmul.f32 %v5506, %v5991
  %v6000 = vmul.f32 %v5510, %v5991
  %v6001 = vmul.f32 %v5514, %v5991
  %v6002 = vmul.f32 %v5518, %v5991
  %v6003 = vmul.f32 %v5522, %v5991
  %v6004 = vmul.f32 %v5526, %v5991
  %v6005 = vmul.f32 %v5530, %v5991
  %v6006 = vmul.f32 %v5534, %v5991
  %v6007 = vmul.f32 %v5538, %v5991
  %v6008 = vmul.f32 %v5542, %v5991
  %v6009 = vmul.f32 %v5546, %v5991
  %v6010 = vmul.f32 %v5550, %v5991
  %v6011 = vmul.f32 %v5554, %v5991
  %v6012 = vmul.f32 %v5558, %v5991
  %v6013 = vmul.f32 %v5562, %v5991
  %v6014 = vmul.f32 %v5566, %v5991
  %v6015 = vmul.f32 %v5570, %v5991
  %v6016 = vmul.f32 %v5574, %v5991
  %v6017 = vmul.f32 %v5578, %v5991
  %v6018 = vmul.f32 %v5582, %v5991
  %v6019 = vmul.f32 %v5586, %v5991
  %v6020 = vmul.f32 %v5590, %v5991
  %v6021 = vmul.f32 %v5594, %v5991
  %v6022 = vmul.f32 %v5598, %v5991
  %v6023 = vmul.f32 %v5602, %v5991
  %v6024 = vmul.f32 %v5606, %v5991
  %v6025 = vmul.f32 %v5610, %v5991
  %v6026 = vmul.f32 %v5614, %v5991
  %v6027 = vmul.f32 %v5618, %v5991
  %v6028 = vmul.f32 %v5622, %v5991
  %v6029 = vmul.f32 %v5626, %v5991
  %v6030 = vmul.f32 %v5630, %v5991
  %v6031 = vmul.f32 %v5634, %v5991
  %v6032 = vmul.f32 %v5638, %v5991
  %v6033 = vmul.f32 %v5642, %v5991
  %v6034 = vmul.f32 %v5646, %v5991
  %v6035 = vmul.f32 %v5650, %v5991
  %v6036 = vmul.f32 %v5654, %v5991
  %v6037 = vmul.f32 %v5658, %v5991
  %v6038 = vmul.f32 %v5662, %v5991
  %v6039 = vmul.f32 %v5666, %v5991
  %v6040 = vmul.f32 %v5670, %v5991
  %v6041 = vmul.f32 %v5674, %v5991
  %v6042 = vmul.f32 %v5678, %v5991
  %v6043 = vmul.f32 %v5682, %v5991
  %v6044 = vmul.f32 %v5686, %v5991
  %v6045 = vmul.f32 %v5690, %v5991
  %v6046 = vmul.f32 %v5694, %v5991
  %v6047 = vmul.f32 %v5698, %v5991
  %v6048 = vmul.f32 %v5702, %v5991
  %v6049 = vmul.f32 %v5706, %v5991
  %v6050 = vmul.f32 %v5710, %v5991
  %v6051 = vmul.f32 %v5714, %v5991
  %v6052 = vmul.f32 %v5718, %v5991
  %v6053 = vmul.f32 %v5722, %v5991
  %v6054 = vmul.f32 %v5726, %v5991
  %v6055 = vmul.f32 %v5730, %v5991
  %v6056 = vmul.f32 %v5734, %v5991
  %v6057 = vmul.f32 %v5738, %v5991
  %v6058 = vmul.f32 %v5742, %v5991
  %v6059 = vmul.f32 %v5746, %v5991
  %v6060 = vmul.f32 %v5750, %v5991
  %v6061 = vmul.f32 %v5754, %v5991
  %v6062 = vmul.f32 %v5758, %v5991
  %v6063 = vmul.f32 %v5762, %v5991
  %v6064 = vmul.f32 %v5766, %v5991
  %v6065 = vmul.f32 %v5770, %v5991
  %v6066 = vmul.f32 %v5774, %v5991
  %v6067 = vmul.f32 %v5778, %v5991
  %v6068 = vmul.f32 %v5782, %v5991
  %v6069 = vmul.f32 %v5786, %v5991
  %v6070 = vmul.f32 %v5790, %v5991
  %v6071 = vmul.f32 %v5794, %v5991
  %v6072 = vmul.f32 %v5798, %v5991
  %v6073 = vmul.f32 %v5802, %v5991
  %v6074 = vmul.f32 %v5806, %v5991
  %v6075 = vmul.f32 %v5810, %v5991
  %v6076 = vmul.f32 %v5814, %v5991
  %v6077 = vmul.f32 %v5818, %v5991
  %v6078 = vmul.f32 %v5822, %v5991
  %v6079 = vmul.f32 %v5826, %v5991
  %v6080 = vmul.f32 %v5830, %v5991
  %v6081 = vmul.f32 %v5834, %v5991
  %v6082 = vmul.f32 %v5838, %v5991
  %v6083 = vmul.f32 %v5842, %v5991
  %v6084 = vmul.f32 %v5846, %v5991
  %v6085 = vmul.f32 %v5850, %v5991
  %v6086 = vmul.f32 %v5854, %v5991
  %v6087 = vmul.f32 %v5858, %v5991
  %v6088 = vmul.f32 %v5862, %v5991
  %v6089 = vmul.f32 %v5866, %v5991
  %v6090 = vmul.f32 %v5870, %v5991
  %v6091 = vmul.f32 %v5874, %v5991
  %v6092 = vmul.f32 %v5878, %v5991
  %v6093 = vmul.f32 %v5882, %v5991
  %v6094 = vmul.f32 %v5886, %v5991
  %v6095 = vmul.f32 %v5890, %v5991
  %v6096 = vmul.f32 %v5894, %v5991
  %v6097 = vmul.f32 %v5898, %v5991
  %v6098 = vmul.f32 %v5902, %v5991
  %v6099 = vmul.f32 %v5906, %v5991
  %v6100 = vmul.f32 %v5910, %v5991
  %v6101 = vmul.f32 %v5914, %v5991
  %v6102 = vmul.f32 %v5918, %v5991
  %v6103 = vmul.f32 %v5922, %v5991
  %v6104 = vmul.f32 %v5926, %v5991
  %v6105 = vmul.f32 %v5930, %v5991
  %v6106 = vmul.f32 %v5934, %v5991
  %v6107 = vmul.f32 %v5938, %v5991
  %v6108 = vmul.f32 %v5942, %v5991
  %v6109 = vmul.f32 %v5946, %v5991
  %v6110 = vmul.f32 %v5950, %v5991
  %v6111 = vmul.f32 %v5954, %v5991
  %v6112 = vmul.f32 %v5958, %v5991
  %v6113 = vmul.f32 %v5962, %v5991
  %v6114 = vmul.f32 %v5966, %v5991
  %v6115 = vmul.f32 %v5970, %v5991
  %v6116 = vmul.f32 %v5974, %v5991
  %v6117 = vmul.f32 %v5978, %v5991
  %v6118 = vmul.f32 %v5982, %v5991
  %v6119 = vmul.f32 %v5986, %v5991
  %v6120 = vadd.f32 %v5348, %v5992
  %v6121 = vadd.f32 %v5349, %v5993
  %v6122 = vadd.f32 %v5350, %v5994
  %v6123 = vadd.f32 %v5351, %v5995
  %v6124 = vadd.f32 %v5352, %v5996
  %v6125 = vadd.f32 %v5353, %v5997
  %v6126 = vadd.f32 %v5354, %v5998
  %v6127 = vadd.f32 %v5355, %v5999
  %v6128 = vadd.f32 %v5356, %v6000
  %v6129 = vadd.f32 %v5357, %v6001
  %v6130 = vadd.f32 %v5358, %v6002
  %v6131 = vadd.f32 %v5359, %v6003
  %v6132 = vadd.f32 %v5360, %v6004
  %v6133 = vadd.f32 %v5361, %v6005
  %v6134 = vadd.f32 %v5362, %v6006
  %v6135 = vadd.f32 %v5363, %v6007
  %v6136 = vadd.f32 %v5364, %v6008
  %v6137 = vadd.f32 %v5365, %v6009
  %v6138 = vadd.f32 %v5366, %v6010
  %v6139 = vadd.f32 %v5367, %v6011
  %v6140 = vadd.f32 %v5368, %v6012
  %v6141 = vadd.f32 %v5369, %v6013
  %v6142 = vadd.f32 %v5370, %v6014
  %v6143 = vadd.f32 %v5371, %v6015
  %v6144 = vadd.f32 %v5372, %v6016
  %v6145 = vadd.f32 %v5373, %v6017
  %v6146 = vadd.f32 %v5374, %v6018
  %v6147 = vadd.f32 %v5375, %v6019
  %v6148 = vadd.f32 %v5376, %v6020
  %v6149 = vadd.f32 %v5377, %v6021
  %v6150 = vadd.f32 %v5378, %v6022
  %v6151 = vadd.f32 %v5379, %v6023
  %v6152 = vadd.f32 %v5380, %v6024
  %v6153 = vadd.f32 %v5381, %v6025
  %v6154 = vadd.f32 %v5382, %v6026
  %v6155 = vadd.f32 %v5383, %v6027
  %v6156 = vadd.f32 %v5384, %v6028
  %v6157 = vadd.f32 %v5385, %v6029
  %v6158 = vadd.f32 %v5386, %v6030
  %v6159 = vadd.f32 %v5387, %v6031
  %v6160 = vadd.f32 %v5388, %v6032
  %v6161 = vadd.f32 %v5389, %v6033
  %v6162 = vadd.f32 %v5390, %v6034
  %v6163 = vadd.f32 %v5391, %v6035
  %v6164 = vadd.f32 %v5392, %v6036
  %v6165 = vadd.f32 %v5393, %v6037
  %v6166 = vadd.f32 %v5394, %v6038
  %v6167 = vadd.f32 %v5395, %v6039
  %v6168 = vadd.f32 %v5396, %v6040
  %v6169 = vadd.f32 %v5397, %v6041
  %v6170 = vadd.f32 %v5398, %v6042
  %v6171 = vadd.f32 %v5399, %v6043
  %v6172 = vadd.f32 %v5400, %v6044
  %v6173 = vadd.f32 %v5401, %v6045
  %v6174 = vadd.f32 %v5402, %v6046
  %v6175 = vadd.f32 %v5403, %v6047
  %v6176 = vadd.f32 %v5404, %v6048
  %v6177 = vadd.f32 %v5405, %v6049
  %v6178 = vadd.f32 %v5406, %v6050
  %v6179 = vadd.f32 %v5407, %v6051
  %v6180 = vadd.f32 %v5408, %v6052
  %v6181 = vadd.f32 %v5409, %v6053
  %v6182 = vadd.f32 %v5410, %v6054
  %v6183 = vadd.f32 %v5411, %v6055
  %v6184 = vadd.f32 %v5412, %v6056
  %v6185 = vadd.f32 %v5413, %v6057
  %v6186 = vadd.f32 %v5414, %v6058
  %v6187 = vadd.f32 %v5415, %v6059
  %v6188 = vadd.f32 %v5416, %v6060
  %v6189 = vadd.f32 %v5417, %v6061
  %v6190 = vadd.f32 %v5418, %v6062
  %v6191 = vadd.f32 %v5419, %v6063
  %v6192 = vadd.f32 %v5420, %v6064
  %v6193 = vadd.f32 %v5421, %v6065
  %v6194 = vadd.f32 %v5422, %v6066
  %v6195 = vadd.f32 %v5423, %v6067
  %v6196 = vadd.f32 %v5424, %v6068
  %v6197 = vadd.f32 %v5425, %v6069
  %v6198 = vadd.f32 %v5426, %v6070
  %v6199 = vadd.f32 %v5427, %v6071
  %v6200 = vadd.f32 %v5428, %v6072
  %v6201 = vadd.f32 %v5429, %v6073
  %v6202 = vadd.f32 %v5430, %v6074
  %v6203 = vadd.f32 %v5431, %v6075
  %v6204 = vadd.f32 %v5432, %v6076
  %v6205 = vadd.f32 %v5433, %v6077
  %v6206 = vadd.f32 %v5434, %v6078
  %v6207 = vadd.f32 %v5435, %v6079
  %v6208 = vadd.f32 %v5436, %v6080
  %v6209 = vadd.f32 %v5437, %v6081
  %v6210 = vadd.f32 %v5438, %v6082
  %v6211 = vadd.f32 %v5439, %v6083
  %v6212 = vadd.f32 %v5440, %v6084
  %v6213 = vadd.f32 %v5441, %v6085
  %v6214 = vadd.f32 %v5442, %v6086
  %v6215 = vadd.f32 %v5443, %v6087
  %v6216 = vadd.f32 %v5444, %v6088
  %v6217 = vadd.f32 %v5445, %v6089
  %v6218 = vadd.f32 %v5446, %v6090
  %v6219 = vadd.f32 %v5447, %v6091
  %v6220 = vadd.f32 %v5448, %v6092
  %v6221 = vadd.f32 %v5449, %v6093
  %v6222 = vadd.f32 %v5450, %v6094
  %v6223 = vadd.f32 %v5451, %v6095
  %v6224 = vadd.f32 %v5452, %v6096
  %v6225 = vadd.f32 %v5453, %v6097
  %v6226 = vadd.f32 %v5454, %v6098
  %v6227 = vadd.f32 %v5455, %v6099
  %v6228 = vadd.f32 %v5456, %v6100
  %v6229 = vadd.f32 %v5457, %v6101
  %v6230 = vadd.f32 %v5458, %v6102
  %v6231 = vadd.f32 %v5459, %v6103
  %v6232 = vadd.f32 %v5460, %v6104
  %v6233 = vadd.f32 %v5461, %v6105
  %v6234 = vadd.f32 %v5462, %v6106
  %v6235 = vadd.f32 %v5463, %v6107
  %v6236 = vadd.f32 %v5464, %v6108
  %v6237 = vadd.f32 %v5465, %v6109
  %v6238 = vadd.f32 %v5466, %v6110
  %v6239 = vadd.f32 %v5467, %v6111
  %v6240 = vadd.f32 %v5468, %v6112
  %v6241 = vadd.f32 %v5469, %v6113
  %v6242 = vadd.f32 %v5470, %v6114
  %v6243 = vadd.f32 %v5471, %v6115
  %v6244 = vadd.f32 %v5472, %v6116
  %v6245 = vadd.f32 %v5473, %v6117
  %v6246 = vadd.f32 %v5474, %v6118
  %v6247 = vadd.f32 %v5475, %v6119
  %v6248 = vlaneseq
  %v6249 = vshrl.u32 %v6248, 7
  %v6250 = vsub.s32 6, %v6249
  %v6251 = vrot.slane %v196, %v6250
  %v6252 = vadd.f32 %v6120, %v6251
  %v6253 = vadd.f32 %v6121, %v6251
  %v6254 = vadd.f32 %v6122, %v6251
  %v6255 = vadd.f32 %v6123, %v6251
  %v6256 = vadd.f32 %v6124, %v6251
  %v6257 = vadd.f32 %v6125, %v6251
  %v6258 = vadd.f32 %v6126, %v6251
  %v6259 = vadd.f32 %v6127, %v6251
  %v6260 = vadd.f32 %v6128, %v6251
  %v6261 = vadd.f32 %v6129, %v6251
  %v6262 = vadd.f32 %v6130, %v6251
  %v6263 = vadd.f32 %v6131, %v6251
  %v6264 = vadd.f32 %v6132, %v6251
  %v6265 = vadd.f32 %v6133, %v6251
  %v6266 = vadd.f32 %v6134, %v6251
  %v6267 = vadd.f32 %v6135, %v6251
  %v6268 = vadd.f32 %v6136, %v6251
  %v6269 = vadd.f32 %v6137, %v6251
  %v6270 = vadd.f32 %v6138, %v6251
  %v6271 = vadd.f32 %v6139, %v6251
  %v6272 = vadd.f32 %v6140, %v6251
  %v6273 = vadd.f32 %v6141, %v6251
  %v6274 = vadd.f32 %v6142, %v6251
  %v6275 = vadd.f32 %v6143, %v6251
  %v6276 = vadd.f32 %v6144, %v6251
  %v6277 = vadd.f32 %v6145, %v6251
  %v6278 = vadd.f32 %v6146, %v6251
  %v6279 = vadd.f32 %v6147, %v6251
  %v6280 = vadd.f32 %v6148, %v6251
  %v6281 = vadd.f32 %v6149, %v6251
  %v6282 = vadd.f32 %v6150, %v6251
  %v6283 = vadd.f32 %v6151, %v6251
  %v6284 = vadd.f32 %v6152, %v6251
  %v6285 = vadd.f32 %v6153, %v6251
  %v6286 = vadd.f32 %v6154, %v6251
  %v6287 = vadd.f32 %v6155, %v6251
  %v6288 = vadd.f32 %v6156, %v6251
  %v6289 = vadd.f32 %v6157, %v6251
  %v6290 = vadd.f32 %v6158, %v6251
  %v6291 = vadd.f32 %v6159, %v6251
  %v6292 = vadd.f32 %v6160, %v6251
  %v6293 = vadd.f32 %v6161, %v6251
  %v6294 = vadd.f32 %v6162, %v6251
  %v6295 = vadd.f32 %v6163, %v6251
  %v6296 = vadd.f32 %v6164, %v6251
  %v6297 = vadd.f32 %v6165, %v6251
  %v6298 = vadd.f32 %v6166, %v6251
  %v6299 = vadd.f32 %v6167, %v6251
  %v6300 = vadd.f32 %v6168, %v6251
  %v6301 = vadd.f32 %v6169, %v6251
  %v6302 = vadd.f32 %v6170, %v6251
  %v6303 = vadd.f32 %v6171, %v6251
  %v6304 = vadd.f32 %v6172, %v6251
  %v6305 = vadd.f32 %v6173, %v6251
  %v6306 = vadd.f32 %v6174, %v6251
  %v6307 = vadd.f32 %v6175, %v6251
  %v6308 = vadd.f32 %v6176, %v6251
  %v6309 = vadd.f32 %v6177, %v6251
  %v6310 = vadd.f32 %v6178, %v6251
  %v6311 = vadd.f32 %v6179, %v6251
  %v6312 = vadd.f32 %v6180, %v6251
  %v6313 = vadd.f32 %v6181, %v6251
  %v6314 = vadd.f32 %v6182, %v6251
  %v6315 = vadd.f32 %v6183, %v6251
  %v6316 = vadd.f32 %v6184, %v6251
  %v6317 = vadd.f32 %v6185, %v6251
  %v6318 = vadd.f32 %v6186, %v6251
  %v6319 = vadd.f32 %v6187, %v6251
  %v6320 = vadd.f32 %v6188, %v6251
  %v6321 = vadd.f32 %v6189, %v6251
  %v6322 = vadd.f32 %v6190, %v6251
  %v6323 = vadd.f32 %v6191, %v6251
  %v6324 = vadd.f32 %v6192, %v6251
  %v6325 = vadd.f32 %v6193, %v6251
  %v6326 = vadd.f32 %v6194, %v6251
  %v6327 = vadd.f32 %v6195, %v6251
  %v6328 = vadd.f32 %v6196, %v6251
  %v6329 = vadd.f32 %v6197, %v6251
  %v6330 = vadd.f32 %v6198, %v6251
  %v6331 = vadd.f32 %v6199, %v6251
  %v6332 = vadd.f32 %v6200, %v6251
  %v6333 = vadd.f32 %v6201, %v6251
  %v6334 = vadd.f32 %v6202, %v6251
  %v6335 = vadd.f32 %v6203, %v6251
  %v6336 = vadd.f32 %v6204, %v6251
  %v6337 = vadd.f32 %v6205, %v6251
  %v6338 = vadd.f32 %v6206, %v6251
  %v6339 = vadd.f32 %v6207, %v6251
  %v6340 = vadd.f32 %v6208, %v6251
  %v6341 = vadd.f32 %v6209, %v6251
  %v6342 = vadd.f32 %v6210, %v6251
  %v6343 = vadd.f32 %v6211, %v6251
  %v6344 = vadd.f32 %v6212, %v6251
  %v6345 = vadd.f32 %v6213, %v6251
  %v6346 = vadd.f32 %v6214, %v6251
  %v6347 = vadd.f32 %v6215, %v6251
  %v6348 = vadd.f32 %v6216, %v6251
  %v6349 = vadd.f32 %v6217, %v6251
  %v6350 = vadd.f32 %v6218, %v6251
  %v6351 = vadd.f32 %v6219, %v6251
  %v6352 = vadd.f32 %v6220, %v6251
  %v6353 = vadd.f32 %v6221, %v6251
  %v6354 = vadd.f32 %v6222, %v6251
  %v6355 = vadd.f32 %v6223, %v6251
  %v6356 = vadd.f32 %v6224, %v6251
  %v6357 = vadd.f32 %v6225, %v6251
  %v6358 = vadd.f32 %v6226, %v6251
  %v6359 = vadd.f32 %v6227, %v6251
  %v6360 = vadd.f32 %v6228, %v6251
  %v6361 = vadd.f32 %v6229, %v6251
  %v6362 = vadd.f32 %v6230, %v6251
  %v6363 = vadd.f32 %v6231, %v6251
  %v6364 = vadd.f32 %v6232, %v6251
  %v6365 = vadd.f32 %v6233, %v6251
  %v6366 = vadd.f32 %v6234, %v6251
  %v6367 = vadd.f32 %v6235, %v6251
  %v6368 = vadd.f32 %v6236, %v6251
  %v6369 = vadd.f32 %v6237, %v6251
  %v6370 = vadd.f32 %v6238, %v6251
  %v6371 = vadd.f32 %v6239, %v6251
  %v6372 = vadd.f32 %v6240, %v6251
  %v6373 = vadd.f32 %v6241, %v6251
  %v6374 = vadd.f32 %v6242, %v6251
  %v6375 = vadd.f32 %v6243, %v6251
  %v6376 = vadd.f32 %v6244, %v6251
  %v6377 = vadd.f32 %v6245, %v6251
  %v6378 = vadd.f32 %v6246, %v6251
  %v6379 = vadd.f32 %v6247, %v6251
  %v6388 = vcombine.high %v609, %v609
  %v6390 = vunpack.c.l.s4 1966171168
  %v6391 = vunpack.c.0.s8 %v6390
  %v6392 = vlaneseq
  %v6393 = vshrl.u32 %v6392, 7
  %v6394 = vsub.s32 %v6391, %v6393
  %v6395 = vrot.slane %v609, %v6394
  %v6397 = vunpack.c.l.s4 1966171168
  %v6398 = vunpack.c.0.s8 %v6397
  %v6399 = vlaneseq
  %v6400 = vshrl.u32 %v6399, 7
  %v6401 = vsub.s32 %v6398, %v6400
  %v6402 = vrot.slane %v6388, %v6401
  %v6403 = vcombine.high %v6395, %v6395
  %v6404 = vcombine.high %v6402, %v6402
  %v6406 = vunpack.c.l.s4 1966171168
  %v6407 = vunpack.c.0.s8 %v6406
  %v6408 = vlaneseq
  %v6409 = vshrl.u32 %v6408, 7
  %v6410 = vsub.s32 %v6407, %v6409
  %v6411 = vrot.slane %v6395, %v6410
  %v6413 = vunpack.c.l.s4 1966171168
  %v6414 = vunpack.c.0.s8 %v6413
  %v6415 = vlaneseq
  %v6416 = vshrl.u32 %v6415, 7
  %v6417 = vsub.s32 %v6414, %v6416
  %v6418 = vrot.slane %v6402, %v6417
  %v6420 = vunpack.c.l.s4 1966171168
  %v6421 = vunpack.c.0.s8 %v6420
  %v6422 = vlaneseq
  %v6423 = vshrl.u32 %v6422, 7
  %v6424 = vsub.s32 %v6421, %v6423
  %v6425 = vrot.slane %v6403, %v6424
  %v6427 = vunpack.c.l.s4 1966171168
  %v6428 = vunpack.c.0.s8 %v6427
  %v6429 = vlaneseq
  %v6430 = vshrl.u32 %v6429, 7
  %v6431 = vsub.s32 %v6428, %v6430
  %v6432 = vrot.slane %v6404, %v6431
  %v6433 = vcombine.high %v6411, %v6411
  %v6434 = vcombine.high %v6418, %v6418
  %v6435 = vcombine.high %v6425, %v6425
  %v6436 = vcombine.high %v6432, %v6432
  %v6437 = vcombine.high %v614, %v614
  %v6439 = vunpack.c.l.s4 1966171168
  %v6440 = vunpack.c.0.s8 %v6439
  %v6441 = vlaneseq
  %v6442 = vshrl.u32 %v6441, 7
  %v6443 = vsub.s32 %v6440, %v6442
  %v6444 = vrot.slane %v614, %v6443
  %v6446 = vunpack.c.l.s4 1966171168
  %v6447 = vunpack.c.0.s8 %v6446
  %v6448 = vlaneseq
  %v6449 = vshrl.u32 %v6448, 7
  %v6450 = vsub.s32 %v6447, %v6449
  %v6451 = vrot.slane %v6437, %v6450
  %v6452 = vcombine.high %v6444, %v6444
  %v6453 = vcombine.high %v6451, %v6451
  %v6455 = vunpack.c.l.s4 1966171168
  %v6456 = vunpack.c.0.s8 %v6455
  %v6457 = vlaneseq
  %v6458 = vshrl.u32 %v6457, 7
  %v6459 = vsub.s32 %v6456, %v6458
  %v6460 = vrot.slane %v6444, %v6459
  %v6462 = vunpack.c.l.s4 1966171168
  %v6463 = vunpack.c.0.s8 %v6462
  %v6464 = vlaneseq
  %v6465 = vshrl.u32 %v6464, 7
  %v6466 = vsub.s32 %v6463, %v6465
  %v6467 = vrot.slane %v6451, %v6466
  %v6469 = vunpack.c.l.s4 1966171168
  %v6470 = vunpack.c.0.s8 %v6469
  %v6471 = vlaneseq
  %v6472 = vshrl.u32 %v6471, 7
  %v6473 = vsub.s32 %v6470, %v6472
  %v6474 = vrot.slane %v6452, %v6473
  %v6476 = vunpack.c.l.s4 1966171168
  %v6477 = vunpack.c.0.s8 %v6476
  %v6478 = vlaneseq
  %v6479 = vshrl.u32 %v6478, 7
  %v6480 = vsub.s32 %v6477, %v6479
  %v6481 = vrot.slane %v6453, %v6480
  %v6482 = vcombine.high %v6460, %v6460
  %v6483 = vcombine.high %v6467, %v6467
  %v6484 = vcombine.high %v6474, %v6474
  %v6485 = vcombine.high %v6481, %v6481
  %v6486 = vcombine.high %v619, %v619
  %v6488 = vunpack.c.l.s4 1966171168
  %v6489 = vunpack.c.0.s8 %v6488
  %v6490 = vlaneseq
  %v6491 = vshrl.u32 %v6490, 7
  %v6492 = vsub.s32 %v6489, %v6491
  %v6493 = vrot.slane %v619, %v6492
  %v6495 = vunpack.c.l.s4 1966171168
  %v6496 = vunpack.c.0.s8 %v6495
  %v6497 = vlaneseq
  %v6498 = vshrl.u32 %v6497, 7
  %v6499 = vsub.s32 %v6496, %v6498
  %v6500 = vrot.slane %v6486, %v6499
  %v6501 = vcombine.high %v6493, %v6493
  %v6502 = vcombine.high %v6500, %v6500
  %v6504 = vunpack.c.l.s4 1966171168
  %v6505 = vunpack.c.0.s8 %v6504
  %v6506 = vlaneseq
  %v6507 = vshrl.u32 %v6506, 7
  %v6508 = vsub.s32 %v6505, %v6507
  %v6509 = vrot.slane %v6493, %v6508
  %v6511 = vunpack.c.l.s4 1966171168
  %v6512 = vunpack.c.0.s8 %v6511
  %v6513 = vlaneseq
  %v6514 = vshrl.u32 %v6513, 7
  %v6515 = vsub.s32 %v6512, %v6514
  %v6516 = vrot.slane %v6500, %v6515
  %v6518 = vunpack.c.l.s4 1966171168
  %v6519 = vunpack.c.0.s8 %v6518
  %v6520 = vlaneseq
  %v6521 = vshrl.u32 %v6520, 7
  %v6522 = vsub.s32 %v6519, %v6521
  %v6523 = vrot.slane %v6501, %v6522
  %v6525 = vunpack.c.l.s4 1966171168
  %v6526 = vunpack.c.0.s8 %v6525
  %v6527 = vlaneseq
  %v6528 = vshrl.u32 %v6527, 7
  %v6529 = vsub.s32 %v6526, %v6528
  %v6530 = vrot.slane %v6502, %v6529
  %v6531 = vcombine.high %v6509, %v6509
  %v6532 = vcombine.high %v6516, %v6516
  %v6533 = vcombine.high %v6523, %v6523
  %v6534 = vcombine.high %v6530, %v6530
  %v6535 = vcombine.high %v624, %v624
  %v6537 = vunpack.c.l.s4 1966171168
  %v6538 = vunpack.c.0.s8 %v6537
  %v6539 = vlaneseq
  %v6540 = vshrl.u32 %v6539, 7
  %v6541 = vsub.s32 %v6538, %v6540
  %v6542 = vrot.slane %v624, %v6541
  %v6544 = vunpack.c.l.s4 1966171168
  %v6545 = vunpack.c.0.s8 %v6544
  %v6546 = vlaneseq
  %v6547 = vshrl.u32 %v6546, 7
  %v6548 = vsub.s32 %v6545, %v6547
  %v6549 = vrot.slane %v6535, %v6548
  %v6550 = vcombine.high %v6542, %v6542
  %v6551 = vcombine.high %v6549, %v6549
  %v6553 = vunpack.c.l.s4 1966171168
  %v6554 = vunpack.c.0.s8 %v6553
  %v6555 = vlaneseq
  %v6556 = vshrl.u32 %v6555, 7
  %v6557 = vsub.s32 %v6554, %v6556
  %v6558 = vrot.slane %v6542, %v6557
  %v6560 = vunpack.c.l.s4 1966171168
  %v6561 = vunpack.c.0.s8 %v6560
  %v6562 = vlaneseq
  %v6563 = vshrl.u32 %v6562, 7
  %v6564 = vsub.s32 %v6561, %v6563
  %v6565 = vrot.slane %v6549, %v6564
  %v6567 = vunpack.c.l.s4 1966171168
  %v6568 = vunpack.c.0.s8 %v6567
  %v6569 = vlaneseq
  %v6570 = vshrl.u32 %v6569, 7
  %v6571 = vsub.s32 %v6568, %v6570
  %v6572 = vrot.slane %v6550, %v6571
  %v6574 = vunpack.c.l.s4 1966171168
  %v6575 = vunpack.c.0.s8 %v6574
  %v6576 = vlaneseq
  %v6577 = vshrl.u32 %v6576, 7
  %v6578 = vsub.s32 %v6575, %v6577
  %v6579 = vrot.slane %v6551, %v6578
  %v6580 = vcombine.high %v6558, %v6558
  %v6581 = vcombine.high %v6565, %v6565
  %v6582 = vcombine.high %v6572, %v6572
  %v6583 = vcombine.high %v6579, %v6579
  %v6584 = vcombine.high %v629, %v629
  %v6586 = vunpack.c.l.s4 1966171168
  %v6587 = vunpack.c.0.s8 %v6586
  %v6588 = vlaneseq
  %v6589 = vshrl.u32 %v6588, 7
  %v6590 = vsub.s32 %v6587, %v6589
  %v6591 = vrot.slane %v629, %v6590
  %v6593 = vunpack.c.l.s4 1966171168
  %v6594 = vunpack.c.0.s8 %v6593
  %v6595 = vlaneseq
  %v6596 = vshrl.u32 %v6595, 7
  %v6597 = vsub.s32 %v6594, %v6596
  %v6598 = vrot.slane %v6584, %v6597
  %v6599 = vcombine.high %v6591, %v6591
  %v6600 = vcombine.high %v6598, %v6598
  %v6602 = vunpack.c.l.s4 1966171168
  %v6603 = vunpack.c.0.s8 %v6602
  %v6604 = vlaneseq
  %v6605 = vshrl.u32 %v6604, 7
  %v6606 = vsub.s32 %v6603, %v6605
  %v6607 = vrot.slane %v6591, %v6606
  %v6609 = vunpack.c.l.s4 1966171168
  %v6610 = vunpack.c.0.s8 %v6609
  %v6611 = vlaneseq
  %v6612 = vshrl.u32 %v6611, 7
  %v6613 = vsub.s32 %v6610, %v6612
  %v6614 = vrot.slane %v6598, %v6613
  %v6616 = vunpack.c.l.s4 1966171168
  %v6617 = vunpack.c.0.s8 %v6616
  %v6618 = vlaneseq
  %v6619 = vshrl.u32 %v6618, 7
  %v6620 = vsub.s32 %v6617, %v6619
  %v6621 = vrot.slane %v6599, %v6620
  %v6623 = vunpack.c.l.s4 1966171168
  %v6624 = vunpack.c.0.s8 %v6623
  %v6625 = vlaneseq
  %v6626 = vshrl.u32 %v6625, 7
  %v6627 = vsub.s32 %v6624, %v6626
  %v6628 = vrot.slane %v6600, %v6627
  %v6629 = vcombine.high %v6607, %v6607
  %v6630 = vcombine.high %v6614, %v6614
  %v6631 = vcombine.high %v6621, %v6621
  %v6632 = vcombine.high %v6628, %v6628
  %v6633 = vcombine.high %v634, %v634
  %v6635 = vunpack.c.l.s4 1966171168
  %v6636 = vunpack.c.0.s8 %v6635
  %v6637 = vlaneseq
  %v6638 = vshrl.u32 %v6637, 7
  %v6639 = vsub.s32 %v6636, %v6638
  %v6640 = vrot.slane %v634, %v6639
  %v6642 = vunpack.c.l.s4 1966171168
  %v6643 = vunpack.c.0.s8 %v6642
  %v6644 = vlaneseq
  %v6645 = vshrl.u32 %v6644, 7
  %v6646 = vsub.s32 %v6643, %v6645
  %v6647 = vrot.slane %v6633, %v6646
  %v6648 = vcombine.high %v6640, %v6640
  %v6649 = vcombine.high %v6647, %v6647
  %v6651 = vunpack.c.l.s4 1966171168
  %v6652 = vunpack.c.0.s8 %v6651
  %v6653 = vlaneseq
  %v6654 = vshrl.u32 %v6653, 7
  %v6655 = vsub.s32 %v6652, %v6654
  %v6656 = vrot.slane %v6640, %v6655
  %v6658 = vunpack.c.l.s4 1966171168
  %v6659 = vunpack.c.0.s8 %v6658
  %v6660 = vlaneseq
  %v6661 = vshrl.u32 %v6660, 7
  %v6662 = vsub.s32 %v6659, %v6661
  %v6663 = vrot.slane %v6647, %v6662
  %v6665 = vunpack.c.l.s4 1966171168
  %v6666 = vunpack.c.0.s8 %v6665
  %v6667 = vlaneseq
  %v6668 = vshrl.u32 %v6667, 7
  %v6669 = vsub.s32 %v6666, %v6668
  %v6670 = vrot.slane %v6648, %v6669
  %v6672 = vunpack.c.l.s4 1966171168
  %v6673 = vunpack.c.0.s8 %v6672
  %v6674 = vlaneseq
  %v6675 = vshrl.u32 %v6674, 7
  %v6676 = vsub.s32 %v6673, %v6675
  %v6677 = vrot.slane %v6649, %v6676
  %v6678 = vcombine.high %v6656, %v6656
  %v6679 = vcombine.high %v6663, %v6663
  %v6680 = vcombine.high %v6670, %v6670
  %v6681 = vcombine.high %v6677, %v6677
  %v6682 = vcombine.high %v639, %v639
  %v6684 = vunpack.c.l.s4 1966171168
  %v6685 = vunpack.c.0.s8 %v6684
  %v6686 = vlaneseq
  %v6687 = vshrl.u32 %v6686, 7
  %v6688 = vsub.s32 %v6685, %v6687
  %v6689 = vrot.slane %v639, %v6688
  %v6691 = vunpack.c.l.s4 1966171168
  %v6692 = vunpack.c.0.s8 %v6691
  %v6693 = vlaneseq
  %v6694 = vshrl.u32 %v6693, 7
  %v6695 = vsub.s32 %v6692, %v6694
  %v6696 = vrot.slane %v6682, %v6695
  %v6697 = vcombine.high %v6689, %v6689
  %v6698 = vcombine.high %v6696, %v6696
  %v6700 = vunpack.c.l.s4 1966171168
  %v6701 = vunpack.c.0.s8 %v6700
  %v6702 = vlaneseq
  %v6703 = vshrl.u32 %v6702, 7
  %v6704 = vsub.s32 %v6701, %v6703
  %v6705 = vrot.slane %v6689, %v6704
  %v6707 = vunpack.c.l.s4 1966171168
  %v6708 = vunpack.c.0.s8 %v6707
  %v6709 = vlaneseq
  %v6710 = vshrl.u32 %v6709, 7
  %v6711 = vsub.s32 %v6708, %v6710
  %v6712 = vrot.slane %v6696, %v6711
  %v6714 = vunpack.c.l.s4 1966171168
  %v6715 = vunpack.c.0.s8 %v6714
  %v6716 = vlaneseq
  %v6717 = vshrl.u32 %v6716, 7
  %v6718 = vsub.s32 %v6715, %v6717
  %v6719 = vrot.slane %v6697, %v6718
  %v6721 = vunpack.c.l.s4 1966171168
  %v6722 = vunpack.c.0.s8 %v6721
  %v6723 = vlaneseq
  %v6724 = vshrl.u32 %v6723, 7
  %v6725 = vsub.s32 %v6722, %v6724
  %v6726 = vrot.slane %v6698, %v6725
  %v6727 = vcombine.high %v6705, %v6705
  %v6728 = vcombine.high %v6712, %v6712
  %v6729 = vcombine.high %v6719, %v6719
  %v6730 = vcombine.high %v6726, %v6726
  %v6731 = vcombine.high %v644, %v644
  %v6733 = vunpack.c.l.s4 1966171168
  %v6734 = vunpack.c.0.s8 %v6733
  %v6735 = vlaneseq
  %v6736 = vshrl.u32 %v6735, 7
  %v6737 = vsub.s32 %v6734, %v6736
  %v6738 = vrot.slane %v644, %v6737
  %v6740 = vunpack.c.l.s4 1966171168
  %v6741 = vunpack.c.0.s8 %v6740
  %v6742 = vlaneseq
  %v6743 = vshrl.u32 %v6742, 7
  %v6744 = vsub.s32 %v6741, %v6743
  %v6745 = vrot.slane %v6731, %v6744
  %v6746 = vcombine.high %v6738, %v6738
  %v6747 = vcombine.high %v6745, %v6745
  %v6749 = vunpack.c.l.s4 1966171168
  %v6750 = vunpack.c.0.s8 %v6749
  %v6751 = vlaneseq
  %v6752 = vshrl.u32 %v6751, 7
  %v6753 = vsub.s32 %v6750, %v6752
  %v6754 = vrot.slane %v6738, %v6753
  %v6756 = vunpack.c.l.s4 1966171168
  %v6757 = vunpack.c.0.s8 %v6756
  %v6758 = vlaneseq
  %v6759 = vshrl.u32 %v6758, 7
  %v6760 = vsub.s32 %v6757, %v6759
  %v6761 = vrot.slane %v6745, %v6760
  %v6763 = vunpack.c.l.s4 1966171168
  %v6764 = vunpack.c.0.s8 %v6763
  %v6765 = vlaneseq
  %v6766 = vshrl.u32 %v6765, 7
  %v6767 = vsub.s32 %v6764, %v6766
  %v6768 = vrot.slane %v6746, %v6767
  %v6770 = vunpack.c.l.s4 1966171168
  %v6771 = vunpack.c.0.s8 %v6770
  %v6772 = vlaneseq
  %v6773 = vshrl.u32 %v6772, 7
  %v6774 = vsub.s32 %v6771, %v6773
  %v6775 = vrot.slane %v6747, %v6774
  %v6776 = vcombine.high %v6754, %v6754
  %v6777 = vcombine.high %v6761, %v6761
  %v6778 = vcombine.high %v6768, %v6768
  %v6779 = vcombine.high %v6775, %v6775
  %v6780 = vlaneseq
  %v6781 = vshrl.u32 %v6780, 7
  %v6782 = vsub.s32 0, %v6781
  %v6783 = vrot.slane %v6411, %v6782
  %v6784 = vlaneseq
  %v6785 = vshrl.u32 %v6784, 7
  %v6786 = vsub.s32 0, %v6785
  %v6787 = vrot.slane %v6425, %v6786
  %v6788 = vlaneseq
  %v6789 = vshrl.u32 %v6788, 7
  %v6790 = vsub.s32 0, %v6789
  %v6791 = vrot.slane %v6433, %v6790
  %v6792 = vlaneseq
  %v6793 = vshrl.u32 %v6792, 7
  %v6794 = vsub.s32 0, %v6793
  %v6795 = vrot.slane %v6435, %v6794
  %v6796 = vlaneseq
  %v6797 = vshrl.u32 %v6796, 7
  %v6798 = vsub.s32 0, %v6797
  %v6799 = vrot.slane %v6418, %v6798
  %v6800 = vlaneseq
  %v6801 = vshrl.u32 %v6800, 7
  %v6802 = vsub.s32 0, %v6801
  %v6803 = vrot.slane %v6432, %v6802
  %v6804 = vlaneseq
  %v6805 = vshrl.u32 %v6804, 7
  %v6806 = vsub.s32 0, %v6805
  %v6807 = vrot.slane %v6434, %v6806
  %v6808 = vlaneseq
  %v6809 = vshrl.u32 %v6808, 7
  %v6810 = vsub.s32 0, %v6809
  %v6811 = vrot.slane %v6436, %v6810
  %v6812 = vlaneseq
  %v6813 = vshrl.u32 %v6812, 7
  %v6814 = vsub.s32 0, %v6813
  %v6815 = vrot.slane %v6460, %v6814
  %v6816 = vlaneseq
  %v6817 = vshrl.u32 %v6816, 7
  %v6818 = vsub.s32 0, %v6817
  %v6819 = vrot.slane %v6474, %v6818
  %v6820 = vlaneseq
  %v6821 = vshrl.u32 %v6820, 7
  %v6822 = vsub.s32 0, %v6821
  %v6823 = vrot.slane %v6482, %v6822
  %v6824 = vlaneseq
  %v6825 = vshrl.u32 %v6824, 7
  %v6826 = vsub.s32 0, %v6825
  %v6827 = vrot.slane %v6484, %v6826
  %v6828 = vlaneseq
  %v6829 = vshrl.u32 %v6828, 7
  %v6830 = vsub.s32 0, %v6829
  %v6831 = vrot.slane %v6467, %v6830
  %v6832 = vlaneseq
  %v6833 = vshrl.u32 %v6832, 7
  %v6834 = vsub.s32 0, %v6833
  %v6835 = vrot.slane %v6481, %v6834
  %v6836 = vlaneseq
  %v6837 = vshrl.u32 %v6836, 7
  %v6838 = vsub.s32 0, %v6837
  %v6839 = vrot.slane %v6483, %v6838
  %v6840 = vlaneseq
  %v6841 = vshrl.u32 %v6840, 7
  %v6842 = vsub.s32 0, %v6841
  %v6843 = vrot.slane %v6485, %v6842
  %v6844 = vlaneseq
  %v6845 = vshrl.u32 %v6844, 7
  %v6846 = vsub.s32 0, %v6845
  %v6847 = vrot.slane %v6509, %v6846
  %v6848 = vlaneseq
  %v6849 = vshrl.u32 %v6848, 7
  %v6850 = vsub.s32 0, %v6849
  %v6851 = vrot.slane %v6523, %v6850
  %v6852 = vlaneseq
  %v6853 = vshrl.u32 %v6852, 7
  %v6854 = vsub.s32 0, %v6853
  %v6855 = vrot.slane %v6531, %v6854
  %v6856 = vlaneseq
  %v6857 = vshrl.u32 %v6856, 7
  %v6858 = vsub.s32 0, %v6857
  %v6859 = vrot.slane %v6533, %v6858
  %v6860 = vlaneseq
  %v6861 = vshrl.u32 %v6860, 7
  %v6862 = vsub.s32 0, %v6861
  %v6863 = vrot.slane %v6516, %v6862
  %v6864 = vlaneseq
  %v6865 = vshrl.u32 %v6864, 7
  %v6866 = vsub.s32 0, %v6865
  %v6867 = vrot.slane %v6530, %v6866
  %v6868 = vlaneseq
  %v6869 = vshrl.u32 %v6868, 7
  %v6870 = vsub.s32 0, %v6869
  %v6871 = vrot.slane %v6532, %v6870
  %v6872 = vlaneseq
  %v6873 = vshrl.u32 %v6872, 7
  %v6874 = vsub.s32 0, %v6873
  %v6875 = vrot.slane %v6534, %v6874
  %v6876 = vlaneseq
  %v6877 = vshrl.u32 %v6876, 7
  %v6878 = vsub.s32 0, %v6877
  %v6879 = vrot.slane %v6558, %v6878
  %v6880 = vlaneseq
  %v6881 = vshrl.u32 %v6880, 7
  %v6882 = vsub.s32 0, %v6881
  %v6883 = vrot.slane %v6572, %v6882
  %v6884 = vlaneseq
  %v6885 = vshrl.u32 %v6884, 7
  %v6886 = vsub.s32 0, %v6885
  %v6887 = vrot.slane %v6580, %v6886
  %v6888 = vlaneseq
  %v6889 = vshrl.u32 %v6888, 7
  %v6890 = vsub.s32 0, %v6889
  %v6891 = vrot.slane %v6582, %v6890
  %v6892 = vlaneseq
  %v6893 = vshrl.u32 %v6892, 7
  %v6894 = vsub.s32 0, %v6893
  %v6895 = vrot.slane %v6565, %v6894
  %v6896 = vlaneseq
  %v6897 = vshrl.u32 %v6896, 7
  %v6898 = vsub.s32 0, %v6897
  %v6899 = vrot.slane %v6579, %v6898
  %v6900 = vlaneseq
  %v6901 = vshrl.u32 %v6900, 7
  %v6902 = vsub.s32 0, %v6901
  %v6903 = vrot.slane %v6581, %v6902
  %v6904 = vlaneseq
  %v6905 = vshrl.u32 %v6904, 7
  %v6906 = vsub.s32 0, %v6905
  %v6907 = vrot.slane %v6583, %v6906
  %v6908 = vlaneseq
  %v6909 = vshrl.u32 %v6908, 7
  %v6910 = vsub.s32 0, %v6909
  %v6911 = vrot.slane %v6607, %v6910
  %v6912 = vlaneseq
  %v6913 = vshrl.u32 %v6912, 7
  %v6914 = vsub.s32 0, %v6913
  %v6915 = vrot.slane %v6621, %v6914
  %v6916 = vlaneseq
  %v6917 = vshrl.u32 %v6916, 7
  %v6918 = vsub.s32 0, %v6917
  %v6919 = vrot.slane %v6629, %v6918
  %v6920 = vlaneseq
  %v6921 = vshrl.u32 %v6920, 7
  %v6922 = vsub.s32 0, %v6921
  %v6923 = vrot.slane %v6631, %v6922
  %v6924 = vlaneseq
  %v6925 = vshrl.u32 %v6924, 7
  %v6926 = vsub.s32 0, %v6925
  %v6927 = vrot.slane %v6614, %v6926
  %v6928 = vlaneseq
  %v6929 = vshrl.u32 %v6928, 7
  %v6930 = vsub.s32 0, %v6929
  %v6931 = vrot.slane %v6628, %v6930
  %v6932 = vlaneseq
  %v6933 = vshrl.u32 %v6932, 7
  %v6934 = vsub.s32 0, %v6933
  %v6935 = vrot.slane %v6630, %v6934
  %v6936 = vlaneseq
  %v6937 = vshrl.u32 %v6936, 7
  %v6938 = vsub.s32 0, %v6937
  %v6939 = vrot.slane %v6632, %v6938
  %v6940 = vlaneseq
  %v6941 = vshrl.u32 %v6940, 7
  %v6942 = vsub.s32 0, %v6941
  %v6943 = vrot.slane %v6656, %v6942
  %v6944 = vlaneseq
  %v6945 = vshrl.u32 %v6944, 7
  %v6946 = vsub.s32 0, %v6945
  %v6947 = vrot.slane %v6670, %v6946
  %v6948 = vlaneseq
  %v6949 = vshrl.u32 %v6948, 7
  %v6950 = vsub.s32 0, %v6949
  %v6951 = vrot.slane %v6678, %v6950
  %v6952 = vlaneseq
  %v6953 = vshrl.u32 %v6952, 7
  %v6954 = vsub.s32 0, %v6953
  %v6955 = vrot.slane %v6680, %v6954
  %v6956 = vlaneseq
  %v6957 = vshrl.u32 %v6956, 7
  %v6958 = vsub.s32 0, %v6957
  %v6959 = vrot.slane %v6663, %v6958
  %v6960 = vlaneseq
  %v6961 = vshrl.u32 %v6960, 7
  %v6962 = vsub.s32 0, %v6961
  %v6963 = vrot.slane %v6677, %v6962
  %v6964 = vlaneseq
  %v6965 = vshrl.u32 %v6964, 7
  %v6966 = vsub.s32 0, %v6965
  %v6967 = vrot.slane %v6679, %v6966
  %v6968 = vlaneseq
  %v6969 = vshrl.u32 %v6968, 7
  %v6970 = vsub.s32 0, %v6969
  %v6971 = vrot.slane %v6681, %v6970
  %v6972 = vlaneseq
  %v6973 = vshrl.u32 %v6972, 7
  %v6974 = vsub.s32 0, %v6973
  %v6975 = vrot.slane %v6705, %v6974
  %v6976 = vlaneseq
  %v6977 = vshrl.u32 %v6976, 7
  %v6978 = vsub.s32 0, %v6977
  %v6979 = vrot.slane %v6719, %v6978
  %v6980 = vlaneseq
  %v6981 = vshrl.u32 %v6980, 7
  %v6982 = vsub.s32 0, %v6981
  %v6983 = vrot.slane %v6727, %v6982
  %v6984 = vlaneseq
  %v6985 = vshrl.u32 %v6984, 7
  %v6986 = vsub.s32 0, %v6985
  %v6987 = vrot.slane %v6729, %v6986
  %v6988 = vlaneseq
  %v6989 = vshrl.u32 %v6988, 7
  %v6990 = vsub.s32 0, %v6989
  %v6991 = vrot.slane %v6712, %v6990
  %v6992 = vlaneseq
  %v6993 = vshrl.u32 %v6992, 7
  %v6994 = vsub.s32 0, %v6993
  %v6995 = vrot.slane %v6726, %v6994
  %v6996 = vlaneseq
  %v6997 = vshrl.u32 %v6996, 7
  %v6998 = vsub.s32 0, %v6997
  %v6999 = vrot.slane %v6728, %v6998
  %v7000 = vlaneseq
  %v7001 = vshrl.u32 %v7000, 7
  %v7002 = vsub.s32 0, %v7001
  %v7003 = vrot.slane %v6730, %v7002
  %v7004 = vlaneseq
  %v7005 = vshrl.u32 %v7004, 7
  %v7006 = vsub.s32 0, %v7005
  %v7007 = vrot.slane %v6754, %v7006
  %v7008 = vlaneseq
  %v7009 = vshrl.u32 %v7008, 7
  %v7010 = vsub.s32 0, %v7009
  %v7011 = vrot.slane %v6768, %v7010
  %v7012 = vlaneseq
  %v7013 = vshrl.u32 %v7012, 7
  %v7014 = vsub.s32 0, %v7013
  %v7015 = vrot.slane %v6776, %v7014
  %v7016 = vlaneseq
  %v7017 = vshrl.u32 %v7016, 7
  %v7018 = vsub.s32 0, %v7017
  %v7019 = vrot.slane %v6778, %v7018
  %v7020 = vlaneseq
  %v7021 = vshrl.u32 %v7020, 7
  %v7022 = vsub.s32 0, %v7021
  %v7023 = vrot.slane %v6761, %v7022
  %v7024 = vlaneseq
  %v7025 = vshrl.u32 %v7024, 7
  %v7026 = vsub.s32 0, %v7025
  %v7027 = vrot.slane %v6775, %v7026
  %v7028 = vlaneseq
  %v7029 = vshrl.u32 %v7028, 7
  %v7030 = vsub.s32 0, %v7029
  %v7031 = vrot.slane %v6777, %v7030
  %v7032 = vlaneseq
  %v7033 = vshrl.u32 %v7032, 7
  %v7034 = vsub.s32 0, %v7033
  %v7035 = vrot.slane %v6779, %v7034
  %v7100 = vsub.f32 %v2182, %v6783
  %v7101 = vsub.f32 %v2185, %v6783
  %v7102 = vsub.f32 %v2190, %v6787
  %v7103 = vsub.f32 %v2193, %v6787
  %v7104 = vsub.f32 %v2198, %v6791
  %v7105 = vsub.f32 %v2201, %v6791
  %v7106 = vsub.f32 %v2206, %v6795
  %v7107 = vsub.f32 %v2209, %v6795
  %v7108 = vsub.f32 %v2214, %v6799
  %v7109 = vsub.f32 %v2217, %v6799
  %v7110 = vsub.f32 %v2222, %v6803
  %v7111 = vsub.f32 %v2225, %v6803
  %v7112 = vsub.f32 %v2230, %v6807
  %v7113 = vsub.f32 %v2233, %v6807
  %v7114 = vsub.f32 %v2238, %v6811
  %v7115 = vsub.f32 %v2241, %v6811
  %v7116 = vsub.f32 %v2246, %v6815
  %v7117 = vsub.f32 %v2249, %v6815
  %v7118 = vsub.f32 %v2254, %v6819
  %v7119 = vsub.f32 %v2257, %v6819
  %v7120 = vsub.f32 %v2262, %v6823
  %v7121 = vsub.f32 %v2265, %v6823
  %v7122 = vsub.f32 %v2270, %v6827
  %v7123 = vsub.f32 %v2273, %v6827
  %v7124 = vsub.f32 %v2278, %v6831
  %v7125 = vsub.f32 %v2281, %v6831
  %v7126 = vsub.f32 %v2286, %v6835
  %v7127 = vsub.f32 %v2289, %v6835
  %v7128 = vsub.f32 %v2294, %v6839
  %v7129 = vsub.f32 %v2297, %v6839
  %v7130 = vsub.f32 %v2302, %v6843
  %v7131 = vsub.f32 %v2305, %v6843
  %v7132 = vsub.f32 %v2310, %v6847
  %v7133 = vsub.f32 %v2313, %v6847
  %v7134 = vsub.f32 %v2318, %v6851
  %v7135 = vsub.f32 %v2321, %v6851
  %v7136 = vsub.f32 %v2326, %v6855
  %v7137 = vsub.f32 %v2329, %v6855
  %v7138 = vsub.f32 %v2334, %v6859
  %v7139 = vsub.f32 %v2337, %v6859
  %v7140 = vsub.f32 %v2342, %v6863
  %v7141 = vsub.f32 %v2345, %v6863
  %v7142 = vsub.f32 %v2350, %v6867
  %v7143 = vsub.f32 %v2353, %v6867
  %v7144 = vsub.f32 %v2358, %v6871
  %v7145 = vsub.f32 %v2361, %v6871
  %v7146 = vsub.f32 %v2366, %v6875
  %v7147 = vsub.f32 %v2369, %v6875
  %v7148 = vsub.f32 %v2374, %v6879
  %v7149 = vsub.f32 %v2377, %v6879
  %v7150 = vsub.f32 %v2382, %v6883
  %v7151 = vsub.f32 %v2385, %v6883
  %v7152 = vsub.f32 %v2390, %v6887
  %v7153 = vsub.f32 %v2393, %v6887
  %v7154 = vsub.f32 %v2398, %v6891
  %v7155 = vsub.f32 %v2401, %v6891
  %v7156 = vsub.f32 %v2406, %v6895
  %v7157 = vsub.f32 %v2409, %v6895
  %v7158 = vsub.f32 %v2414, %v6899
  %v7159 = vsub.f32 %v2417, %v6899
  %v7160 = vsub.f32 %v2422, %v6903
  %v7161 = vsub.f32 %v2425, %v6903
  %v7162 = vsub.f32 %v2430, %v6907
  %v7163 = vsub.f32 %v2433, %v6907
  %v7164 = vsub.f32 %v2438, %v6911
  %v7165 = vsub.f32 %v2441, %v6911
  %v7166 = vsub.f32 %v2446, %v6915
  %v7167 = vsub.f32 %v2449, %v6915
  %v7168 = vsub.f32 %v2454, %v6919
  %v7169 = vsub.f32 %v2457, %v6919
  %v7170 = vsub.f32 %v2462, %v6923
  %v7171 = vsub.f32 %v2465, %v6923
  %v7172 = vsub.f32 %v2470, %v6927
  %v7173 = vsub.f32 %v2473, %v6927
  %v7174 = vsub.f32 %v2478, %v6931
  %v7175 = vsub.f32 %v2481, %v6931
  %v7176 = vsub.f32 %v2486, %v6935
  %v7177 = vsub.f32 %v2489, %v6935
  %v7178 = vsub.f32 %v2494, %v6939
  %v7179 = vsub.f32 %v2497, %v6939
  %v7180 = vsub.f32 %v2502, %v6943
  %v7181 = vsub.f32 %v2505, %v6943
  %v7182 = vsub.f32 %v2510, %v6947
  %v7183 = vsub.f32 %v2513, %v6947
  %v7184 = vsub.f32 %v2518, %v6951
  %v7185 = vsub.f32 %v2521, %v6951
  %v7186 = vsub.f32 %v2526, %v6955
  %v7187 = vsub.f32 %v2529, %v6955
  %v7188 = vsub.f32 %v2534, %v6959
  %v7189 = vsub.f32 %v2537, %v6959
  %v7190 = vsub.f32 %v2542, %v6963
  %v7191 = vsub.f32 %v2545, %v6963
  %v7192 = vsub.f32 %v2550, %v6967
  %v7193 = vsub.f32 %v2553, %v6967
  %v7194 = vsub.f32 %v2558, %v6971
  %v7195 = vsub.f32 %v2561, %v6971
  %v7196 = vsub.f32 %v2566, %v6975
  %v7197 = vsub.f32 %v2569, %v6975
  %v7198 = vsub.f32 %v2574, %v6979
  %v7199 = vsub.f32 %v2577, %v6979
  %v7200 = vsub.f32 %v2582, %v6983
  %v7201 = vsub.f32 %v2585, %v6983
  %v7202 = vsub.f32 %v2590, %v6987
  %v7203 = vsub.f32 %v2593, %v6987
  %v7204 = vsub.f32 %v2598, %v6991
  %v7205 = vsub.f32 %v2601, %v6991
  %v7206 = vsub.f32 %v2606, %v6995
  %v7207 = vsub.f32 %v2609, %v6995
  %v7208 = vsub.f32 %v2614, %v6999
  %v7209 = vsub.f32 %v2617, %v6999
  %v7210 = vsub.f32 %v2622, %v7003
  %v7211 = vsub.f32 %v2625, %v7003
  %v7212 = vsub.f32 %v2630, %v7007
  %v7213 = vsub.f32 %v2633, %v7007
  %v7214 = vsub.f32 %v2638, %v7011
  %v7215 = vsub.f32 %v2641, %v7011
  %v7216 = vsub.f32 %v2646, %v7015
  %v7217 = vsub.f32 %v2649, %v7015
  %v7218 = vsub.f32 %v2654, %v7019
  %v7219 = vsub.f32 %v2657, %v7019
  %v7220 = vsub.f32 %v2662, %v7023
  %v7221 = vsub.f32 %v2665, %v7023
  %v7222 = vsub.f32 %v2670, %v7027
  %v7223 = vsub.f32 %v2673, %v7027
  %v7224 = vsub.f32 %v2678, %v7031
  %v7225 = vsub.f32 %v2681, %v7031
  %v7226 = vsub.f32 %v2686, %v7035
  %v7227 = vsub.f32 %v2689, %v7035
  %v7228 = vadd.f32 %v7100, %v6252
  %v7229 = vadd.f32 %v7101, %v6253
  %v7230 = vadd.f32 %v7102, %v6254
  %v7231 = vadd.f32 %v7103, %v6255
  %v7232 = vadd.f32 %v7104, %v6256
  %v7233 = vadd.f32 %v7105, %v6257
  %v7234 = vadd.f32 %v7106, %v6258
  %v7235 = vadd.f32 %v7107, %v6259
  %v7236 = vadd.f32 %v7108, %v6260
  %v7237 = vadd.f32 %v7109, %v6261
  %v7238 = vadd.f32 %v7110, %v6262
  %v7239 = vadd.f32 %v7111, %v6263
  %v7240 = vadd.f32 %v7112, %v6264
  %v7241 = vadd.f32 %v7113, %v6265
  %v7242 = vadd.f32 %v7114, %v6266
  %v7243 = vadd.f32 %v7115, %v6267
  %v7244 = vadd.f32 %v7116, %v6268
  %v7245 = vadd.f32 %v7117, %v6269
  %v7246 = vadd.f32 %v7118, %v6270
  %v7247 = vadd.f32 %v7119, %v6271
  %v7248 = vadd.f32 %v7120, %v6272
  %v7249 = vadd.f32 %v7121, %v6273
  %v7250 = vadd.f32 %v7122, %v6274
  %v7251 = vadd.f32 %v7123, %v6275
  %v7252 = vadd.f32 %v7124, %v6276
  %v7253 = vadd.f32 %v7125, %v6277
  %v7254 = vadd.f32 %v7126, %v6278
  %v7255 = vadd.f32 %v7127, %v6279
  %v7256 = vadd.f32 %v7128, %v6280
  %v7257 = vadd.f32 %v7129, %v6281
  %v7258 = vadd.f32 %v7130, %v6282
  %v7259 = vadd.f32 %v7131, %v6283
  %v7260 = vadd.f32 %v7132, %v6284
  %v7261 = vadd.f32 %v7133, %v6285
  %v7262 = vadd.f32 %v7134, %v6286
  %v7263 = vadd.f32 %v7135, %v6287
  %v7264 = vadd.f32 %v7136, %v6288
  %v7265 = vadd.f32 %v7137, %v6289
  %v7266 = vadd.f32 %v7138, %v6290
  %v7267 = vadd.f32 %v7139, %v6291
  %v7268 = vadd.f32 %v7140, %v6292
  %v7269 = vadd.f32 %v7141, %v6293
  %v7270 = vadd.f32 %v7142, %v6294
  %v7271 = vadd.f32 %v7143, %v6295
  %v7272 = vadd.f32 %v7144, %v6296
  %v7273 = vadd.f32 %v7145, %v6297
  %v7274 = vadd.f32 %v7146, %v6298
  %v7275 = vadd.f32 %v7147, %v6299
  %v7276 = vadd.f32 %v7148, %v6300
  %v7277 = vadd.f32 %v7149, %v6301
  %v7278 = vadd.f32 %v7150, %v6302
  %v7279 = vadd.f32 %v7151, %v6303
  %v7280 = vadd.f32 %v7152, %v6304
  %v7281 = vadd.f32 %v7153, %v6305
  %v7282 = vadd.f32 %v7154, %v6306
  %v7283 = vadd.f32 %v7155, %v6307
  %v7284 = vadd.f32 %v7156, %v6308
  %v7285 = vadd.f32 %v7157, %v6309
  %v7286 = vadd.f32 %v7158, %v6310
  %v7287 = vadd.f32 %v7159, %v6311
  %v7288 = vadd.f32 %v7160, %v6312
  %v7289 = vadd.f32 %v7161, %v6313
  %v7290 = vadd.f32 %v7162, %v6314
  %v7291 = vadd.f32 %v7163, %v6315
  %v7292 = vadd.f32 %v7164, %v6316
  %v7293 = vadd.f32 %v7165, %v6317
  %v7294 = vadd.f32 %v7166, %v6318
  %v7295 = vadd.f32 %v7167, %v6319
  %v7296 = vadd.f32 %v7168, %v6320
  %v7297 = vadd.f32 %v7169, %v6321
  %v7298 = vadd.f32 %v7170, %v6322
  %v7299 = vadd.f32 %v7171, %v6323
  %v7300 = vadd.f32 %v7172, %v6324
  %v7301 = vadd.f32 %v7173, %v6325
  %v7302 = vadd.f32 %v7174, %v6326
  %v7303 = vadd.f32 %v7175, %v6327
  %v7304 = vadd.f32 %v7176, %v6328
  %v7305 = vadd.f32 %v7177, %v6329
  %v7306 = vadd.f32 %v7178, %v6330
  %v7307 = vadd.f32 %v7179, %v6331
  %v7308 = vadd.f32 %v7180, %v6332
  %v7309 = vadd.f32 %v7181, %v6333
  %v7310 = vadd.f32 %v7182, %v6334
  %v7311 = vadd.f32 %v7183, %v6335
  %v7312 = vadd.f32 %v7184, %v6336
  %v7313 = vadd.f32 %v7185, %v6337
  %v7314 = vadd.f32 %v7186, %v6338
  %v7315 = vadd.f32 %v7187, %v6339
  %v7316 = vadd.f32 %v7188, %v6340
  %v7317 = vadd.f32 %v7189, %v6341
  %v7318 = vadd.f32 %v7190, %v6342
  %v7319 = vadd.f32 %v7191, %v6343
  %v7320 = vadd.f32 %v7192, %v6344
  %v7321 = vadd.f32 %v7193, %v6345
  %v7322 = vadd.f32 %v7194, %v6346
  %v7323 = vadd.f32 %v7195, %v6347
  %v7324 = vadd.f32 %v7196, %v6348
  %v7325 = vadd.f32 %v7197, %v6349
  %v7326 = vadd.f32 %v7198, %v6350
  %v7327 = vadd.f32 %v7199, %v6351
  %v7328 = vadd.f32 %v7200, %v6352
  %v7329 = vadd.f32 %v7201, %v6353
  %v7330 = vadd.f32 %v7202, %v6354
  %v7331 = vadd.f32 %v7203, %v6355
  %v7332 = vadd.f32 %v7204, %v6356
  %v7333 = vadd.f32 %v7205, %v6357
  %v7334 = vadd.f32 %v7206, %v6358
  %v7335 = vadd.f32 %v7207, %v6359
  %v7336 = vadd.f32 %v7208, %v6360
  %v7337 = vadd.f32 %v7209, %v6361
  %v7338 = vadd.f32 %v7210, %v6362
  %v7339 = vadd.f32 %v7211, %v6363
  %v7340 = vadd.f32 %v7212, %v6364
  %v7341 = vadd.f32 %v7213, %v6365
  %v7342 = vadd.f32 %v7214, %v6366
  %v7343 = vadd.f32 %v7215, %v6367
  %v7344 = vadd.f32 %v7216, %v6368
  %v7345 = vadd.f32 %v7217, %v6369
  %v7346 = vadd.f32 %v7218, %v6370
  %v7347 = vadd.f32 %v7219, %v6371
  %v7348 = vadd.f32 %v7220, %v6372
  %v7349 = vadd.f32 %v7221, %v6373
  %v7350 = vadd.f32 %v7222, %v6374
  %v7351 = vadd.f32 %v7223, %v6375
  %v7352 = vadd.f32 %v7224, %v6376
  %v7353 = vadd.f32 %v7225, %v6377
  %v7354 = vadd.f32 %v7226, %v6378
  %v7355 = vadd.f32 %v7227, %v6379
  %v7356 = vlaneseq
  %v7357 = vshrl.u32 %v7356, 7
  %v7358 = vsub.s32 7, %v7357
  %v7359 = vrot.slane %v196, %v7358
  %v7360 = vmul.f32 %v7228, %v7359
  %v7361 = vmul.f32 %v7229, %v7359
  %v7362 = vmul.f32 %v7230, %v7359
  %v7363 = vmul.f32 %v7231, %v7359
  %v7364 = vmul.f32 %v7232, %v7359
  %v7365 = vmul.f32 %v7233, %v7359
  %v7366 = vmul.f32 %v7234, %v7359
  %v7367 = vmul.f32 %v7235, %v7359
  %v7368 = vmul.f32 %v7236, %v7359
  %v7369 = vmul.f32 %v7237, %v7359
  %v7370 = vmul.f32 %v7238, %v7359
  %v7371 = vmul.f32 %v7239, %v7359
  %v7372 = vmul.f32 %v7240, %v7359
  %v7373 = vmul.f32 %v7241, %v7359
  %v7374 = vmul.f32 %v7242, %v7359
  %v7375 = vmul.f32 %v7243, %v7359
  %v7376 = vmul.f32 %v7244, %v7359
  %v7377 = vmul.f32 %v7245, %v7359
  %v7378 = vmul.f32 %v7246, %v7359
  %v7379 = vmul.f32 %v7247, %v7359
  %v7380 = vmul.f32 %v7248, %v7359
  %v7381 = vmul.f32 %v7249, %v7359
  %v7382 = vmul.f32 %v7250, %v7359
  %v7383 = vmul.f32 %v7251, %v7359
  %v7384 = vmul.f32 %v7252, %v7359
  %v7385 = vmul.f32 %v7253, %v7359
  %v7386 = vmul.f32 %v7254, %v7359
  %v7387 = vmul.f32 %v7255, %v7359
  %v7388 = vmul.f32 %v7256, %v7359
  %v7389 = vmul.f32 %v7257, %v7359
  %v7390 = vmul.f32 %v7258, %v7359
  %v7391 = vmul.f32 %v7259, %v7359
  %v7392 = vmul.f32 %v7260, %v7359
  %v7393 = vmul.f32 %v7261, %v7359
  %v7394 = vmul.f32 %v7262, %v7359
  %v7395 = vmul.f32 %v7263, %v7359
  %v7396 = vmul.f32 %v7264, %v7359
  %v7397 = vmul.f32 %v7265, %v7359
  %v7398 = vmul.f32 %v7266, %v7359
  %v7399 = vmul.f32 %v7267, %v7359
  %v7400 = vmul.f32 %v7268, %v7359
  %v7401 = vmul.f32 %v7269, %v7359
  %v7402 = vmul.f32 %v7270, %v7359
  %v7403 = vmul.f32 %v7271, %v7359
  %v7404 = vmul.f32 %v7272, %v7359
  %v7405 = vmul.f32 %v7273, %v7359
  %v7406 = vmul.f32 %v7274, %v7359
  %v7407 = vmul.f32 %v7275, %v7359
  %v7408 = vmul.f32 %v7276, %v7359
  %v7409 = vmul.f32 %v7277, %v7359
  %v7410 = vmul.f32 %v7278, %v7359
  %v7411 = vmul.f32 %v7279, %v7359
  %v7412 = vmul.f32 %v7280, %v7359
  %v7413 = vmul.f32 %v7281, %v7359
  %v7414 = vmul.f32 %v7282, %v7359
  %v7415 = vmul.f32 %v7283, %v7359
  %v7416 = vmul.f32 %v7284, %v7359
  %v7417 = vmul.f32 %v7285, %v7359
  %v7418 = vmul.f32 %v7286, %v7359
  %v7419 = vmul.f32 %v7287, %v7359
  %v7420 = vmul.f32 %v7288, %v7359
  %v7421 = vmul.f32 %v7289, %v7359
  %v7422 = vmul.f32 %v7290, %v7359
  %v7423 = vmul.f32 %v7291, %v7359
  %v7424 = vmul.f32 %v7292, %v7359
  %v7425 = vmul.f32 %v7293, %v7359
  %v7426 = vmul.f32 %v7294, %v7359
  %v7427 = vmul.f32 %v7295, %v7359
  %v7428 = vmul.f32 %v7296, %v7359
  %v7429 = vmul.f32 %v7297, %v7359
  %v7430 = vmul.f32 %v7298, %v7359
  %v7431 = vmul.f32 %v7299, %v7359
  %v7432 = vmul.f32 %v7300, %v7359
  %v7433 = vmul.f32 %v7301, %v7359
  %v7434 = vmul.f32 %v7302, %v7359
  %v7435 = vmul.f32 %v7303, %v7359
  %v7436 = vmul.f32 %v7304, %v7359
  %v7437 = vmul.f32 %v7305, %v7359
  %v7438 = vmul.f32 %v7306, %v7359
  %v7439 = vmul.f32 %v7307, %v7359
  %v7440 = vmul.f32 %v7308, %v7359
  %v7441 = vmul.f32 %v7309, %v7359
  %v7442 = vmul.f32 %v7310, %v7359
  %v7443 = vmul.f32 %v7311, %v7359
  %v7444 = vmul.f32 %v7312, %v7359
  %v7445 = vmul.f32 %v7313, %v7359
  %v7446 = vmul.f32 %v7314, %v7359
  %v7447 = vmul.f32 %v7315, %v7359
  %v7448 = vmul.f32 %v7316, %v7359
  %v7449 = vmul.f32 %v7317, %v7359
  %v7450 = vmul.f32 %v7318, %v7359
  %v7451 = vmul.f32 %v7319, %v7359
  %v7452 = vmul.f32 %v7320, %v7359
  %v7453 = vmul.f32 %v7321, %v7359
  %v7454 = vmul.f32 %v7322, %v7359
  %v7455 = vmul.f32 %v7323, %v7359
  %v7456 = vmul.f32 %v7324, %v7359
  %v7457 = vmul.f32 %v7325, %v7359
  %v7458 = vmul.f32 %v7326, %v7359
  %v7459 = vmul.f32 %v7327, %v7359
  %v7460 = vmul.f32 %v7328, %v7359
  %v7461 = vmul.f32 %v7329, %v7359
  %v7462 = vmul.f32 %v7330, %v7359
  %v7463 = vmul.f32 %v7331, %v7359
  %v7464 = vmul.f32 %v7332, %v7359
  %v7465 = vmul.f32 %v7333, %v7359
  %v7466 = vmul.f32 %v7334, %v7359
  %v7467 = vmul.f32 %v7335, %v7359
  %v7468 = vmul.f32 %v7336, %v7359
  %v7469 = vmul.f32 %v7337, %v7359
  %v7470 = vmul.f32 %v7338, %v7359
  %v7471 = vmul.f32 %v7339, %v7359
  %v7472 = vmul.f32 %v7340, %v7359
  %v7473 = vmul.f32 %v7341, %v7359
  %v7474 = vmul.f32 %v7342, %v7359
  %v7475 = vmul.f32 %v7343, %v7359
  %v7476 = vmul.f32 %v7344, %v7359
  %v7477 = vmul.f32 %v7345, %v7359
  %v7478 = vmul.f32 %v7346, %v7359
  %v7479 = vmul.f32 %v7347, %v7359
  %v7480 = vmul.f32 %v7348, %v7359
  %v7481 = vmul.f32 %v7349, %v7359
  %v7482 = vmul.f32 %v7350, %v7359
  %v7483 = vmul.f32 %v7351, %v7359
  %v7484 = vmul.f32 %v7352, %v7359
  %v7485 = vmul.f32 %v7353, %v7359
  %v7486 = vmul.f32 %v7354, %v7359
  %v7487 = vmul.f32 %v7355, %v7359
  %v7488 = vlaneseq
  %v7489 = vshrl.u32 %v7488, 7
  %v7490 = vsub.s32 0, %v7489
  %v7491 = vrot.slane %v197, %v7490
  %v7492 = vadd.f32 %v7360, %v7491
  %v7493 = vadd.f32 %v7361, %v7491
  %v7494 = vadd.f32 %v7362, %v7491
  %v7495 = vadd.f32 %v7363, %v7491
  %v7496 = vadd.f32 %v7364, %v7491
  %v7497 = vadd.f32 %v7365, %v7491
  %v7498 = vadd.f32 %v7366, %v7491
  %v7499 = vadd.f32 %v7367, %v7491
  %v7500 = vadd.f32 %v7368, %v7491
  %v7501 = vadd.f32 %v7369, %v7491
  %v7502 = vadd.f32 %v7370, %v7491
  %v7503 = vadd.f32 %v7371, %v7491
  %v7504 = vadd.f32 %v7372, %v7491
  %v7505 = vadd.f32 %v7373, %v7491
  %v7506 = vadd.f32 %v7374, %v7491
  %v7507 = vadd.f32 %v7375, %v7491
  %v7508 = vadd.f32 %v7376, %v7491
  %v7509 = vadd.f32 %v7377, %v7491
  %v7510 = vadd.f32 %v7378, %v7491
  %v7511 = vadd.f32 %v7379, %v7491
  %v7512 = vadd.f32 %v7380, %v7491
  %v7513 = vadd.f32 %v7381, %v7491
  %v7514 = vadd.f32 %v7382, %v7491
  %v7515 = vadd.f32 %v7383, %v7491
  %v7516 = vadd.f32 %v7384, %v7491
  %v7517 = vadd.f32 %v7385, %v7491
  %v7518 = vadd.f32 %v7386, %v7491
  %v7519 = vadd.f32 %v7387, %v7491
  %v7520 = vadd.f32 %v7388, %v7491
  %v7521 = vadd.f32 %v7389, %v7491
  %v7522 = vadd.f32 %v7390, %v7491
  %v7523 = vadd.f32 %v7391, %v7491
  %v7524 = vadd.f32 %v7392, %v7491
  %v7525 = vadd.f32 %v7393, %v7491
  %v7526 = vadd.f32 %v7394, %v7491
  %v7527 = vadd.f32 %v7395, %v7491
  %v7528 = vadd.f32 %v7396, %v7491
  %v7529 = vadd.f32 %v7397, %v7491
  %v7530 = vadd.f32 %v7398, %v7491
  %v7531 = vadd.f32 %v7399, %v7491
  %v7532 = vadd.f32 %v7400, %v7491
  %v7533 = vadd.f32 %v7401, %v7491
  %v7534 = vadd.f32 %v7402, %v7491
  %v7535 = vadd.f32 %v7403, %v7491
  %v7536 = vadd.f32 %v7404, %v7491
  %v7537 = vadd.f32 %v7405, %v7491
  %v7538 = vadd.f32 %v7406, %v7491
  %v7539 = vadd.f32 %v7407, %v7491
  %v7540 = vadd.f32 %v7408, %v7491
  %v7541 = vadd.f32 %v7409, %v7491
  %v7542 = vadd.f32 %v7410, %v7491
  %v7543 = vadd.f32 %v7411, %v7491
  %v7544 = vadd.f32 %v7412, %v7491
  %v7545 = vadd.f32 %v7413, %v7491
  %v7546 = vadd.f32 %v7414, %v7491
  %v7547 = vadd.f32 %v7415, %v7491
  %v7548 = vadd.f32 %v7416, %v7491
  %v7549 = vadd.f32 %v7417, %v7491
  %v7550 = vadd.f32 %v7418, %v7491
  %v7551 = vadd.f32 %v7419, %v7491
  %v7552 = vadd.f32 %v7420, %v7491
  %v7553 = vadd.f32 %v7421, %v7491
  %v7554 = vadd.f32 %v7422, %v7491
  %v7555 = vadd.f32 %v7423, %v7491
  %v7556 = vadd.f32 %v7424, %v7491
  %v7557 = vadd.f32 %v7425, %v7491
  %v7558 = vadd.f32 %v7426, %v7491
  %v7559 = vadd.f32 %v7427, %v7491
  %v7560 = vadd.f32 %v7428, %v7491
  %v7561 = vadd.f32 %v7429, %v7491
  %v7562 = vadd.f32 %v7430, %v7491
  %v7563 = vadd.f32 %v7431, %v7491
  %v7564 = vadd.f32 %v7432, %v7491
  %v7565 = vadd.f32 %v7433, %v7491
  %v7566 = vadd.f32 %v7434, %v7491
  %v7567 = vadd.f32 %v7435, %v7491
  %v7568 = vadd.f32 %v7436, %v7491
  %v7569 = vadd.f32 %v7437, %v7491
  %v7570 = vadd.f32 %v7438, %v7491
  %v7571 = vadd.f32 %v7439, %v7491
  %v7572 = vadd.f32 %v7440, %v7491
  %v7573 = vadd.f32 %v7441, %v7491
  %v7574 = vadd.f32 %v7442, %v7491
  %v7575 = vadd.f32 %v7443, %v7491
  %v7576 = vadd.f32 %v7444, %v7491
  %v7577 = vadd.f32 %v7445, %v7491
  %v7578 = vadd.f32 %v7446, %v7491
  %v7579 = vadd.f32 %v7447, %v7491
  %v7580 = vadd.f32 %v7448, %v7491
  %v7581 = vadd.f32 %v7449, %v7491
  %v7582 = vadd.f32 %v7450, %v7491
  %v7583 = vadd.f32 %v7451, %v7491
  %v7584 = vadd.f32 %v7452, %v7491
  %v7585 = vadd.f32 %v7453, %v7491
  %v7586 = vadd.f32 %v7454, %v7491
  %v7587 = vadd.f32 %v7455, %v7491
  %v7588 = vadd.f32 %v7456, %v7491
  %v7589 = vadd.f32 %v7457, %v7491
  %v7590 = vadd.f32 %v7458, %v7491
  %v7591 = vadd.f32 %v7459, %v7491
  %v7592 = vadd.f32 %v7460, %v7491
  %v7593 = vadd.f32 %v7461, %v7491
  %v7594 = vadd.f32 %v7462, %v7491
  %v7595 = vadd.f32 %v7463, %v7491
  %v7596 = vadd.f32 %v7464, %v7491
  %v7597 = vadd.f32 %v7465, %v7491
  %v7598 = vadd.f32 %v7466, %v7491
  %v7599 = vadd.f32 %v7467, %v7491
  %v7600 = vadd.f32 %v7468, %v7491
  %v7601 = vadd.f32 %v7469, %v7491
  %v7602 = vadd.f32 %v7470, %v7491
  %v7603 = vadd.f32 %v7471, %v7491
  %v7604 = vadd.f32 %v7472, %v7491
  %v7605 = vadd.f32 %v7473, %v7491
  %v7606 = vadd.f32 %v7474, %v7491
  %v7607 = vadd.f32 %v7475, %v7491
  %v7608 = vadd.f32 %v7476, %v7491
  %v7609 = vadd.f32 %v7477, %v7491
  %v7610 = vadd.f32 %v7478, %v7491
  %v7611 = vadd.f32 %v7479, %v7491
  %v7612 = vadd.f32 %v7480, %v7491
  %v7613 = vadd.f32 %v7481, %v7491
  %v7614 = vadd.f32 %v7482, %v7491
  %v7615 = vadd.f32 %v7483, %v7491
  %v7616 = vadd.f32 %v7484, %v7491
  %v7617 = vadd.f32 %v7485, %v7491
  %v7618 = vadd.f32 %v7486, %v7491
  %v7619 = vadd.f32 %v7487, %v7491
  %v7620 = vmax.f32 %v7492, 0.0
  %v7621 = vmax.f32 %v7493, 0.0
  %v7622 = vmax.f32 %v7494, 0.0
  %v7623 = vmax.f32 %v7495, 0.0
  %v7624 = vmax.f32 %v7496, 0.0
  %v7625 = vmax.f32 %v7497, 0.0
  %v7626 = vmax.f32 %v7498, 0.0
  %v7627 = vmax.f32 %v7499, 0.0
  %v7628 = vmax.f32 %v7500, 0.0
  %v7629 = vmax.f32 %v7501, 0.0
  %v7630 = vmax.f32 %v7502, 0.0
  %v7631 = vmax.f32 %v7503, 0.0
  %v7632 = vmax.f32 %v7504, 0.0
  %v7633 = vmax.f32 %v7505, 0.0
  %v7634 = vmax.f32 %v7506, 0.0
  %v7635 = vmax.f32 %v7507, 0.0
  %v7636 = vmax.f32 %v7508, 0.0
  %v7637 = vmax.f32 %v7509, 0.0
  %v7638 = vmax.f32 %v7510, 0.0
  %v7639 = vmax.f32 %v7511, 0.0
  %v7640 = vmax.f32 %v7512, 0.0
  %v7641 = vmax.f32 %v7513, 0.0
  %v7642 = vmax.f32 %v7514, 0.0
  %v7643 = vmax.f32 %v7515, 0.0
  %v7644 = vmax.f32 %v7516, 0.0
  %v7645 = vmax.f32 %v7517, 0.0
  %v7646 = vmax.f32 %v7518, 0.0
  %v7647 = vmax.f32 %v7519, 0.0
  %v7648 = vmax.f32 %v7520, 0.0
  %v7649 = vmax.f32 %v7521, 0.0
  %v7650 = vmax.f32 %v7522, 0.0
  %v7651 = vmax.f32 %v7523, 0.0
  %v7652 = vmax.f32 %v7524, 0.0
  %v7653 = vmax.f32 %v7525, 0.0
  %v7654 = vmax.f32 %v7526, 0.0
  %v7655 = vmax.f32 %v7527, 0.0
  %v7656 = vmax.f32 %v7528, 0.0
  %v7657 = vmax.f32 %v7529, 0.0
  %v7658 = vmax.f32 %v7530, 0.0
  %v7659 = vmax.f32 %v7531, 0.0
  %v7660 = vmax.f32 %v7532, 0.0
  %v7661 = vmax.f32 %v7533, 0.0
  %v7662 = vmax.f32 %v7534, 0.0
  %v7663 = vmax.f32 %v7535, 0.0
  %v7664 = vmax.f32 %v7536, 0.0
  %v7665 = vmax.f32 %v7537, 0.0
  %v7666 = vmax.f32 %v7538, 0.0
  %v7667 = vmax.f32 %v7539, 0.0
  %v7668 = vmax.f32 %v7540, 0.0
  %v7669 = vmax.f32 %v7541, 0.0
  %v7670 = vmax.f32 %v7542, 0.0
  %v7671 = vmax.f32 %v7543, 0.0
  %v7672 = vmax.f32 %v7544, 0.0
  %v7673 = vmax.f32 %v7545, 0.0
  %v7674 = vmax.f32 %v7546, 0.0
  %v7675 = vmax.f32 %v7547, 0.0
  %v7676 = vmax.f32 %v7548, 0.0
  %v7677 = vmax.f32 %v7549, 0.0
  %v7678 = vmax.f32 %v7550, 0.0
  %v7679 = vmax.f32 %v7551, 0.0
  %v7680 = vmax.f32 %v7552, 0.0
  %v7681 = vmax.f32 %v7553, 0.0
  %v7682 = vmax.f32 %v7554, 0.0
  %v7683 = vmax.f32 %v7555, 0.0
  %v7684 = vmax.f32 %v7556, 0.0
  %v7685 = vmax.f32 %v7557, 0.0
  %v7686 = vmax.f32 %v7558, 0.0
  %v7687 = vmax.f32 %v7559, 0.0
  %v7688 = vmax.f32 %v7560, 0.0
  %v7689 = vmax.f32 %v7561, 0.0
  %v7690 = vmax.f32 %v7562, 0.0
  %v7691 = vmax.f32 %v7563, 0.0
  %v7692 = vmax.f32 %v7564, 0.0
  %v7693 = vmax.f32 %v7565, 0.0
  %v7694 = vmax.f32 %v7566, 0.0
  %v7695 = vmax.f32 %v7567, 0.0
  %v7696 = vmax.f32 %v7568, 0.0
  %v7697 = vmax.f32 %v7569, 0.0
  %v7698 = vmax.f32 %v7570, 0.0
  %v7699 = vmax.f32 %v7571, 0.0
  %v7700 = vmax.f32 %v7572, 0.0
  %v7701 = vmax.f32 %v7573, 0.0
  %v7702 = vmax.f32 %v7574, 0.0
  %v7703 = vmax.f32 %v7575, 0.0
  %v7704 = vmax.f32 %v7576, 0.0
  %v7705 = vmax.f32 %v7577, 0.0
  %v7706 = vmax.f32 %v7578, 0.0
  %v7707 = vmax.f32 %v7579, 0.0
  %v7708 = vmax.f32 %v7580, 0.0
  %v7709 = vmax.f32 %v7581, 0.0
  %v7710 = vmax.f32 %v7582, 0.0
  %v7711 = vmax.f32 %v7583, 0.0
  %v7712 = vmax.f32 %v7584, 0.0
  %v7713 = vmax.f32 %v7585, 0.0
  %v7714 = vmax.f32 %v7586, 0.0
  %v7715 = vmax.f32 %v7587, 0.0
  %v7716 = vmax.f32 %v7588, 0.0
  %v7717 = vmax.f32 %v7589, 0.0
  %v7718 = vmax.f32 %v7590, 0.0
  %v7719 = vmax.f32 %v7591, 0.0
  %v7720 = vmax.f32 %v7592, 0.0
  %v7721 = vmax.f32 %v7593, 0.0
  %v7722 = vmax.f32 %v7594, 0.0
  %v7723 = vmax.f32 %v7595, 0.0
  %v7724 = vmax.f32 %v7596, 0.0
  %v7725 = vmax.f32 %v7597, 0.0
  %v7726 = vmax.f32 %v7598, 0.0
  %v7727 = vmax.f32 %v7599, 0.0
  %v7728 = vmax.f32 %v7600, 0.0
  %v7729 = vmax.f32 %v7601, 0.0
  %v7730 = vmax.f32 %v7602, 0.0
  %v7731 = vmax.f32 %v7603, 0.0
  %v7732 = vmax.f32 %v7604, 0.0
  %v7733 = vmax.f32 %v7605, 0.0
  %v7734 = vmax.f32 %v7606, 0.0
  %v7735 = vmax.f32 %v7607, 0.0
  %v7736 = vmax.f32 %v7608, 0.0
  %v7737 = vmax.f32 %v7609, 0.0
  %v7738 = vmax.f32 %v7610, 0.0
  %v7739 = vmax.f32 %v7611, 0.0
  %v7740 = vmax.f32 %v7612, 0.0
  %v7741 = vmax.f32 %v7613, 0.0
  %v7742 = vmax.f32 %v7614, 0.0
  %v7743 = vmax.f32 %v7615, 0.0
  %v7744 = vmax.f32 %v7616, 0.0
  %v7745 = vmax.f32 %v7617, 0.0
  %v7746 = vmax.f32 %v7618, 0.0
  %v7747 = vmax.f32 %v7619, 0.0
  %v7748 = vlaneseq
  %v7749 = vshrl.u32 %v7748, 7
  %v7750 = vsub.s32 1, %v7749
  %v7751 = vrot.slane %v197, %v7750
  %7756 = vrot.lane.b32.xlu0 %v191, 96
  %v7757 = vpop.permute.xlu0 %7756
  %7758 = vrot.lane.b32.xlu0 %v192, 96
  %v7759 = vpop.permute.xlu0 %7758
  %7760 = vrot.lane.b32.xlu0 %v193, 96
  %v7761 = vpop.permute.xlu0 %7760
  %7762 = vrot.lane.b32.xlu0 %v194, 96
  %v7763 = vpop.permute.xlu0 %7762
  %v7769 = vsel %vm199, %v7620, 0
  %v7772 = vsel %vm199, %v7621, 0
  %v7775 = vsel %vm199, %v7622, 0
  %v7778 = vsel %vm199, %v7623, 0
  %v7781 = vsel %vm199, %v7624, 0
  %v7784 = vsel %vm199, %v7625, 0
  %v7787 = vsel %vm199, %v7626, 0
  %v7790 = vsel %vm199, %v7627, 0
  %v7793 = vsel %vm199, %v7628, 0
  %v7796 = vsel %vm199, %v7629, 0
  %v7799 = vsel %vm199, %v7630, 0
  %v7802 = vsel %vm199, %v7631, 0
  %v7805 = vsel %vm199, %v7632, 0
  %v7808 = vsel %vm199, %v7633, 0
  %v7811 = vsel %vm199, %v7634, 0
  %v7814 = vsel %vm199, %v7635, 0
  %v7817 = vsel %vm199, %v7636, 0
  %v7820 = vsel %vm199, %v7637, 0
  %v7823 = vsel %vm199, %v7638, 0
  %v7826 = vsel %vm199, %v7639, 0
  %v7829 = vsel %vm199, %v7640, 0
  %v7832 = vsel %vm199, %v7641, 0
  %v7835 = vsel %vm199, %v7642, 0
  %v7838 = vsel %vm199, %v7643, 0
  %v7841 = vsel %vm199, %v7644, 0
  %v7844 = vsel %vm199, %v7645, 0
  %v7847 = vsel %vm199, %v7646, 0
  %v7850 = vsel %vm199, %v7647, 0
  %v7853 = vsel %vm199, %v7648, 0
  %v7856 = vsel %vm199, %v7649, 0
  %v7859 = vsel %vm199, %v7650, 0
  %v7862 = vsel %vm199, %v7651, 0
  %v7865 = vsel %vm199, %v7652, 0
  %v7868 = vsel %vm199, %v7653, 0
  %v7871 = vsel %vm199, %v7654, 0
  %v7874 = vsel %vm199, %v7655, 0
  %v7877 = vsel %vm199, %v7656, 0
  %v7880 = vsel %vm199, %v7657, 0
  %v7883 = vsel %vm199, %v7658, 0
  %v7886 = vsel %vm199, %v7659, 0
  %v7889 = vsel %vm199, %v7660, 0
  %v7892 = vsel %vm199, %v7661, 0
  %v7895 = vsel %vm199, %v7662, 0
  %v7898 = vsel %vm199, %v7663, 0
  %v7901 = vsel %vm199, %v7664, 0
  %v7904 = vsel %vm199, %v7665, 0
  %v7907 = vsel %vm199, %v7666, 0
  %v7910 = vsel %vm199, %v7667, 0
  %v7913 = vsel %vm199, %v7668, 0
  %v7916 = vsel %vm199, %v7669, 0
  %v7919 = vsel %vm199, %v7670, 0
  %v7922 = vsel %vm199, %v7671, 0
  %v7925 = vsel %vm199, %v7672, 0
  %v7928 = vsel %vm199, %v7673, 0
  %v7931 = vsel %vm199, %v7674, 0
  %v7934 = vsel %vm199, %v7675, 0
  %v7937 = vsel %vm199, %v7676, 0
  %v7940 = vsel %vm199, %v7677, 0
  %v7943 = vsel %vm199, %v7678, 0
  %v7946 = vsel %vm199, %v7679, 0
  %v7949 = vsel %vm199, %v7680, 0
  %v7952 = vsel %vm199, %v7681, 0
  %v7955 = vsel %vm199, %v7682, 0
  %v7958 = vsel %vm199, %v7683, 0
  %v7961 = vsel %vm199, %v7684, 0
  %v7964 = vsel %vm199, %v7685, 0
  %v7967 = vsel %vm199, %v7686, 0
  %v7970 = vsel %vm199, %v7687, 0
  %v7973 = vsel %vm199, %v7688, 0
  %v7976 = vsel %vm199, %v7689, 0
  %v7979 = vsel %vm199, %v7690, 0
  %v7982 = vsel %vm199, %v7691, 0
  %v7985 = vsel %vm199, %v7692, 0
  %v7988 = vsel %vm199, %v7693, 0
  %v7991 = vsel %vm199, %v7694, 0
  %v7994 = vsel %vm199, %v7695, 0
  %v7997 = vsel %vm199, %v7696, 0
  %v8000 = vsel %vm199, %v7697, 0
  %v8003 = vsel %vm199, %v7698, 0
  %v8006 = vsel %vm199, %v7699, 0
  %v8009 = vsel %vm199, %v7700, 0
  %v8012 = vsel %vm199, %v7701, 0
  %v8015 = vsel %vm199, %v7702, 0
  %v8018 = vsel %vm199, %v7703, 0
  %v8021 = vsel %vm199, %v7704, 0
  %v8024 = vsel %vm199, %v7705, 0
  %v8027 = vsel %vm199, %v7706, 0
  %v8030 = vsel %vm199, %v7707, 0
  %v8033 = vsel %vm199, %v7708, 0
  %v8036 = vsel %vm199, %v7709, 0
  %v8039 = vsel %vm199, %v7710, 0
  %v8042 = vsel %vm199, %v7711, 0
  %v8045 = vsel %vm199, %v7712, 0
  %v8048 = vsel %vm199, %v7713, 0
  %v8051 = vsel %vm199, %v7714, 0
  %v8054 = vsel %vm199, %v7715, 0
  %v8057 = vsel %vm199, %v7716, 0
  %v8060 = vsel %vm199, %v7717, 0
  %v8063 = vsel %vm199, %v7718, 0
  %v8066 = vsel %vm199, %v7719, 0
  %v8069 = vsel %vm199, %v7720, 0
  %v8072 = vsel %vm199, %v7721, 0
  %v8075 = vsel %vm199, %v7722, 0
  %v8078 = vsel %vm199, %v7723, 0
  %v8081 = vsel %vm199, %v7724, 0
  %v8084 = vsel %vm199, %v7725, 0
  %v8087 = vsel %vm199, %v7726, 0
  %v8090 = vsel %vm199, %v7727, 0
  %v8093 = vsel %vm199, %v7728, 0
  %v8096 = vsel %vm199, %v7729, 0
  %v8099 = vsel %vm199, %v7730, 0
  %v8102 = vsel %vm199, %v7731, 0
  %v8105 = vsel %vm199, %v7732, 0
  %v8108 = vsel %vm199, %v7733, 0
  %v8111 = vsel %vm199, %v7734, 0
  %v8114 = vsel %vm199, %v7735, 0
  %v8117 = vsel %vm199, %v7736, 0
  %v8120 = vsel %vm199, %v7737, 0
  %v8123 = vsel %vm199, %v7738, 0
  %v8126 = vsel %vm199, %v7739, 0
  %v8129 = vsel %vm199, %v7740, 0
  %v8132 = vsel %vm199, %v7741, 0
  %v8135 = vsel %vm199, %v7742, 0
  %v8138 = vsel %vm199, %v7743, 0
  %v8141 = vsel %vm199, %v7744, 0
  %v8144 = vsel %vm199, %v7745, 0
  %v8147 = vsel %vm199, %v7746, 0
  %v8150 = vsel %vm199, %v7747, 0
  %8152 = vmatprep.subr.mxu0 0.0
  %8153 = vmatpush1.msra.mxu0 %v7757
  %8154 = vmatprep.subr.mxu0 0.0
  %8155 = vmatpush1.msra.mxu0 %v7759
  %8156 = vmatprep.subr.mxu0 0.0
  %8157 = vmatpush1.msra.mxu0 %v7761
  %8158 = vmatprep.subr.mxu0 0.0
  %8159 = vmatpush1.msra.mxu0 %v7763
  %8160 = vmatprep.subr.mxu0 0.0
  %8161 = vmatpush1.msra.mxu0 0.0
  %8162 = vmatprep.subr.mxu0 0.0
  %8163 = vmatpush1.msra.mxu0 0.0
  %8164 = vmatprep.subr.mxu0 0.0
  %8165 = vmatpush1.msra.mxu0 0.0
  %8166 = vmatprep.subr.mxu0 0.0
  %8167 = vmatpush1.msra.mxu0 0.0
  %8168 = vmatprep.subr.mxu0 0.0
  %8169 = vmatpush1.msra.mxu0 0.0
  %8170 = vmatprep.subr.mxu0 0.0
  %8171 = vmatpush1.msra.mxu0 0.0
  %8172 = vmatprep.subr.mxu0 0.0
  %8173 = vmatpush1.msra.mxu0 0.0
  %8174 = vmatprep.subr.mxu0 0.0
  %8175 = vmatpush1.msra.mxu0 0.0
  %8176 = vmatprep.subr.mxu0 0.0
  %8177 = vmatpush1.msra.mxu0 0.0
  %8178 = vmatprep.subr.mxu0 0.0
  %8179 = vmatpush1.msra.mxu0 0.0
  %8180 = vmatprep.subr.mxu0 0.0
  %8181 = vmatpush1.msra.mxu0 0.0
  %8182 = vmatprep.subr.mxu0 0.0
  %8183 = vmatpush1.msra.mxu0 0.0
  %8184 = vmatprep.subr.mxu0 0.0
  %8185 = vmatpush1.msra.mxu0 0.0
  %8186 = vmatprep.subr.mxu0 0.0
  %8187 = vmatpush1.msra.mxu0 0.0
  %8188 = vmatprep.subr.mxu0 0.0
  %8189 = vmatpush1.msra.mxu0 0.0
  %8190 = vmatprep.subr.mxu0 0.0
  %8191 = vmatpush1.msra.mxu0 0.0
  %8192 = vmatprep.subr.mxu0 0.0
  %8193 = vmatpush1.msra.mxu0 0.0
  %8194 = vmatprep.subr.mxu0 0.0
  %8195 = vmatpush1.msra.mxu0 0.0
  %8196 = vmatprep.subr.mxu0 0.0
  %8197 = vmatpush1.msra.mxu0 0.0
  %8198 = vmatprep.subr.mxu0 0.0
  %8199 = vmatpush1.msra.mxu0 0.0
  %8200 = vmatprep.subr.mxu0 0.0
  %8201 = vmatpush1.msra.mxu0 0.0
  %8202 = vmatprep.subr.mxu0 0.0
  %8203 = vmatpush1.msra.mxu0 0.0
  %8204 = vmatprep.subr.mxu0 0.0
  %8205 = vmatpush1.msra.mxu0 0.0
  %8206 = vmatprep.subr.mxu0 0.0
  %8207 = vmatpush1.msra.mxu0 0.0
  %8208 = vmatprep.subr.mxu0 0.0
  %8209 = vmatpush1.msra.mxu0 0.0
  %8210 = vmatprep.subr.mxu0 0.0
  %8211 = vmatpush1.msra.mxu0 0.0
  %8212 = vmatprep.subr.mxu0 0.0
  %8213 = vmatpush1.msra.mxu0 0.0
  %8214 = vmatprep.subr.mxu0 0.0
  %8215 = vmatpush1.msra.mxu0 0.0
  %8216 = vmatprep.mubr.f32.mxu0 0.0
  %8217 = vmatmul.mubr.f32.gmra.mrb[0].mxu0 %v7769
  %v8218 = vpop.f32.mrb[0].mxu0
  %v8219 = vadd.f32 %v7751, %v8218
  %v8220 = vpop.f32.mrb[0].mxu0
  %8221 = vmatprep.mubr.f32.mxu0 0.0
  %8222 = vmatmul.mubr.f32.gmra.mrb[0].mxu0 %v7772
  %v8223 = vpop.f32.mrb[0].mxu0
  %v8224 = vadd.f32 %v7751, %v8223
  %v8225 = vpop.f32.mrb[0].mxu0
  %8226 = vmatprep.mubr.f32.mxu0 0.0
  %8227 = vmatmul.mubr.f32.gmra.mrb[0].mxu0 %v7775
  %v8228 = vpop.f32.mrb[0].mxu0
  %v8229 = vadd.f32 %v7751, %v8228
  %v8230 = vpop.f32.mrb[0].mxu0
  %8231 = vmatprep.mubr.f32.mxu0 0.0
  %8232 = vmatmul.mubr.f32.gmra.mrb[0].mxu0 %v7778
  %v8233 = vpop.f32.mrb[0].mxu0
  %v8234 = vadd.f32 %v7751, %v8233
  %v8235 = vpop.f32.mrb[0].mxu0
  %8236 = vmatprep.mubr.f32.mxu0 0.0
  %8237 = vmatmul.mubr.f32.gmra.mrb[0].mxu0 %v7781
  %v8238 = vpop.f32.mrb[0].mxu0
  %v8239 = vadd.f32 %v7751, %v8238
  %v8240 = vpop.f32.mrb[0].mxu0
  %8241 = vmatprep.mubr.f32.mxu0 0.0
  %8242 = vmatmul.mubr.f32.gmra.mrb[0].mxu0 %v7784
  %v8243 = vpop.f32.mrb[0].mxu0
  %v8244 = vadd.f32 %v7751, %v8243
  %v8245 = vpop.f32.mrb[0].mxu0
  %8246 = vmatprep.mubr.f32.mxu0 0.0
  %8247 = vmatmul.mubr.f32.gmra.mrb[0].mxu0 %v7787
  %v8248 = vpop.f32.mrb[0].mxu0
  %v8249 = vadd.f32 %v7751, %v8248
  %v8250 = vpop.f32.mrb[0].mxu0
  %8251 = vmatprep.mubr.f32.mxu0 0.0
  %8252 = vmatmul.mubr.f32.gmra.mrb[0].mxu0 %v7790
  %v8253 = vpop.f32.mrb[0].mxu0
  %v8254 = vadd.f32 %v7751, %v8253
  %v8255 = vpop.f32.mrb[0].mxu0
  %8256 = vmatprep.mubr.f32.mxu0 0.0
  %8257 = vmatmul.mubr.f32.gmra.mrb[0].mxu0 %v7793
  %v8258 = vpop.f32.mrb[0].mxu0
  %v8259 = vadd.f32 %v7751, %v8258
  %v8260 = vpop.f32.mrb[0].mxu0
  %8261 = vmatprep.mubr.f32.mxu0 0.0
  %8262 = vmatmul.mubr.f32.gmra.mrb[0].mxu0 %v7796
  %v8263 = vpop.f32.mrb[0].mxu0
  %v8264 = vadd.f32 %v7751, %v8263
  %v8265 = vpop.f32.mrb[0].mxu0
  %8266 = vmatprep.mubr.f32.mxu0 0.0
  %8267 = vmatmul.mubr.f32.gmra.mrb[0].mxu0 %v7799
  %v8268 = vpop.f32.mrb[0].mxu0
  %v8269 = vadd.f32 %v7751, %v8268
  %v8270 = vpop.f32.mrb[0].mxu0
  %8271 = vmatprep.mubr.f32.mxu0 0.0
  %8272 = vmatmul.mubr.f32.gmra.mrb[0].mxu0 %v7802
  %v8273 = vpop.f32.mrb[0].mxu0
  %v8274 = vadd.f32 %v7751, %v8273
  %v8275 = vpop.f32.mrb[0].mxu0
  %8276 = vmatprep.mubr.f32.mxu0 0.0
  %8277 = vmatmul.mubr.f32.gmra.mrb[0].mxu0 %v7805
  %v8278 = vpop.f32.mrb[0].mxu0
  %v8279 = vadd.f32 %v7751, %v8278
  %v8280 = vpop.f32.mrb[0].mxu0
  %8281 = vmatprep.mubr.f32.mxu0 0.0
  %8282 = vmatmul.mubr.f32.gmra.mrb[0].mxu0 %v7808
  %v8283 = vpop.f32.mrb[0].mxu0
  %v8284 = vadd.f32 %v7751, %v8283
  %v8285 = vpop.f32.mrb[0].mxu0
  %8286 = vmatprep.mubr.f32.mxu0 0.0
  %8287 = vmatmul.mubr.f32.gmra.mrb[0].mxu0 %v7811
  %v8288 = vpop.f32.mrb[0].mxu0
  %v8289 = vadd.f32 %v7751, %v8288
  %v8290 = vpop.f32.mrb[0].mxu0
  %8291 = vmatprep.mubr.f32.mxu0 0.0
  %8292 = vmatmul.mubr.f32.gmra.mrb[0].mxu0 %v7814
  %v8293 = vpop.f32.mrb[0].mxu0
  %v8294 = vadd.f32 %v7751, %v8293
  %v8295 = vpop.f32.mrb[0].mxu0
  %8296 = vmatprep.mubr.f32.mxu0 0.0
  %8297 = vmatmul.mubr.f32.gmra.mrb[0].mxu0 %v7817
  %v8298 = vpop.f32.mrb[0].mxu0
  %v8299 = vadd.f32 %v7751, %v8298
  %v8300 = vpop.f32.mrb[0].mxu0
  %8301 = vmatprep.mubr.f32.mxu0 0.0
  %8302 = vmatmul.mubr.f32.gmra.mrb[0].mxu0 %v7820
  %v8303 = vpop.f32.mrb[0].mxu0
  %v8304 = vadd.f32 %v7751, %v8303
  %v8305 = vpop.f32.mrb[0].mxu0
  %8306 = vmatprep.mubr.f32.mxu0 0.0
  %8307 = vmatmul.mubr.f32.gmra.mrb[0].mxu0 %v7823
  %v8308 = vpop.f32.mrb[0].mxu0
  %v8309 = vadd.f32 %v7751, %v8308
  %v8310 = vpop.f32.mrb[0].mxu0
  %8311 = vmatprep.mubr.f32.mxu0 0.0
  %8312 = vmatmul.mubr.f32.gmra.mrb[0].mxu0 %v7826
  %v8313 = vpop.f32.mrb[0].mxu0
  %v8314 = vadd.f32 %v7751, %v8313
  %v8315 = vpop.f32.mrb[0].mxu0
  %8316 = vmatprep.mubr.f32.mxu0 0.0
  %8317 = vmatmul.mubr.f32.gmra.mrb[0].mxu0 %v7829
  %v8318 = vpop.f32.mrb[0].mxu0
  %v8319 = vadd.f32 %v7751, %v8318
  %v8320 = vpop.f32.mrb[0].mxu0
  %8321 = vmatprep.mubr.f32.mxu0 0.0
  %8322 = vmatmul.mubr.f32.gmra.mrb[0].mxu0 %v7832
  %v8323 = vpop.f32.mrb[0].mxu0
  %v8324 = vadd.f32 %v7751, %v8323
  %v8325 = vpop.f32.mrb[0].mxu0
  %8326 = vmatprep.mubr.f32.mxu0 0.0
  %8327 = vmatmul.mubr.f32.gmra.mrb[0].mxu0 %v7835
  %v8328 = vpop.f32.mrb[0].mxu0
  %v8329 = vadd.f32 %v7751, %v8328
  %v8330 = vpop.f32.mrb[0].mxu0
  %8331 = vmatprep.mubr.f32.mxu0 0.0
  %8332 = vmatmul.mubr.f32.gmra.mrb[0].mxu0 %v7838
  %v8333 = vpop.f32.mrb[0].mxu0
  %v8334 = vadd.f32 %v7751, %v8333
  %v8335 = vpop.f32.mrb[0].mxu0
  %8336 = vmatprep.mubr.f32.mxu0 0.0
  %8337 = vmatmul.mubr.f32.gmra.mrb[0].mxu0 %v7841
  %v8338 = vpop.f32.mrb[0].mxu0
  %v8339 = vadd.f32 %v7751, %v8338
  %v8340 = vpop.f32.mrb[0].mxu0
  %8341 = vmatprep.mubr.f32.mxu0 0.0
  %8342 = vmatmul.mubr.f32.gmra.mrb[0].mxu0 %v7844
  %v8343 = vpop.f32.mrb[0].mxu0
  %v8344 = vadd.f32 %v7751, %v8343
  %v8345 = vpop.f32.mrb[0].mxu0
  %8346 = vmatprep.mubr.f32.mxu0 0.0
  %8347 = vmatmul.mubr.f32.gmra.mrb[0].mxu0 %v7847
  %v8348 = vpop.f32.mrb[0].mxu0
  %v8349 = vadd.f32 %v7751, %v8348
  %v8350 = vpop.f32.mrb[0].mxu0
  %8351 = vmatprep.mubr.f32.mxu0 0.0
  %8352 = vmatmul.mubr.f32.gmra.mrb[0].mxu0 %v7850
  %v8353 = vpop.f32.mrb[0].mxu0
  %v8354 = vadd.f32 %v7751, %v8353
  %v8355 = vpop.f32.mrb[0].mxu0
  %8356 = vmatprep.mubr.f32.mxu0 0.0
  %8357 = vmatmul.mubr.f32.gmra.mrb[0].mxu0 %v7853
  %v8358 = vpop.f32.mrb[0].mxu0
  %v8359 = vadd.f32 %v7751, %v8358
  %v8360 = vpop.f32.mrb[0].mxu0
  %8361 = vmatprep.mubr.f32.mxu0 0.0
  %8362 = vmatmul.mubr.f32.gmra.mrb[0].mxu0 %v7856
  %v8363 = vpop.f32.mrb[0].mxu0
  %v8364 = vadd.f32 %v7751, %v8363
  %v8365 = vpop.f32.mrb[0].mxu0
  %8366 = vmatprep.mubr.f32.mxu0 0.0
  %8367 = vmatmul.mubr.f32.gmra.mrb[0].mxu0 %v7859
  %v8368 = vpop.f32.mrb[0].mxu0
  %v8369 = vadd.f32 %v7751, %v8368
  %v8370 = vpop.f32.mrb[0].mxu0
  %8371 = vmatprep.mubr.f32.mxu0 0.0
  %8372 = vmatmul.mubr.f32.gmra.mrb[0].mxu0 %v7862
  %v8373 = vpop.f32.mrb[0].mxu0
  %v8374 = vadd.f32 %v7751, %v8373
  %v8375 = vpop.f32.mrb[0].mxu0
  %8376 = vmatprep.mubr.f32.mxu0 0.0
  %8377 = vmatmul.mubr.f32.gmra.mrb[0].mxu0 %v7865
  %v8378 = vpop.f32.mrb[0].mxu0
  %v8379 = vadd.f32 %v7751, %v8378
  %v8380 = vpop.f32.mrb[0].mxu0
  %8381 = vmatprep.mubr.f32.mxu0 0.0
  %8382 = vmatmul.mubr.f32.gmra.mrb[0].mxu0 %v7868
  %v8383 = vpop.f32.mrb[0].mxu0
  %v8384 = vadd.f32 %v7751, %v8383
  %v8385 = vpop.f32.mrb[0].mxu0
  %8386 = vmatprep.mubr.f32.mxu0 0.0
  %8387 = vmatmul.mubr.f32.gmra.mrb[0].mxu0 %v7871
  %v8388 = vpop.f32.mrb[0].mxu0
  %v8389 = vadd.f32 %v7751, %v8388
  %v8390 = vpop.f32.mrb[0].mxu0
  %8391 = vmatprep.mubr.f32.mxu0 0.0
  %8392 = vmatmul.mubr.f32.gmra.mrb[0].mxu0 %v7874
  %v8393 = vpop.f32.mrb[0].mxu0
  %v8394 = vadd.f32 %v7751, %v8393
  %v8395 = vpop.f32.mrb[0].mxu0
  %8396 = vmatprep.mubr.f32.mxu0 0.0
  %8397 = vmatmul.mubr.f32.gmra.mrb[0].mxu0 %v7877
  %v8398 = vpop.f32.mrb[0].mxu0
  %v8399 = vadd.f32 %v7751, %v8398
  %v8400 = vpop.f32.mrb[0].mxu0
  %8401 = vmatprep.mubr.f32.mxu0 0.0
  %8402 = vmatmul.mubr.f32.gmra.mrb[0].mxu0 %v7880
  %v8403 = vpop.f32.mrb[0].mxu0
  %v8404 = vadd.f32 %v7751, %v8403
  %v8405 = vpop.f32.mrb[0].mxu0
  %8406 = vmatprep.mubr.f32.mxu0 0.0
  %8407 = vmatmul.mubr.f32.gmra.mrb[0].mxu0 %v7883
  %v8408 = vpop.f32.mrb[0].mxu0
  %v8409 = vadd.f32 %v7751, %v8408
  %v8410 = vpop.f32.mrb[0].mxu0
  %8411 = vmatprep.mubr.f32.mxu0 0.0
  %8412 = vmatmul.mubr.f32.gmra.mrb[0].mxu0 %v7886
  %v8413 = vpop.f32.mrb[0].mxu0
  %v8414 = vadd.f32 %v7751, %v8413
  %v8415 = vpop.f32.mrb[0].mxu0
  %8416 = vmatprep.mubr.f32.mxu0 0.0
  %8417 = vmatmul.mubr.f32.gmra.mrb[0].mxu0 %v7889
  %v8418 = vpop.f32.mrb[0].mxu0
  %v8419 = vadd.f32 %v7751, %v8418
  %v8420 = vpop.f32.mrb[0].mxu0
  %8421 = vmatprep.mubr.f32.mxu0 0.0
  %8422 = vmatmul.mubr.f32.gmra.mrb[0].mxu0 %v7892
  %v8423 = vpop.f32.mrb[0].mxu0
  %v8424 = vadd.f32 %v7751, %v8423
  %v8425 = vpop.f32.mrb[0].mxu0
  %8426 = vmatprep.mubr.f32.mxu0 0.0
  %8427 = vmatmul.mubr.f32.gmra.mrb[0].mxu0 %v7895
  %v8428 = vpop.f32.mrb[0].mxu0
  %v8429 = vadd.f32 %v7751, %v8428
  %v8430 = vpop.f32.mrb[0].mxu0
  %8431 = vmatprep.mubr.f32.mxu0 0.0
  %8432 = vmatmul.mubr.f32.gmra.mrb[0].mxu0 %v7898
  %v8433 = vpop.f32.mrb[0].mxu0
  %v8434 = vadd.f32 %v7751, %v8433
  %v8435 = vpop.f32.mrb[0].mxu0
  %8436 = vmatprep.mubr.f32.mxu0 0.0
  %8437 = vmatmul.mubr.f32.gmra.mrb[0].mxu0 %v7901
  %v8438 = vpop.f32.mrb[0].mxu0
  %v8439 = vadd.f32 %v7751, %v8438
  %v8440 = vpop.f32.mrb[0].mxu0
  %8441 = vmatprep.mubr.f32.mxu0 0.0
  %8442 = vmatmul.mubr.f32.gmra.mrb[0].mxu0 %v7904
  %v8443 = vpop.f32.mrb[0].mxu0
  %v8444 = vadd.f32 %v7751, %v8443
  %v8445 = vpop.f32.mrb[0].mxu0
  %8446 = vmatprep.mubr.f32.mxu0 0.0
  %8447 = vmatmul.mubr.f32.gmra.mrb[0].mxu0 %v7907
  %v8448 = vpop.f32.mrb[0].mxu0
  %v8449 = vadd.f32 %v7751, %v8448
  %v8450 = vpop.f32.mrb[0].mxu0
  %8451 = vmatprep.mubr.f32.mxu0 0.0
  %8452 = vmatmul.mubr.f32.gmra.mrb[0].mxu0 %v7910
  %v8453 = vpop.f32.mrb[0].mxu0
  %v8454 = vadd.f32 %v7751, %v8453
  %v8455 = vpop.f32.mrb[0].mxu0
  %8456 = vmatprep.mubr.f32.mxu0 0.0
  %8457 = vmatmul.mubr.f32.gmra.mrb[0].mxu0 %v7913
  %v8458 = vpop.f32.mrb[0].mxu0
  %v8459 = vadd.f32 %v7751, %v8458
  %v8460 = vpop.f32.mrb[0].mxu0
  %8461 = vmatprep.mubr.f32.mxu0 0.0
  %8462 = vmatmul.mubr.f32.gmra.mrb[0].mxu0 %v7916
  %v8463 = vpop.f32.mrb[0].mxu0
  %v8464 = vadd.f32 %v7751, %v8463
  %v8465 = vpop.f32.mrb[0].mxu0
  %8466 = vmatprep.mubr.f32.mxu0 0.0
  %8467 = vmatmul.mubr.f32.gmra.mrb[0].mxu0 %v7919
  %v8468 = vpop.f32.mrb[0].mxu0
  %v8469 = vadd.f32 %v7751, %v8468
  %v8470 = vpop.f32.mrb[0].mxu0
  %8471 = vmatprep.mubr.f32.mxu0 0.0
  %8472 = vmatmul.mubr.f32.gmra.mrb[0].mxu0 %v7922
  %v8473 = vpop.f32.mrb[0].mxu0
  %v8474 = vadd.f32 %v7751, %v8473
  %v8475 = vpop.f32.mrb[0].mxu0
  %8476 = vmatprep.mubr.f32.mxu0 0.0
  %8477 = vmatmul.mubr.f32.gmra.mrb[0].mxu0 %v7925
  %v8478 = vpop.f32.mrb[0].mxu0
  %v8479 = vadd.f32 %v7751, %v8478
  %v8480 = vpop.f32.mrb[0].mxu0
  %8481 = vmatprep.mubr.f32.mxu0 0.0
  %8482 = vmatmul.mubr.f32.gmra.mrb[0].mxu0 %v7928
  %v8483 = vpop.f32.mrb[0].mxu0
  %v8484 = vadd.f32 %v7751, %v8483
  %v8485 = vpop.f32.mrb[0].mxu0
  %8486 = vmatprep.mubr.f32.mxu0 0.0
  %8487 = vmatmul.mubr.f32.gmra.mrb[0].mxu0 %v7931
  %v8488 = vpop.f32.mrb[0].mxu0
  %v8489 = vadd.f32 %v7751, %v8488
  %v8490 = vpop.f32.mrb[0].mxu0
  %8491 = vmatprep.mubr.f32.mxu0 0.0
  %8492 = vmatmul.mubr.f32.gmra.mrb[0].mxu0 %v7934
  %v8493 = vpop.f32.mrb[0].mxu0
  %v8494 = vadd.f32 %v7751, %v8493
  %v8495 = vpop.f32.mrb[0].mxu0
  %8496 = vmatprep.mubr.f32.mxu0 0.0
  %8497 = vmatmul.mubr.f32.gmra.mrb[0].mxu0 %v7937
  %v8498 = vpop.f32.mrb[0].mxu0
  %v8499 = vadd.f32 %v7751, %v8498
  %v8500 = vpop.f32.mrb[0].mxu0
  %8501 = vmatprep.mubr.f32.mxu0 0.0
  %8502 = vmatmul.mubr.f32.gmra.mrb[0].mxu0 %v7940
  %v8503 = vpop.f32.mrb[0].mxu0
  %v8504 = vadd.f32 %v7751, %v8503
  %v8505 = vpop.f32.mrb[0].mxu0
  %8506 = vmatprep.mubr.f32.mxu0 0.0
  %8507 = vmatmul.mubr.f32.gmra.mrb[0].mxu0 %v7943
  %v8508 = vpop.f32.mrb[0].mxu0
  %v8509 = vadd.f32 %v7751, %v8508
  %v8510 = vpop.f32.mrb[0].mxu0
  %8511 = vmatprep.mubr.f32.mxu0 0.0
  %8512 = vmatmul.mubr.f32.gmra.mrb[0].mxu0 %v7946
  %v8513 = vpop.f32.mrb[0].mxu0
  %v8514 = vadd.f32 %v7751, %v8513
  %v8515 = vpop.f32.mrb[0].mxu0
  %8516 = vmatprep.mubr.f32.mxu0 0.0
  %8517 = vmatmul.mubr.f32.gmra.mrb[0].mxu0 %v7949
  %v8518 = vpop.f32.mrb[0].mxu0
  %v8519 = vadd.f32 %v7751, %v8518
  %v8520 = vpop.f32.mrb[0].mxu0
  %8521 = vmatprep.mubr.f32.mxu0 0.0
  %8522 = vmatmul.mubr.f32.gmra.mrb[0].mxu0 %v7952
  %v8523 = vpop.f32.mrb[0].mxu0
  %v8524 = vadd.f32 %v7751, %v8523
  %v8525 = vpop.f32.mrb[0].mxu0
  %8526 = vmatprep.mubr.f32.mxu0 0.0
  %8527 = vmatmul.mubr.f32.gmra.mrb[0].mxu0 %v7955
  %v8528 = vpop.f32.mrb[0].mxu0
  %v8529 = vadd.f32 %v7751, %v8528
  %v8530 = vpop.f32.mrb[0].mxu0
  %8531 = vmatprep.mubr.f32.mxu0 0.0
  %8532 = vmatmul.mubr.f32.gmra.mrb[0].mxu0 %v7958
  %v8533 = vpop.f32.mrb[0].mxu0
  %v8534 = vadd.f32 %v7751, %v8533
  %v8535 = vpop.f32.mrb[0].mxu0
  %8536 = vmatprep.mubr.f32.mxu0 0.0
  %8537 = vmatmul.mubr.f32.gmra.mrb[0].mxu0 %v7961
  %v8538 = vpop.f32.mrb[0].mxu0
  %v8539 = vadd.f32 %v7751, %v8538
  %v8540 = vpop.f32.mrb[0].mxu0
  %8541 = vmatprep.mubr.f32.mxu0 0.0
  %8542 = vmatmul.mubr.f32.gmra.mrb[0].mxu0 %v7964
  %v8543 = vpop.f32.mrb[0].mxu0
  %v8544 = vadd.f32 %v7751, %v8543
  %v8545 = vpop.f32.mrb[0].mxu0
  %8546 = vmatprep.mubr.f32.mxu0 0.0
  %8547 = vmatmul.mubr.f32.gmra.mrb[0].mxu0 %v7967
  %v8548 = vpop.f32.mrb[0].mxu0
  %v8549 = vadd.f32 %v7751, %v8548
  %v8550 = vpop.f32.mrb[0].mxu0
  %8551 = vmatprep.mubr.f32.mxu0 0.0
  %8552 = vmatmul.mubr.f32.gmra.mrb[0].mxu0 %v7970
  %v8553 = vpop.f32.mrb[0].mxu0
  %v8554 = vadd.f32 %v7751, %v8553
  %v8555 = vpop.f32.mrb[0].mxu0
  %8556 = vmatprep.mubr.f32.mxu0 0.0
  %8557 = vmatmul.mubr.f32.gmra.mrb[0].mxu0 %v7973
  %v8558 = vpop.f32.mrb[0].mxu0
  %v8559 = vadd.f32 %v7751, %v8558
  %v8560 = vpop.f32.mrb[0].mxu0
  %8561 = vmatprep.mubr.f32.mxu0 0.0
  %8562 = vmatmul.mubr.f32.gmra.mrb[0].mxu0 %v7976
  %v8563 = vpop.f32.mrb[0].mxu0
  %v8564 = vadd.f32 %v7751, %v8563
  %v8565 = vpop.f32.mrb[0].mxu0
  %8566 = vmatprep.mubr.f32.mxu0 0.0
  %8567 = vmatmul.mubr.f32.gmra.mrb[0].mxu0 %v7979
  %v8568 = vpop.f32.mrb[0].mxu0
  %v8569 = vadd.f32 %v7751, %v8568
  %v8570 = vpop.f32.mrb[0].mxu0
  %8571 = vmatprep.mubr.f32.mxu0 0.0
  %8572 = vmatmul.mubr.f32.gmra.mrb[0].mxu0 %v7982
  %v8573 = vpop.f32.mrb[0].mxu0
  %v8574 = vadd.f32 %v7751, %v8573
  %v8575 = vpop.f32.mrb[0].mxu0
  %8576 = vmatprep.mubr.f32.mxu0 0.0
  %8577 = vmatmul.mubr.f32.gmra.mrb[0].mxu0 %v7985
  %v8578 = vpop.f32.mrb[0].mxu0
  %v8579 = vadd.f32 %v7751, %v8578
  %v8580 = vpop.f32.mrb[0].mxu0
  %8581 = vmatprep.mubr.f32.mxu0 0.0
  %8582 = vmatmul.mubr.f32.gmra.mrb[0].mxu0 %v7988
  %v8583 = vpop.f32.mrb[0].mxu0
  %v8584 = vadd.f32 %v7751, %v8583
  %v8585 = vpop.f32.mrb[0].mxu0
  %8586 = vmatprep.mubr.f32.mxu0 0.0
  %8587 = vmatmul.mubr.f32.gmra.mrb[0].mxu0 %v7991
  %v8588 = vpop.f32.mrb[0].mxu0
  %v8589 = vadd.f32 %v7751, %v8588
  %v8590 = vpop.f32.mrb[0].mxu0
  %8591 = vmatprep.mubr.f32.mxu0 0.0
  %8592 = vmatmul.mubr.f32.gmra.mrb[0].mxu0 %v7994
  %v8593 = vpop.f32.mrb[0].mxu0
  %v8594 = vadd.f32 %v7751, %v8593
  %v8595 = vpop.f32.mrb[0].mxu0
  %8596 = vmatprep.mubr.f32.mxu0 0.0
  %8597 = vmatmul.mubr.f32.gmra.mrb[0].mxu0 %v7997
  %v8598 = vpop.f32.mrb[0].mxu0
  %v8599 = vadd.f32 %v7751, %v8598
  %v8600 = vpop.f32.mrb[0].mxu0
  %8601 = vmatprep.mubr.f32.mxu0 0.0
  %8602 = vmatmul.mubr.f32.gmra.mrb[0].mxu0 %v8000
  %v8603 = vpop.f32.mrb[0].mxu0
  %v8604 = vadd.f32 %v7751, %v8603
  %v8605 = vpop.f32.mrb[0].mxu0
  %8606 = vmatprep.mubr.f32.mxu0 0.0
  %8607 = vmatmul.mubr.f32.gmra.mrb[0].mxu0 %v8003
  %v8608 = vpop.f32.mrb[0].mxu0
  %v8609 = vadd.f32 %v7751, %v8608
  %v8610 = vpop.f32.mrb[0].mxu0
  %8611 = vmatprep.mubr.f32.mxu0 0.0
  %8612 = vmatmul.mubr.f32.gmra.mrb[0].mxu0 %v8006
  %v8613 = vpop.f32.mrb[0].mxu0
  %v8614 = vadd.f32 %v7751, %v8613
  %v8615 = vpop.f32.mrb[0].mxu0
  %8616 = vmatprep.mubr.f32.mxu0 0.0
  %8617 = vmatmul.mubr.f32.gmra.mrb[0].mxu0 %v8009
  %v8618 = vpop.f32.mrb[0].mxu0
  %v8619 = vadd.f32 %v7751, %v8618
  %v8620 = vpop.f32.mrb[0].mxu0
  %8621 = vmatprep.mubr.f32.mxu0 0.0
  %8622 = vmatmul.mubr.f32.gmra.mrb[0].mxu0 %v8012
  %v8623 = vpop.f32.mrb[0].mxu0
  %v8624 = vadd.f32 %v7751, %v8623
  %v8625 = vpop.f32.mrb[0].mxu0
  %8626 = vmatprep.mubr.f32.mxu0 0.0
  %8627 = vmatmul.mubr.f32.gmra.mrb[0].mxu0 %v8015
  %v8628 = vpop.f32.mrb[0].mxu0
  %v8629 = vadd.f32 %v7751, %v8628
  %v8630 = vpop.f32.mrb[0].mxu0
  %8631 = vmatprep.mubr.f32.mxu0 0.0
  %8632 = vmatmul.mubr.f32.gmra.mrb[0].mxu0 %v8018
  %v8633 = vpop.f32.mrb[0].mxu0
  %v8634 = vadd.f32 %v7751, %v8633
  %v8635 = vpop.f32.mrb[0].mxu0
  %8636 = vmatprep.mubr.f32.mxu0 0.0
  %8637 = vmatmul.mubr.f32.gmra.mrb[0].mxu0 %v8021
  %v8638 = vpop.f32.mrb[0].mxu0
  %v8639 = vadd.f32 %v7751, %v8638
  %v8640 = vpop.f32.mrb[0].mxu0
  %8641 = vmatprep.mubr.f32.mxu0 0.0
  %8642 = vmatmul.mubr.f32.gmra.mrb[0].mxu0 %v8024
  %v8643 = vpop.f32.mrb[0].mxu0
  %v8644 = vadd.f32 %v7751, %v8643
  %v8645 = vpop.f32.mrb[0].mxu0
  %8646 = vmatprep.mubr.f32.mxu0 0.0
  %8647 = vmatmul.mubr.f32.gmra.mrb[0].mxu0 %v8027
  %v8648 = vpop.f32.mrb[0].mxu0
  %v8649 = vadd.f32 %v7751, %v8648
  %v8650 = vpop.f32.mrb[0].mxu0
  %8651 = vmatprep.mubr.f32.mxu0 0.0
  %8652 = vmatmul.mubr.f32.gmra.mrb[0].mxu0 %v8030
  %v8653 = vpop.f32.mrb[0].mxu0
  %v8654 = vadd.f32 %v7751, %v8653
  %v8655 = vpop.f32.mrb[0].mxu0
  %8656 = vmatprep.mubr.f32.mxu0 0.0
  %8657 = vmatmul.mubr.f32.gmra.mrb[0].mxu0 %v8033
  %v8658 = vpop.f32.mrb[0].mxu0
  %v8659 = vadd.f32 %v7751, %v8658
  %v8660 = vpop.f32.mrb[0].mxu0
  %8661 = vmatprep.mubr.f32.mxu0 0.0
  %8662 = vmatmul.mubr.f32.gmra.mrb[0].mxu0 %v8036
  %v8663 = vpop.f32.mrb[0].mxu0
  %v8664 = vadd.f32 %v7751, %v8663
  %v8665 = vpop.f32.mrb[0].mxu0
  %8666 = vmatprep.mubr.f32.mxu0 0.0
  %8667 = vmatmul.mubr.f32.gmra.mrb[0].mxu0 %v8039
  %v8668 = vpop.f32.mrb[0].mxu0
  %v8669 = vadd.f32 %v7751, %v8668
  %v8670 = vpop.f32.mrb[0].mxu0
  %8671 = vmatprep.mubr.f32.mxu0 0.0
  %8672 = vmatmul.mubr.f32.gmra.mrb[0].mxu0 %v8042
  %v8673 = vpop.f32.mrb[0].mxu0
  %v8674 = vadd.f32 %v7751, %v8673
  %v8675 = vpop.f32.mrb[0].mxu0
  %8676 = vmatprep.mubr.f32.mxu0 0.0
  %8677 = vmatmul.mubr.f32.gmra.mrb[0].mxu0 %v8045
  %v8678 = vpop.f32.mrb[0].mxu0
  %v8679 = vadd.f32 %v7751, %v8678
  %v8680 = vpop.f32.mrb[0].mxu0
  %8681 = vmatprep.mubr.f32.mxu0 0.0
  %8682 = vmatmul.mubr.f32.gmra.mrb[0].mxu0 %v8048
  %v8683 = vpop.f32.mrb[0].mxu0
  %v8684 = vadd.f32 %v7751, %v8683
  %v8685 = vpop.f32.mrb[0].mxu0
  %8686 = vmatprep.mubr.f32.mxu0 0.0
  %8687 = vmatmul.mubr.f32.gmra.mrb[0].mxu0 %v8051
  %v8688 = vpop.f32.mrb[0].mxu0
  %v8689 = vadd.f32 %v7751, %v8688
  %v8690 = vpop.f32.mrb[0].mxu0
  %8691 = vmatprep.mubr.f32.mxu0 0.0
  %8692 = vmatmul.mubr.f32.gmra.mrb[0].mxu0 %v8054
  %v8693 = vpop.f32.mrb[0].mxu0
  %v8694 = vadd.f32 %v7751, %v8693
  %v8695 = vpop.f32.mrb[0].mxu0
  %8696 = vmatprep.mubr.f32.mxu0 0.0
  %8697 = vmatmul.mubr.f32.gmra.mrb[0].mxu0 %v8057
  %v8698 = vpop.f32.mrb[0].mxu0
  %v8699 = vadd.f32 %v7751, %v8698
  %v8700 = vpop.f32.mrb[0].mxu0
  %8701 = vmatprep.mubr.f32.mxu0 0.0
  %8702 = vmatmul.mubr.f32.gmra.mrb[0].mxu0 %v8060
  %v8703 = vpop.f32.mrb[0].mxu0
  %v8704 = vadd.f32 %v7751, %v8703
  %v8705 = vpop.f32.mrb[0].mxu0
  %8706 = vmatprep.mubr.f32.mxu0 0.0
  %8707 = vmatmul.mubr.f32.gmra.mrb[0].mxu0 %v8063
  %v8708 = vpop.f32.mrb[0].mxu0
  %v8709 = vadd.f32 %v7751, %v8708
  %v8710 = vpop.f32.mrb[0].mxu0
  %8711 = vmatprep.mubr.f32.mxu0 0.0
  %8712 = vmatmul.mubr.f32.gmra.mrb[0].mxu0 %v8066
  %v8713 = vpop.f32.mrb[0].mxu0
  %v8714 = vadd.f32 %v7751, %v8713
  %v8715 = vpop.f32.mrb[0].mxu0
  %8716 = vmatprep.mubr.f32.mxu0 0.0
  %8717 = vmatmul.mubr.f32.gmra.mrb[0].mxu0 %v8069
  %v8718 = vpop.f32.mrb[0].mxu0
  %v8719 = vadd.f32 %v7751, %v8718
  %v8720 = vpop.f32.mrb[0].mxu0
  %8721 = vmatprep.mubr.f32.mxu0 0.0
  %8722 = vmatmul.mubr.f32.gmra.mrb[0].mxu0 %v8072
  %v8723 = vpop.f32.mrb[0].mxu0
  %v8724 = vadd.f32 %v7751, %v8723
  %v8725 = vpop.f32.mrb[0].mxu0
  %8726 = vmatprep.mubr.f32.mxu0 0.0
  %8727 = vmatmul.mubr.f32.gmra.mrb[0].mxu0 %v8075
  %v8728 = vpop.f32.mrb[0].mxu0
  %v8729 = vadd.f32 %v7751, %v8728
  %v8730 = vpop.f32.mrb[0].mxu0
  %8731 = vmatprep.mubr.f32.mxu0 0.0
  %8732 = vmatmul.mubr.f32.gmra.mrb[0].mxu0 %v8078
  %v8733 = vpop.f32.mrb[0].mxu0
  %v8734 = vadd.f32 %v7751, %v8733
  %v8735 = vpop.f32.mrb[0].mxu0
  %8736 = vmatprep.mubr.f32.mxu0 0.0
  %8737 = vmatmul.mubr.f32.gmra.mrb[0].mxu0 %v8081
  %v8738 = vpop.f32.mrb[0].mxu0
  %v8739 = vadd.f32 %v7751, %v8738
  %v8740 = vpop.f32.mrb[0].mxu0
  %8741 = vmatprep.mubr.f32.mxu0 0.0
  %8742 = vmatmul.mubr.f32.gmra.mrb[0].mxu0 %v8084
  %v8743 = vpop.f32.mrb[0].mxu0
  %v8744 = vadd.f32 %v7751, %v8743
  %v8745 = vpop.f32.mrb[0].mxu0
  %8746 = vmatprep.mubr.f32.mxu0 0.0
  %8747 = vmatmul.mubr.f32.gmra.mrb[0].mxu0 %v8087
  %v8748 = vpop.f32.mrb[0].mxu0
  %v8749 = vadd.f32 %v7751, %v8748
  %v8750 = vpop.f32.mrb[0].mxu0
  %8751 = vmatprep.mubr.f32.mxu0 0.0
  %8752 = vmatmul.mubr.f32.gmra.mrb[0].mxu0 %v8090
  %v8753 = vpop.f32.mrb[0].mxu0
  %v8754 = vadd.f32 %v7751, %v8753
  %v8755 = vpop.f32.mrb[0].mxu0
  %8756 = vmatprep.mubr.f32.mxu0 0.0
  %8757 = vmatmul.mubr.f32.gmra.mrb[0].mxu0 %v8093
  %v8758 = vpop.f32.mrb[0].mxu0
  %v8759 = vadd.f32 %v7751, %v8758
  %v8760 = vpop.f32.mrb[0].mxu0
  %8761 = vmatprep.mubr.f32.mxu0 0.0
  %8762 = vmatmul.mubr.f32.gmra.mrb[0].mxu0 %v8096
  %v8763 = vpop.f32.mrb[0].mxu0
  %v8764 = vadd.f32 %v7751, %v8763
  %v8765 = vpop.f32.mrb[0].mxu0
  %8766 = vmatprep.mubr.f32.mxu0 0.0
  %8767 = vmatmul.mubr.f32.gmra.mrb[0].mxu0 %v8099
  %v8768 = vpop.f32.mrb[0].mxu0
  %v8769 = vadd.f32 %v7751, %v8768
  %v8770 = vpop.f32.mrb[0].mxu0
  %8771 = vmatprep.mubr.f32.mxu0 0.0
  %8772 = vmatmul.mubr.f32.gmra.mrb[0].mxu0 %v8102
  %v8773 = vpop.f32.mrb[0].mxu0
  %v8774 = vadd.f32 %v7751, %v8773
  %v8775 = vpop.f32.mrb[0].mxu0
  %8776 = vmatprep.mubr.f32.mxu0 0.0
  %8777 = vmatmul.mubr.f32.gmra.mrb[0].mxu0 %v8105
  %v8778 = vpop.f32.mrb[0].mxu0
  %v8779 = vadd.f32 %v7751, %v8778
  %v8780 = vpop.f32.mrb[0].mxu0
  %8781 = vmatprep.mubr.f32.mxu0 0.0
  %8782 = vmatmul.mubr.f32.gmra.mrb[0].mxu0 %v8108
  %v8783 = vpop.f32.mrb[0].mxu0
  %v8784 = vadd.f32 %v7751, %v8783
  %v8785 = vpop.f32.mrb[0].mxu0
  %8786 = vmatprep.mubr.f32.mxu0 0.0
  %8787 = vmatmul.mubr.f32.gmra.mrb[0].mxu0 %v8111
  %v8788 = vpop.f32.mrb[0].mxu0
  %v8789 = vadd.f32 %v7751, %v8788
  %v8790 = vpop.f32.mrb[0].mxu0
  %8791 = vmatprep.mubr.f32.mxu0 0.0
  %8792 = vmatmul.mubr.f32.gmra.mrb[0].mxu0 %v8114
  %v8793 = vpop.f32.mrb[0].mxu0
  %v8794 = vadd.f32 %v7751, %v8793
  %v8795 = vpop.f32.mrb[0].mxu0
  %8796 = vmatprep.mubr.f32.mxu0 0.0
  %8797 = vmatmul.mubr.f32.gmra.mrb[0].mxu0 %v8117
  %v8798 = vpop.f32.mrb[0].mxu0
  %v8799 = vadd.f32 %v7751, %v8798
  %v8800 = vpop.f32.mrb[0].mxu0
  %8801 = vmatprep.mubr.f32.mxu0 0.0
  %8802 = vmatmul.mubr.f32.gmra.mrb[0].mxu0 %v8120
  %v8803 = vpop.f32.mrb[0].mxu0
  %v8804 = vadd.f32 %v7751, %v8803
  %v8805 = vpop.f32.mrb[0].mxu0
  %8806 = vmatprep.mubr.f32.mxu0 0.0
  %8807 = vmatmul.mubr.f32.gmra.mrb[0].mxu0 %v8123
  %v8808 = vpop.f32.mrb[0].mxu0
  %v8809 = vadd.f32 %v7751, %v8808
  %v8810 = vpop.f32.mrb[0].mxu0
  %8811 = vmatprep.mubr.f32.mxu0 0.0
  %8812 = vmatmul.mubr.f32.gmra.mrb[0].mxu0 %v8126
  %v8813 = vpop.f32.mrb[0].mxu0
  %v8814 = vadd.f32 %v7751, %v8813
  %v8815 = vpop.f32.mrb[0].mxu0
  %8816 = vmatprep.mubr.f32.mxu0 0.0
  %8817 = vmatmul.mubr.f32.gmra.mrb[0].mxu0 %v8129
  %v8818 = vpop.f32.mrb[0].mxu0
  %v8819 = vadd.f32 %v7751, %v8818
  %v8820 = vpop.f32.mrb[0].mxu0
  %8821 = vmatprep.mubr.f32.mxu0 0.0
  %8822 = vmatmul.mubr.f32.gmra.mrb[0].mxu0 %v8132
  %v8823 = vpop.f32.mrb[0].mxu0
  %v8824 = vadd.f32 %v7751, %v8823
  %v8825 = vpop.f32.mrb[0].mxu0
  %8826 = vmatprep.mubr.f32.mxu0 0.0
  %8827 = vmatmul.mubr.f32.gmra.mrb[0].mxu0 %v8135
  %v8828 = vpop.f32.mrb[0].mxu0
  %v8829 = vadd.f32 %v7751, %v8828
  %v8830 = vpop.f32.mrb[0].mxu0
  %8831 = vmatprep.mubr.f32.mxu0 0.0
  %8832 = vmatmul.mubr.f32.gmra.mrb[0].mxu0 %v8138
  %v8833 = vpop.f32.mrb[0].mxu0
  %v8834 = vadd.f32 %v7751, %v8833
  %v8835 = vpop.f32.mrb[0].mxu0
  %8836 = vmatprep.mubr.f32.mxu0 0.0
  %8837 = vmatmul.mubr.f32.gmra.mrb[0].mxu0 %v8141
  %v8838 = vpop.f32.mrb[0].mxu0
  %v8839 = vadd.f32 %v7751, %v8838
  %v8840 = vpop.f32.mrb[0].mxu0
  %8841 = vmatprep.mubr.f32.mxu0 0.0
  %8842 = vmatmul.mubr.f32.gmra.mrb[0].mxu0 %v8144
  %v8843 = vpop.f32.mrb[0].mxu0
  %v8844 = vadd.f32 %v7751, %v8843
  %v8845 = vpop.f32.mrb[0].mxu0
  %8846 = vmatprep.mubr.f32.mxu0 0.0
  %8847 = vmatmul.mubr.f32.gmra.mrb[0].mxu0 %v8147
  %v8848 = vpop.f32.mrb[0].mxu0
  %v8849 = vadd.f32 %v7751, %v8848
  %v8850 = vpop.f32.mrb[0].mxu0
  %8851 = vmatprep.mubr.f32.mxu0 0.0
  %8852 = vmatmul.mubr.f32.gmra.mrb[0].mxu0 %v8150
  %v8853 = vpop.f32.mrb[0].mxu0
  %v8854 = vadd.f32 %v7751, %v8853
  %v8855 = vpop.f32.mrb[0].mxu0
  %8856 = vdwg.mxu0
  %v8857 = vlaneseq
  %v8858 = vshrl.u32 %v8857, 7
  %v8859 = vsub.s32 2, %v8858
  %v8860 = vrot.slane %v197, %v8859
  %v8861 = vmul.f32 %v8219, %v8860
  %v8862 = vmul.f32 %v8224, %v8860
  %v8863 = vmul.f32 %v8229, %v8860
  %v8864 = vmul.f32 %v8234, %v8860
  %v8865 = vmul.f32 %v8239, %v8860
  %v8866 = vmul.f32 %v8244, %v8860
  %v8867 = vmul.f32 %v8249, %v8860
  %v8868 = vmul.f32 %v8254, %v8860
  %v8869 = vmul.f32 %v8259, %v8860
  %v8870 = vmul.f32 %v8264, %v8860
  %v8871 = vmul.f32 %v8269, %v8860
  %v8872 = vmul.f32 %v8274, %v8860
  %v8873 = vmul.f32 %v8279, %v8860
  %v8874 = vmul.f32 %v8284, %v8860
  %v8875 = vmul.f32 %v8289, %v8860
  %v8876 = vmul.f32 %v8294, %v8860
  %v8877 = vmul.f32 %v8299, %v8860
  %v8878 = vmul.f32 %v8304, %v8860
  %v8879 = vmul.f32 %v8309, %v8860
  %v8880 = vmul.f32 %v8314, %v8860
  %v8881 = vmul.f32 %v8319, %v8860
  %v8882 = vmul.f32 %v8324, %v8860
  %v8883 = vmul.f32 %v8329, %v8860
  %v8884 = vmul.f32 %v8334, %v8860
  %v8885 = vmul.f32 %v8339, %v8860
  %v8886 = vmul.f32 %v8344, %v8860
  %v8887 = vmul.f32 %v8349, %v8860
  %v8888 = vmul.f32 %v8354, %v8860
  %v8889 = vmul.f32 %v8359, %v8860
  %v8890 = vmul.f32 %v8364, %v8860
  %v8891 = vmul.f32 %v8369, %v8860
  %v8892 = vmul.f32 %v8374, %v8860
  %v8893 = vmul.f32 %v8379, %v8860
  %v8894 = vmul.f32 %v8384, %v8860
  %v8895 = vmul.f32 %v8389, %v8860
  %v8896 = vmul.f32 %v8394, %v8860
  %v8897 = vmul.f32 %v8399, %v8860
  %v8898 = vmul.f32 %v8404, %v8860
  %v8899 = vmul.f32 %v8409, %v8860
  %v8900 = vmul.f32 %v8414, %v8860
  %v8901 = vmul.f32 %v8419, %v8860
  %v8902 = vmul.f32 %v8424, %v8860
  %v8903 = vmul.f32 %v8429, %v8860
  %v8904 = vmul.f32 %v8434, %v8860
  %v8905 = vmul.f32 %v8439, %v8860
  %v8906 = vmul.f32 %v8444, %v8860
  %v8907 = vmul.f32 %v8449, %v8860
  %v8908 = vmul.f32 %v8454, %v8860
  %v8909 = vmul.f32 %v8459, %v8860
  %v8910 = vmul.f32 %v8464, %v8860
  %v8911 = vmul.f32 %v8469, %v8860
  %v8912 = vmul.f32 %v8474, %v8860
  %v8913 = vmul.f32 %v8479, %v8860
  %v8914 = vmul.f32 %v8484, %v8860
  %v8915 = vmul.f32 %v8489, %v8860
  %v8916 = vmul.f32 %v8494, %v8860
  %v8917 = vmul.f32 %v8499, %v8860
  %v8918 = vmul.f32 %v8504, %v8860
  %v8919 = vmul.f32 %v8509, %v8860
  %v8920 = vmul.f32 %v8514, %v8860
  %v8921 = vmul.f32 %v8519, %v8860
  %v8922 = vmul.f32 %v8524, %v8860
  %v8923 = vmul.f32 %v8529, %v8860
  %v8924 = vmul.f32 %v8534, %v8860
  %v8925 = vmul.f32 %v8539, %v8860
  %v8926 = vmul.f32 %v8544, %v8860
  %v8927 = vmul.f32 %v8549, %v8860
  %v8928 = vmul.f32 %v8554, %v8860
  %v8929 = vmul.f32 %v8559, %v8860
  %v8930 = vmul.f32 %v8564, %v8860
  %v8931 = vmul.f32 %v8569, %v8860
  %v8932 = vmul.f32 %v8574, %v8860
  %v8933 = vmul.f32 %v8579, %v8860
  %v8934 = vmul.f32 %v8584, %v8860
  %v8935 = vmul.f32 %v8589, %v8860
  %v8936 = vmul.f32 %v8594, %v8860
  %v8937 = vmul.f32 %v8599, %v8860
  %v8938 = vmul.f32 %v8604, %v8860
  %v8939 = vmul.f32 %v8609, %v8860
  %v8940 = vmul.f32 %v8614, %v8860
  %v8941 = vmul.f32 %v8619, %v8860
  %v8942 = vmul.f32 %v8624, %v8860
  %v8943 = vmul.f32 %v8629, %v8860
  %v8944 = vmul.f32 %v8634, %v8860
  %v8945 = vmul.f32 %v8639, %v8860
  %v8946 = vmul.f32 %v8644, %v8860
  %v8947 = vmul.f32 %v8649, %v8860
  %v8948 = vmul.f32 %v8654, %v8860
  %v8949 = vmul.f32 %v8659, %v8860
  %v8950 = vmul.f32 %v8664, %v8860
  %v8951 = vmul.f32 %v8669, %v8860
  %v8952 = vmul.f32 %v8674, %v8860
  %v8953 = vmul.f32 %v8679, %v8860
  %v8954 = vmul.f32 %v8684, %v8860
  %v8955 = vmul.f32 %v8689, %v8860
  %v8956 = vmul.f32 %v8694, %v8860
  %v8957 = vmul.f32 %v8699, %v8860
  %v8958 = vmul.f32 %v8704, %v8860
  %v8959 = vmul.f32 %v8709, %v8860
  %v8960 = vmul.f32 %v8714, %v8860
  %v8961 = vmul.f32 %v8719, %v8860
  %v8962 = vmul.f32 %v8724, %v8860
  %v8963 = vmul.f32 %v8729, %v8860
  %v8964 = vmul.f32 %v8734, %v8860
  %v8965 = vmul.f32 %v8739, %v8860
  %v8966 = vmul.f32 %v8744, %v8860
  %v8967 = vmul.f32 %v8749, %v8860
  %v8968 = vmul.f32 %v8754, %v8860
  %v8969 = vmul.f32 %v8759, %v8860
  %v8970 = vmul.f32 %v8764, %v8860
  %v8971 = vmul.f32 %v8769, %v8860
  %v8972 = vmul.f32 %v8774, %v8860
  %v8973 = vmul.f32 %v8779, %v8860
  %v8974 = vmul.f32 %v8784, %v8860
  %v8975 = vmul.f32 %v8789, %v8860
  %v8976 = vmul.f32 %v8794, %v8860
  %v8977 = vmul.f32 %v8799, %v8860
  %v8978 = vmul.f32 %v8804, %v8860
  %v8979 = vmul.f32 %v8809, %v8860
  %v8980 = vmul.f32 %v8814, %v8860
  %v8981 = vmul.f32 %v8819, %v8860
  %v8982 = vmul.f32 %v8824, %v8860
  %v8983 = vmul.f32 %v8829, %v8860
  %v8984 = vmul.f32 %v8834, %v8860
  %v8985 = vmul.f32 %v8839, %v8860
  %v8986 = vmul.f32 %v8844, %v8860
  %v8987 = vmul.f32 %v8849, %v8860
  %v8988 = vmul.f32 %v8854, %v8860
  %v8989 = vlaneseq
  %v8990 = vshrl.u32 %v8989, 7
  %v8991 = vsub.s32 3, %v8990
  %v8992 = vrot.slane %v197, %v8991
  %v8993 = vadd.f32 %v8861, %v8992
  %v8994 = vadd.f32 %v8862, %v8992
  %v8995 = vadd.f32 %v8863, %v8992
  %v8996 = vadd.f32 %v8864, %v8992
  %v8997 = vadd.f32 %v8865, %v8992
  %v8998 = vadd.f32 %v8866, %v8992
  %v8999 = vadd.f32 %v8867, %v8992
  %v9000 = vadd.f32 %v8868, %v8992
  %v9001 = vadd.f32 %v8869, %v8992
  %v9002 = vadd.f32 %v8870, %v8992
  %v9003 = vadd.f32 %v8871, %v8992
  %v9004 = vadd.f32 %v8872, %v8992
  %v9005 = vadd.f32 %v8873, %v8992
  %v9006 = vadd.f32 %v8874, %v8992
  %v9007 = vadd.f32 %v8875, %v8992
  %v9008 = vadd.f32 %v8876, %v8992
  %v9009 = vadd.f32 %v8877, %v8992
  %v9010 = vadd.f32 %v8878, %v8992
  %v9011 = vadd.f32 %v8879, %v8992
  %v9012 = vadd.f32 %v8880, %v8992
  %v9013 = vadd.f32 %v8881, %v8992
  %v9014 = vadd.f32 %v8882, %v8992
  %v9015 = vadd.f32 %v8883, %v8992
  %v9016 = vadd.f32 %v8884, %v8992
  %v9017 = vadd.f32 %v8885, %v8992
  %v9018 = vadd.f32 %v8886, %v8992
  %v9019 = vadd.f32 %v8887, %v8992
  %v9020 = vadd.f32 %v8888, %v8992
  %v9021 = vadd.f32 %v8889, %v8992
  %v9022 = vadd.f32 %v8890, %v8992
  %v9023 = vadd.f32 %v8891, %v8992
  %v9024 = vadd.f32 %v8892, %v8992
  %v9025 = vadd.f32 %v8893, %v8992
  %v9026 = vadd.f32 %v8894, %v8992
  %v9027 = vadd.f32 %v8895, %v8992
  %v9028 = vadd.f32 %v8896, %v8992
  %v9029 = vadd.f32 %v8897, %v8992
  %v9030 = vadd.f32 %v8898, %v8992
  %v9031 = vadd.f32 %v8899, %v8992
  %v9032 = vadd.f32 %v8900, %v8992
  %v9033 = vadd.f32 %v8901, %v8992
  %v9034 = vadd.f32 %v8902, %v8992
  %v9035 = vadd.f32 %v8903, %v8992
  %v9036 = vadd.f32 %v8904, %v8992
  %v9037 = vadd.f32 %v8905, %v8992
  %v9038 = vadd.f32 %v8906, %v8992
  %v9039 = vadd.f32 %v8907, %v8992
  %v9040 = vadd.f32 %v8908, %v8992
  %v9041 = vadd.f32 %v8909, %v8992
  %v9042 = vadd.f32 %v8910, %v8992
  %v9043 = vadd.f32 %v8911, %v8992
  %v9044 = vadd.f32 %v8912, %v8992
  %v9045 = vadd.f32 %v8913, %v8992
  %v9046 = vadd.f32 %v8914, %v8992
  %v9047 = vadd.f32 %v8915, %v8992
  %v9048 = vadd.f32 %v8916, %v8992
  %v9049 = vadd.f32 %v8917, %v8992
  %v9050 = vadd.f32 %v8918, %v8992
  %v9051 = vadd.f32 %v8919, %v8992
  %v9052 = vadd.f32 %v8920, %v8992
  %v9053 = vadd.f32 %v8921, %v8992
  %v9054 = vadd.f32 %v8922, %v8992
  %v9055 = vadd.f32 %v8923, %v8992
  %v9056 = vadd.f32 %v8924, %v8992
  %v9057 = vadd.f32 %v8925, %v8992
  %v9058 = vadd.f32 %v8926, %v8992
  %v9059 = vadd.f32 %v8927, %v8992
  %v9060 = vadd.f32 %v8928, %v8992
  %v9061 = vadd.f32 %v8929, %v8992
  %v9062 = vadd.f32 %v8930, %v8992
  %v9063 = vadd.f32 %v8931, %v8992
  %v9064 = vadd.f32 %v8932, %v8992
  %v9065 = vadd.f32 %v8933, %v8992
  %v9066 = vadd.f32 %v8934, %v8992
  %v9067 = vadd.f32 %v8935, %v8992
  %v9068 = vadd.f32 %v8936, %v8992
  %v9069 = vadd.f32 %v8937, %v8992
  %v9070 = vadd.f32 %v8938, %v8992
  %v9071 = vadd.f32 %v8939, %v8992
  %v9072 = vadd.f32 %v8940, %v8992
  %v9073 = vadd.f32 %v8941, %v8992
  %v9074 = vadd.f32 %v8942, %v8992
  %v9075 = vadd.f32 %v8943, %v8992
  %v9076 = vadd.f32 %v8944, %v8992
  %v9077 = vadd.f32 %v8945, %v8992
  %v9078 = vadd.f32 %v8946, %v8992
  %v9079 = vadd.f32 %v8947, %v8992
  %v9080 = vadd.f32 %v8948, %v8992
  %v9081 = vadd.f32 %v8949, %v8992
  %v9082 = vadd.f32 %v8950, %v8992
  %v9083 = vadd.f32 %v8951, %v8992
  %v9084 = vadd.f32 %v8952, %v8992
  %v9085 = vadd.f32 %v8953, %v8992
  %v9086 = vadd.f32 %v8954, %v8992
  %v9087 = vadd.f32 %v8955, %v8992
  %v9088 = vadd.f32 %v8956, %v8992
  %v9089 = vadd.f32 %v8957, %v8992
  %v9090 = vadd.f32 %v8958, %v8992
  %v9091 = vadd.f32 %v8959, %v8992
  %v9092 = vadd.f32 %v8960, %v8992
  %v9093 = vadd.f32 %v8961, %v8992
  %v9094 = vadd.f32 %v8962, %v8992
  %v9095 = vadd.f32 %v8963, %v8992
  %v9096 = vadd.f32 %v8964, %v8992
  %v9097 = vadd.f32 %v8965, %v8992
  %v9098 = vadd.f32 %v8966, %v8992
  %v9099 = vadd.f32 %v8967, %v8992
  %v9100 = vadd.f32 %v8968, %v8992
  %v9101 = vadd.f32 %v8969, %v8992
  %v9102 = vadd.f32 %v8970, %v8992
  %v9103 = vadd.f32 %v8971, %v8992
  %v9104 = vadd.f32 %v8972, %v8992
  %v9105 = vadd.f32 %v8973, %v8992
  %v9106 = vadd.f32 %v8974, %v8992
  %v9107 = vadd.f32 %v8975, %v8992
  %v9108 = vadd.f32 %v8976, %v8992
  %v9109 = vadd.f32 %v8977, %v8992
  %v9110 = vadd.f32 %v8978, %v8992
  %v9111 = vadd.f32 %v8979, %v8992
  %v9112 = vadd.f32 %v8980, %v8992
  %v9113 = vadd.f32 %v8981, %v8992
  %v9114 = vadd.f32 %v8982, %v8992
  %v9115 = vadd.f32 %v8983, %v8992
  %v9116 = vadd.f32 %v8984, %v8992
  %v9117 = vadd.f32 %v8985, %v8992
  %v9118 = vadd.f32 %v8986, %v8992
  %v9119 = vadd.f32 %v8987, %v8992
  %v9120 = vadd.f32 %v8988, %v8992
  %v9121 = vmax.f32 %v8993, 0.0
  %v9122 = vmax.f32 %v8994, 0.0
  %v9123 = vmax.f32 %v8995, 0.0
  %v9124 = vmax.f32 %v8996, 0.0
  %v9125 = vmax.f32 %v8997, 0.0
  %v9126 = vmax.f32 %v8998, 0.0
  %v9127 = vmax.f32 %v8999, 0.0
  %v9128 = vmax.f32 %v9000, 0.0
  %v9129 = vmax.f32 %v9001, 0.0
  %v9130 = vmax.f32 %v9002, 0.0
  %v9131 = vmax.f32 %v9003, 0.0
  %v9132 = vmax.f32 %v9004, 0.0
  %v9133 = vmax.f32 %v9005, 0.0
  %v9134 = vmax.f32 %v9006, 0.0
  %v9135 = vmax.f32 %v9007, 0.0
  %v9136 = vmax.f32 %v9008, 0.0
  %v9137 = vmax.f32 %v9009, 0.0
  %v9138 = vmax.f32 %v9010, 0.0
  %v9139 = vmax.f32 %v9011, 0.0
  %v9140 = vmax.f32 %v9012, 0.0
  %v9141 = vmax.f32 %v9013, 0.0
  %v9142 = vmax.f32 %v9014, 0.0
  %v9143 = vmax.f32 %v9015, 0.0
  %v9144 = vmax.f32 %v9016, 0.0
  %v9145 = vmax.f32 %v9017, 0.0
  %v9146 = vmax.f32 %v9018, 0.0
  %v9147 = vmax.f32 %v9019, 0.0
  %v9148 = vmax.f32 %v9020, 0.0
  %v9149 = vmax.f32 %v9021, 0.0
  %v9150 = vmax.f32 %v9022, 0.0
  %v9151 = vmax.f32 %v9023, 0.0
  %v9152 = vmax.f32 %v9024, 0.0
  %v9153 = vmax.f32 %v9025, 0.0
  %v9154 = vmax.f32 %v9026, 0.0
  %v9155 = vmax.f32 %v9027, 0.0
  %v9156 = vmax.f32 %v9028, 0.0
  %v9157 = vmax.f32 %v9029, 0.0
  %v9158 = vmax.f32 %v9030, 0.0
  %v9159 = vmax.f32 %v9031, 0.0
  %v9160 = vmax.f32 %v9032, 0.0
  %v9161 = vmax.f32 %v9033, 0.0
  %v9162 = vmax.f32 %v9034, 0.0
  %v9163 = vmax.f32 %v9035, 0.0
  %v9164 = vmax.f32 %v9036, 0.0
  %v9165 = vmax.f32 %v9037, 0.0
  %v9166 = vmax.f32 %v9038, 0.0
  %v9167 = vmax.f32 %v9039, 0.0
  %v9168 = vmax.f32 %v9040, 0.0
  %v9169 = vmax.f32 %v9041, 0.0
  %v9170 = vmax.f32 %v9042, 0.0
  %v9171 = vmax.f32 %v9043, 0.0
  %v9172 = vmax.f32 %v9044, 0.0
  %v9173 = vmax.f32 %v9045, 0.0
  %v9174 = vmax.f32 %v9046, 0.0
  %v9175 = vmax.f32 %v9047, 0.0
  %v9176 = vmax.f32 %v9048, 0.0
  %v9177 = vmax.f32 %v9049, 0.0
  %v9178 = vmax.f32 %v9050, 0.0
  %v9179 = vmax.f32 %v9051, 0.0
  %v9180 = vmax.f32 %v9052, 0.0
  %v9181 = vmax.f32 %v9053, 0.0
  %v9182 = vmax.f32 %v9054, 0.0
  %v9183 = vmax.f32 %v9055, 0.0
  %v9184 = vmax.f32 %v9056, 0.0
  %v9185 = vmax.f32 %v9057, 0.0
  %v9186 = vmax.f32 %v9058, 0.0
  %v9187 = vmax.f32 %v9059, 0.0
  %v9188 = vmax.f32 %v9060, 0.0
  %v9189 = vmax.f32 %v9061, 0.0
  %v9190 = vmax.f32 %v9062, 0.0
  %v9191 = vmax.f32 %v9063, 0.0
  %v9192 = vmax.f32 %v9064, 0.0
  %v9193 = vmax.f32 %v9065, 0.0
  %v9194 = vmax.f32 %v9066, 0.0
  %v9195 = vmax.f32 %v9067, 0.0
  %v9196 = vmax.f32 %v9068, 0.0
  %v9197 = vmax.f32 %v9069, 0.0
  %v9198 = vmax.f32 %v9070, 0.0
  %v9199 = vmax.f32 %v9071, 0.0
  %v9200 = vmax.f32 %v9072, 0.0
  %v9201 = vmax.f32 %v9073, 0.0
  %v9202 = vmax.f32 %v9074, 0.0
  %v9203 = vmax.f32 %v9075, 0.0
  %v9204 = vmax.f32 %v9076, 0.0
  %v9205 = vmax.f32 %v9077, 0.0
  %v9206 = vmax.f32 %v9078, 0.0
  %v9207 = vmax.f32 %v9079, 0.0
  %v9208 = vmax.f32 %v9080, 0.0
  %v9209 = vmax.f32 %v9081, 0.0
  %v9210 = vmax.f32 %v9082, 0.0
  %v9211 = vmax.f32 %v9083, 0.0
  %v9212 = vmax.f32 %v9084, 0.0
  %v9213 = vmax.f32 %v9085, 0.0
  %v9214 = vmax.f32 %v9086, 0.0
  %v9215 = vmax.f32 %v9087, 0.0
  %v9216 = vmax.f32 %v9088, 0.0
  %v9217 = vmax.f32 %v9089, 0.0
  %v9218 = vmax.f32 %v9090, 0.0
  %v9219 = vmax.f32 %v9091, 0.0
  %v9220 = vmax.f32 %v9092, 0.0
  %v9221 = vmax.f32 %v9093, 0.0
  %v9222 = vmax.f32 %v9094, 0.0
  %v9223 = vmax.f32 %v9095, 0.0
  %v9224 = vmax.f32 %v9096, 0.0
  %v9225 = vmax.f32 %v9097, 0.0
  %v9226 = vmax.f32 %v9098, 0.0
  %v9227 = vmax.f32 %v9099, 0.0
  %v9228 = vmax.f32 %v9100, 0.0
  %v9229 = vmax.f32 %v9101, 0.0
  %v9230 = vmax.f32 %v9102, 0.0
  %v9231 = vmax.f32 %v9103, 0.0
  %v9232 = vmax.f32 %v9104, 0.0
  %v9233 = vmax.f32 %v9105, 0.0
  %v9234 = vmax.f32 %v9106, 0.0
  %v9235 = vmax.f32 %v9107, 0.0
  %v9236 = vmax.f32 %v9108, 0.0
  %v9237 = vmax.f32 %v9109, 0.0
  %v9238 = vmax.f32 %v9110, 0.0
  %v9239 = vmax.f32 %v9111, 0.0
  %v9240 = vmax.f32 %v9112, 0.0
  %v9241 = vmax.f32 %v9113, 0.0
  %v9242 = vmax.f32 %v9114, 0.0
  %v9243 = vmax.f32 %v9115, 0.0
  %v9244 = vmax.f32 %v9116, 0.0
  %v9245 = vmax.f32 %v9117, 0.0
  %v9246 = vmax.f32 %v9118, 0.0
  %v9247 = vmax.f32 %v9119, 0.0
  %v9248 = vmax.f32 %v9120, 0.0
  %v9249 = vlaneseq
  %v9250 = vshrl.u32 %v9249, 7
  %v9251 = vsub.s32 4, %v9250
  %v9252 = vrot.slane %v197, %v9251
  %9253 = vrot.lane.b32.xlu0 %v191, 64
  %v9254 = vpop.permute.xlu0 %9253
  %9255 = vrot.lane.b32.xlu0 %v192, 64
  %v9256 = vpop.permute.xlu0 %9255
  %9257 = vrot.lane.b32.xlu0 %v193, 64
  %v9258 = vpop.permute.xlu0 %9257
  %9259 = vrot.lane.b32.xlu0 %v194, 64
  %v9260 = vpop.permute.xlu0 %9259
  %v9266 = vsel %vm199, %v9121, 0
  %v9269 = vsel %vm199, %v9122, 0
  %v9272 = vsel %vm199, %v9123, 0
  %v9275 = vsel %vm199, %v9124, 0
  %v9278 = vsel %vm199, %v9125, 0
  %v9281 = vsel %vm199, %v9126, 0
  %v9284 = vsel %vm199, %v9127, 0
  %v9287 = vsel %vm199, %v9128, 0
  %v9290 = vsel %vm199, %v9129, 0
  %v9293 = vsel %vm199, %v9130, 0
  %v9296 = vsel %vm199, %v9131, 0
  %v9299 = vsel %vm199, %v9132, 0
  %v9302 = vsel %vm199, %v9133, 0
  %v9305 = vsel %vm199, %v9134, 0
  %v9308 = vsel %vm199, %v9135, 0
  %v9311 = vsel %vm199, %v9136, 0
  %v9314 = vsel %vm199, %v9137, 0
  %v9317 = vsel %vm199, %v9138, 0
  %v9320 = vsel %vm199, %v9139, 0
  %v9323 = vsel %vm199, %v9140, 0
  %v9326 = vsel %vm199, %v9141, 0
  %v9329 = vsel %vm199, %v9142, 0
  %v9332 = vsel %vm199, %v9143, 0
  %v9335 = vsel %vm199, %v9144, 0
  %v9338 = vsel %vm199, %v9145, 0
  %v9341 = vsel %vm199, %v9146, 0
  %v9344 = vsel %vm199, %v9147, 0
  %v9347 = vsel %vm199, %v9148, 0
  %v9350 = vsel %vm199, %v9149, 0
  %v9353 = vsel %vm199, %v9150, 0
  %v9356 = vsel %vm199, %v9151, 0
  %v9359 = vsel %vm199, %v9152, 0
  %v9362 = vsel %vm199, %v9153, 0
  %v9365 = vsel %vm199, %v9154, 0
  %v9368 = vsel %vm199, %v9155, 0
  %v9371 = vsel %vm199, %v9156, 0
  %v9374 = vsel %vm199, %v9157, 0
  %v9377 = vsel %vm199, %v9158, 0
  %v9380 = vsel %vm199, %v9159, 0
  %v9383 = vsel %vm199, %v9160, 0
  %v9386 = vsel %vm199, %v9161, 0
  %v9389 = vsel %vm199, %v9162, 0
  %v9392 = vsel %vm199, %v9163, 0
  %v9395 = vsel %vm199, %v9164, 0
  %v9398 = vsel %vm199, %v9165, 0
  %v9401 = vsel %vm199, %v9166, 0
  %v9404 = vsel %vm199, %v9167, 0
  %v9407 = vsel %vm199, %v9168, 0
  %v9410 = vsel %vm199, %v9169, 0
  %v9413 = vsel %vm199, %v9170, 0
  %v9416 = vsel %vm199, %v9171, 0
  %v9419 = vsel %vm199, %v9172, 0
  %v9422 = vsel %vm199, %v9173, 0
  %v9425 = vsel %vm199, %v9174, 0
  %v9428 = vsel %vm199, %v9175, 0
  %v9431 = vsel %vm199, %v9176, 0
  %v9434 = vsel %vm199, %v9177, 0
  %v9437 = vsel %vm199, %v9178, 0
  %v9440 = vsel %vm199, %v9179, 0
  %v9443 = vsel %vm199, %v9180, 0
  %v9446 = vsel %vm199, %v9181, 0
  %v9449 = vsel %vm199, %v9182, 0
  %v9452 = vsel %vm199, %v9183, 0
  %v9455 = vsel %vm199, %v9184, 0
  %v9458 = vsel %vm199, %v9185, 0
  %v9461 = vsel %vm199, %v9186, 0
  %v9464 = vsel %vm199, %v9187, 0
  %v9467 = vsel %vm199, %v9188, 0
  %v9470 = vsel %vm199, %v9189, 0
  %v9473 = vsel %vm199, %v9190, 0
  %v9476 = vsel %vm199, %v9191, 0
  %v9479 = vsel %vm199, %v9192, 0
  %v9482 = vsel %vm199, %v9193, 0
  %v9485 = vsel %vm199, %v9194, 0
  %v9488 = vsel %vm199, %v9195, 0
  %v9491 = vsel %vm199, %v9196, 0
  %v9494 = vsel %vm199, %v9197, 0
  %v9497 = vsel %vm199, %v9198, 0
  %v9500 = vsel %vm199, %v9199, 0
  %v9503 = vsel %vm199, %v9200, 0
  %v9506 = vsel %vm199, %v9201, 0
  %v9509 = vsel %vm199, %v9202, 0
  %v9512 = vsel %vm199, %v9203, 0
  %v9515 = vsel %vm199, %v9204, 0
  %v9518 = vsel %vm199, %v9205, 0
  %v9521 = vsel %vm199, %v9206, 0
  %v9524 = vsel %vm199, %v9207, 0
  %v9527 = vsel %vm199, %v9208, 0
  %v9530 = vsel %vm199, %v9209, 0
  %v9533 = vsel %vm199, %v9210, 0
  %v9536 = vsel %vm199, %v9211, 0
  %v9539 = vsel %vm199, %v9212, 0
  %v9542 = vsel %vm199, %v9213, 0
  %v9545 = vsel %vm199, %v9214, 0
  %v9548 = vsel %vm199, %v9215, 0
  %v9551 = vsel %vm199, %v9216, 0
  %v9554 = vsel %vm199, %v9217, 0
  %v9557 = vsel %vm199, %v9218, 0
  %v9560 = vsel %vm199, %v9219, 0
  %v9563 = vsel %vm199, %v9220, 0
  %v9566 = vsel %vm199, %v9221, 0
  %v9569 = vsel %vm199, %v9222, 0
  %v9572 = vsel %vm199, %v9223, 0
  %v9575 = vsel %vm199, %v9224, 0
  %v9578 = vsel %vm199, %v9225, 0
  %v9581 = vsel %vm199, %v9226, 0
  %v9584 = vsel %vm199, %v9227, 0
  %v9587 = vsel %vm199, %v9228, 0
  %v9590 = vsel %vm199, %v9229, 0
  %v9593 = vsel %vm199, %v9230, 0
  %v9596 = vsel %vm199, %v9231, 0
  %v9599 = vsel %vm199, %v9232, 0
  %v9602 = vsel %vm199, %v9233, 0
  %v9605 = vsel %vm199, %v9234, 0
  %v9608 = vsel %vm199, %v9235, 0
  %v9611 = vsel %vm199, %v9236, 0
  %v9614 = vsel %vm199, %v9237, 0
  %v9617 = vsel %vm199, %v9238, 0
  %v9620 = vsel %vm199, %v9239, 0
  %v9623 = vsel %vm199, %v9240, 0
  %v9626 = vsel %vm199, %v9241, 0
  %v9629 = vsel %vm199, %v9242, 0
  %v9632 = vsel %vm199, %v9243, 0
  %v9635 = vsel %vm199, %v9244, 0
  %v9638 = vsel %vm199, %v9245, 0
  %v9641 = vsel %vm199, %v9246, 0
  %v9644 = vsel %vm199, %v9247, 0
  %v9647 = vsel %vm199, %v9248, 0
  %9649 = vmatprep.subr.mxu0 0.0
  %9650 = vmatpush1.msra.mxu0 %v9254
  %9651 = vmatprep.subr.mxu0 0.0
  %9652 = vmatpush1.msra.mxu0 %v9256
  %9653 = vmatprep.subr.mxu0 0.0
  %9654 = vmatpush1.msra.mxu0 %v9258
  %9655 = vmatprep.subr.mxu0 0.0
  %9656 = vmatpush1.msra.mxu0 %v9260
  %9657 = vmatprep.subr.mxu0 0.0
  %9658 = vmatpush1.msra.mxu0 0.0
  %9659 = vmatprep.subr.mxu0 0.0
  %9660 = vmatpush1.msra.mxu0 0.0
  %9661 = vmatprep.subr.mxu0 0.0
  %9662 = vmatpush1.msra.mxu0 0.0
  %9663 = vmatprep.subr.mxu0 0.0
  %9664 = vmatpush1.msra.mxu0 0.0
  %9665 = vmatprep.subr.mxu0 0.0
  %9666 = vmatpush1.msra.mxu0 0.0
  %9667 = vmatprep.subr.mxu0 0.0
  %9668 = vmatpush1.msra.mxu0 0.0
  %9669 = vmatprep.subr.mxu0 0.0
  %9670 = vmatpush1.msra.mxu0 0.0
  %9671 = vmatprep.subr.mxu0 0.0
  %9672 = vmatpush1.msra.mxu0 0.0
  %9673 = vmatprep.subr.mxu0 0.0
  %9674 = vmatpush1.msra.mxu0 0.0
  %9675 = vmatprep.subr.mxu0 0.0
  %9676 = vmatpush1.msra.mxu0 0.0
  %9677 = vmatprep.subr.mxu0 0.0
  %9678 = vmatpush1.msra.mxu0 0.0
  %9679 = vmatprep.subr.mxu0 0.0
  %9680 = vmatpush1.msra.mxu0 0.0
  %9681 = vmatprep.subr.mxu0 0.0
  %9682 = vmatpush1.msra.mxu0 0.0
  %9683 = vmatprep.subr.mxu0 0.0
  %9684 = vmatpush1.msra.mxu0 0.0
  %9685 = vmatprep.subr.mxu0 0.0
  %9686 = vmatpush1.msra.mxu0 0.0
  %9687 = vmatprep.subr.mxu0 0.0
  %9688 = vmatpush1.msra.mxu0 0.0
  %9689 = vmatprep.subr.mxu0 0.0
  %9690 = vmatpush1.msra.mxu0 0.0
  %9691 = vmatprep.subr.mxu0 0.0
  %9692 = vmatpush1.msra.mxu0 0.0
  %9693 = vmatprep.subr.mxu0 0.0
  %9694 = vmatpush1.msra.mxu0 0.0
  %9695 = vmatprep.subr.mxu0 0.0
  %9696 = vmatpush1.msra.mxu0 0.0
  %9697 = vmatprep.subr.mxu0 0.0
  %9698 = vmatpush1.msra.mxu0 0.0
  %9699 = vmatprep.subr.mxu0 0.0
  %9700 = vmatpush1.msra.mxu0 0.0
  %9701 = vmatprep.subr.mxu0 0.0
  %9702 = vmatpush1.msra.mxu0 0.0
  %9703 = vmatprep.subr.mxu0 0.0
  %9704 = vmatpush1.msra.mxu0 0.0
  %9705 = vmatprep.subr.mxu0 0.0
  %9706 = vmatpush1.msra.mxu0 0.0
  %9707 = vmatprep.subr.mxu0 0.0
  %9708 = vmatpush1.msra.mxu0 0.0
  %9709 = vmatprep.subr.mxu0 0.0
  %9710 = vmatpush1.msra.mxu0 0.0
  %9711 = vmatprep.subr.mxu0 0.0
  %9712 = vmatpush1.msra.mxu0 0.0
  %9713 = vmatprep.mubr.f32.mxu0 0.0
  %9714 = vmatmul.mubr.f32.gmra.mrb[0].mxu0 %v9266
  %v9715 = vpop.f32.mrb[0].mxu0
  %v9716 = vadd.f32 %v9252, %v9715
  %v9717 = vpop.f32.mrb[0].mxu0
  %9718 = vmatprep.mubr.f32.mxu0 0.0
  %9719 = vmatmul.mubr.f32.gmra.mrb[0].mxu0 %v9269
  %v9720 = vpop.f32.mrb[0].mxu0
  %v9721 = vadd.f32 %v9252, %v9720
  %v9722 = vpop.f32.mrb[0].mxu0
  %9723 = vmatprep.mubr.f32.mxu0 0.0
  %9724 = vmatmul.mubr.f32.gmra.mrb[0].mxu0 %v9272
  %v9725 = vpop.f32.mrb[0].mxu0
  %v9726 = vadd.f32 %v9252, %v9725
  %v9727 = vpop.f32.mrb[0].mxu0
  %9728 = vmatprep.mubr.f32.mxu0 0.0
  %9729 = vmatmul.mubr.f32.gmra.mrb[0].mxu0 %v9275
  %v9730 = vpop.f32.mrb[0].mxu0
  %v9731 = vadd.f32 %v9252, %v9730
  %v9732 = vpop.f32.mrb[0].mxu0
  %9733 = vmatprep.mubr.f32.mxu0 0.0
  %9734 = vmatmul.mubr.f32.gmra.mrb[0].mxu0 %v9278
  %v9735 = vpop.f32.mrb[0].mxu0
  %v9736 = vadd.f32 %v9252, %v9735
  %v9737 = vpop.f32.mrb[0].mxu0
  %9738 = vmatprep.mubr.f32.mxu0 0.0
  %9739 = vmatmul.mubr.f32.gmra.mrb[0].mxu0 %v9281
  %v9740 = vpop.f32.mrb[0].mxu0
  %v9741 = vadd.f32 %v9252, %v9740
  %v9742 = vpop.f32.mrb[0].mxu0
  %9743 = vmatprep.mubr.f32.mxu0 0.0
  %9744 = vmatmul.mubr.f32.gmra.mrb[0].mxu0 %v9284
  %v9745 = vpop.f32.mrb[0].mxu0
  %v9746 = vadd.f32 %v9252, %v9745
  %v9747 = vpop.f32.mrb[0].mxu0
  %9748 = vmatprep.mubr.f32.mxu0 0.0
  %9749 = vmatmul.mubr.f32.gmra.mrb[0].mxu0 %v9287
  %v9750 = vpop.f32.mrb[0].mxu0
  %v9751 = vadd.f32 %v9252, %v9750
  %v9752 = vpop.f32.mrb[0].mxu0
  %9753 = vmatprep.mubr.f32.mxu0 0.0
  %9754 = vmatmul.mubr.f32.gmra.mrb[0].mxu0 %v9290
  %v9755 = vpop.f32.mrb[0].mxu0
  %v9756 = vadd.f32 %v9252, %v9755
  %v9757 = vpop.f32.mrb[0].mxu0
  %9758 = vmatprep.mubr.f32.mxu0 0.0
  %9759 = vmatmul.mubr.f32.gmra.mrb[0].mxu0 %v9293
  %v9760 = vpop.f32.mrb[0].mxu0
  %v9761 = vadd.f32 %v9252, %v9760
  %v9762 = vpop.f32.mrb[0].mxu0
  %9763 = vmatprep.mubr.f32.mxu0 0.0
  %9764 = vmatmul.mubr.f32.gmra.mrb[0].mxu0 %v9296
  %v9765 = vpop.f32.mrb[0].mxu0
  %v9766 = vadd.f32 %v9252, %v9765
  %v9767 = vpop.f32.mrb[0].mxu0
  %9768 = vmatprep.mubr.f32.mxu0 0.0
  %9769 = vmatmul.mubr.f32.gmra.mrb[0].mxu0 %v9299
  %v9770 = vpop.f32.mrb[0].mxu0
  %v9771 = vadd.f32 %v9252, %v9770
  %v9772 = vpop.f32.mrb[0].mxu0
  %9773 = vmatprep.mubr.f32.mxu0 0.0
  %9774 = vmatmul.mubr.f32.gmra.mrb[0].mxu0 %v9302
  %v9775 = vpop.f32.mrb[0].mxu0
  %v9776 = vadd.f32 %v9252, %v9775
  %v9777 = vpop.f32.mrb[0].mxu0
  %9778 = vmatprep.mubr.f32.mxu0 0.0
  %9779 = vmatmul.mubr.f32.gmra.mrb[0].mxu0 %v9305
  %v9780 = vpop.f32.mrb[0].mxu0
  %v9781 = vadd.f32 %v9252, %v9780
  %v9782 = vpop.f32.mrb[0].mxu0
  %9783 = vmatprep.mubr.f32.mxu0 0.0
  %9784 = vmatmul.mubr.f32.gmra.mrb[0].mxu0 %v9308
  %v9785 = vpop.f32.mrb[0].mxu0
  %v9786 = vadd.f32 %v9252, %v9785
  %v9787 = vpop.f32.mrb[0].mxu0
  %9788 = vmatprep.mubr.f32.mxu0 0.0
  %9789 = vmatmul.mubr.f32.gmra.mrb[0].mxu0 %v9311
  %v9790 = vpop.f32.mrb[0].mxu0
  %v9791 = vadd.f32 %v9252, %v9790
  %v9792 = vpop.f32.mrb[0].mxu0
  %9793 = vmatprep.mubr.f32.mxu0 0.0
  %9794 = vmatmul.mubr.f32.gmra.mrb[0].mxu0 %v9314
  %v9795 = vpop.f32.mrb[0].mxu0
  %v9796 = vadd.f32 %v9252, %v9795
  %v9797 = vpop.f32.mrb[0].mxu0
  %9798 = vmatprep.mubr.f32.mxu0 0.0
  %9799 = vmatmul.mubr.f32.gmra.mrb[0].mxu0 %v9317
  %v9800 = vpop.f32.mrb[0].mxu0
  %v9801 = vadd.f32 %v9252, %v9800
  %v9802 = vpop.f32.mrb[0].mxu0
  %9803 = vmatprep.mubr.f32.mxu0 0.0
  %9804 = vmatmul.mubr.f32.gmra.mrb[0].mxu0 %v9320
  %v9805 = vpop.f32.mrb[0].mxu0
  %v9806 = vadd.f32 %v9252, %v9805
  %v9807 = vpop.f32.mrb[0].mxu0
  %9808 = vmatprep.mubr.f32.mxu0 0.0
  %9809 = vmatmul.mubr.f32.gmra.mrb[0].mxu0 %v9323
  %v9810 = vpop.f32.mrb[0].mxu0
  %v9811 = vadd.f32 %v9252, %v9810
  %v9812 = vpop.f32.mrb[0].mxu0
  %9813 = vmatprep.mubr.f32.mxu0 0.0
  %9814 = vmatmul.mubr.f32.gmra.mrb[0].mxu0 %v9326
  %v9815 = vpop.f32.mrb[0].mxu0
  %v9816 = vadd.f32 %v9252, %v9815
  %v9817 = vpop.f32.mrb[0].mxu0
  %9818 = vmatprep.mubr.f32.mxu0 0.0
  %9819 = vmatmul.mubr.f32.gmra.mrb[0].mxu0 %v9329
  %v9820 = vpop.f32.mrb[0].mxu0
  %v9821 = vadd.f32 %v9252, %v9820
  %v9822 = vpop.f32.mrb[0].mxu0
  %9823 = vmatprep.mubr.f32.mxu0 0.0
  %9824 = vmatmul.mubr.f32.gmra.mrb[0].mxu0 %v9332
  %v9825 = vpop.f32.mrb[0].mxu0
  %v9826 = vadd.f32 %v9252, %v9825
  %v9827 = vpop.f32.mrb[0].mxu0
  %9828 = vmatprep.mubr.f32.mxu0 0.0
  %9829 = vmatmul.mubr.f32.gmra.mrb[0].mxu0 %v9335
  %v9830 = vpop.f32.mrb[0].mxu0
  %v9831 = vadd.f32 %v9252, %v9830
  %v9832 = vpop.f32.mrb[0].mxu0
  %9833 = vmatprep.mubr.f32.mxu0 0.0
  %9834 = vmatmul.mubr.f32.gmra.mrb[0].mxu0 %v9338
  %v9835 = vpop.f32.mrb[0].mxu0
  %v9836 = vadd.f32 %v9252, %v9835
  %v9837 = vpop.f32.mrb[0].mxu0
  %9838 = vmatprep.mubr.f32.mxu0 0.0
  %9839 = vmatmul.mubr.f32.gmra.mrb[0].mxu0 %v9341
  %v9840 = vpop.f32.mrb[0].mxu0
  %v9841 = vadd.f32 %v9252, %v9840
  %v9842 = vpop.f32.mrb[0].mxu0
  %9843 = vmatprep.mubr.f32.mxu0 0.0
  %9844 = vmatmul.mubr.f32.gmra.mrb[0].mxu0 %v9344
  %v9845 = vpop.f32.mrb[0].mxu0
  %v9846 = vadd.f32 %v9252, %v9845
  %v9847 = vpop.f32.mrb[0].mxu0
  %9848 = vmatprep.mubr.f32.mxu0 0.0
  %9849 = vmatmul.mubr.f32.gmra.mrb[0].mxu0 %v9347
  %v9850 = vpop.f32.mrb[0].mxu0
  %v9851 = vadd.f32 %v9252, %v9850
  %v9852 = vpop.f32.mrb[0].mxu0
  %9853 = vmatprep.mubr.f32.mxu0 0.0
  %9854 = vmatmul.mubr.f32.gmra.mrb[0].mxu0 %v9350
  %v9855 = vpop.f32.mrb[0].mxu0
  %v9856 = vadd.f32 %v9252, %v9855
  %v9857 = vpop.f32.mrb[0].mxu0
  %9858 = vmatprep.mubr.f32.mxu0 0.0
  %9859 = vmatmul.mubr.f32.gmra.mrb[0].mxu0 %v9353
  %v9860 = vpop.f32.mrb[0].mxu0
  %v9861 = vadd.f32 %v9252, %v9860
  %v9862 = vpop.f32.mrb[0].mxu0
  %9863 = vmatprep.mubr.f32.mxu0 0.0
  %9864 = vmatmul.mubr.f32.gmra.mrb[0].mxu0 %v9356
  %v9865 = vpop.f32.mrb[0].mxu0
  %v9866 = vadd.f32 %v9252, %v9865
  %v9867 = vpop.f32.mrb[0].mxu0
  %9868 = vmatprep.mubr.f32.mxu0 0.0
  %9869 = vmatmul.mubr.f32.gmra.mrb[0].mxu0 %v9359
  %v9870 = vpop.f32.mrb[0].mxu0
  %v9871 = vadd.f32 %v9252, %v9870
  %v9872 = vpop.f32.mrb[0].mxu0
  %9873 = vmatprep.mubr.f32.mxu0 0.0
  %9874 = vmatmul.mubr.f32.gmra.mrb[0].mxu0 %v9362
  %v9875 = vpop.f32.mrb[0].mxu0
  %v9876 = vadd.f32 %v9252, %v9875
  %v9877 = vpop.f32.mrb[0].mxu0
  %9878 = vmatprep.mubr.f32.mxu0 0.0
  %9879 = vmatmul.mubr.f32.gmra.mrb[0].mxu0 %v9365
  %v9880 = vpop.f32.mrb[0].mxu0
  %v9881 = vadd.f32 %v9252, %v9880
  %v9882 = vpop.f32.mrb[0].mxu0
  %9883 = vmatprep.mubr.f32.mxu0 0.0
  %9884 = vmatmul.mubr.f32.gmra.mrb[0].mxu0 %v9368
  %v9885 = vpop.f32.mrb[0].mxu0
  %v9886 = vadd.f32 %v9252, %v9885
  %v9887 = vpop.f32.mrb[0].mxu0
  %9888 = vmatprep.mubr.f32.mxu0 0.0
  %9889 = vmatmul.mubr.f32.gmra.mrb[0].mxu0 %v9371
  %v9890 = vpop.f32.mrb[0].mxu0
  %v9891 = vadd.f32 %v9252, %v9890
  %v9892 = vpop.f32.mrb[0].mxu0
  %9893 = vmatprep.mubr.f32.mxu0 0.0
  %9894 = vmatmul.mubr.f32.gmra.mrb[0].mxu0 %v9374
  %v9895 = vpop.f32.mrb[0].mxu0
  %v9896 = vadd.f32 %v9252, %v9895
  %v9897 = vpop.f32.mrb[0].mxu0
  %9898 = vmatprep.mubr.f32.mxu0 0.0
  %9899 = vmatmul.mubr.f32.gmra.mrb[0].mxu0 %v9377
  %v9900 = vpop.f32.mrb[0].mxu0
  %v9901 = vadd.f32 %v9252, %v9900
  %v9902 = vpop.f32.mrb[0].mxu0
  %9903 = vmatprep.mubr.f32.mxu0 0.0
  %9904 = vmatmul.mubr.f32.gmra.mrb[0].mxu0 %v9380
  %v9905 = vpop.f32.mrb[0].mxu0
  %v9906 = vadd.f32 %v9252, %v9905
  %v9907 = vpop.f32.mrb[0].mxu0
  %9908 = vmatprep.mubr.f32.mxu0 0.0
  %9909 = vmatmul.mubr.f32.gmra.mrb[0].mxu0 %v9383
  %v9910 = vpop.f32.mrb[0].mxu0
  %v9911 = vadd.f32 %v9252, %v9910
  %v9912 = vpop.f32.mrb[0].mxu0
  %9913 = vmatprep.mubr.f32.mxu0 0.0
  %9914 = vmatmul.mubr.f32.gmra.mrb[0].mxu0 %v9386
  %v9915 = vpop.f32.mrb[0].mxu0
  %v9916 = vadd.f32 %v9252, %v9915
  %v9917 = vpop.f32.mrb[0].mxu0
  %9918 = vmatprep.mubr.f32.mxu0 0.0
  %9919 = vmatmul.mubr.f32.gmra.mrb[0].mxu0 %v9389
  %v9920 = vpop.f32.mrb[0].mxu0
  %v9921 = vadd.f32 %v9252, %v9920
  %v9922 = vpop.f32.mrb[0].mxu0
  %9923 = vmatprep.mubr.f32.mxu0 0.0
  %9924 = vmatmul.mubr.f32.gmra.mrb[0].mxu0 %v9392
  %v9925 = vpop.f32.mrb[0].mxu0
  %v9926 = vadd.f32 %v9252, %v9925
  %v9927 = vpop.f32.mrb[0].mxu0
  %9928 = vmatprep.mubr.f32.mxu0 0.0
  %9929 = vmatmul.mubr.f32.gmra.mrb[0].mxu0 %v9395
  %v9930 = vpop.f32.mrb[0].mxu0
  %v9931 = vadd.f32 %v9252, %v9930
  %v9932 = vpop.f32.mrb[0].mxu0
  %9933 = vmatprep.mubr.f32.mxu0 0.0
  %9934 = vmatmul.mubr.f32.gmra.mrb[0].mxu0 %v9398
  %v9935 = vpop.f32.mrb[0].mxu0
  %v9936 = vadd.f32 %v9252, %v9935
  %v9937 = vpop.f32.mrb[0].mxu0
  %9938 = vmatprep.mubr.f32.mxu0 0.0
  %9939 = vmatmul.mubr.f32.gmra.mrb[0].mxu0 %v9401
  %v9940 = vpop.f32.mrb[0].mxu0
  %v9941 = vadd.f32 %v9252, %v9940
  %v9942 = vpop.f32.mrb[0].mxu0
  %9943 = vmatprep.mubr.f32.mxu0 0.0
  %9944 = vmatmul.mubr.f32.gmra.mrb[0].mxu0 %v9404
  %v9945 = vpop.f32.mrb[0].mxu0
  %v9946 = vadd.f32 %v9252, %v9945
  %v9947 = vpop.f32.mrb[0].mxu0
  %9948 = vmatprep.mubr.f32.mxu0 0.0
  %9949 = vmatmul.mubr.f32.gmra.mrb[0].mxu0 %v9407
  %v9950 = vpop.f32.mrb[0].mxu0
  %v9951 = vadd.f32 %v9252, %v9950
  %v9952 = vpop.f32.mrb[0].mxu0
  %9953 = vmatprep.mubr.f32.mxu0 0.0
  %9954 = vmatmul.mubr.f32.gmra.mrb[0].mxu0 %v9410
  %v9955 = vpop.f32.mrb[0].mxu0
  %v9956 = vadd.f32 %v9252, %v9955
  %v9957 = vpop.f32.mrb[0].mxu0
  %9958 = vmatprep.mubr.f32.mxu0 0.0
  %9959 = vmatmul.mubr.f32.gmra.mrb[0].mxu0 %v9413
  %v9960 = vpop.f32.mrb[0].mxu0
  %v9961 = vadd.f32 %v9252, %v9960
  %v9962 = vpop.f32.mrb[0].mxu0
  %9963 = vmatprep.mubr.f32.mxu0 0.0
  %9964 = vmatmul.mubr.f32.gmra.mrb[0].mxu0 %v9416
  %v9965 = vpop.f32.mrb[0].mxu0
  %v9966 = vadd.f32 %v9252, %v9965
  %v9967 = vpop.f32.mrb[0].mxu0
  %9968 = vmatprep.mubr.f32.mxu0 0.0
  %9969 = vmatmul.mubr.f32.gmra.mrb[0].mxu0 %v9419
  %v9970 = vpop.f32.mrb[0].mxu0
  %v9971 = vadd.f32 %v9252, %v9970
  %v9972 = vpop.f32.mrb[0].mxu0
  %9973 = vmatprep.mubr.f32.mxu0 0.0
  %9974 = vmatmul.mubr.f32.gmra.mrb[0].mxu0 %v9422
  %v9975 = vpop.f32.mrb[0].mxu0
  %v9976 = vadd.f32 %v9252, %v9975
  %v9977 = vpop.f32.mrb[0].mxu0
  %9978 = vmatprep.mubr.f32.mxu0 0.0
  %9979 = vmatmul.mubr.f32.gmra.mrb[0].mxu0 %v9425
  %v9980 = vpop.f32.mrb[0].mxu0
  %v9981 = vadd.f32 %v9252, %v9980
  %v9982 = vpop.f32.mrb[0].mxu0
  %9983 = vmatprep.mubr.f32.mxu0 0.0
  %9984 = vmatmul.mubr.f32.gmra.mrb[0].mxu0 %v9428
  %v9985 = vpop.f32.mrb[0].mxu0
  %v9986 = vadd.f32 %v9252, %v9985
  %v9987 = vpop.f32.mrb[0].mxu0
  %9988 = vmatprep.mubr.f32.mxu0 0.0
  %9989 = vmatmul.mubr.f32.gmra.mrb[0].mxu0 %v9431
  %v9990 = vpop.f32.mrb[0].mxu0
  %v9991 = vadd.f32 %v9252, %v9990
  %v9992 = vpop.f32.mrb[0].mxu0
  %9993 = vmatprep.mubr.f32.mxu0 0.0
  %9994 = vmatmul.mubr.f32.gmra.mrb[0].mxu0 %v9434
  %v9995 = vpop.f32.mrb[0].mxu0
  %v9996 = vadd.f32 %v9252, %v9995
  %v9997 = vpop.f32.mrb[0].mxu0
  %9998 = vmatprep.mubr.f32.mxu0 0.0
  %9999 = vmatmul.mubr.f32.gmra.mrb[0].mxu0 %v9437
  %v10000 = vpop.f32.mrb[0].mxu0
  %v10001 = vadd.f32 %v9252, %v10000
  %v10002 = vpop.f32.mrb[0].mxu0
  %10003 = vmatprep.mubr.f32.mxu0 0.0
  %10004 = vmatmul.mubr.f32.gmra.mrb[0].mxu0 %v9440
  %v10005 = vpop.f32.mrb[0].mxu0
  %v10006 = vadd.f32 %v9252, %v10005
  %v10007 = vpop.f32.mrb[0].mxu0
  %10008 = vmatprep.mubr.f32.mxu0 0.0
  %10009 = vmatmul.mubr.f32.gmra.mrb[0].mxu0 %v9443
  %v10010 = vpop.f32.mrb[0].mxu0
  %v10011 = vadd.f32 %v9252, %v10010
  %v10012 = vpop.f32.mrb[0].mxu0
  %10013 = vmatprep.mubr.f32.mxu0 0.0
  %10014 = vmatmul.mubr.f32.gmra.mrb[0].mxu0 %v9446
  %v10015 = vpop.f32.mrb[0].mxu0
  %v10016 = vadd.f32 %v9252, %v10015
  %v10017 = vpop.f32.mrb[0].mxu0
  %10018 = vmatprep.mubr.f32.mxu0 0.0
  %10019 = vmatmul.mubr.f32.gmra.mrb[0].mxu0 %v9449
  %v10020 = vpop.f32.mrb[0].mxu0
  %v10021 = vadd.f32 %v9252, %v10020
  %v10022 = vpop.f32.mrb[0].mxu0
  %10023 = vmatprep.mubr.f32.mxu0 0.0
  %10024 = vmatmul.mubr.f32.gmra.mrb[0].mxu0 %v9452
  %v10025 = vpop.f32.mrb[0].mxu0
  %v10026 = vadd.f32 %v9252, %v10025
  %v10027 = vpop.f32.mrb[0].mxu0
  %10028 = vmatprep.mubr.f32.mxu0 0.0
  %10029 = vmatmul.mubr.f32.gmra.mrb[0].mxu0 %v9455
  %v10030 = vpop.f32.mrb[0].mxu0
  %v10031 = vadd.f32 %v9252, %v10030
  %v10032 = vpop.f32.mrb[0].mxu0
  %10033 = vmatprep.mubr.f32.mxu0 0.0
  %10034 = vmatmul.mubr.f32.gmra.mrb[0].mxu0 %v9458
  %v10035 = vpop.f32.mrb[0].mxu0
  %v10036 = vadd.f32 %v9252, %v10035
  %v10037 = vpop.f32.mrb[0].mxu0
  %10038 = vmatprep.mubr.f32.mxu0 0.0
  %10039 = vmatmul.mubr.f32.gmra.mrb[0].mxu0 %v9461
  %v10040 = vpop.f32.mrb[0].mxu0
  %v10041 = vadd.f32 %v9252, %v10040
  %v10042 = vpop.f32.mrb[0].mxu0
  %10043 = vmatprep.mubr.f32.mxu0 0.0
  %10044 = vmatmul.mubr.f32.gmra.mrb[0].mxu0 %v9464
  %v10045 = vpop.f32.mrb[0].mxu0
  %v10046 = vadd.f32 %v9252, %v10045
  %v10047 = vpop.f32.mrb[0].mxu0
  %10048 = vmatprep.mubr.f32.mxu0 0.0
  %10049 = vmatmul.mubr.f32.gmra.mrb[0].mxu0 %v9467
  %v10050 = vpop.f32.mrb[0].mxu0
  %v10051 = vadd.f32 %v9252, %v10050
  %v10052 = vpop.f32.mrb[0].mxu0
  %10053 = vmatprep.mubr.f32.mxu0 0.0
  %10054 = vmatmul.mubr.f32.gmra.mrb[0].mxu0 %v9470
  %v10055 = vpop.f32.mrb[0].mxu0
  %v10056 = vadd.f32 %v9252, %v10055
  %v10057 = vpop.f32.mrb[0].mxu0
  %10058 = vmatprep.mubr.f32.mxu0 0.0
  %10059 = vmatmul.mubr.f32.gmra.mrb[0].mxu0 %v9473
  %v10060 = vpop.f32.mrb[0].mxu0
  %v10061 = vadd.f32 %v9252, %v10060
  %v10062 = vpop.f32.mrb[0].mxu0
  %10063 = vmatprep.mubr.f32.mxu0 0.0
  %10064 = vmatmul.mubr.f32.gmra.mrb[0].mxu0 %v9476
  %v10065 = vpop.f32.mrb[0].mxu0
  %v10066 = vadd.f32 %v9252, %v10065
  %v10067 = vpop.f32.mrb[0].mxu0
  %10068 = vmatprep.mubr.f32.mxu0 0.0
  %10069 = vmatmul.mubr.f32.gmra.mrb[0].mxu0 %v9479
  %v10070 = vpop.f32.mrb[0].mxu0
  %v10071 = vadd.f32 %v9252, %v10070
  %v10072 = vpop.f32.mrb[0].mxu0
  %10073 = vmatprep.mubr.f32.mxu0 0.0
  %10074 = vmatmul.mubr.f32.gmra.mrb[0].mxu0 %v9482
  %v10075 = vpop.f32.mrb[0].mxu0
  %v10076 = vadd.f32 %v9252, %v10075
  %v10077 = vpop.f32.mrb[0].mxu0
  %10078 = vmatprep.mubr.f32.mxu0 0.0
  %10079 = vmatmul.mubr.f32.gmra.mrb[0].mxu0 %v9485
  %v10080 = vpop.f32.mrb[0].mxu0
  %v10081 = vadd.f32 %v9252, %v10080
  %v10082 = vpop.f32.mrb[0].mxu0
  %10083 = vmatprep.mubr.f32.mxu0 0.0
  %10084 = vmatmul.mubr.f32.gmra.mrb[0].mxu0 %v9488
  %v10085 = vpop.f32.mrb[0].mxu0
  %v10086 = vadd.f32 %v9252, %v10085
  %v10087 = vpop.f32.mrb[0].mxu0
  %10088 = vmatprep.mubr.f32.mxu0 0.0
  %10089 = vmatmul.mubr.f32.gmra.mrb[0].mxu0 %v9491
  %v10090 = vpop.f32.mrb[0].mxu0
  %v10091 = vadd.f32 %v9252, %v10090
  %v10092 = vpop.f32.mrb[0].mxu0
  %10093 = vmatprep.mubr.f32.mxu0 0.0
  %10094 = vmatmul.mubr.f32.gmra.mrb[0].mxu0 %v9494
  %v10095 = vpop.f32.mrb[0].mxu0
  %v10096 = vadd.f32 %v9252, %v10095
  %v10097 = vpop.f32.mrb[0].mxu0
  %10098 = vmatprep.mubr.f32.mxu0 0.0
  %10099 = vmatmul.mubr.f32.gmra.mrb[0].mxu0 %v9497
  %v10100 = vpop.f32.mrb[0].mxu0
  %v10101 = vadd.f32 %v9252, %v10100
  %v10102 = vpop.f32.mrb[0].mxu0
  %10103 = vmatprep.mubr.f32.mxu0 0.0
  %10104 = vmatmul.mubr.f32.gmra.mrb[0].mxu0 %v9500
  %v10105 = vpop.f32.mrb[0].mxu0
  %v10106 = vadd.f32 %v9252, %v10105
  %v10107 = vpop.f32.mrb[0].mxu0
  %10108 = vmatprep.mubr.f32.mxu0 0.0
  %10109 = vmatmul.mubr.f32.gmra.mrb[0].mxu0 %v9503
  %v10110 = vpop.f32.mrb[0].mxu0
  %v10111 = vadd.f32 %v9252, %v10110
  %v10112 = vpop.f32.mrb[0].mxu0
  %10113 = vmatprep.mubr.f32.mxu0 0.0
  %10114 = vmatmul.mubr.f32.gmra.mrb[0].mxu0 %v9506
  %v10115 = vpop.f32.mrb[0].mxu0
  %v10116 = vadd.f32 %v9252, %v10115
  %v10117 = vpop.f32.mrb[0].mxu0
  %10118 = vmatprep.mubr.f32.mxu0 0.0
  %10119 = vmatmul.mubr.f32.gmra.mrb[0].mxu0 %v9509
  %v10120 = vpop.f32.mrb[0].mxu0
  %v10121 = vadd.f32 %v9252, %v10120
  %v10122 = vpop.f32.mrb[0].mxu0
  %10123 = vmatprep.mubr.f32.mxu0 0.0
  %10124 = vmatmul.mubr.f32.gmra.mrb[0].mxu0 %v9512
  %v10125 = vpop.f32.mrb[0].mxu0
  %v10126 = vadd.f32 %v9252, %v10125
  %v10127 = vpop.f32.mrb[0].mxu0
  %10128 = vmatprep.mubr.f32.mxu0 0.0
  %10129 = vmatmul.mubr.f32.gmra.mrb[0].mxu0 %v9515
  %v10130 = vpop.f32.mrb[0].mxu0
  %v10131 = vadd.f32 %v9252, %v10130
  %v10132 = vpop.f32.mrb[0].mxu0
  %10133 = vmatprep.mubr.f32.mxu0 0.0
  %10134 = vmatmul.mubr.f32.gmra.mrb[0].mxu0 %v9518
  %v10135 = vpop.f32.mrb[0].mxu0
  %v10136 = vadd.f32 %v9252, %v10135
  %v10137 = vpop.f32.mrb[0].mxu0
  %10138 = vmatprep.mubr.f32.mxu0 0.0
  %10139 = vmatmul.mubr.f32.gmra.mrb[0].mxu0 %v9521
  %v10140 = vpop.f32.mrb[0].mxu0
  %v10141 = vadd.f32 %v9252, %v10140
  %v10142 = vpop.f32.mrb[0].mxu0
  %10143 = vmatprep.mubr.f32.mxu0 0.0
  %10144 = vmatmul.mubr.f32.gmra.mrb[0].mxu0 %v9524
  %v10145 = vpop.f32.mrb[0].mxu0
  %v10146 = vadd.f32 %v9252, %v10145
  %v10147 = vpop.f32.mrb[0].mxu0
  %10148 = vmatprep.mubr.f32.mxu0 0.0
  %10149 = vmatmul.mubr.f32.gmra.mrb[0].mxu0 %v9527
  %v10150 = vpop.f32.mrb[0].mxu0
  %v10151 = vadd.f32 %v9252, %v10150
  %v10152 = vpop.f32.mrb[0].mxu0
  %10153 = vmatprep.mubr.f32.mxu0 0.0
  %10154 = vmatmul.mubr.f32.gmra.mrb[0].mxu0 %v9530
  %v10155 = vpop.f32.mrb[0].mxu0
  %v10156 = vadd.f32 %v9252, %v10155
  %v10157 = vpop.f32.mrb[0].mxu0
  %10158 = vmatprep.mubr.f32.mxu0 0.0
  %10159 = vmatmul.mubr.f32.gmra.mrb[0].mxu0 %v9533
  %v10160 = vpop.f32.mrb[0].mxu0
  %v10161 = vadd.f32 %v9252, %v10160
  %v10162 = vpop.f32.mrb[0].mxu0
  %10163 = vmatprep.mubr.f32.mxu0 0.0
  %10164 = vmatmul.mubr.f32.gmra.mrb[0].mxu0 %v9536
  %v10165 = vpop.f32.mrb[0].mxu0
  %v10166 = vadd.f32 %v9252, %v10165
  %v10167 = vpop.f32.mrb[0].mxu0
  %10168 = vmatprep.mubr.f32.mxu0 0.0
  %10169 = vmatmul.mubr.f32.gmra.mrb[0].mxu0 %v9539
  %v10170 = vpop.f32.mrb[0].mxu0
  %v10171 = vadd.f32 %v9252, %v10170
  %v10172 = vpop.f32.mrb[0].mxu0
  %10173 = vmatprep.mubr.f32.mxu0 0.0
  %10174 = vmatmul.mubr.f32.gmra.mrb[0].mxu0 %v9542
  %v10175 = vpop.f32.mrb[0].mxu0
  %v10176 = vadd.f32 %v9252, %v10175
  %v10177 = vpop.f32.mrb[0].mxu0
  %10178 = vmatprep.mubr.f32.mxu0 0.0
  %10179 = vmatmul.mubr.f32.gmra.mrb[0].mxu0 %v9545
  %v10180 = vpop.f32.mrb[0].mxu0
  %v10181 = vadd.f32 %v9252, %v10180
  %v10182 = vpop.f32.mrb[0].mxu0
  %10183 = vmatprep.mubr.f32.mxu0 0.0
  %10184 = vmatmul.mubr.f32.gmra.mrb[0].mxu0 %v9548
  %v10185 = vpop.f32.mrb[0].mxu0
  %v10186 = vadd.f32 %v9252, %v10185
  %v10187 = vpop.f32.mrb[0].mxu0
  %10188 = vmatprep.mubr.f32.mxu0 0.0
  %10189 = vmatmul.mubr.f32.gmra.mrb[0].mxu0 %v9551
  %v10190 = vpop.f32.mrb[0].mxu0
  %v10191 = vadd.f32 %v9252, %v10190
  %v10192 = vpop.f32.mrb[0].mxu0
  %10193 = vmatprep.mubr.f32.mxu0 0.0
  %10194 = vmatmul.mubr.f32.gmra.mrb[0].mxu0 %v9554
  %v10195 = vpop.f32.mrb[0].mxu0
  %v10196 = vadd.f32 %v9252, %v10195
  %v10197 = vpop.f32.mrb[0].mxu0
  %10198 = vmatprep.mubr.f32.mxu0 0.0
  %10199 = vmatmul.mubr.f32.gmra.mrb[0].mxu0 %v9557
  %v10200 = vpop.f32.mrb[0].mxu0
  %v10201 = vadd.f32 %v9252, %v10200
  %v10202 = vpop.f32.mrb[0].mxu0
  %10203 = vmatprep.mubr.f32.mxu0 0.0
  %10204 = vmatmul.mubr.f32.gmra.mrb[0].mxu0 %v9560
  %v10205 = vpop.f32.mrb[0].mxu0
  %v10206 = vadd.f32 %v9252, %v10205
  %v10207 = vpop.f32.mrb[0].mxu0
  %10208 = vmatprep.mubr.f32.mxu0 0.0
  %10209 = vmatmul.mubr.f32.gmra.mrb[0].mxu0 %v9563
  %v10210 = vpop.f32.mrb[0].mxu0
  %v10211 = vadd.f32 %v9252, %v10210
  %v10212 = vpop.f32.mrb[0].mxu0
  %10213 = vmatprep.mubr.f32.mxu0 0.0
  %10214 = vmatmul.mubr.f32.gmra.mrb[0].mxu0 %v9566
  %v10215 = vpop.f32.mrb[0].mxu0
  %v10216 = vadd.f32 %v9252, %v10215
  %v10217 = vpop.f32.mrb[0].mxu0
  %10218 = vmatprep.mubr.f32.mxu0 0.0
  %10219 = vmatmul.mubr.f32.gmra.mrb[0].mxu0 %v9569
  %v10220 = vpop.f32.mrb[0].mxu0
  %v10221 = vadd.f32 %v9252, %v10220
  %v10222 = vpop.f32.mrb[0].mxu0
  %10223 = vmatprep.mubr.f32.mxu0 0.0
  %10224 = vmatmul.mubr.f32.gmra.mrb[0].mxu0 %v9572
  %v10225 = vpop.f32.mrb[0].mxu0
  %v10226 = vadd.f32 %v9252, %v10225
  %v10227 = vpop.f32.mrb[0].mxu0
  %10228 = vmatprep.mubr.f32.mxu0 0.0
  %10229 = vmatmul.mubr.f32.gmra.mrb[0].mxu0 %v9575
  %v10230 = vpop.f32.mrb[0].mxu0
  %v10231 = vadd.f32 %v9252, %v10230
  %v10232 = vpop.f32.mrb[0].mxu0
  %10233 = vmatprep.mubr.f32.mxu0 0.0
  %10234 = vmatmul.mubr.f32.gmra.mrb[0].mxu0 %v9578
  %v10235 = vpop.f32.mrb[0].mxu0
  %v10236 = vadd.f32 %v9252, %v10235
  %v10237 = vpop.f32.mrb[0].mxu0
  %10238 = vmatprep.mubr.f32.mxu0 0.0
  %10239 = vmatmul.mubr.f32.gmra.mrb[0].mxu0 %v9581
  %v10240 = vpop.f32.mrb[0].mxu0
  %v10241 = vadd.f32 %v9252, %v10240
  %v10242 = vpop.f32.mrb[0].mxu0
  %10243 = vmatprep.mubr.f32.mxu0 0.0
  %10244 = vmatmul.mubr.f32.gmra.mrb[0].mxu0 %v9584
  %v10245 = vpop.f32.mrb[0].mxu0
  %v10246 = vadd.f32 %v9252, %v10245
  %v10247 = vpop.f32.mrb[0].mxu0
  %10248 = vmatprep.mubr.f32.mxu0 0.0
  %10249 = vmatmul.mubr.f32.gmra.mrb[0].mxu0 %v9587
  %v10250 = vpop.f32.mrb[0].mxu0
  %v10251 = vadd.f32 %v9252, %v10250
  %v10252 = vpop.f32.mrb[0].mxu0
  %10253 = vmatprep.mubr.f32.mxu0 0.0
  %10254 = vmatmul.mubr.f32.gmra.mrb[0].mxu0 %v9590
  %v10255 = vpop.f32.mrb[0].mxu0
  %v10256 = vadd.f32 %v9252, %v10255
  %v10257 = vpop.f32.mrb[0].mxu0
  %10258 = vmatprep.mubr.f32.mxu0 0.0
  %10259 = vmatmul.mubr.f32.gmra.mrb[0].mxu0 %v9593
  %v10260 = vpop.f32.mrb[0].mxu0
  %v10261 = vadd.f32 %v9252, %v10260
  %v10262 = vpop.f32.mrb[0].mxu0
  %10263 = vmatprep.mubr.f32.mxu0 0.0
  %10264 = vmatmul.mubr.f32.gmra.mrb[0].mxu0 %v9596
  %v10265 = vpop.f32.mrb[0].mxu0
  %v10266 = vadd.f32 %v9252, %v10265
  %v10267 = vpop.f32.mrb[0].mxu0
  %10268 = vmatprep.mubr.f32.mxu0 0.0
  %10269 = vmatmul.mubr.f32.gmra.mrb[0].mxu0 %v9599
  %v10270 = vpop.f32.mrb[0].mxu0
  %v10271 = vadd.f32 %v9252, %v10270
  %v10272 = vpop.f32.mrb[0].mxu0
  %10273 = vmatprep.mubr.f32.mxu0 0.0
  %10274 = vmatmul.mubr.f32.gmra.mrb[0].mxu0 %v9602
  %v10275 = vpop.f32.mrb[0].mxu0
  %v10276 = vadd.f32 %v9252, %v10275
  %v10277 = vpop.f32.mrb[0].mxu0
  %10278 = vmatprep.mubr.f32.mxu0 0.0
  %10279 = vmatmul.mubr.f32.gmra.mrb[0].mxu0 %v9605
  %v10280 = vpop.f32.mrb[0].mxu0
  %v10281 = vadd.f32 %v9252, %v10280
  %v10282 = vpop.f32.mrb[0].mxu0
  %10283 = vmatprep.mubr.f32.mxu0 0.0
  %10284 = vmatmul.mubr.f32.gmra.mrb[0].mxu0 %v9608
  %v10285 = vpop.f32.mrb[0].mxu0
  %v10286 = vadd.f32 %v9252, %v10285
  %v10287 = vpop.f32.mrb[0].mxu0
  %10288 = vmatprep.mubr.f32.mxu0 0.0
  %10289 = vmatmul.mubr.f32.gmra.mrb[0].mxu0 %v9611
  %v10290 = vpop.f32.mrb[0].mxu0
  %v10291 = vadd.f32 %v9252, %v10290
  %v10292 = vpop.f32.mrb[0].mxu0
  %10293 = vmatprep.mubr.f32.mxu0 0.0
  %10294 = vmatmul.mubr.f32.gmra.mrb[0].mxu0 %v9614
  %v10295 = vpop.f32.mrb[0].mxu0
  %v10296 = vadd.f32 %v9252, %v10295
  %v10297 = vpop.f32.mrb[0].mxu0
  %10298 = vmatprep.mubr.f32.mxu0 0.0
  %10299 = vmatmul.mubr.f32.gmra.mrb[0].mxu0 %v9617
  %v10300 = vpop.f32.mrb[0].mxu0
  %v10301 = vadd.f32 %v9252, %v10300
  %v10302 = vpop.f32.mrb[0].mxu0
  %10303 = vmatprep.mubr.f32.mxu0 0.0
  %10304 = vmatmul.mubr.f32.gmra.mrb[0].mxu0 %v9620
  %v10305 = vpop.f32.mrb[0].mxu0
  %v10306 = vadd.f32 %v9252, %v10305
  %v10307 = vpop.f32.mrb[0].mxu0
  %10308 = vmatprep.mubr.f32.mxu0 0.0
  %10309 = vmatmul.mubr.f32.gmra.mrb[0].mxu0 %v9623
  %v10310 = vpop.f32.mrb[0].mxu0
  %v10311 = vadd.f32 %v9252, %v10310
  %v10312 = vpop.f32.mrb[0].mxu0
  %10313 = vmatprep.mubr.f32.mxu0 0.0
  %10314 = vmatmul.mubr.f32.gmra.mrb[0].mxu0 %v9626
  %v10315 = vpop.f32.mrb[0].mxu0
  %v10316 = vadd.f32 %v9252, %v10315
  %v10317 = vpop.f32.mrb[0].mxu0
  %10318 = vmatprep.mubr.f32.mxu0 0.0
  %10319 = vmatmul.mubr.f32.gmra.mrb[0].mxu0 %v9629
  %v10320 = vpop.f32.mrb[0].mxu0
  %v10321 = vadd.f32 %v9252, %v10320
  %v10322 = vpop.f32.mrb[0].mxu0
  %10323 = vmatprep.mubr.f32.mxu0 0.0
  %10324 = vmatmul.mubr.f32.gmra.mrb[0].mxu0 %v9632
  %v10325 = vpop.f32.mrb[0].mxu0
  %v10326 = vadd.f32 %v9252, %v10325
  %v10327 = vpop.f32.mrb[0].mxu0
  %10328 = vmatprep.mubr.f32.mxu0 0.0
  %10329 = vmatmul.mubr.f32.gmra.mrb[0].mxu0 %v9635
  %v10330 = vpop.f32.mrb[0].mxu0
  %v10331 = vadd.f32 %v9252, %v10330
  %v10332 = vpop.f32.mrb[0].mxu0
  %10333 = vmatprep.mubr.f32.mxu0 0.0
  %10334 = vmatmul.mubr.f32.gmra.mrb[0].mxu0 %v9638
  %v10335 = vpop.f32.mrb[0].mxu0
  %v10336 = vadd.f32 %v9252, %v10335
  %v10337 = vpop.f32.mrb[0].mxu0
  %10338 = vmatprep.mubr.f32.mxu0 0.0
  %10339 = vmatmul.mubr.f32.gmra.mrb[0].mxu0 %v9641
  %v10340 = vpop.f32.mrb[0].mxu0
  %v10341 = vadd.f32 %v9252, %v10340
  %v10342 = vpop.f32.mrb[0].mxu0
  %10343 = vmatprep.mubr.f32.mxu0 0.0
  %10344 = vmatmul.mubr.f32.gmra.mrb[0].mxu0 %v9644
  %v10345 = vpop.f32.mrb[0].mxu0
  %v10346 = vadd.f32 %v9252, %v10345
  %v10347 = vpop.f32.mrb[0].mxu0
  %10348 = vmatprep.mubr.f32.mxu0 0.0
  %10349 = vmatmul.mubr.f32.gmra.mrb[0].mxu0 %v9647
  %v10350 = vpop.f32.mrb[0].mxu0
  %v10351 = vadd.f32 %v9252, %v10350
  %v10352 = vpop.f32.mrb[0].mxu0
  %10353 = vdwg.mxu0
  %v10354 = vsel %vm199, %v9716, -inf
  %v10355 = vsel %vm199, %v9721, -inf
  %v10356 = vmax.f32 %v10354, %v10355
  %v10357 = vrot.slane %v10356, 4
  %v10358 = vmax.f32 %v10356, %v10357
  %v10359 = vrot.slane %v10358, 2
  %v10360 = vmax.f32 %v10358, %v10359
  %v10361 = vrot.slane %v10360, 1
  %v10362 = vmax.f32 %v10360, %v10361
  %v10363 = vsel %vm199, %v9726, -inf
  %v10364 = vsel %vm199, %v9731, -inf
  %v10365 = vmax.f32 %v10363, %v10364
  %v10366 = vrot.slane %v10365, 4
  %v10367 = vmax.f32 %v10365, %v10366
  %v10368 = vrot.slane %v10367, 2
  %v10369 = vmax.f32 %v10367, %v10368
  %v10370 = vrot.slane %v10369, 1
  %v10371 = vmax.f32 %v10369, %v10370
  %v10372 = vsel %vm199, %v9736, -inf
  %v10373 = vsel %vm199, %v9741, -inf
  %v10374 = vmax.f32 %v10372, %v10373
  %v10375 = vrot.slane %v10374, 4
  %v10376 = vmax.f32 %v10374, %v10375
  %v10377 = vrot.slane %v10376, 2
  %v10378 = vmax.f32 %v10376, %v10377
  %v10379 = vrot.slane %v10378, 1
  %v10380 = vmax.f32 %v10378, %v10379
  %v10381 = vsel %vm199, %v9746, -inf
  %v10382 = vsel %vm199, %v9751, -inf
  %v10383 = vmax.f32 %v10381, %v10382
  %v10384 = vrot.slane %v10383, 4
  %v10385 = vmax.f32 %v10383, %v10384
  %v10386 = vrot.slane %v10385, 2
  %v10387 = vmax.f32 %v10385, %v10386
  %v10388 = vrot.slane %v10387, 1
  %v10389 = vmax.f32 %v10387, %v10388
  %v10390 = vsel %vm199, %v9756, -inf
  %v10391 = vsel %vm199, %v9761, -inf
  %v10392 = vmax.f32 %v10390, %v10391
  %v10393 = vrot.slane %v10392, 4
  %v10394 = vmax.f32 %v10392, %v10393
  %v10395 = vrot.slane %v10394, 2
  %v10396 = vmax.f32 %v10394, %v10395
  %v10397 = vrot.slane %v10396, 1
  %v10398 = vmax.f32 %v10396, %v10397
  %v10399 = vsel %vm199, %v9766, -inf
  %v10400 = vsel %vm199, %v9771, -inf
  %v10401 = vmax.f32 %v10399, %v10400
  %v10402 = vrot.slane %v10401, 4
  %v10403 = vmax.f32 %v10401, %v10402
  %v10404 = vrot.slane %v10403, 2
  %v10405 = vmax.f32 %v10403, %v10404
  %v10406 = vrot.slane %v10405, 1
  %v10407 = vmax.f32 %v10405, %v10406
  %v10408 = vsel %vm199, %v9776, -inf
  %v10409 = vsel %vm199, %v9781, -inf
  %v10410 = vmax.f32 %v10408, %v10409
  %v10411 = vrot.slane %v10410, 4
  %v10412 = vmax.f32 %v10410, %v10411
  %v10413 = vrot.slane %v10412, 2
  %v10414 = vmax.f32 %v10412, %v10413
  %v10415 = vrot.slane %v10414, 1
  %v10416 = vmax.f32 %v10414, %v10415
  %v10417 = vsel %vm199, %v9786, -inf
  %v10418 = vsel %vm199, %v9791, -inf
  %v10419 = vmax.f32 %v10417, %v10418
  %v10420 = vrot.slane %v10419, 4
  %v10421 = vmax.f32 %v10419, %v10420
  %v10422 = vrot.slane %v10421, 2
  %v10423 = vmax.f32 %v10421, %v10422
  %v10424 = vrot.slane %v10423, 1
  %v10425 = vmax.f32 %v10423, %v10424
  %v10426 = vsel %vm199, %v9796, -inf
  %v10427 = vsel %vm199, %v9801, -inf
  %v10428 = vmax.f32 %v10426, %v10427
  %v10429 = vrot.slane %v10428, 4
  %v10430 = vmax.f32 %v10428, %v10429
  %v10431 = vrot.slane %v10430, 2
  %v10432 = vmax.f32 %v10430, %v10431
  %v10433 = vrot.slane %v10432, 1
  %v10434 = vmax.f32 %v10432, %v10433
  %v10435 = vsel %vm199, %v9806, -inf
  %v10436 = vsel %vm199, %v9811, -inf
  %v10437 = vmax.f32 %v10435, %v10436
  %v10438 = vrot.slane %v10437, 4
  %v10439 = vmax.f32 %v10437, %v10438
  %v10440 = vrot.slane %v10439, 2
  %v10441 = vmax.f32 %v10439, %v10440
  %v10442 = vrot.slane %v10441, 1
  %v10443 = vmax.f32 %v10441, %v10442
  %v10444 = vsel %vm199, %v9816, -inf
  %v10445 = vsel %vm199, %v9821, -inf
  %v10446 = vmax.f32 %v10444, %v10445
  %v10447 = vrot.slane %v10446, 4
  %v10448 = vmax.f32 %v10446, %v10447
  %v10449 = vrot.slane %v10448, 2
  %v10450 = vmax.f32 %v10448, %v10449
  %v10451 = vrot.slane %v10450, 1
  %v10452 = vmax.f32 %v10450, %v10451
  %v10453 = vsel %vm199, %v9826, -inf
  %v10454 = vsel %vm199, %v9831, -inf
  %v10455 = vmax.f32 %v10453, %v10454
  %v10456 = vrot.slane %v10455, 4
  %v10457 = vmax.f32 %v10455, %v10456
  %v10458 = vrot.slane %v10457, 2
  %v10459 = vmax.f32 %v10457, %v10458
  %v10460 = vrot.slane %v10459, 1
  %v10461 = vmax.f32 %v10459, %v10460
  %v10462 = vsel %vm199, %v9836, -inf
  %v10463 = vsel %vm199, %v9841, -inf
  %v10464 = vmax.f32 %v10462, %v10463
  %v10465 = vrot.slane %v10464, 4
  %v10466 = vmax.f32 %v10464, %v10465
  %v10467 = vrot.slane %v10466, 2
  %v10468 = vmax.f32 %v10466, %v10467
  %v10469 = vrot.slane %v10468, 1
  %v10470 = vmax.f32 %v10468, %v10469
  %v10471 = vsel %vm199, %v9846, -inf
  %v10472 = vsel %vm199, %v9851, -inf
  %v10473 = vmax.f32 %v10471, %v10472
  %v10474 = vrot.slane %v10473, 4
  %v10475 = vmax.f32 %v10473, %v10474
  %v10476 = vrot.slane %v10475, 2
  %v10477 = vmax.f32 %v10475, %v10476
  %v10478 = vrot.slane %v10477, 1
  %v10479 = vmax.f32 %v10477, %v10478
  %v10480 = vsel %vm199, %v9856, -inf
  %v10481 = vsel %vm199, %v9861, -inf
  %v10482 = vmax.f32 %v10480, %v10481
  %v10483 = vrot.slane %v10482, 4
  %v10484 = vmax.f32 %v10482, %v10483
  %v10485 = vrot.slane %v10484, 2
  %v10486 = vmax.f32 %v10484, %v10485
  %v10487 = vrot.slane %v10486, 1
  %v10488 = vmax.f32 %v10486, %v10487
  %v10489 = vsel %vm199, %v9866, -inf
  %v10490 = vsel %vm199, %v9871, -inf
  %v10491 = vmax.f32 %v10489, %v10490
  %v10492 = vrot.slane %v10491, 4
  %v10493 = vmax.f32 %v10491, %v10492
  %v10494 = vrot.slane %v10493, 2
  %v10495 = vmax.f32 %v10493, %v10494
  %v10496 = vrot.slane %v10495, 1
  %v10497 = vmax.f32 %v10495, %v10496
  %v10498 = vsel %vm199, %v9876, -inf
  %v10499 = vsel %vm199, %v9881, -inf
  %v10500 = vmax.f32 %v10498, %v10499
  %v10501 = vrot.slane %v10500, 4
  %v10502 = vmax.f32 %v10500, %v10501
  %v10503 = vrot.slane %v10502, 2
  %v10504 = vmax.f32 %v10502, %v10503
  %v10505 = vrot.slane %v10504, 1
  %v10506 = vmax.f32 %v10504, %v10505
  %v10507 = vsel %vm199, %v9886, -inf
  %v10508 = vsel %vm199, %v9891, -inf
  %v10509 = vmax.f32 %v10507, %v10508
  %v10510 = vrot.slane %v10509, 4
  %v10511 = vmax.f32 %v10509, %v10510
  %v10512 = vrot.slane %v10511, 2
  %v10513 = vmax.f32 %v10511, %v10512
  %v10514 = vrot.slane %v10513, 1
  %v10515 = vmax.f32 %v10513, %v10514
  %v10516 = vsel %vm199, %v9896, -inf
  %v10517 = vsel %vm199, %v9901, -inf
  %v10518 = vmax.f32 %v10516, %v10517
  %v10519 = vrot.slane %v10518, 4
  %v10520 = vmax.f32 %v10518, %v10519
  %v10521 = vrot.slane %v10520, 2
  %v10522 = vmax.f32 %v10520, %v10521
  %v10523 = vrot.slane %v10522, 1
  %v10524 = vmax.f32 %v10522, %v10523
  %v10525 = vsel %vm199, %v9906, -inf
  %v10526 = vsel %vm199, %v9911, -inf
  %v10527 = vmax.f32 %v10525, %v10526
  %v10528 = vrot.slane %v10527, 4
  %v10529 = vmax.f32 %v10527, %v10528
  %v10530 = vrot.slane %v10529, 2
  %v10531 = vmax.f32 %v10529, %v10530
  %v10532 = vrot.slane %v10531, 1
  %v10533 = vmax.f32 %v10531, %v10532
  %v10534 = vsel %vm199, %v9916, -inf
  %v10535 = vsel %vm199, %v9921, -inf
  %v10536 = vmax.f32 %v10534, %v10535
  %v10537 = vrot.slane %v10536, 4
  %v10538 = vmax.f32 %v10536, %v10537
  %v10539 = vrot.slane %v10538, 2
  %v10540 = vmax.f32 %v10538, %v10539
  %v10541 = vrot.slane %v10540, 1
  %v10542 = vmax.f32 %v10540, %v10541
  %v10543 = vsel %vm199, %v9926, -inf
  %v10544 = vsel %vm199, %v9931, -inf
  %v10545 = vmax.f32 %v10543, %v10544
  %v10546 = vrot.slane %v10545, 4
  %v10547 = vmax.f32 %v10545, %v10546
  %v10548 = vrot.slane %v10547, 2
  %v10549 = vmax.f32 %v10547, %v10548
  %v10550 = vrot.slane %v10549, 1
  %v10551 = vmax.f32 %v10549, %v10550
  %v10552 = vsel %vm199, %v9936, -inf
  %v10553 = vsel %vm199, %v9941, -inf
  %v10554 = vmax.f32 %v10552, %v10553
  %v10555 = vrot.slane %v10554, 4
  %v10556 = vmax.f32 %v10554, %v10555
  %v10557 = vrot.slane %v10556, 2
  %v10558 = vmax.f32 %v10556, %v10557
  %v10559 = vrot.slane %v10558, 1
  %v10560 = vmax.f32 %v10558, %v10559
  %v10561 = vsel %vm199, %v9946, -inf
  %v10562 = vsel %vm199, %v9951, -inf
  %v10563 = vmax.f32 %v10561, %v10562
  %v10564 = vrot.slane %v10563, 4
  %v10565 = vmax.f32 %v10563, %v10564
  %v10566 = vrot.slane %v10565, 2
  %v10567 = vmax.f32 %v10565, %v10566
  %v10568 = vrot.slane %v10567, 1
  %v10569 = vmax.f32 %v10567, %v10568
  %v10570 = vsel %vm199, %v9956, -inf
  %v10571 = vsel %vm199, %v9961, -inf
  %v10572 = vmax.f32 %v10570, %v10571
  %v10573 = vrot.slane %v10572, 4
  %v10574 = vmax.f32 %v10572, %v10573
  %v10575 = vrot.slane %v10574, 2
  %v10576 = vmax.f32 %v10574, %v10575
  %v10577 = vrot.slane %v10576, 1
  %v10578 = vmax.f32 %v10576, %v10577
  %v10579 = vsel %vm199, %v9966, -inf
  %v10580 = vsel %vm199, %v9971, -inf
  %v10581 = vmax.f32 %v10579, %v10580
  %v10582 = vrot.slane %v10581, 4
  %v10583 = vmax.f32 %v10581, %v10582
  %v10584 = vrot.slane %v10583, 2
  %v10585 = vmax.f32 %v10583, %v10584
  %v10586 = vrot.slane %v10585, 1
  %v10587 = vmax.f32 %v10585, %v10586
  %v10588 = vsel %vm199, %v9976, -inf
  %v10589 = vsel %vm199, %v9981, -inf
  %v10590 = vmax.f32 %v10588, %v10589
  %v10591 = vrot.slane %v10590, 4
  %v10592 = vmax.f32 %v10590, %v10591
  %v10593 = vrot.slane %v10592, 2
  %v10594 = vmax.f32 %v10592, %v10593
  %v10595 = vrot.slane %v10594, 1
  %v10596 = vmax.f32 %v10594, %v10595
  %v10597 = vsel %vm199, %v9986, -inf
  %v10598 = vsel %vm199, %v9991, -inf
  %v10599 = vmax.f32 %v10597, %v10598
  %v10600 = vrot.slane %v10599, 4
  %v10601 = vmax.f32 %v10599, %v10600
  %v10602 = vrot.slane %v10601, 2
  %v10603 = vmax.f32 %v10601, %v10602
  %v10604 = vrot.slane %v10603, 1
  %v10605 = vmax.f32 %v10603, %v10604
  %v10606 = vsel %vm199, %v9996, -inf
  %v10607 = vsel %vm199, %v10001, -inf
  %v10608 = vmax.f32 %v10606, %v10607
  %v10609 = vrot.slane %v10608, 4
  %v10610 = vmax.f32 %v10608, %v10609
  %v10611 = vrot.slane %v10610, 2
  %v10612 = vmax.f32 %v10610, %v10611
  %v10613 = vrot.slane %v10612, 1
  %v10614 = vmax.f32 %v10612, %v10613
  %v10615 = vsel %vm199, %v10006, -inf
  %v10616 = vsel %vm199, %v10011, -inf
  %v10617 = vmax.f32 %v10615, %v10616
  %v10618 = vrot.slane %v10617, 4
  %v10619 = vmax.f32 %v10617, %v10618
  %v10620 = vrot.slane %v10619, 2
  %v10621 = vmax.f32 %v10619, %v10620
  %v10622 = vrot.slane %v10621, 1
  %v10623 = vmax.f32 %v10621, %v10622
  %v10624 = vsel %vm199, %v10016, -inf
  %v10625 = vsel %vm199, %v10021, -inf
  %v10626 = vmax.f32 %v10624, %v10625
  %v10627 = vrot.slane %v10626, 4
  %v10628 = vmax.f32 %v10626, %v10627
  %v10629 = vrot.slane %v10628, 2
  %v10630 = vmax.f32 %v10628, %v10629
  %v10631 = vrot.slane %v10630, 1
  %v10632 = vmax.f32 %v10630, %v10631
  %v10633 = vsel %vm199, %v10026, -inf
  %v10634 = vsel %vm199, %v10031, -inf
  %v10635 = vmax.f32 %v10633, %v10634
  %v10636 = vrot.slane %v10635, 4
  %v10637 = vmax.f32 %v10635, %v10636
  %v10638 = vrot.slane %v10637, 2
  %v10639 = vmax.f32 %v10637, %v10638
  %v10640 = vrot.slane %v10639, 1
  %v10641 = vmax.f32 %v10639, %v10640
  %v10642 = vsel %vm199, %v10036, -inf
  %v10643 = vsel %vm199, %v10041, -inf
  %v10644 = vmax.f32 %v10642, %v10643
  %v10645 = vrot.slane %v10644, 4
  %v10646 = vmax.f32 %v10644, %v10645
  %v10647 = vrot.slane %v10646, 2
  %v10648 = vmax.f32 %v10646, %v10647
  %v10649 = vrot.slane %v10648, 1
  %v10650 = vmax.f32 %v10648, %v10649
  %v10651 = vsel %vm199, %v10046, -inf
  %v10652 = vsel %vm199, %v10051, -inf
  %v10653 = vmax.f32 %v10651, %v10652
  %v10654 = vrot.slane %v10653, 4
  %v10655 = vmax.f32 %v10653, %v10654
  %v10656 = vrot.slane %v10655, 2
  %v10657 = vmax.f32 %v10655, %v10656
  %v10658 = vrot.slane %v10657, 1
  %v10659 = vmax.f32 %v10657, %v10658
  %v10660 = vsel %vm199, %v10056, -inf
  %v10661 = vsel %vm199, %v10061, -inf
  %v10662 = vmax.f32 %v10660, %v10661
  %v10663 = vrot.slane %v10662, 4
  %v10664 = vmax.f32 %v10662, %v10663
  %v10665 = vrot.slane %v10664, 2
  %v10666 = vmax.f32 %v10664, %v10665
  %v10667 = vrot.slane %v10666, 1
  %v10668 = vmax.f32 %v10666, %v10667
  %v10669 = vsel %vm199, %v10066, -inf
  %v10670 = vsel %vm199, %v10071, -inf
  %v10671 = vmax.f32 %v10669, %v10670
  %v10672 = vrot.slane %v10671, 4
  %v10673 = vmax.f32 %v10671, %v10672
  %v10674 = vrot.slane %v10673, 2
  %v10675 = vmax.f32 %v10673, %v10674
  %v10676 = vrot.slane %v10675, 1
  %v10677 = vmax.f32 %v10675, %v10676
  %v10678 = vsel %vm199, %v10076, -inf
  %v10679 = vsel %vm199, %v10081, -inf
  %v10680 = vmax.f32 %v10678, %v10679
  %v10681 = vrot.slane %v10680, 4
  %v10682 = vmax.f32 %v10680, %v10681
  %v10683 = vrot.slane %v10682, 2
  %v10684 = vmax.f32 %v10682, %v10683
  %v10685 = vrot.slane %v10684, 1
  %v10686 = vmax.f32 %v10684, %v10685
  %v10687 = vsel %vm199, %v10086, -inf
  %v10688 = vsel %vm199, %v10091, -inf
  %v10689 = vmax.f32 %v10687, %v10688
  %v10690 = vrot.slane %v10689, 4
  %v10691 = vmax.f32 %v10689, %v10690
  %v10692 = vrot.slane %v10691, 2
  %v10693 = vmax.f32 %v10691, %v10692
  %v10694 = vrot.slane %v10693, 1
  %v10695 = vmax.f32 %v10693, %v10694
  %v10696 = vsel %vm199, %v10096, -inf
  %v10697 = vsel %vm199, %v10101, -inf
  %v10698 = vmax.f32 %v10696, %v10697
  %v10699 = vrot.slane %v10698, 4
  %v10700 = vmax.f32 %v10698, %v10699
  %v10701 = vrot.slane %v10700, 2
  %v10702 = vmax.f32 %v10700, %v10701
  %v10703 = vrot.slane %v10702, 1
  %v10704 = vmax.f32 %v10702, %v10703
  %v10705 = vsel %vm199, %v10106, -inf
  %v10706 = vsel %vm199, %v10111, -inf
  %v10707 = vmax.f32 %v10705, %v10706
  %v10708 = vrot.slane %v10707, 4
  %v10709 = vmax.f32 %v10707, %v10708
  %v10710 = vrot.slane %v10709, 2
  %v10711 = vmax.f32 %v10709, %v10710
  %v10712 = vrot.slane %v10711, 1
  %v10713 = vmax.f32 %v10711, %v10712
  %v10714 = vsel %vm199, %v10116, -inf
  %v10715 = vsel %vm199, %v10121, -inf
  %v10716 = vmax.f32 %v10714, %v10715
  %v10717 = vrot.slane %v10716, 4
  %v10718 = vmax.f32 %v10716, %v10717
  %v10719 = vrot.slane %v10718, 2
  %v10720 = vmax.f32 %v10718, %v10719
  %v10721 = vrot.slane %v10720, 1
  %v10722 = vmax.f32 %v10720, %v10721
  %v10723 = vsel %vm199, %v10126, -inf
  %v10724 = vsel %vm199, %v10131, -inf
  %v10725 = vmax.f32 %v10723, %v10724
  %v10726 = vrot.slane %v10725, 4
  %v10727 = vmax.f32 %v10725, %v10726
  %v10728 = vrot.slane %v10727, 2
  %v10729 = vmax.f32 %v10727, %v10728
  %v10730 = vrot.slane %v10729, 1
  %v10731 = vmax.f32 %v10729, %v10730
  %v10732 = vsel %vm199, %v10136, -inf
  %v10733 = vsel %vm199, %v10141, -inf
  %v10734 = vmax.f32 %v10732, %v10733
  %v10735 = vrot.slane %v10734, 4
  %v10736 = vmax.f32 %v10734, %v10735
  %v10737 = vrot.slane %v10736, 2
  %v10738 = vmax.f32 %v10736, %v10737
  %v10739 = vrot.slane %v10738, 1
  %v10740 = vmax.f32 %v10738, %v10739
  %v10741 = vsel %vm199, %v10146, -inf
  %v10742 = vsel %vm199, %v10151, -inf
  %v10743 = vmax.f32 %v10741, %v10742
  %v10744 = vrot.slane %v10743, 4
  %v10745 = vmax.f32 %v10743, %v10744
  %v10746 = vrot.slane %v10745, 2
  %v10747 = vmax.f32 %v10745, %v10746
  %v10748 = vrot.slane %v10747, 1
  %v10749 = vmax.f32 %v10747, %v10748
  %v10750 = vsel %vm199, %v10156, -inf
  %v10751 = vsel %vm199, %v10161, -inf
  %v10752 = vmax.f32 %v10750, %v10751
  %v10753 = vrot.slane %v10752, 4
  %v10754 = vmax.f32 %v10752, %v10753
  %v10755 = vrot.slane %v10754, 2
  %v10756 = vmax.f32 %v10754, %v10755
  %v10757 = vrot.slane %v10756, 1
  %v10758 = vmax.f32 %v10756, %v10757
  %v10759 = vsel %vm199, %v10166, -inf
  %v10760 = vsel %vm199, %v10171, -inf
  %v10761 = vmax.f32 %v10759, %v10760
  %v10762 = vrot.slane %v10761, 4
  %v10763 = vmax.f32 %v10761, %v10762
  %v10764 = vrot.slane %v10763, 2
  %v10765 = vmax.f32 %v10763, %v10764
  %v10766 = vrot.slane %v10765, 1
  %v10767 = vmax.f32 %v10765, %v10766
  %v10768 = vsel %vm199, %v10176, -inf
  %v10769 = vsel %vm199, %v10181, -inf
  %v10770 = vmax.f32 %v10768, %v10769
  %v10771 = vrot.slane %v10770, 4
  %v10772 = vmax.f32 %v10770, %v10771
  %v10773 = vrot.slane %v10772, 2
  %v10774 = vmax.f32 %v10772, %v10773
  %v10775 = vrot.slane %v10774, 1
  %v10776 = vmax.f32 %v10774, %v10775
  %v10777 = vsel %vm199, %v10186, -inf
  %v10778 = vsel %vm199, %v10191, -inf
  %v10779 = vmax.f32 %v10777, %v10778
  %v10780 = vrot.slane %v10779, 4
  %v10781 = vmax.f32 %v10779, %v10780
  %v10782 = vrot.slane %v10781, 2
  %v10783 = vmax.f32 %v10781, %v10782
  %v10784 = vrot.slane %v10783, 1
  %v10785 = vmax.f32 %v10783, %v10784
  %v10786 = vsel %vm199, %v10196, -inf
  %v10787 = vsel %vm199, %v10201, -inf
  %v10788 = vmax.f32 %v10786, %v10787
  %v10789 = vrot.slane %v10788, 4
  %v10790 = vmax.f32 %v10788, %v10789
  %v10791 = vrot.slane %v10790, 2
  %v10792 = vmax.f32 %v10790, %v10791
  %v10793 = vrot.slane %v10792, 1
  %v10794 = vmax.f32 %v10792, %v10793
  %v10795 = vsel %vm199, %v10206, -inf
  %v10796 = vsel %vm199, %v10211, -inf
  %v10797 = vmax.f32 %v10795, %v10796
  %v10798 = vrot.slane %v10797, 4
  %v10799 = vmax.f32 %v10797, %v10798
  %v10800 = vrot.slane %v10799, 2
  %v10801 = vmax.f32 %v10799, %v10800
  %v10802 = vrot.slane %v10801, 1
  %v10803 = vmax.f32 %v10801, %v10802
  %v10804 = vsel %vm199, %v10216, -inf
  %v10805 = vsel %vm199, %v10221, -inf
  %v10806 = vmax.f32 %v10804, %v10805
  %v10807 = vrot.slane %v10806, 4
  %v10808 = vmax.f32 %v10806, %v10807
  %v10809 = vrot.slane %v10808, 2
  %v10810 = vmax.f32 %v10808, %v10809
  %v10811 = vrot.slane %v10810, 1
  %v10812 = vmax.f32 %v10810, %v10811
  %v10813 = vsel %vm199, %v10226, -inf
  %v10814 = vsel %vm199, %v10231, -inf
  %v10815 = vmax.f32 %v10813, %v10814
  %v10816 = vrot.slane %v10815, 4
  %v10817 = vmax.f32 %v10815, %v10816
  %v10818 = vrot.slane %v10817, 2
  %v10819 = vmax.f32 %v10817, %v10818
  %v10820 = vrot.slane %v10819, 1
  %v10821 = vmax.f32 %v10819, %v10820
  %v10822 = vsel %vm199, %v10236, -inf
  %v10823 = vsel %vm199, %v10241, -inf
  %v10824 = vmax.f32 %v10822, %v10823
  %v10825 = vrot.slane %v10824, 4
  %v10826 = vmax.f32 %v10824, %v10825
  %v10827 = vrot.slane %v10826, 2
  %v10828 = vmax.f32 %v10826, %v10827
  %v10829 = vrot.slane %v10828, 1
  %v10830 = vmax.f32 %v10828, %v10829
  %v10831 = vsel %vm199, %v10246, -inf
  %v10832 = vsel %vm199, %v10251, -inf
  %v10833 = vmax.f32 %v10831, %v10832
  %v10834 = vrot.slane %v10833, 4
  %v10835 = vmax.f32 %v10833, %v10834
  %v10836 = vrot.slane %v10835, 2
  %v10837 = vmax.f32 %v10835, %v10836
  %v10838 = vrot.slane %v10837, 1
  %v10839 = vmax.f32 %v10837, %v10838
  %v10840 = vsel %vm199, %v10256, -inf
  %v10841 = vsel %vm199, %v10261, -inf
  %v10842 = vmax.f32 %v10840, %v10841
  %v10843 = vrot.slane %v10842, 4
  %v10844 = vmax.f32 %v10842, %v10843
  %v10845 = vrot.slane %v10844, 2
  %v10846 = vmax.f32 %v10844, %v10845
  %v10847 = vrot.slane %v10846, 1
  %v10848 = vmax.f32 %v10846, %v10847
  %v10849 = vsel %vm199, %v10266, -inf
  %v10850 = vsel %vm199, %v10271, -inf
  %v10851 = vmax.f32 %v10849, %v10850
  %v10852 = vrot.slane %v10851, 4
  %v10853 = vmax.f32 %v10851, %v10852
  %v10854 = vrot.slane %v10853, 2
  %v10855 = vmax.f32 %v10853, %v10854
  %v10856 = vrot.slane %v10855, 1
  %v10857 = vmax.f32 %v10855, %v10856
  %v10858 = vsel %vm199, %v10276, -inf
  %v10859 = vsel %vm199, %v10281, -inf
  %v10860 = vmax.f32 %v10858, %v10859
  %v10861 = vrot.slane %v10860, 4
  %v10862 = vmax.f32 %v10860, %v10861
  %v10863 = vrot.slane %v10862, 2
  %v10864 = vmax.f32 %v10862, %v10863
  %v10865 = vrot.slane %v10864, 1
  %v10866 = vmax.f32 %v10864, %v10865
  %v10867 = vsel %vm199, %v10286, -inf
  %v10868 = vsel %vm199, %v10291, -inf
  %v10869 = vmax.f32 %v10867, %v10868
  %v10870 = vrot.slane %v10869, 4
  %v10871 = vmax.f32 %v10869, %v10870
  %v10872 = vrot.slane %v10871, 2
  %v10873 = vmax.f32 %v10871, %v10872
  %v10874 = vrot.slane %v10873, 1
  %v10875 = vmax.f32 %v10873, %v10874
  %v10876 = vsel %vm199, %v10296, -inf
  %v10877 = vsel %vm199, %v10301, -inf
  %v10878 = vmax.f32 %v10876, %v10877
  %v10879 = vrot.slane %v10878, 4
  %v10880 = vmax.f32 %v10878, %v10879
  %v10881 = vrot.slane %v10880, 2
  %v10882 = vmax.f32 %v10880, %v10881
  %v10883 = vrot.slane %v10882, 1
  %v10884 = vmax.f32 %v10882, %v10883
  %v10885 = vsel %vm199, %v10306, -inf
  %v10886 = vsel %vm199, %v10311, -inf
  %v10887 = vmax.f32 %v10885, %v10886
  %v10888 = vrot.slane %v10887, 4
  %v10889 = vmax.f32 %v10887, %v10888
  %v10890 = vrot.slane %v10889, 2
  %v10891 = vmax.f32 %v10889, %v10890
  %v10892 = vrot.slane %v10891, 1
  %v10893 = vmax.f32 %v10891, %v10892
  %v10894 = vsel %vm199, %v10316, -inf
  %v10895 = vsel %vm199, %v10321, -inf
  %v10896 = vmax.f32 %v10894, %v10895
  %v10897 = vrot.slane %v10896, 4
  %v10898 = vmax.f32 %v10896, %v10897
  %v10899 = vrot.slane %v10898, 2
  %v10900 = vmax.f32 %v10898, %v10899
  %v10901 = vrot.slane %v10900, 1
  %v10902 = vmax.f32 %v10900, %v10901
  %v10903 = vsel %vm199, %v10326, -inf
  %v10904 = vsel %vm199, %v10331, -inf
  %v10905 = vmax.f32 %v10903, %v10904
  %v10906 = vrot.slane %v10905, 4
  %v10907 = vmax.f32 %v10905, %v10906
  %v10908 = vrot.slane %v10907, 2
  %v10909 = vmax.f32 %v10907, %v10908
  %v10910 = vrot.slane %v10909, 1
  %v10911 = vmax.f32 %v10909, %v10910
  %v10912 = vsel %vm199, %v10336, -inf
  %v10913 = vsel %vm199, %v10341, -inf
  %v10914 = vmax.f32 %v10912, %v10913
  %v10915 = vrot.slane %v10914, 4
  %v10916 = vmax.f32 %v10914, %v10915
  %v10917 = vrot.slane %v10916, 2
  %v10918 = vmax.f32 %v10916, %v10917
  %v10919 = vrot.slane %v10918, 1
  %v10920 = vmax.f32 %v10918, %v10919
  %v10921 = vsel %vm199, %v10346, -inf
  %v10922 = vsel %vm199, %v10351, -inf
  %v10923 = vmax.f32 %v10921, %v10922
  %v10924 = vrot.slane %v10923, 4
  %v10925 = vmax.f32 %v10923, %v10924
  %v10926 = vrot.slane %v10925, 2
  %v10927 = vmax.f32 %v10925, %v10926
  %v10928 = vrot.slane %v10927, 1
  %v10929 = vmax.f32 %v10927, %v10928
  %v10930 = vsub.f32 %v9716, %v10362
  %v10931 = vsub.f32 %v9721, %v10362
  %v10932 = vsub.f32 %v9726, %v10371
  %v10933 = vsub.f32 %v9731, %v10371
  %v10934 = vsub.f32 %v9736, %v10380
  %v10935 = vsub.f32 %v9741, %v10380
  %v10936 = vsub.f32 %v9746, %v10389
  %v10937 = vsub.f32 %v9751, %v10389
  %v10938 = vsub.f32 %v9756, %v10398
  %v10939 = vsub.f32 %v9761, %v10398
  %v10940 = vsub.f32 %v9766, %v10407
  %v10941 = vsub.f32 %v9771, %v10407
  %v10942 = vsub.f32 %v9776, %v10416
  %v10943 = vsub.f32 %v9781, %v10416
  %v10944 = vsub.f32 %v9786, %v10425
  %v10945 = vsub.f32 %v9791, %v10425
  %v10946 = vsub.f32 %v9796, %v10434
  %v10947 = vsub.f32 %v9801, %v10434
  %v10948 = vsub.f32 %v9806, %v10443
  %v10949 = vsub.f32 %v9811, %v10443
  %v10950 = vsub.f32 %v9816, %v10452
  %v10951 = vsub.f32 %v9821, %v10452
  %v10952 = vsub.f32 %v9826, %v10461
  %v10953 = vsub.f32 %v9831, %v10461
  %v10954 = vsub.f32 %v9836, %v10470
  %v10955 = vsub.f32 %v9841, %v10470
  %v10956 = vsub.f32 %v9846, %v10479
  %v10957 = vsub.f32 %v9851, %v10479
  %v10958 = vsub.f32 %v9856, %v10488
  %v10959 = vsub.f32 %v9861, %v10488
  %v10960 = vsub.f32 %v9866, %v10497
  %v10961 = vsub.f32 %v9871, %v10497
  %v10962 = vsub.f32 %v9876, %v10506
  %v10963 = vsub.f32 %v9881, %v10506
  %v10964 = vsub.f32 %v9886, %v10515
  %v10965 = vsub.f32 %v9891, %v10515
  %v10966 = vsub.f32 %v9896, %v10524
  %v10967 = vsub.f32 %v9901, %v10524
  %v10968 = vsub.f32 %v9906, %v10533
  %v10969 = vsub.f32 %v9911, %v10533
  %v10970 = vsub.f32 %v9916, %v10542
  %v10971 = vsub.f32 %v9921, %v10542
  %v10972 = vsub.f32 %v9926, %v10551
  %v10973 = vsub.f32 %v9931, %v10551
  %v10974 = vsub.f32 %v9936, %v10560
  %v10975 = vsub.f32 %v9941, %v10560
  %v10976 = vsub.f32 %v9946, %v10569
  %v10977 = vsub.f32 %v9951, %v10569
  %v10978 = vsub.f32 %v9956, %v10578
  %v10979 = vsub.f32 %v9961, %v10578
  %v10980 = vsub.f32 %v9966, %v10587
  %v10981 = vsub.f32 %v9971, %v10587
  %v10982 = vsub.f32 %v9976, %v10596
  %v10983 = vsub.f32 %v9981, %v10596
  %v10984 = vsub.f32 %v9986, %v10605
  %v10985 = vsub.f32 %v9991, %v10605
  %v10986 = vsub.f32 %v9996, %v10614
  %v10987 = vsub.f32 %v10001, %v10614
  %v10988 = vsub.f32 %v10006, %v10623
  %v10989 = vsub.f32 %v10011, %v10623
  %v10990 = vsub.f32 %v10016, %v10632
  %v10991 = vsub.f32 %v10021, %v10632
  %v10992 = vsub.f32 %v10026, %v10641
  %v10993 = vsub.f32 %v10031, %v10641
  %v10994 = vsub.f32 %v10036, %v10650
  %v10995 = vsub.f32 %v10041, %v10650
  %v10996 = vsub.f32 %v10046, %v10659
  %v10997 = vsub.f32 %v10051, %v10659
  %v10998 = vsub.f32 %v10056, %v10668
  %v10999 = vsub.f32 %v10061, %v10668
  %v11000 = vsub.f32 %v10066, %v10677
  %v11001 = vsub.f32 %v10071, %v10677
  %v11002 = vsub.f32 %v10076, %v10686
  %v11003 = vsub.f32 %v10081, %v10686
  %v11004 = vsub.f32 %v10086, %v10695
  %v11005 = vsub.f32 %v10091, %v10695
  %v11006 = vsub.f32 %v10096, %v10704
  %v11007 = vsub.f32 %v10101, %v10704
  %v11008 = vsub.f32 %v10106, %v10713
  %v11009 = vsub.f32 %v10111, %v10713
  %v11010 = vsub.f32 %v10116, %v10722
  %v11011 = vsub.f32 %v10121, %v10722
  %v11012 = vsub.f32 %v10126, %v10731
  %v11013 = vsub.f32 %v10131, %v10731
  %v11014 = vsub.f32 %v10136, %v10740
  %v11015 = vsub.f32 %v10141, %v10740
  %v11016 = vsub.f32 %v10146, %v10749
  %v11017 = vsub.f32 %v10151, %v10749
  %v11018 = vsub.f32 %v10156, %v10758
  %v11019 = vsub.f32 %v10161, %v10758
  %v11020 = vsub.f32 %v10166, %v10767
  %v11021 = vsub.f32 %v10171, %v10767
  %v11022 = vsub.f32 %v10176, %v10776
  %v11023 = vsub.f32 %v10181, %v10776
  %v11024 = vsub.f32 %v10186, %v10785
  %v11025 = vsub.f32 %v10191, %v10785
  %v11026 = vsub.f32 %v10196, %v10794
  %v11027 = vsub.f32 %v10201, %v10794
  %v11028 = vsub.f32 %v10206, %v10803
  %v11029 = vsub.f32 %v10211, %v10803
  %v11030 = vsub.f32 %v10216, %v10812
  %v11031 = vsub.f32 %v10221, %v10812
  %v11032 = vsub.f32 %v10226, %v10821
  %v11033 = vsub.f32 %v10231, %v10821
  %v11034 = vsub.f32 %v10236, %v10830
  %v11035 = vsub.f32 %v10241, %v10830
  %v11036 = vsub.f32 %v10246, %v10839
  %v11037 = vsub.f32 %v10251, %v10839
  %v11038 = vsub.f32 %v10256, %v10848
  %v11039 = vsub.f32 %v10261, %v10848
  %v11040 = vsub.f32 %v10266, %v10857
  %v11041 = vsub.f32 %v10271, %v10857
  %v11042 = vsub.f32 %v10276, %v10866
  %v11043 = vsub.f32 %v10281, %v10866
  %v11044 = vsub.f32 %v10286, %v10875
  %v11045 = vsub.f32 %v10291, %v10875
  %v11046 = vsub.f32 %v10296, %v10884
  %v11047 = vsub.f32 %v10301, %v10884
  %v11048 = vsub.f32 %v10306, %v10893
  %v11049 = vsub.f32 %v10311, %v10893
  %v11050 = vsub.f32 %v10316, %v10902
  %v11051 = vsub.f32 %v10321, %v10902
  %v11052 = vsub.f32 %v10326, %v10911
  %v11053 = vsub.f32 %v10331, %v10911
  %v11054 = vsub.f32 %v10336, %v10920
  %v11055 = vsub.f32 %v10341, %v10920
  %v11056 = vsub.f32 %v10346, %v10929
  %v11057 = vsub.f32 %v10351, %v10929
  %v11058 = vmul.f32 %v10930, 1.442695
  %v11059 = vpow.pop %v11058
  %v11060 = vmul.f32 %v10931, 1.442695
  %v11061 = vpow.pop %v11060
  %v11062 = vmul.f32 %v10932, 1.442695
  %v11063 = vpow.pop %v11062
  %v11064 = vmul.f32 %v10933, 1.442695
  %v11065 = vpow.pop %v11064
  %v11066 = vmul.f32 %v10934, 1.442695
  %v11067 = vpow.pop %v11066
  %v11068 = vmul.f32 %v10935, 1.442695
  %v11069 = vpow.pop %v11068
  %v11070 = vmul.f32 %v10936, 1.442695
  %v11071 = vpow.pop %v11070
  %v11072 = vmul.f32 %v10937, 1.442695
  %v11073 = vpow.pop %v11072
  %v11074 = vmul.f32 %v10938, 1.442695
  %v11075 = vpow.pop %v11074
  %v11076 = vmul.f32 %v10939, 1.442695
  %v11077 = vpow.pop %v11076
  %v11078 = vmul.f32 %v10940, 1.442695
  %v11079 = vpow.pop %v11078
  %v11080 = vmul.f32 %v10941, 1.442695
  %v11081 = vpow.pop %v11080
  %v11082 = vmul.f32 %v10942, 1.442695
  %v11083 = vpow.pop %v11082
  %v11084 = vmul.f32 %v10943, 1.442695
  %v11085 = vpow.pop %v11084
  %v11086 = vmul.f32 %v10944, 1.442695
  %v11087 = vpow.pop %v11086
  %v11088 = vmul.f32 %v10945, 1.442695
  %v11089 = vpow.pop %v11088
  %v11090 = vmul.f32 %v10946, 1.442695
  %v11091 = vpow.pop %v11090
  %v11092 = vmul.f32 %v10947, 1.442695
  %v11093 = vpow.pop %v11092
  %v11094 = vmul.f32 %v10948, 1.442695
  %v11095 = vpow.pop %v11094
  %v11096 = vmul.f32 %v10949, 1.442695
  %v11097 = vpow.pop %v11096
  %v11098 = vmul.f32 %v10950, 1.442695
  %v11099 = vpow.pop %v11098
  %v11100 = vmul.f32 %v10951, 1.442695
  %v11101 = vpow.pop %v11100
  %v11102 = vmul.f32 %v10952, 1.442695
  %v11103 = vpow.pop %v11102
  %v11104 = vmul.f32 %v10953, 1.442695
  %v11105 = vpow.pop %v11104
  %v11106 = vmul.f32 %v10954, 1.442695
  %v11107 = vpow.pop %v11106
  %v11108 = vmul.f32 %v10955, 1.442695
  %v11109 = vpow.pop %v11108
  %v11110 = vmul.f32 %v10956, 1.442695
  %v11111 = vpow.pop %v11110
  %v11112 = vmul.f32 %v10957, 1.442695
  %v11113 = vpow.pop %v11112
  %v11114 = vmul.f32 %v10958, 1.442695
  %v11115 = vpow.pop %v11114
  %v11116 = vmul.f32 %v10959, 1.442695
  %v11117 = vpow.pop %v11116
  %v11118 = vmul.f32 %v10960, 1.442695
  %v11119 = vpow.pop %v11118
  %v11120 = vmul.f32 %v10961, 1.442695
  %v11121 = vpow.pop %v11120
  %v11122 = vmul.f32 %v10962, 1.442695
  %v11123 = vpow.pop %v11122
  %v11124 = vmul.f32 %v10963, 1.442695
  %v11125 = vpow.pop %v11124
  %v11126 = vmul.f32 %v10964, 1.442695
  %v11127 = vpow.pop %v11126
  %v11128 = vmul.f32 %v10965, 1.442695
  %v11129 = vpow.pop %v11128
  %v11130 = vmul.f32 %v10966, 1.442695
  %v11131 = vpow.pop %v11130
  %v11132 = vmul.f32 %v10967, 1.442695
  %v11133 = vpow.pop %v11132
  %v11134 = vmul.f32 %v10968, 1.442695
  %v11135 = vpow.pop %v11134
  %v11136 = vmul.f32 %v10969, 1.442695
  %v11137 = vpow.pop %v11136
  %v11138 = vmul.f32 %v10970, 1.442695
  %v11139 = vpow.pop %v11138
  %v11140 = vmul.f32 %v10971, 1.442695
  %v11141 = vpow.pop %v11140
  %v11142 = vmul.f32 %v10972, 1.442695
  %v11143 = vpow.pop %v11142
  %v11144 = vmul.f32 %v10973, 1.442695
  %v11145 = vpow.pop %v11144
  %v11146 = vmul.f32 %v10974, 1.442695
  %v11147 = vpow.pop %v11146
  %v11148 = vmul.f32 %v10975, 1.442695
  %v11149 = vpow.pop %v11148
  %v11150 = vmul.f32 %v10976, 1.442695
  %v11151 = vpow.pop %v11150
  %v11152 = vmul.f32 %v10977, 1.442695
  %v11153 = vpow.pop %v11152
  %v11154 = vmul.f32 %v10978, 1.442695
  %v11155 = vpow.pop %v11154
  %v11156 = vmul.f32 %v10979, 1.442695
  %v11157 = vpow.pop %v11156
  %v11158 = vmul.f32 %v10980, 1.442695
  %v11159 = vpow.pop %v11158
  %v11160 = vmul.f32 %v10981, 1.442695
  %v11161 = vpow.pop %v11160
  %v11162 = vmul.f32 %v10982, 1.442695
  %v11163 = vpow.pop %v11162
  %v11164 = vmul.f32 %v10983, 1.442695
  %v11165 = vpow.pop %v11164
  %v11166 = vmul.f32 %v10984, 1.442695
  %v11167 = vpow.pop %v11166
  %v11168 = vmul.f32 %v10985, 1.442695
  %v11169 = vpow.pop %v11168
  %v11170 = vmul.f32 %v10986, 1.442695
  %v11171 = vpow.pop %v11170
  %v11172 = vmul.f32 %v10987, 1.442695
  %v11173 = vpow.pop %v11172
  %v11174 = vmul.f32 %v10988, 1.442695
  %v11175 = vpow.pop %v11174
  %v11176 = vmul.f32 %v10989, 1.442695
  %v11177 = vpow.pop %v11176
  %v11178 = vmul.f32 %v10990, 1.442695
  %v11179 = vpow.pop %v11178
  %v11180 = vmul.f32 %v10991, 1.442695
  %v11181 = vpow.pop %v11180
  %v11182 = vmul.f32 %v10992, 1.442695
  %v11183 = vpow.pop %v11182
  %v11184 = vmul.f32 %v10993, 1.442695
  %v11185 = vpow.pop %v11184
  %v11186 = vmul.f32 %v10994, 1.442695
  %v11187 = vpow.pop %v11186
  %v11188 = vmul.f32 %v10995, 1.442695
  %v11189 = vpow.pop %v11188
  %v11190 = vmul.f32 %v10996, 1.442695
  %v11191 = vpow.pop %v11190
  %v11192 = vmul.f32 %v10997, 1.442695
  %v11193 = vpow.pop %v11192
  %v11194 = vmul.f32 %v10998, 1.442695
  %v11195 = vpow.pop %v11194
  %v11196 = vmul.f32 %v10999, 1.442695
  %v11197 = vpow.pop %v11196
  %v11198 = vmul.f32 %v11000, 1.442695
  %v11199 = vpow.pop %v11198
  %v11200 = vmul.f32 %v11001, 1.442695
  %v11201 = vpow.pop %v11200
  %v11202 = vmul.f32 %v11002, 1.442695
  %v11203 = vpow.pop %v11202
  %v11204 = vmul.f32 %v11003, 1.442695
  %v11205 = vpow.pop %v11204
  %v11206 = vmul.f32 %v11004, 1.442695
  %v11207 = vpow.pop %v11206
  %v11208 = vmul.f32 %v11005, 1.442695
  %v11209 = vpow.pop %v11208
  %v11210 = vmul.f32 %v11006, 1.442695
  %v11211 = vpow.pop %v11210
  %v11212 = vmul.f32 %v11007, 1.442695
  %v11213 = vpow.pop %v11212
  %v11214 = vmul.f32 %v11008, 1.442695
  %v11215 = vpow.pop %v11214
  %v11216 = vmul.f32 %v11009, 1.442695
  %v11217 = vpow.pop %v11216
  %v11218 = vmul.f32 %v11010, 1.442695
  %v11219 = vpow.pop %v11218
  %v11220 = vmul.f32 %v11011, 1.442695
  %v11221 = vpow.pop %v11220
  %v11222 = vmul.f32 %v11012, 1.442695
  %v11223 = vpow.pop %v11222
  %v11224 = vmul.f32 %v11013, 1.442695
  %v11225 = vpow.pop %v11224
  %v11226 = vmul.f32 %v11014, 1.442695
  %v11227 = vpow.pop %v11226
  %v11228 = vmul.f32 %v11015, 1.442695
  %v11229 = vpow.pop %v11228
  %v11230 = vmul.f32 %v11016, 1.442695
  %v11231 = vpow.pop %v11230
  %v11232 = vmul.f32 %v11017, 1.442695
  %v11233 = vpow.pop %v11232
  %v11234 = vmul.f32 %v11018, 1.442695
  %v11235 = vpow.pop %v11234
  %v11236 = vmul.f32 %v11019, 1.442695
  %v11237 = vpow.pop %v11236
  %v11238 = vmul.f32 %v11020, 1.442695
  %v11239 = vpow.pop %v11238
  %v11240 = vmul.f32 %v11021, 1.442695
  %v11241 = vpow.pop %v11240
  %v11242 = vmul.f32 %v11022, 1.442695
  %v11243 = vpow.pop %v11242
  %v11244 = vmul.f32 %v11023, 1.442695
  %v11245 = vpow.pop %v11244
  %v11246 = vmul.f32 %v11024, 1.442695
  %v11247 = vpow.pop %v11246
  %v11248 = vmul.f32 %v11025, 1.442695
  %v11249 = vpow.pop %v11248
  %v11250 = vmul.f32 %v11026, 1.442695
  %v11251 = vpow.pop %v11250
  %v11252 = vmul.f32 %v11027, 1.442695
  %v11253 = vpow.pop %v11252
  %v11254 = vmul.f32 %v11028, 1.442695
  %v11255 = vpow.pop %v11254
  %v11256 = vmul.f32 %v11029, 1.442695
  %v11257 = vpow.pop %v11256
  %v11258 = vmul.f32 %v11030, 1.442695
  %v11259 = vpow.pop %v11258
  %v11260 = vmul.f32 %v11031, 1.442695
  %v11261 = vpow.pop %v11260
  %v11262 = vmul.f32 %v11032, 1.442695
  %v11263 = vpow.pop %v11262
  %v11264 = vmul.f32 %v11033, 1.442695
  %v11265 = vpow.pop %v11264
  %v11266 = vmul.f32 %v11034, 1.442695
  %v11267 = vpow.pop %v11266
  %v11268 = vmul.f32 %v11035, 1.442695
  %v11269 = vpow.pop %v11268
  %v11270 = vmul.f32 %v11036, 1.442695
  %v11271 = vpow.pop %v11270
  %v11272 = vmul.f32 %v11037, 1.442695
  %v11273 = vpow.pop %v11272
  %v11274 = vmul.f32 %v11038, 1.442695
  %v11275 = vpow.pop %v11274
  %v11276 = vmul.f32 %v11039, 1.442695
  %v11277 = vpow.pop %v11276
  %v11278 = vmul.f32 %v11040, 1.442695
  %v11279 = vpow.pop %v11278
  %v11280 = vmul.f32 %v11041, 1.442695
  %v11281 = vpow.pop %v11280
  %v11282 = vmul.f32 %v11042, 1.442695
  %v11283 = vpow.pop %v11282
  %v11284 = vmul.f32 %v11043, 1.442695
  %v11285 = vpow.pop %v11284
  %v11286 = vmul.f32 %v11044, 1.442695
  %v11287 = vpow.pop %v11286
  %v11288 = vmul.f32 %v11045, 1.442695
  %v11289 = vpow.pop %v11288
  %v11290 = vmul.f32 %v11046, 1.442695
  %v11291 = vpow.pop %v11290
  %v11292 = vmul.f32 %v11047, 1.442695
  %v11293 = vpow.pop %v11292
  %v11294 = vmul.f32 %v11048, 1.442695
  %v11295 = vpow.pop %v11294
  %v11296 = vmul.f32 %v11049, 1.442695
  %v11297 = vpow.pop %v11296
  %v11298 = vmul.f32 %v11050, 1.442695
  %v11299 = vpow.pop %v11298
  %v11300 = vmul.f32 %v11051, 1.442695
  %v11301 = vpow.pop %v11300
  %v11302 = vmul.f32 %v11052, 1.442695
  %v11303 = vpow.pop %v11302
  %v11304 = vmul.f32 %v11053, 1.442695
  %v11305 = vpow.pop %v11304
  %v11306 = vmul.f32 %v11054, 1.442695
  %v11307 = vpow.pop %v11306
  %v11308 = vmul.f32 %v11055, 1.442695
  %v11309 = vpow.pop %v11308
  %v11310 = vmul.f32 %v11056, 1.442695
  %v11311 = vpow.pop %v11310
  %v11312 = vmul.f32 %v11057, 1.442695
  %v11313 = vpow.pop %v11312
  %v11314 = vsel %vm199, %v11059, 0.0
  %v11315 = vsel %vm199, %v11061, 0.0
  %v11316 = vadd.f32 %v11314, %v11315
  %v11317 = vrot.slane %v11316, 4
  %v11318 = vadd.f32 %v11316, %v11317
  %v11319 = vrot.slane %v11318, 2
  %v11320 = vadd.f32 %v11318, %v11319
  %v11321 = vrot.slane %v11320, 1
  %v11322 = vadd.f32 %v11320, %v11321
  %v11323 = vsel %vm199, %v11063, 0.0
  %v11324 = vsel %vm199, %v11065, 0.0
  %v11325 = vadd.f32 %v11323, %v11324
  %v11326 = vrot.slane %v11325, 4
  %v11327 = vadd.f32 %v11325, %v11326
  %v11328 = vrot.slane %v11327, 2
  %v11329 = vadd.f32 %v11327, %v11328
  %v11330 = vrot.slane %v11329, 1
  %v11331 = vadd.f32 %v11329, %v11330
  %v11332 = vsel %vm199, %v11067, 0.0
  %v11333 = vsel %vm199, %v11069, 0.0
  %v11334 = vadd.f32 %v11332, %v11333
  %v11335 = vrot.slane %v11334, 4
  %v11336 = vadd.f32 %v11334, %v11335
  %v11337 = vrot.slane %v11336, 2
  %v11338 = vadd.f32 %v11336, %v11337
  %v11339 = vrot.slane %v11338, 1
  %v11340 = vadd.f32 %v11338, %v11339
  %v11341 = vsel %vm199, %v11071, 0.0
  %v11342 = vsel %vm199, %v11073, 0.0
  %v11343 = vadd.f32 %v11341, %v11342
  %v11344 = vrot.slane %v11343, 4
  %v11345 = vadd.f32 %v11343, %v11344
  %v11346 = vrot.slane %v11345, 2
  %v11347 = vadd.f32 %v11345, %v11346
  %v11348 = vrot.slane %v11347, 1
  %v11349 = vadd.f32 %v11347, %v11348
  %v11350 = vsel %vm199, %v11075, 0.0
  %v11351 = vsel %vm199, %v11077, 0.0
  %v11352 = vadd.f32 %v11350, %v11351
  %v11353 = vrot.slane %v11352, 4
  %v11354 = vadd.f32 %v11352, %v11353
  %v11355 = vrot.slane %v11354, 2
  %v11356 = vadd.f32 %v11354, %v11355
  %v11357 = vrot.slane %v11356, 1
  %v11358 = vadd.f32 %v11356, %v11357
  %v11359 = vsel %vm199, %v11079, 0.0
  %v11360 = vsel %vm199, %v11081, 0.0
  %v11361 = vadd.f32 %v11359, %v11360
  %v11362 = vrot.slane %v11361, 4
  %v11363 = vadd.f32 %v11361, %v11362
  %v11364 = vrot.slane %v11363, 2
  %v11365 = vadd.f32 %v11363, %v11364
  %v11366 = vrot.slane %v11365, 1
  %v11367 = vadd.f32 %v11365, %v11366
  %v11368 = vsel %vm199, %v11083, 0.0
  %v11369 = vsel %vm199, %v11085, 0.0
  %v11370 = vadd.f32 %v11368, %v11369
  %v11371 = vrot.slane %v11370, 4
  %v11372 = vadd.f32 %v11370, %v11371
  %v11373 = vrot.slane %v11372, 2
  %v11374 = vadd.f32 %v11372, %v11373
  %v11375 = vrot.slane %v11374, 1
  %v11376 = vadd.f32 %v11374, %v11375
  %v11377 = vsel %vm199, %v11087, 0.0
  %v11378 = vsel %vm199, %v11089, 0.0
  %v11379 = vadd.f32 %v11377, %v11378
  %v11380 = vrot.slane %v11379, 4
  %v11381 = vadd.f32 %v11379, %v11380
  %v11382 = vrot.slane %v11381, 2
  %v11383 = vadd.f32 %v11381, %v11382
  %v11384 = vrot.slane %v11383, 1
  %v11385 = vadd.f32 %v11383, %v11384
  %v11386 = vsel %vm199, %v11091, 0.0
  %v11387 = vsel %vm199, %v11093, 0.0
  %v11388 = vadd.f32 %v11386, %v11387
  %v11389 = vrot.slane %v11388, 4
  %v11390 = vadd.f32 %v11388, %v11389
  %v11391 = vrot.slane %v11390, 2
  %v11392 = vadd.f32 %v11390, %v11391
  %v11393 = vrot.slane %v11392, 1
  %v11394 = vadd.f32 %v11392, %v11393
  %v11395 = vsel %vm199, %v11095, 0.0
  %v11396 = vsel %vm199, %v11097, 0.0
  %v11397 = vadd.f32 %v11395, %v11396
  %v11398 = vrot.slane %v11397, 4
  %v11399 = vadd.f32 %v11397, %v11398
  %v11400 = vrot.slane %v11399, 2
  %v11401 = vadd.f32 %v11399, %v11400
  %v11402 = vrot.slane %v11401, 1
  %v11403 = vadd.f32 %v11401, %v11402
  %v11404 = vsel %vm199, %v11099, 0.0
  %v11405 = vsel %vm199, %v11101, 0.0
  %v11406 = vadd.f32 %v11404, %v11405
  %v11407 = vrot.slane %v11406, 4
  %v11408 = vadd.f32 %v11406, %v11407
  %v11409 = vrot.slane %v11408, 2
  %v11410 = vadd.f32 %v11408, %v11409
  %v11411 = vrot.slane %v11410, 1
  %v11412 = vadd.f32 %v11410, %v11411
  %v11413 = vsel %vm199, %v11103, 0.0
  %v11414 = vsel %vm199, %v11105, 0.0
  %v11415 = vadd.f32 %v11413, %v11414
  %v11416 = vrot.slane %v11415, 4
  %v11417 = vadd.f32 %v11415, %v11416
  %v11418 = vrot.slane %v11417, 2
  %v11419 = vadd.f32 %v11417, %v11418
  %v11420 = vrot.slane %v11419, 1
  %v11421 = vadd.f32 %v11419, %v11420
  %v11422 = vsel %vm199, %v11107, 0.0
  %v11423 = vsel %vm199, %v11109, 0.0
  %v11424 = vadd.f32 %v11422, %v11423
  %v11425 = vrot.slane %v11424, 4
  %v11426 = vadd.f32 %v11424, %v11425
  %v11427 = vrot.slane %v11426, 2
  %v11428 = vadd.f32 %v11426, %v11427
  %v11429 = vrot.slane %v11428, 1
  %v11430 = vadd.f32 %v11428, %v11429
  %v11431 = vsel %vm199, %v11111, 0.0
  %v11432 = vsel %vm199, %v11113, 0.0
  %v11433 = vadd.f32 %v11431, %v11432
  %v11434 = vrot.slane %v11433, 4
  %v11435 = vadd.f32 %v11433, %v11434
  %v11436 = vrot.slane %v11435, 2
  %v11437 = vadd.f32 %v11435, %v11436
  %v11438 = vrot.slane %v11437, 1
  %v11439 = vadd.f32 %v11437, %v11438
  %v11440 = vsel %vm199, %v11115, 0.0
  %v11441 = vsel %vm199, %v11117, 0.0
  %v11442 = vadd.f32 %v11440, %v11441
  %v11443 = vrot.slane %v11442, 4
  %v11444 = vadd.f32 %v11442, %v11443
  %v11445 = vrot.slane %v11444, 2
  %v11446 = vadd.f32 %v11444, %v11445
  %v11447 = vrot.slane %v11446, 1
  %v11448 = vadd.f32 %v11446, %v11447
  %v11449 = vsel %vm199, %v11119, 0.0
  %v11450 = vsel %vm199, %v11121, 0.0
  %v11451 = vadd.f32 %v11449, %v11450
  %v11452 = vrot.slane %v11451, 4
  %v11453 = vadd.f32 %v11451, %v11452
  %v11454 = vrot.slane %v11453, 2
  %v11455 = vadd.f32 %v11453, %v11454
  %v11456 = vrot.slane %v11455, 1
  %v11457 = vadd.f32 %v11455, %v11456
  %v11458 = vsel %vm199, %v11123, 0.0
  %v11459 = vsel %vm199, %v11125, 0.0
  %v11460 = vadd.f32 %v11458, %v11459
  %v11461 = vrot.slane %v11460, 4
  %v11462 = vadd.f32 %v11460, %v11461
  %v11463 = vrot.slane %v11462, 2
  %v11464 = vadd.f32 %v11462, %v11463
  %v11465 = vrot.slane %v11464, 1
  %v11466 = vadd.f32 %v11464, %v11465
  %v11467 = vsel %vm199, %v11127, 0.0
  %v11468 = vsel %vm199, %v11129, 0.0
  %v11469 = vadd.f32 %v11467, %v11468
  %v11470 = vrot.slane %v11469, 4
  %v11471 = vadd.f32 %v11469, %v11470
  %v11472 = vrot.slane %v11471, 2
  %v11473 = vadd.f32 %v11471, %v11472
  %v11474 = vrot.slane %v11473, 1
  %v11475 = vadd.f32 %v11473, %v11474
  %v11476 = vsel %vm199, %v11131, 0.0
  %v11477 = vsel %vm199, %v11133, 0.0
  %v11478 = vadd.f32 %v11476, %v11477
  %v11479 = vrot.slane %v11478, 4
  %v11480 = vadd.f32 %v11478, %v11479
  %v11481 = vrot.slane %v11480, 2
  %v11482 = vadd.f32 %v11480, %v11481
  %v11483 = vrot.slane %v11482, 1
  %v11484 = vadd.f32 %v11482, %v11483
  %v11485 = vsel %vm199, %v11135, 0.0
  %v11486 = vsel %vm199, %v11137, 0.0
  %v11487 = vadd.f32 %v11485, %v11486
  %v11488 = vrot.slane %v11487, 4
  %v11489 = vadd.f32 %v11487, %v11488
  %v11490 = vrot.slane %v11489, 2
  %v11491 = vadd.f32 %v11489, %v11490
  %v11492 = vrot.slane %v11491, 1
  %v11493 = vadd.f32 %v11491, %v11492
  %v11494 = vsel %vm199, %v11139, 0.0
  %v11495 = vsel %vm199, %v11141, 0.0
  %v11496 = vadd.f32 %v11494, %v11495
  %v11497 = vrot.slane %v11496, 4
  %v11498 = vadd.f32 %v11496, %v11497
  %v11499 = vrot.slane %v11498, 2
  %v11500 = vadd.f32 %v11498, %v11499
  %v11501 = vrot.slane %v11500, 1
  %v11502 = vadd.f32 %v11500, %v11501
  %v11503 = vsel %vm199, %v11143, 0.0
  %v11504 = vsel %vm199, %v11145, 0.0
  %v11505 = vadd.f32 %v11503, %v11504
  %v11506 = vrot.slane %v11505, 4
  %v11507 = vadd.f32 %v11505, %v11506
  %v11508 = vrot.slane %v11507, 2
  %v11509 = vadd.f32 %v11507, %v11508
  %v11510 = vrot.slane %v11509, 1
  %v11511 = vadd.f32 %v11509, %v11510
  %v11512 = vsel %vm199, %v11147, 0.0
  %v11513 = vsel %vm199, %v11149, 0.0
  %v11514 = vadd.f32 %v11512, %v11513
  %v11515 = vrot.slane %v11514, 4
  %v11516 = vadd.f32 %v11514, %v11515
  %v11517 = vrot.slane %v11516, 2
  %v11518 = vadd.f32 %v11516, %v11517
  %v11519 = vrot.slane %v11518, 1
  %v11520 = vadd.f32 %v11518, %v11519
  %v11521 = vsel %vm199, %v11151, 0.0
  %v11522 = vsel %vm199, %v11153, 0.0
  %v11523 = vadd.f32 %v11521, %v11522
  %v11524 = vrot.slane %v11523, 4
  %v11525 = vadd.f32 %v11523, %v11524
  %v11526 = vrot.slane %v11525, 2
  %v11527 = vadd.f32 %v11525, %v11526
  %v11528 = vrot.slane %v11527, 1
  %v11529 = vadd.f32 %v11527, %v11528
  %v11530 = vsel %vm199, %v11155, 0.0
  %v11531 = vsel %vm199, %v11157, 0.0
  %v11532 = vadd.f32 %v11530, %v11531
  %v11533 = vrot.slane %v11532, 4
  %v11534 = vadd.f32 %v11532, %v11533
  %v11535 = vrot.slane %v11534, 2
  %v11536 = vadd.f32 %v11534, %v11535
  %v11537 = vrot.slane %v11536, 1
  %v11538 = vadd.f32 %v11536, %v11537
  %v11539 = vsel %vm199, %v11159, 0.0
  %v11540 = vsel %vm199, %v11161, 0.0
  %v11541 = vadd.f32 %v11539, %v11540
  %v11542 = vrot.slane %v11541, 4
  %v11543 = vadd.f32 %v11541, %v11542
  %v11544 = vrot.slane %v11543, 2
  %v11545 = vadd.f32 %v11543, %v11544
  %v11546 = vrot.slane %v11545, 1
  %v11547 = vadd.f32 %v11545, %v11546
  %v11548 = vsel %vm199, %v11163, 0.0
  %v11549 = vsel %vm199, %v11165, 0.0
  %v11550 = vadd.f32 %v11548, %v11549
  %v11551 = vrot.slane %v11550, 4
  %v11552 = vadd.f32 %v11550, %v11551
  %v11553 = vrot.slane %v11552, 2
  %v11554 = vadd.f32 %v11552, %v11553
  %v11555 = vrot.slane %v11554, 1
  %v11556 = vadd.f32 %v11554, %v11555
  %v11557 = vsel %vm199, %v11167, 0.0
  %v11558 = vsel %vm199, %v11169, 0.0
  %v11559 = vadd.f32 %v11557, %v11558
  %v11560 = vrot.slane %v11559, 4
  %v11561 = vadd.f32 %v11559, %v11560
  %v11562 = vrot.slane %v11561, 2
  %v11563 = vadd.f32 %v11561, %v11562
  %v11564 = vrot.slane %v11563, 1
  %v11565 = vadd.f32 %v11563, %v11564
  %v11566 = vsel %vm199, %v11171, 0.0
  %v11567 = vsel %vm199, %v11173, 0.0
  %v11568 = vadd.f32 %v11566, %v11567
  %v11569 = vrot.slane %v11568, 4
  %v11570 = vadd.f32 %v11568, %v11569
  %v11571 = vrot.slane %v11570, 2
  %v11572 = vadd.f32 %v11570, %v11571
  %v11573 = vrot.slane %v11572, 1
  %v11574 = vadd.f32 %v11572, %v11573
  %v11575 = vsel %vm199, %v11175, 0.0
  %v11576 = vsel %vm199, %v11177, 0.0
  %v11577 = vadd.f32 %v11575, %v11576
  %v11578 = vrot.slane %v11577, 4
  %v11579 = vadd.f32 %v11577, %v11578
  %v11580 = vrot.slane %v11579, 2
  %v11581 = vadd.f32 %v11579, %v11580
  %v11582 = vrot.slane %v11581, 1
  %v11583 = vadd.f32 %v11581, %v11582
  %v11584 = vsel %vm199, %v11179, 0.0
  %v11585 = vsel %vm199, %v11181, 0.0
  %v11586 = vadd.f32 %v11584, %v11585
  %v11587 = vrot.slane %v11586, 4
  %v11588 = vadd.f32 %v11586, %v11587
  %v11589 = vrot.slane %v11588, 2
  %v11590 = vadd.f32 %v11588, %v11589
  %v11591 = vrot.slane %v11590, 1
  %v11592 = vadd.f32 %v11590, %v11591
  %v11593 = vsel %vm199, %v11183, 0.0
  %v11594 = vsel %vm199, %v11185, 0.0
  %v11595 = vadd.f32 %v11593, %v11594
  %v11596 = vrot.slane %v11595, 4
  %v11597 = vadd.f32 %v11595, %v11596
  %v11598 = vrot.slane %v11597, 2
  %v11599 = vadd.f32 %v11597, %v11598
  %v11600 = vrot.slane %v11599, 1
  %v11601 = vadd.f32 %v11599, %v11600
  %v11602 = vsel %vm199, %v11187, 0.0
  %v11603 = vsel %vm199, %v11189, 0.0
  %v11604 = vadd.f32 %v11602, %v11603
  %v11605 = vrot.slane %v11604, 4
  %v11606 = vadd.f32 %v11604, %v11605
  %v11607 = vrot.slane %v11606, 2
  %v11608 = vadd.f32 %v11606, %v11607
  %v11609 = vrot.slane %v11608, 1
  %v11610 = vadd.f32 %v11608, %v11609
  %v11611 = vsel %vm199, %v11191, 0.0
  %v11612 = vsel %vm199, %v11193, 0.0
  %v11613 = vadd.f32 %v11611, %v11612
  %v11614 = vrot.slane %v11613, 4
  %v11615 = vadd.f32 %v11613, %v11614
  %v11616 = vrot.slane %v11615, 2
  %v11617 = vadd.f32 %v11615, %v11616
  %v11618 = vrot.slane %v11617, 1
  %v11619 = vadd.f32 %v11617, %v11618
  %v11620 = vsel %vm199, %v11195, 0.0
  %v11621 = vsel %vm199, %v11197, 0.0
  %v11622 = vadd.f32 %v11620, %v11621
  %v11623 = vrot.slane %v11622, 4
  %v11624 = vadd.f32 %v11622, %v11623
  %v11625 = vrot.slane %v11624, 2
  %v11626 = vadd.f32 %v11624, %v11625
  %v11627 = vrot.slane %v11626, 1
  %v11628 = vadd.f32 %v11626, %v11627
  %v11629 = vsel %vm199, %v11199, 0.0
  %v11630 = vsel %vm199, %v11201, 0.0
  %v11631 = vadd.f32 %v11629, %v11630
  %v11632 = vrot.slane %v11631, 4
  %v11633 = vadd.f32 %v11631, %v11632
  %v11634 = vrot.slane %v11633, 2
  %v11635 = vadd.f32 %v11633, %v11634
  %v11636 = vrot.slane %v11635, 1
  %v11637 = vadd.f32 %v11635, %v11636
  %v11638 = vsel %vm199, %v11203, 0.0
  %v11639 = vsel %vm199, %v11205, 0.0
  %v11640 = vadd.f32 %v11638, %v11639
  %v11641 = vrot.slane %v11640, 4
  %v11642 = vadd.f32 %v11640, %v11641
  %v11643 = vrot.slane %v11642, 2
  %v11644 = vadd.f32 %v11642, %v11643
  %v11645 = vrot.slane %v11644, 1
  %v11646 = vadd.f32 %v11644, %v11645
  %v11647 = vsel %vm199, %v11207, 0.0
  %v11648 = vsel %vm199, %v11209, 0.0
  %v11649 = vadd.f32 %v11647, %v11648
  %v11650 = vrot.slane %v11649, 4
  %v11651 = vadd.f32 %v11649, %v11650
  %v11652 = vrot.slane %v11651, 2
  %v11653 = vadd.f32 %v11651, %v11652
  %v11654 = vrot.slane %v11653, 1
  %v11655 = vadd.f32 %v11653, %v11654
  %v11656 = vsel %vm199, %v11211, 0.0
  %v11657 = vsel %vm199, %v11213, 0.0
  %v11658 = vadd.f32 %v11656, %v11657
  %v11659 = vrot.slane %v11658, 4
  %v11660 = vadd.f32 %v11658, %v11659
  %v11661 = vrot.slane %v11660, 2
  %v11662 = vadd.f32 %v11660, %v11661
  %v11663 = vrot.slane %v11662, 1
  %v11664 = vadd.f32 %v11662, %v11663
  %v11665 = vsel %vm199, %v11215, 0.0
  %v11666 = vsel %vm199, %v11217, 0.0
  %v11667 = vadd.f32 %v11665, %v11666
  %v11668 = vrot.slane %v11667, 4
  %v11669 = vadd.f32 %v11667, %v11668
  %v11670 = vrot.slane %v11669, 2
  %v11671 = vadd.f32 %v11669, %v11670
  %v11672 = vrot.slane %v11671, 1
  %v11673 = vadd.f32 %v11671, %v11672
  %v11674 = vsel %vm199, %v11219, 0.0
  %v11675 = vsel %vm199, %v11221, 0.0
  %v11676 = vadd.f32 %v11674, %v11675
  %v11677 = vrot.slane %v11676, 4
  %v11678 = vadd.f32 %v11676, %v11677
  %v11679 = vrot.slane %v11678, 2
  %v11680 = vadd.f32 %v11678, %v11679
  %v11681 = vrot.slane %v11680, 1
  %v11682 = vadd.f32 %v11680, %v11681
  %v11683 = vsel %vm199, %v11223, 0.0
  %v11684 = vsel %vm199, %v11225, 0.0
  %v11685 = vadd.f32 %v11683, %v11684
  %v11686 = vrot.slane %v11685, 4
  %v11687 = vadd.f32 %v11685, %v11686
  %v11688 = vrot.slane %v11687, 2
  %v11689 = vadd.f32 %v11687, %v11688
  %v11690 = vrot.slane %v11689, 1
  %v11691 = vadd.f32 %v11689, %v11690
  %v11692 = vsel %vm199, %v11227, 0.0
  %v11693 = vsel %vm199, %v11229, 0.0
  %v11694 = vadd.f32 %v11692, %v11693
  %v11695 = vrot.slane %v11694, 4
  %v11696 = vadd.f32 %v11694, %v11695
  %v11697 = vrot.slane %v11696, 2
  %v11698 = vadd.f32 %v11696, %v11697
  %v11699 = vrot.slane %v11698, 1
  %v11700 = vadd.f32 %v11698, %v11699
  %v11701 = vsel %vm199, %v11231, 0.0
  %v11702 = vsel %vm199, %v11233, 0.0
  %v11703 = vadd.f32 %v11701, %v11702
  %v11704 = vrot.slane %v11703, 4
  %v11705 = vadd.f32 %v11703, %v11704
  %v11706 = vrot.slane %v11705, 2
  %v11707 = vadd.f32 %v11705, %v11706
  %v11708 = vrot.slane %v11707, 1
  %v11709 = vadd.f32 %v11707, %v11708
  %v11710 = vsel %vm199, %v11235, 0.0
  %v11711 = vsel %vm199, %v11237, 0.0
  %v11712 = vadd.f32 %v11710, %v11711
  %v11713 = vrot.slane %v11712, 4
  %v11714 = vadd.f32 %v11712, %v11713
  %v11715 = vrot.slane %v11714, 2
  %v11716 = vadd.f32 %v11714, %v11715
  %v11717 = vrot.slane %v11716, 1
  %v11718 = vadd.f32 %v11716, %v11717
  %v11719 = vsel %vm199, %v11239, 0.0
  %v11720 = vsel %vm199, %v11241, 0.0
  %v11721 = vadd.f32 %v11719, %v11720
  %v11722 = vrot.slane %v11721, 4
  %v11723 = vadd.f32 %v11721, %v11722
  %v11724 = vrot.slane %v11723, 2
  %v11725 = vadd.f32 %v11723, %v11724
  %v11726 = vrot.slane %v11725, 1
  %v11727 = vadd.f32 %v11725, %v11726
  %v11728 = vsel %vm199, %v11243, 0.0
  %v11729 = vsel %vm199, %v11245, 0.0
  %v11730 = vadd.f32 %v11728, %v11729
  %v11731 = vrot.slane %v11730, 4
  %v11732 = vadd.f32 %v11730, %v11731
  %v11733 = vrot.slane %v11732, 2
  %v11734 = vadd.f32 %v11732, %v11733
  %v11735 = vrot.slane %v11734, 1
  %v11736 = vadd.f32 %v11734, %v11735
  %v11737 = vsel %vm199, %v11247, 0.0
  %v11738 = vsel %vm199, %v11249, 0.0
  %v11739 = vadd.f32 %v11737, %v11738
  %v11740 = vrot.slane %v11739, 4
  %v11741 = vadd.f32 %v11739, %v11740
  %v11742 = vrot.slane %v11741, 2
  %v11743 = vadd.f32 %v11741, %v11742
  %v11744 = vrot.slane %v11743, 1
  %v11745 = vadd.f32 %v11743, %v11744
  %v11746 = vsel %vm199, %v11251, 0.0
  %v11747 = vsel %vm199, %v11253, 0.0
  %v11748 = vadd.f32 %v11746, %v11747
  %v11749 = vrot.slane %v11748, 4
  %v11750 = vadd.f32 %v11748, %v11749
  %v11751 = vrot.slane %v11750, 2
  %v11752 = vadd.f32 %v11750, %v11751
  %v11753 = vrot.slane %v11752, 1
  %v11754 = vadd.f32 %v11752, %v11753
  %v11755 = vsel %vm199, %v11255, 0.0
  %v11756 = vsel %vm199, %v11257, 0.0
  %v11757 = vadd.f32 %v11755, %v11756
  %v11758 = vrot.slane %v11757, 4
  %v11759 = vadd.f32 %v11757, %v11758
  %v11760 = vrot.slane %v11759, 2
  %v11761 = vadd.f32 %v11759, %v11760
  %v11762 = vrot.slane %v11761, 1
  %v11763 = vadd.f32 %v11761, %v11762
  %v11764 = vsel %vm199, %v11259, 0.0
  %v11765 = vsel %vm199, %v11261, 0.0
  %v11766 = vadd.f32 %v11764, %v11765
  %v11767 = vrot.slane %v11766, 4
  %v11768 = vadd.f32 %v11766, %v11767
  %v11769 = vrot.slane %v11768, 2
  %v11770 = vadd.f32 %v11768, %v11769
  %v11771 = vrot.slane %v11770, 1
  %v11772 = vadd.f32 %v11770, %v11771
  %v11773 = vsel %vm199, %v11263, 0.0
  %v11774 = vsel %vm199, %v11265, 0.0
  %v11775 = vadd.f32 %v11773, %v11774
  %v11776 = vrot.slane %v11775, 4
  %v11777 = vadd.f32 %v11775, %v11776
  %v11778 = vrot.slane %v11777, 2
  %v11779 = vadd.f32 %v11777, %v11778
  %v11780 = vrot.slane %v11779, 1
  %v11781 = vadd.f32 %v11779, %v11780
  %v11782 = vsel %vm199, %v11267, 0.0
  %v11783 = vsel %vm199, %v11269, 0.0
  %v11784 = vadd.f32 %v11782, %v11783
  %v11785 = vrot.slane %v11784, 4
  %v11786 = vadd.f32 %v11784, %v11785
  %v11787 = vrot.slane %v11786, 2
  %v11788 = vadd.f32 %v11786, %v11787
  %v11789 = vrot.slane %v11788, 1
  %v11790 = vadd.f32 %v11788, %v11789
  %v11791 = vsel %vm199, %v11271, 0.0
  %v11792 = vsel %vm199, %v11273, 0.0
  %v11793 = vadd.f32 %v11791, %v11792
  %v11794 = vrot.slane %v11793, 4
  %v11795 = vadd.f32 %v11793, %v11794
  %v11796 = vrot.slane %v11795, 2
  %v11797 = vadd.f32 %v11795, %v11796
  %v11798 = vrot.slane %v11797, 1
  %v11799 = vadd.f32 %v11797, %v11798
  %v11800 = vsel %vm199, %v11275, 0.0
  %v11801 = vsel %vm199, %v11277, 0.0
  %v11802 = vadd.f32 %v11800, %v11801
  %v11803 = vrot.slane %v11802, 4
  %v11804 = vadd.f32 %v11802, %v11803
  %v11805 = vrot.slane %v11804, 2
  %v11806 = vadd.f32 %v11804, %v11805
  %v11807 = vrot.slane %v11806, 1
  %v11808 = vadd.f32 %v11806, %v11807
  %v11809 = vsel %vm199, %v11279, 0.0
  %v11810 = vsel %vm199, %v11281, 0.0
  %v11811 = vadd.f32 %v11809, %v11810
  %v11812 = vrot.slane %v11811, 4
  %v11813 = vadd.f32 %v11811, %v11812
  %v11814 = vrot.slane %v11813, 2
  %v11815 = vadd.f32 %v11813, %v11814
  %v11816 = vrot.slane %v11815, 1
  %v11817 = vadd.f32 %v11815, %v11816
  %v11818 = vsel %vm199, %v11283, 0.0
  %v11819 = vsel %vm199, %v11285, 0.0
  %v11820 = vadd.f32 %v11818, %v11819
  %v11821 = vrot.slane %v11820, 4
  %v11822 = vadd.f32 %v11820, %v11821
  %v11823 = vrot.slane %v11822, 2
  %v11824 = vadd.f32 %v11822, %v11823
  %v11825 = vrot.slane %v11824, 1
  %v11826 = vadd.f32 %v11824, %v11825
  %v11827 = vsel %vm199, %v11287, 0.0
  %v11828 = vsel %vm199, %v11289, 0.0
  %v11829 = vadd.f32 %v11827, %v11828
  %v11830 = vrot.slane %v11829, 4
  %v11831 = vadd.f32 %v11829, %v11830
  %v11832 = vrot.slane %v11831, 2
  %v11833 = vadd.f32 %v11831, %v11832
  %v11834 = vrot.slane %v11833, 1
  %v11835 = vadd.f32 %v11833, %v11834
  %v11836 = vsel %vm199, %v11291, 0.0
  %v11837 = vsel %vm199, %v11293, 0.0
  %v11838 = vadd.f32 %v11836, %v11837
  %v11839 = vrot.slane %v11838, 4
  %v11840 = vadd.f32 %v11838, %v11839
  %v11841 = vrot.slane %v11840, 2
  %v11842 = vadd.f32 %v11840, %v11841
  %v11843 = vrot.slane %v11842, 1
  %v11844 = vadd.f32 %v11842, %v11843
  %v11845 = vsel %vm199, %v11295, 0.0
  %v11846 = vsel %vm199, %v11297, 0.0
  %v11847 = vadd.f32 %v11845, %v11846
  %v11848 = vrot.slane %v11847, 4
  %v11849 = vadd.f32 %v11847, %v11848
  %v11850 = vrot.slane %v11849, 2
  %v11851 = vadd.f32 %v11849, %v11850
  %v11852 = vrot.slane %v11851, 1
  %v11853 = vadd.f32 %v11851, %v11852
  %v11854 = vsel %vm199, %v11299, 0.0
  %v11855 = vsel %vm199, %v11301, 0.0
  %v11856 = vadd.f32 %v11854, %v11855
  %v11857 = vrot.slane %v11856, 4
  %v11858 = vadd.f32 %v11856, %v11857
  %v11859 = vrot.slane %v11858, 2
  %v11860 = vadd.f32 %v11858, %v11859
  %v11861 = vrot.slane %v11860, 1
  %v11862 = vadd.f32 %v11860, %v11861
  %v11863 = vsel %vm199, %v11303, 0.0
  %v11864 = vsel %vm199, %v11305, 0.0
  %v11865 = vadd.f32 %v11863, %v11864
  %v11866 = vrot.slane %v11865, 4
  %v11867 = vadd.f32 %v11865, %v11866
  %v11868 = vrot.slane %v11867, 2
  %v11869 = vadd.f32 %v11867, %v11868
  %v11870 = vrot.slane %v11869, 1
  %v11871 = vadd.f32 %v11869, %v11870
  %v11872 = vsel %vm199, %v11307, 0.0
  %v11873 = vsel %vm199, %v11309, 0.0
  %v11874 = vadd.f32 %v11872, %v11873
  %v11875 = vrot.slane %v11874, 4
  %v11876 = vadd.f32 %v11874, %v11875
  %v11877 = vrot.slane %v11876, 2
  %v11878 = vadd.f32 %v11876, %v11877
  %v11879 = vrot.slane %v11878, 1
  %v11880 = vadd.f32 %v11878, %v11879
  %v11881 = vsel %vm199, %v11311, 0.0
  %v11882 = vsel %vm199, %v11313, 0.0
  %v11883 = vadd.f32 %v11881, %v11882
  %v11884 = vrot.slane %v11883, 4
  %v11885 = vadd.f32 %v11883, %v11884
  %v11886 = vrot.slane %v11885, 2
  %v11887 = vadd.f32 %v11885, %v11886
  %v11888 = vrot.slane %v11887, 1
  %v11889 = vadd.f32 %v11887, %v11888
  %v11890 = vrcp.pop %v11322
  %v11891 = vrcp.pop %v11331
  %v11892 = vrcp.pop %v11340
  %v11893 = vrcp.pop %v11349
  %v11894 = vrcp.pop %v11358
  %v11895 = vrcp.pop %v11367
  %v11896 = vrcp.pop %v11376
  %v11897 = vrcp.pop %v11385
  %v11898 = vrcp.pop %v11394
  %v11899 = vrcp.pop %v11403
  %v11900 = vrcp.pop %v11412
  %v11901 = vrcp.pop %v11421
  %v11902 = vrcp.pop %v11430
  %v11903 = vrcp.pop %v11439
  %v11904 = vrcp.pop %v11448
  %v11905 = vrcp.pop %v11457
  %v11906 = vrcp.pop %v11466
  %v11907 = vrcp.pop %v11475
  %v11908 = vrcp.pop %v11484
  %v11909 = vrcp.pop %v11493
  %v11910 = vrcp.pop %v11502
  %v11911 = vrcp.pop %v11511
  %v11912 = vrcp.pop %v11520
  %v11913 = vrcp.pop %v11529
  %v11914 = vrcp.pop %v11538
  %v11915 = vrcp.pop %v11547
  %v11916 = vrcp.pop %v11556
  %v11917 = vrcp.pop %v11565
  %v11918 = vrcp.pop %v11574
  %v11919 = vrcp.pop %v11583
  %v11920 = vrcp.pop %v11592
  %v11921 = vrcp.pop %v11601
  %v11922 = vrcp.pop %v11610
  %v11923 = vrcp.pop %v11619
  %v11924 = vrcp.pop %v11628
  %v11925 = vrcp.pop %v11637
  %v11926 = vrcp.pop %v11646
  %v11927 = vrcp.pop %v11655
  %v11928 = vrcp.pop %v11664
  %v11929 = vrcp.pop %v11673
  %v11930 = vrcp.pop %v11682
  %v11931 = vrcp.pop %v11691
  %v11932 = vrcp.pop %v11700
  %v11933 = vrcp.pop %v11709
  %v11934 = vrcp.pop %v11718
  %v11935 = vrcp.pop %v11727
  %v11936 = vrcp.pop %v11736
  %v11937 = vrcp.pop %v11745
  %v11938 = vrcp.pop %v11754
  %v11939 = vrcp.pop %v11763
  %v11940 = vrcp.pop %v11772
  %v11941 = vrcp.pop %v11781
  %v11942 = vrcp.pop %v11790
  %v11943 = vrcp.pop %v11799
  %v11944 = vrcp.pop %v11808
  %v11945 = vrcp.pop %v11817
  %v11946 = vrcp.pop %v11826
  %v11947 = vrcp.pop %v11835
  %v11948 = vrcp.pop %v11844
  %v11949 = vrcp.pop %v11853
  %v11950 = vrcp.pop %v11862
  %v11951 = vrcp.pop %v11871
  %v11952 = vrcp.pop %v11880
  %v11953 = vrcp.pop %v11889
  %12082 = vrot.lane.b32.xlu0 %v6252, 32
  %v12083 = vpop.permute.xlu0 %12082
  %12084 = vrot.lane.b32.xlu0 %v6253, 32
  %v12085 = vpop.permute.xlu0 %12084
  %12086 = vrot.lane.b32.xlu0 %v6254, 32
  %v12087 = vpop.permute.xlu0 %12086
  %12088 = vrot.lane.b32.xlu0 %v6255, 32
  %v12089 = vpop.permute.xlu0 %12088
  %12090 = vrot.lane.b32.xlu0 %v6256, 32
  %v12091 = vpop.permute.xlu0 %12090
  %12092 = vrot.lane.b32.xlu0 %v6257, 32
  %v12093 = vpop.permute.xlu0 %12092
  %12094 = vrot.lane.b32.xlu0 %v6258, 32
  %v12095 = vpop.permute.xlu0 %12094
  %12096 = vrot.lane.b32.xlu0 %v6259, 32
  %v12097 = vpop.permute.xlu0 %12096
  %12098 = vrot.lane.b32.xlu0 %v6260, 32
  %v12099 = vpop.permute.xlu0 %12098
  %12100 = vrot.lane.b32.xlu0 %v6261, 32
  %v12101 = vpop.permute.xlu0 %12100
  %12102 = vrot.lane.b32.xlu0 %v6262, 32
  %v12103 = vpop.permute.xlu0 %12102
  %12104 = vrot.lane.b32.xlu0 %v6263, 32
  %v12105 = vpop.permute.xlu0 %12104
  %12106 = vrot.lane.b32.xlu0 %v6264, 32
  %v12107 = vpop.permute.xlu0 %12106
  %12108 = vrot.lane.b32.xlu0 %v6265, 32
  %v12109 = vpop.permute.xlu0 %12108
  %12110 = vrot.lane.b32.xlu0 %v6266, 32
  %v12111 = vpop.permute.xlu0 %12110
  %12112 = vrot.lane.b32.xlu0 %v6267, 32
  %v12113 = vpop.permute.xlu0 %12112
  %12114 = vrot.lane.b32.xlu0 %v6268, 32
  %v12115 = vpop.permute.xlu0 %12114
  %12116 = vrot.lane.b32.xlu0 %v6269, 32
  %v12117 = vpop.permute.xlu0 %12116
  %12118 = vrot.lane.b32.xlu0 %v6270, 32
  %v12119 = vpop.permute.xlu0 %12118
  %12120 = vrot.lane.b32.xlu0 %v6271, 32
  %v12121 = vpop.permute.xlu0 %12120
  %12122 = vrot.lane.b32.xlu0 %v6272, 32
  %v12123 = vpop.permute.xlu0 %12122
  %12124 = vrot.lane.b32.xlu0 %v6273, 32
  %v12125 = vpop.permute.xlu0 %12124
  %12126 = vrot.lane.b32.xlu0 %v6274, 32
  %v12127 = vpop.permute.xlu0 %12126
  %12128 = vrot.lane.b32.xlu0 %v6275, 32
  %v12129 = vpop.permute.xlu0 %12128
  %12130 = vrot.lane.b32.xlu0 %v6276, 32
  %v12131 = vpop.permute.xlu0 %12130
  %12132 = vrot.lane.b32.xlu0 %v6277, 32
  %v12133 = vpop.permute.xlu0 %12132
  %12134 = vrot.lane.b32.xlu0 %v6278, 32
  %v12135 = vpop.permute.xlu0 %12134
  %12136 = vrot.lane.b32.xlu0 %v6279, 32
  %v12137 = vpop.permute.xlu0 %12136
  %12138 = vrot.lane.b32.xlu0 %v6280, 32
  %v12139 = vpop.permute.xlu0 %12138
  %12140 = vrot.lane.b32.xlu0 %v6281, 32
  %v12141 = vpop.permute.xlu0 %12140
  %12142 = vrot.lane.b32.xlu0 %v6282, 32
  %v12143 = vpop.permute.xlu0 %12142
  %12144 = vrot.lane.b32.xlu0 %v6283, 32
  %v12145 = vpop.permute.xlu0 %12144
  %12146 = vrot.lane.b32.xlu0 %v6284, 32
  %v12147 = vpop.permute.xlu0 %12146
  %12148 = vrot.lane.b32.xlu0 %v6285, 32
  %v12149 = vpop.permute.xlu0 %12148
  %12150 = vrot.lane.b32.xlu0 %v6286, 32
  %v12151 = vpop.permute.xlu0 %12150
  %12152 = vrot.lane.b32.xlu0 %v6287, 32
  %v12153 = vpop.permute.xlu0 %12152
  %12154 = vrot.lane.b32.xlu0 %v6288, 32
  %v12155 = vpop.permute.xlu0 %12154
  %12156 = vrot.lane.b32.xlu0 %v6289, 32
  %v12157 = vpop.permute.xlu0 %12156
  %12158 = vrot.lane.b32.xlu0 %v6290, 32
  %v12159 = vpop.permute.xlu0 %12158
  %12160 = vrot.lane.b32.xlu0 %v6291, 32
  %v12161 = vpop.permute.xlu0 %12160
  %12162 = vrot.lane.b32.xlu0 %v6292, 32
  %v12163 = vpop.permute.xlu0 %12162
  %12164 = vrot.lane.b32.xlu0 %v6293, 32
  %v12165 = vpop.permute.xlu0 %12164
  %12166 = vrot.lane.b32.xlu0 %v6294, 32
  %v12167 = vpop.permute.xlu0 %12166
  %12168 = vrot.lane.b32.xlu0 %v6295, 32
  %v12169 = vpop.permute.xlu0 %12168
  %12170 = vrot.lane.b32.xlu0 %v6296, 32
  %v12171 = vpop.permute.xlu0 %12170
  %12172 = vrot.lane.b32.xlu0 %v6297, 32
  %v12173 = vpop.permute.xlu0 %12172
  %12174 = vrot.lane.b32.xlu0 %v6298, 32
  %v12175 = vpop.permute.xlu0 %12174
  %12176 = vrot.lane.b32.xlu0 %v6299, 32
  %v12177 = vpop.permute.xlu0 %12176
  %12178 = vrot.lane.b32.xlu0 %v6300, 32
  %v12179 = vpop.permute.xlu0 %12178
  %12180 = vrot.lane.b32.xlu0 %v6301, 32
  %v12181 = vpop.permute.xlu0 %12180
  %12182 = vrot.lane.b32.xlu0 %v6302, 32
  %v12183 = vpop.permute.xlu0 %12182
  %12184 = vrot.lane.b32.xlu0 %v6303, 32
  %v12185 = vpop.permute.xlu0 %12184
  %12186 = vrot.lane.b32.xlu0 %v6304, 32
  %v12187 = vpop.permute.xlu0 %12186
  %12188 = vrot.lane.b32.xlu0 %v6305, 32
  %v12189 = vpop.permute.xlu0 %12188
  %12190 = vrot.lane.b32.xlu0 %v6306, 32
  %v12191 = vpop.permute.xlu0 %12190
  %12192 = vrot.lane.b32.xlu0 %v6307, 32
  %v12193 = vpop.permute.xlu0 %12192
  %12194 = vrot.lane.b32.xlu0 %v6308, 32
  %v12195 = vpop.permute.xlu0 %12194
  %12196 = vrot.lane.b32.xlu0 %v6309, 32
  %v12197 = vpop.permute.xlu0 %12196
  %12198 = vrot.lane.b32.xlu0 %v6310, 32
  %v12199 = vpop.permute.xlu0 %12198
  %12200 = vrot.lane.b32.xlu0 %v6311, 32
  %v12201 = vpop.permute.xlu0 %12200
  %12202 = vrot.lane.b32.xlu0 %v6312, 32
  %v12203 = vpop.permute.xlu0 %12202
  %12204 = vrot.lane.b32.xlu0 %v6313, 32
  %v12205 = vpop.permute.xlu0 %12204
  %12206 = vrot.lane.b32.xlu0 %v6314, 32
  %v12207 = vpop.permute.xlu0 %12206
  %12208 = vrot.lane.b32.xlu0 %v6315, 32
  %v12209 = vpop.permute.xlu0 %12208
  %12210 = vrot.lane.b32.xlu0 %v6316, 32
  %v12211 = vpop.permute.xlu0 %12210
  %12212 = vrot.lane.b32.xlu0 %v6317, 32
  %v12213 = vpop.permute.xlu0 %12212
  %12214 = vrot.lane.b32.xlu0 %v6318, 32
  %v12215 = vpop.permute.xlu0 %12214
  %12216 = vrot.lane.b32.xlu0 %v6319, 32
  %v12217 = vpop.permute.xlu0 %12216
  %12218 = vrot.lane.b32.xlu0 %v6320, 32
  %v12219 = vpop.permute.xlu0 %12218
  %12220 = vrot.lane.b32.xlu0 %v6321, 32
  %v12221 = vpop.permute.xlu0 %12220
  %12222 = vrot.lane.b32.xlu0 %v6322, 32
  %v12223 = vpop.permute.xlu0 %12222
  %12224 = vrot.lane.b32.xlu0 %v6323, 32
  %v12225 = vpop.permute.xlu0 %12224
  %12226 = vrot.lane.b32.xlu0 %v6324, 32
  %v12227 = vpop.permute.xlu0 %12226
  %12228 = vrot.lane.b32.xlu0 %v6325, 32
  %v12229 = vpop.permute.xlu0 %12228
  %12230 = vrot.lane.b32.xlu0 %v6326, 32
  %v12231 = vpop.permute.xlu0 %12230
  %12232 = vrot.lane.b32.xlu0 %v6327, 32
  %v12233 = vpop.permute.xlu0 %12232
  %12234 = vrot.lane.b32.xlu0 %v6328, 32
  %v12235 = vpop.permute.xlu0 %12234
  %12236 = vrot.lane.b32.xlu0 %v6329, 32
  %v12237 = vpop.permute.xlu0 %12236
  %12238 = vrot.lane.b32.xlu0 %v6330, 32
  %v12239 = vpop.permute.xlu0 %12238
  %12240 = vrot.lane.b32.xlu0 %v6331, 32
  %v12241 = vpop.permute.xlu0 %12240
  %12242 = vrot.lane.b32.xlu0 %v6332, 32
  %v12243 = vpop.permute.xlu0 %12242
  %12244 = vrot.lane.b32.xlu0 %v6333, 32
  %v12245 = vpop.permute.xlu0 %12244
  %12246 = vrot.lane.b32.xlu0 %v6334, 32
  %v12247 = vpop.permute.xlu0 %12246
  %12248 = vrot.lane.b32.xlu0 %v6335, 32
  %v12249 = vpop.permute.xlu0 %12248
  %12250 = vrot.lane.b32.xlu0 %v6336, 32
  %v12251 = vpop.permute.xlu0 %12250
  %12252 = vrot.lane.b32.xlu0 %v6337, 32
  %v12253 = vpop.permute.xlu0 %12252
  %12254 = vrot.lane.b32.xlu0 %v6338, 32
  %v12255 = vpop.permute.xlu0 %12254
  %12256 = vrot.lane.b32.xlu0 %v6339, 32
  %v12257 = vpop.permute.xlu0 %12256
  %12258 = vrot.lane.b32.xlu0 %v6340, 32
  %v12259 = vpop.permute.xlu0 %12258
  %12260 = vrot.lane.b32.xlu0 %v6341, 32
  %v12261 = vpop.permute.xlu0 %12260
  %12262 = vrot.lane.b32.xlu0 %v6342, 32
  %v12263 = vpop.permute.xlu0 %12262
  %12264 = vrot.lane.b32.xlu0 %v6343, 32
  %v12265 = vpop.permute.xlu0 %12264
  %12266 = vrot.lane.b32.xlu0 %v6344, 32
  %v12267 = vpop.permute.xlu0 %12266
  %12268 = vrot.lane.b32.xlu0 %v6345, 32
  %v12269 = vpop.permute.xlu0 %12268
  %12270 = vrot.lane.b32.xlu0 %v6346, 32
  %v12271 = vpop.permute.xlu0 %12270
  %12272 = vrot.lane.b32.xlu0 %v6347, 32
  %v12273 = vpop.permute.xlu0 %12272
  %12274 = vrot.lane.b32.xlu0 %v6348, 32
  %v12275 = vpop.permute.xlu0 %12274
  %12276 = vrot.lane.b32.xlu0 %v6349, 32
  %v12277 = vpop.permute.xlu0 %12276
  %12278 = vrot.lane.b32.xlu0 %v6350, 32
  %v12279 = vpop.permute.xlu0 %12278
  %12280 = vrot.lane.b32.xlu0 %v6351, 32
  %v12281 = vpop.permute.xlu0 %12280
  %12282 = vrot.lane.b32.xlu0 %v6352, 32
  %v12283 = vpop.permute.xlu0 %12282
  %12284 = vrot.lane.b32.xlu0 %v6353, 32
  %v12285 = vpop.permute.xlu0 %12284
  %12286 = vrot.lane.b32.xlu0 %v6354, 32
  %v12287 = vpop.permute.xlu0 %12286
  %12288 = vrot.lane.b32.xlu0 %v6355, 32
  %v12289 = vpop.permute.xlu0 %12288
  %12290 = vrot.lane.b32.xlu0 %v6356, 32
  %v12291 = vpop.permute.xlu0 %12290
  %12292 = vrot.lane.b32.xlu0 %v6357, 32
  %v12293 = vpop.permute.xlu0 %12292
  %12294 = vrot.lane.b32.xlu0 %v6358, 32
  %v12295 = vpop.permute.xlu0 %12294
  %12296 = vrot.lane.b32.xlu0 %v6359, 32
  %v12297 = vpop.permute.xlu0 %12296
  %12298 = vrot.lane.b32.xlu0 %v6360, 32
  %v12299 = vpop.permute.xlu0 %12298
  %12300 = vrot.lane.b32.xlu0 %v6361, 32
  %v12301 = vpop.permute.xlu0 %12300
  %12302 = vrot.lane.b32.xlu0 %v6362, 32
  %v12303 = vpop.permute.xlu0 %12302
  %12304 = vrot.lane.b32.xlu0 %v6363, 32
  %v12305 = vpop.permute.xlu0 %12304
  %12306 = vrot.lane.b32.xlu0 %v6364, 32
  %v12307 = vpop.permute.xlu0 %12306
  %12308 = vrot.lane.b32.xlu0 %v6365, 32
  %v12309 = vpop.permute.xlu0 %12308
  %12310 = vrot.lane.b32.xlu0 %v6366, 32
  %v12311 = vpop.permute.xlu0 %12310
  %12312 = vrot.lane.b32.xlu0 %v6367, 32
  %v12313 = vpop.permute.xlu0 %12312
  %12314 = vrot.lane.b32.xlu0 %v6368, 32
  %v12315 = vpop.permute.xlu0 %12314
  %12316 = vrot.lane.b32.xlu0 %v6369, 32
  %v12317 = vpop.permute.xlu0 %12316
  %12318 = vrot.lane.b32.xlu0 %v6370, 32
  %v12319 = vpop.permute.xlu0 %12318
  %12320 = vrot.lane.b32.xlu0 %v6371, 32
  %v12321 = vpop.permute.xlu0 %12320
  %12322 = vrot.lane.b32.xlu0 %v6372, 32
  %v12323 = vpop.permute.xlu0 %12322
  %12324 = vrot.lane.b32.xlu0 %v6373, 32
  %v12325 = vpop.permute.xlu0 %12324
  %12326 = vrot.lane.b32.xlu0 %v6374, 32
  %v12327 = vpop.permute.xlu0 %12326
  %12328 = vrot.lane.b32.xlu0 %v6375, 32
  %v12329 = vpop.permute.xlu0 %12328
  %12330 = vrot.lane.b32.xlu0 %v6376, 32
  %v12331 = vpop.permute.xlu0 %12330
  %12332 = vrot.lane.b32.xlu0 %v6377, 32
  %v12333 = vpop.permute.xlu0 %12332
  %12334 = vrot.lane.b32.xlu0 %v6378, 32
  %v12335 = vpop.permute.xlu0 %12334
  %12336 = vrot.lane.b32.xlu0 %v6379, 32
  %v12337 = vpop.permute.xlu0 %12336
  %v12466 = vadd.f32 %v2182, %v12083
  %v12467 = vadd.f32 %v2185, %v12085
  %v12468 = vadd.f32 %v2190, %v12087
  %v12469 = vadd.f32 %v2193, %v12089
  %v12470 = vadd.f32 %v2198, %v12091
  %v12471 = vadd.f32 %v2201, %v12093
  %v12472 = vadd.f32 %v2206, %v12095
  %v12473 = vadd.f32 %v2209, %v12097
  %v12474 = vadd.f32 %v2214, %v12099
  %v12475 = vadd.f32 %v2217, %v12101
  %v12476 = vadd.f32 %v2222, %v12103
  %v12477 = vadd.f32 %v2225, %v12105
  %v12478 = vadd.f32 %v2230, %v12107
  %v12479 = vadd.f32 %v2233, %v12109
  %v12480 = vadd.f32 %v2238, %v12111
  %v12481 = vadd.f32 %v2241, %v12113
  %v12482 = vadd.f32 %v2246, %v12115
  %v12483 = vadd.f32 %v2249, %v12117
  %v12484 = vadd.f32 %v2254, %v12119
  %v12485 = vadd.f32 %v2257, %v12121
  %v12486 = vadd.f32 %v2262, %v12123
  %v12487 = vadd.f32 %v2265, %v12125
  %v12488 = vadd.f32 %v2270, %v12127
  %v12489 = vadd.f32 %v2273, %v12129
  %v12490 = vadd.f32 %v2278, %v12131
  %v12491 = vadd.f32 %v2281, %v12133
  %v12492 = vadd.f32 %v2286, %v12135
  %v12493 = vadd.f32 %v2289, %v12137
  %v12494 = vadd.f32 %v2294, %v12139
  %v12495 = vadd.f32 %v2297, %v12141
  %v12496 = vadd.f32 %v2302, %v12143
  %v12497 = vadd.f32 %v2305, %v12145
  %v12498 = vadd.f32 %v2310, %v12147
  %v12499 = vadd.f32 %v2313, %v12149
  %v12500 = vadd.f32 %v2318, %v12151
  %v12501 = vadd.f32 %v2321, %v12153
  %v12502 = vadd.f32 %v2326, %v12155
  %v12503 = vadd.f32 %v2329, %v12157
  %v12504 = vadd.f32 %v2334, %v12159
  %v12505 = vadd.f32 %v2337, %v12161
  %v12506 = vadd.f32 %v2342, %v12163
  %v12507 = vadd.f32 %v2345, %v12165
  %v12508 = vadd.f32 %v2350, %v12167
  %v12509 = vadd.f32 %v2353, %v12169
  %v12510 = vadd.f32 %v2358, %v12171
  %v12511 = vadd.f32 %v2361, %v12173
  %v12512 = vadd.f32 %v2366, %v12175
  %v12513 = vadd.f32 %v2369, %v12177
  %v12514 = vadd.f32 %v2374, %v12179
  %v12515 = vadd.f32 %v2377, %v12181
  %v12516 = vadd.f32 %v2382, %v12183
  %v12517 = vadd.f32 %v2385, %v12185
  %v12518 = vadd.f32 %v2390, %v12187
  %v12519 = vadd.f32 %v2393, %v12189
  %v12520 = vadd.f32 %v2398, %v12191
  %v12521 = vadd.f32 %v2401, %v12193
  %v12522 = vadd.f32 %v2406, %v12195
  %v12523 = vadd.f32 %v2409, %v12197
  %v12524 = vadd.f32 %v2414, %v12199
  %v12525 = vadd.f32 %v2417, %v12201
  %v12526 = vadd.f32 %v2422, %v12203
  %v12527 = vadd.f32 %v2425, %v12205
  %v12528 = vadd.f32 %v2430, %v12207
  %v12529 = vadd.f32 %v2433, %v12209
  %v12530 = vadd.f32 %v2438, %v12211
  %v12531 = vadd.f32 %v2441, %v12213
  %v12532 = vadd.f32 %v2446, %v12215
  %v12533 = vadd.f32 %v2449, %v12217
  %v12534 = vadd.f32 %v2454, %v12219
  %v12535 = vadd.f32 %v2457, %v12221
  %v12536 = vadd.f32 %v2462, %v12223
  %v12537 = vadd.f32 %v2465, %v12225
  %v12538 = vadd.f32 %v2470, %v12227
  %v12539 = vadd.f32 %v2473, %v12229
  %v12540 = vadd.f32 %v2478, %v12231
  %v12541 = vadd.f32 %v2481, %v12233
  %v12542 = vadd.f32 %v2486, %v12235
  %v12543 = vadd.f32 %v2489, %v12237
  %v12544 = vadd.f32 %v2494, %v12239
  %v12545 = vadd.f32 %v2497, %v12241
  %v12546 = vadd.f32 %v2502, %v12243
  %v12547 = vadd.f32 %v2505, %v12245
  %v12548 = vadd.f32 %v2510, %v12247
  %v12549 = vadd.f32 %v2513, %v12249
  %v12550 = vadd.f32 %v2518, %v12251
  %v12551 = vadd.f32 %v2521, %v12253
  %v12552 = vadd.f32 %v2526, %v12255
  %v12553 = vadd.f32 %v2529, %v12257
  %v12554 = vadd.f32 %v2534, %v12259
  %v12555 = vadd.f32 %v2537, %v12261
  %v12556 = vadd.f32 %v2542, %v12263
  %v12557 = vadd.f32 %v2545, %v12265
  %v12558 = vadd.f32 %v2550, %v12267
  %v12559 = vadd.f32 %v2553, %v12269
  %v12560 = vadd.f32 %v2558, %v12271
  %v12561 = vadd.f32 %v2561, %v12273
  %v12562 = vadd.f32 %v2566, %v12275
  %v12563 = vadd.f32 %v2569, %v12277
  %v12564 = vadd.f32 %v2574, %v12279
  %v12565 = vadd.f32 %v2577, %v12281
  %v12566 = vadd.f32 %v2582, %v12283
  %v12567 = vadd.f32 %v2585, %v12285
  %v12568 = vadd.f32 %v2590, %v12287
  %v12569 = vadd.f32 %v2593, %v12289
  %v12570 = vadd.f32 %v2598, %v12291
  %v12571 = vadd.f32 %v2601, %v12293
  %v12572 = vadd.f32 %v2606, %v12295
  %v12573 = vadd.f32 %v2609, %v12297
  %v12574 = vadd.f32 %v2614, %v12299
  %v12575 = vadd.f32 %v2617, %v12301
  %v12576 = vadd.f32 %v2622, %v12303
  %v12577 = vadd.f32 %v2625, %v12305
  %v12578 = vadd.f32 %v2630, %v12307
  %v12579 = vadd.f32 %v2633, %v12309
  %v12580 = vadd.f32 %v2638, %v12311
  %v12581 = vadd.f32 %v2641, %v12313
  %v12582 = vadd.f32 %v2646, %v12315
  %v12583 = vadd.f32 %v2649, %v12317
  %v12584 = vadd.f32 %v2654, %v12319
  %v12585 = vadd.f32 %v2657, %v12321
  %v12586 = vadd.f32 %v2662, %v12323
  %v12587 = vadd.f32 %v2665, %v12325
  %v12588 = vadd.f32 %v2670, %v12327
  %v12589 = vadd.f32 %v2673, %v12329
  %v12590 = vadd.f32 %v2678, %v12331
  %v12591 = vadd.f32 %v2681, %v12333
  %v12592 = vadd.f32 %v2686, %v12335
  %v12593 = vadd.f32 %v2689, %v12337
  %12722 = vrot.lane.b32.xlu0 %v11059, 32
  %v12723 = vpop.permute.xlu0 %12722
  %12724 = vrot.lane.b32.xlu0 %v11061, 32
  %v12725 = vpop.permute.xlu0 %12724
  %12726 = vrot.lane.b32.xlu0 %v11063, 32
  %v12727 = vpop.permute.xlu0 %12726
  %12728 = vrot.lane.b32.xlu0 %v11065, 32
  %v12729 = vpop.permute.xlu0 %12728
  %12730 = vrot.lane.b32.xlu0 %v11067, 32
  %v12731 = vpop.permute.xlu0 %12730
  %12732 = vrot.lane.b32.xlu0 %v11069, 32
  %v12733 = vpop.permute.xlu0 %12732
  %12734 = vrot.lane.b32.xlu0 %v11071, 32
  %v12735 = vpop.permute.xlu0 %12734
  %12736 = vrot.lane.b32.xlu0 %v11073, 32
  %v12737 = vpop.permute.xlu0 %12736
  %12738 = vrot.lane.b32.xlu0 %v11075, 32
  %v12739 = vpop.permute.xlu0 %12738
  %12740 = vrot.lane.b32.xlu0 %v11077, 32
  %v12741 = vpop.permute.xlu0 %12740
  %12742 = vrot.lane.b32.xlu0 %v11079, 32
  %v12743 = vpop.permute.xlu0 %12742
  %12744 = vrot.lane.b32.xlu0 %v11081, 32
  %v12745 = vpop.permute.xlu0 %12744
  %12746 = vrot.lane.b32.xlu0 %v11083, 32
  %v12747 = vpop.permute.xlu0 %12746
  %12748 = vrot.lane.b32.xlu0 %v11085, 32
  %v12749 = vpop.permute.xlu0 %12748
  %12750 = vrot.lane.b32.xlu0 %v11087, 32
  %v12751 = vpop.permute.xlu0 %12750
  %12752 = vrot.lane.b32.xlu0 %v11089, 32
  %v12753 = vpop.permute.xlu0 %12752
  %12754 = vrot.lane.b32.xlu0 %v11091, 32
  %v12755 = vpop.permute.xlu0 %12754
  %12756 = vrot.lane.b32.xlu0 %v11093, 32
  %v12757 = vpop.permute.xlu0 %12756
  %12758 = vrot.lane.b32.xlu0 %v11095, 32
  %v12759 = vpop.permute.xlu0 %12758
  %12760 = vrot.lane.b32.xlu0 %v11097, 32
  %v12761 = vpop.permute.xlu0 %12760
  %12762 = vrot.lane.b32.xlu0 %v11099, 32
  %v12763 = vpop.permute.xlu0 %12762
  %12764 = vrot.lane.b32.xlu0 %v11101, 32
  %v12765 = vpop.permute.xlu0 %12764
  %12766 = vrot.lane.b32.xlu0 %v11103, 32
  %v12767 = vpop.permute.xlu0 %12766
  %12768 = vrot.lane.b32.xlu0 %v11105, 32
  %v12769 = vpop.permute.xlu0 %12768
  %12770 = vrot.lane.b32.xlu0 %v11107, 32
  %v12771 = vpop.permute.xlu0 %12770
  %12772 = vrot.lane.b32.xlu0 %v11109, 32
  %v12773 = vpop.permute.xlu0 %12772
  %12774 = vrot.lane.b32.xlu0 %v11111, 32
  %v12775 = vpop.permute.xlu0 %12774
  %12776 = vrot.lane.b32.xlu0 %v11113, 32
  %v12777 = vpop.permute.xlu0 %12776
  %12778 = vrot.lane.b32.xlu0 %v11115, 32
  %v12779 = vpop.permute.xlu0 %12778
  %12780 = vrot.lane.b32.xlu0 %v11117, 32
  %v12781 = vpop.permute.xlu0 %12780
  %12782 = vrot.lane.b32.xlu0 %v11119, 32
  %v12783 = vpop.permute.xlu0 %12782
  %12784 = vrot.lane.b32.xlu0 %v11121, 32
  %v12785 = vpop.permute.xlu0 %12784
  %12786 = vrot.lane.b32.xlu0 %v11123, 32
  %v12787 = vpop.permute.xlu0 %12786
  %12788 = vrot.lane.b32.xlu0 %v11125, 32
  %v12789 = vpop.permute.xlu0 %12788
  %12790 = vrot.lane.b32.xlu0 %v11127, 32
  %v12791 = vpop.permute.xlu0 %12790
  %12792 = vrot.lane.b32.xlu0 %v11129, 32
  %v12793 = vpop.permute.xlu0 %12792
  %12794 = vrot.lane.b32.xlu0 %v11131, 32
  %v12795 = vpop.permute.xlu0 %12794
  %12796 = vrot.lane.b32.xlu0 %v11133, 32
  %v12797 = vpop.permute.xlu0 %12796
  %12798 = vrot.lane.b32.xlu0 %v11135, 32
  %v12799 = vpop.permute.xlu0 %12798
  %12800 = vrot.lane.b32.xlu0 %v11137, 32
  %v12801 = vpop.permute.xlu0 %12800
  %12802 = vrot.lane.b32.xlu0 %v11139, 32
  %v12803 = vpop.permute.xlu0 %12802
  %12804 = vrot.lane.b32.xlu0 %v11141, 32
  %v12805 = vpop.permute.xlu0 %12804
  %12806 = vrot.lane.b32.xlu0 %v11143, 32
  %v12807 = vpop.permute.xlu0 %12806
  %12808 = vrot.lane.b32.xlu0 %v11145, 32
  %v12809 = vpop.permute.xlu0 %12808
  %12810 = vrot.lane.b32.xlu0 %v11147, 32
  %v12811 = vpop.permute.xlu0 %12810
  %12812 = vrot.lane.b32.xlu0 %v11149, 32
  %v12813 = vpop.permute.xlu0 %12812
  %12814 = vrot.lane.b32.xlu0 %v11151, 32
  %v12815 = vpop.permute.xlu0 %12814
  %12816 = vrot.lane.b32.xlu0 %v11153, 32
  %v12817 = vpop.permute.xlu0 %12816
  %12818 = vrot.lane.b32.xlu0 %v11155, 32
  %v12819 = vpop.permute.xlu0 %12818
  %12820 = vrot.lane.b32.xlu0 %v11157, 32
  %v12821 = vpop.permute.xlu0 %12820
  %12822 = vrot.lane.b32.xlu0 %v11159, 32
  %v12823 = vpop.permute.xlu0 %12822
  %12824 = vrot.lane.b32.xlu0 %v11161, 32
  %v12825 = vpop.permute.xlu0 %12824
  %12826 = vrot.lane.b32.xlu0 %v11163, 32
  %v12827 = vpop.permute.xlu0 %12826
  %12828 = vrot.lane.b32.xlu0 %v11165, 32
  %v12829 = vpop.permute.xlu0 %12828
  %12830 = vrot.lane.b32.xlu0 %v11167, 32
  %v12831 = vpop.permute.xlu0 %12830
  %12832 = vrot.lane.b32.xlu0 %v11169, 32
  %v12833 = vpop.permute.xlu0 %12832
  %12834 = vrot.lane.b32.xlu0 %v11171, 32
  %v12835 = vpop.permute.xlu0 %12834
  %12836 = vrot.lane.b32.xlu0 %v11173, 32
  %v12837 = vpop.permute.xlu0 %12836
  %12838 = vrot.lane.b32.xlu0 %v11175, 32
  %v12839 = vpop.permute.xlu0 %12838
  %12840 = vrot.lane.b32.xlu0 %v11177, 32
  %v12841 = vpop.permute.xlu0 %12840
  %12842 = vrot.lane.b32.xlu0 %v11179, 32
  %v12843 = vpop.permute.xlu0 %12842
  %12844 = vrot.lane.b32.xlu0 %v11181, 32
  %v12845 = vpop.permute.xlu0 %12844
  %12846 = vrot.lane.b32.xlu0 %v11183, 32
  %v12847 = vpop.permute.xlu0 %12846
  %12848 = vrot.lane.b32.xlu0 %v11185, 32
  %v12849 = vpop.permute.xlu0 %12848
  %12850 = vrot.lane.b32.xlu0 %v11187, 32
  %v12851 = vpop.permute.xlu0 %12850
  %12852 = vrot.lane.b32.xlu0 %v11189, 32
  %v12853 = vpop.permute.xlu0 %12852
  %12854 = vrot.lane.b32.xlu0 %v11191, 32
  %v12855 = vpop.permute.xlu0 %12854
  %12856 = vrot.lane.b32.xlu0 %v11193, 32
  %v12857 = vpop.permute.xlu0 %12856
  %12858 = vrot.lane.b32.xlu0 %v11195, 32
  %v12859 = vpop.permute.xlu0 %12858
  %12860 = vrot.lane.b32.xlu0 %v11197, 32
  %v12861 = vpop.permute.xlu0 %12860
  %12862 = vrot.lane.b32.xlu0 %v11199, 32
  %v12863 = vpop.permute.xlu0 %12862
  %12864 = vrot.lane.b32.xlu0 %v11201, 32
  %v12865 = vpop.permute.xlu0 %12864
  %12866 = vrot.lane.b32.xlu0 %v11203, 32
  %v12867 = vpop.permute.xlu0 %12866
  %12868 = vrot.lane.b32.xlu0 %v11205, 32
  %v12869 = vpop.permute.xlu0 %12868
  %12870 = vrot.lane.b32.xlu0 %v11207, 32
  %v12871 = vpop.permute.xlu0 %12870
  %12872 = vrot.lane.b32.xlu0 %v11209, 32
  %v12873 = vpop.permute.xlu0 %12872
  %12874 = vrot.lane.b32.xlu0 %v11211, 32
  %v12875 = vpop.permute.xlu0 %12874
  %12876 = vrot.lane.b32.xlu0 %v11213, 32
  %v12877 = vpop.permute.xlu0 %12876
  %12878 = vrot.lane.b32.xlu0 %v11215, 32
  %v12879 = vpop.permute.xlu0 %12878
  %12880 = vrot.lane.b32.xlu0 %v11217, 32
  %v12881 = vpop.permute.xlu0 %12880
  %12882 = vrot.lane.b32.xlu0 %v11219, 32
  %v12883 = vpop.permute.xlu0 %12882
  %12884 = vrot.lane.b32.xlu0 %v11221, 32
  %v12885 = vpop.permute.xlu0 %12884
  %12886 = vrot.lane.b32.xlu0 %v11223, 32
  %v12887 = vpop.permute.xlu0 %12886
  %12888 = vrot.lane.b32.xlu0 %v11225, 32
  %v12889 = vpop.permute.xlu0 %12888
  %12890 = vrot.lane.b32.xlu0 %v11227, 32
  %v12891 = vpop.permute.xlu0 %12890
  %12892 = vrot.lane.b32.xlu0 %v11229, 32
  %v12893 = vpop.permute.xlu0 %12892
  %12894 = vrot.lane.b32.xlu0 %v11231, 32
  %v12895 = vpop.permute.xlu0 %12894
  %12896 = vrot.lane.b32.xlu0 %v11233, 32
  %v12897 = vpop.permute.xlu0 %12896
  %12898 = vrot.lane.b32.xlu0 %v11235, 32
  %v12899 = vpop.permute.xlu0 %12898
  %12900 = vrot.lane.b32.xlu0 %v11237, 32
  %v12901 = vpop.permute.xlu0 %12900
  %12902 = vrot.lane.b32.xlu0 %v11239, 32
  %v12903 = vpop.permute.xlu0 %12902
  %12904 = vrot.lane.b32.xlu0 %v11241, 32
  %v12905 = vpop.permute.xlu0 %12904
  %12906 = vrot.lane.b32.xlu0 %v11243, 32
  %v12907 = vpop.permute.xlu0 %12906
  %12908 = vrot.lane.b32.xlu0 %v11245, 32
  %v12909 = vpop.permute.xlu0 %12908
  %12910 = vrot.lane.b32.xlu0 %v11247, 32
  %v12911 = vpop.permute.xlu0 %12910
  %12912 = vrot.lane.b32.xlu0 %v11249, 32
  %v12913 = vpop.permute.xlu0 %12912
  %12914 = vrot.lane.b32.xlu0 %v11251, 32
  %v12915 = vpop.permute.xlu0 %12914
  %12916 = vrot.lane.b32.xlu0 %v11253, 32
  %v12917 = vpop.permute.xlu0 %12916
  %12918 = vrot.lane.b32.xlu0 %v11255, 32
  %v12919 = vpop.permute.xlu0 %12918
  %12920 = vrot.lane.b32.xlu0 %v11257, 32
  %v12921 = vpop.permute.xlu0 %12920
  %12922 = vrot.lane.b32.xlu0 %v11259, 32
  %v12923 = vpop.permute.xlu0 %12922
  %12924 = vrot.lane.b32.xlu0 %v11261, 32
  %v12925 = vpop.permute.xlu0 %12924
  %12926 = vrot.lane.b32.xlu0 %v11263, 32
  %v12927 = vpop.permute.xlu0 %12926
  %12928 = vrot.lane.b32.xlu0 %v11265, 32
  %v12929 = vpop.permute.xlu0 %12928
  %12930 = vrot.lane.b32.xlu0 %v11267, 32
  %v12931 = vpop.permute.xlu0 %12930
  %12932 = vrot.lane.b32.xlu0 %v11269, 32
  %v12933 = vpop.permute.xlu0 %12932
  %12934 = vrot.lane.b32.xlu0 %v11271, 32
  %v12935 = vpop.permute.xlu0 %12934
  %12936 = vrot.lane.b32.xlu0 %v11273, 32
  %v12937 = vpop.permute.xlu0 %12936
  %12938 = vrot.lane.b32.xlu0 %v11275, 32
  %v12939 = vpop.permute.xlu0 %12938
  %12940 = vrot.lane.b32.xlu0 %v11277, 32
  %v12941 = vpop.permute.xlu0 %12940
  %12942 = vrot.lane.b32.xlu0 %v11279, 32
  %v12943 = vpop.permute.xlu0 %12942
  %12944 = vrot.lane.b32.xlu0 %v11281, 32
  %v12945 = vpop.permute.xlu0 %12944
  %12946 = vrot.lane.b32.xlu0 %v11283, 32
  %v12947 = vpop.permute.xlu0 %12946
  %12948 = vrot.lane.b32.xlu0 %v11285, 32
  %v12949 = vpop.permute.xlu0 %12948
  %12950 = vrot.lane.b32.xlu0 %v11287, 32
  %v12951 = vpop.permute.xlu0 %12950
  %12952 = vrot.lane.b32.xlu0 %v11289, 32
  %v12953 = vpop.permute.xlu0 %12952
  %12954 = vrot.lane.b32.xlu0 %v11291, 32
  %v12955 = vpop.permute.xlu0 %12954
  %12956 = vrot.lane.b32.xlu0 %v11293, 32
  %v12957 = vpop.permute.xlu0 %12956
  %12958 = vrot.lane.b32.xlu0 %v11295, 32
  %v12959 = vpop.permute.xlu0 %12958
  %12960 = vrot.lane.b32.xlu0 %v11297, 32
  %v12961 = vpop.permute.xlu0 %12960
  %12962 = vrot.lane.b32.xlu0 %v11299, 32
  %v12963 = vpop.permute.xlu0 %12962
  %12964 = vrot.lane.b32.xlu0 %v11301, 32
  %v12965 = vpop.permute.xlu0 %12964
  %12966 = vrot.lane.b32.xlu0 %v11303, 32
  %v12967 = vpop.permute.xlu0 %12966
  %12968 = vrot.lane.b32.xlu0 %v11305, 32
  %v12969 = vpop.permute.xlu0 %12968
  %12970 = vrot.lane.b32.xlu0 %v11307, 32
  %v12971 = vpop.permute.xlu0 %12970
  %12972 = vrot.lane.b32.xlu0 %v11309, 32
  %v12973 = vpop.permute.xlu0 %12972
  %12974 = vrot.lane.b32.xlu0 %v11311, 32
  %v12975 = vpop.permute.xlu0 %12974
  %12976 = vrot.lane.b32.xlu0 %v11313, 32
  %v12977 = vpop.permute.xlu0 %12976
  %v13106 = vmul.f32 %v12466, %v12723
  %v13107 = vmul.f32 %v12467, %v12725
  %v13108 = vmul.f32 %v12468, %v12727
  %v13109 = vmul.f32 %v12469, %v12729
  %v13110 = vmul.f32 %v12470, %v12731
  %v13111 = vmul.f32 %v12471, %v12733
  %v13112 = vmul.f32 %v12472, %v12735
  %v13113 = vmul.f32 %v12473, %v12737
  %v13114 = vmul.f32 %v12474, %v12739
  %v13115 = vmul.f32 %v12475, %v12741
  %v13116 = vmul.f32 %v12476, %v12743
  %v13117 = vmul.f32 %v12477, %v12745
  %v13118 = vmul.f32 %v12478, %v12747
  %v13119 = vmul.f32 %v12479, %v12749
  %v13120 = vmul.f32 %v12480, %v12751
  %v13121 = vmul.f32 %v12481, %v12753
  %v13122 = vmul.f32 %v12482, %v12755
  %v13123 = vmul.f32 %v12483, %v12757
  %v13124 = vmul.f32 %v12484, %v12759
  %v13125 = vmul.f32 %v12485, %v12761
  %v13126 = vmul.f32 %v12486, %v12763
  %v13127 = vmul.f32 %v12487, %v12765
  %v13128 = vmul.f32 %v12488, %v12767
  %v13129 = vmul.f32 %v12489, %v12769
  %v13130 = vmul.f32 %v12490, %v12771
  %v13131 = vmul.f32 %v12491, %v12773
  %v13132 = vmul.f32 %v12492, %v12775
  %v13133 = vmul.f32 %v12493, %v12777
  %v13134 = vmul.f32 %v12494, %v12779
  %v13135 = vmul.f32 %v12495, %v12781
  %v13136 = vmul.f32 %v12496, %v12783
  %v13137 = vmul.f32 %v12497, %v12785
  %v13138 = vmul.f32 %v12498, %v12787
  %v13139 = vmul.f32 %v12499, %v12789
  %v13140 = vmul.f32 %v12500, %v12791
  %v13141 = vmul.f32 %v12501, %v12793
  %v13142 = vmul.f32 %v12502, %v12795
  %v13143 = vmul.f32 %v12503, %v12797
  %v13144 = vmul.f32 %v12504, %v12799
  %v13145 = vmul.f32 %v12505, %v12801
  %v13146 = vmul.f32 %v12506, %v12803
  %v13147 = vmul.f32 %v12507, %v12805
  %v13148 = vmul.f32 %v12508, %v12807
  %v13149 = vmul.f32 %v12509, %v12809
  %v13150 = vmul.f32 %v12510, %v12811
  %v13151 = vmul.f32 %v12511, %v12813
  %v13152 = vmul.f32 %v12512, %v12815
  %v13153 = vmul.f32 %v12513, %v12817
  %v13154 = vmul.f32 %v12514, %v12819
  %v13155 = vmul.f32 %v12515, %v12821
  %v13156 = vmul.f32 %v12516, %v12823
  %v13157 = vmul.f32 %v12517, %v12825
  %v13158 = vmul.f32 %v12518, %v12827
  %v13159 = vmul.f32 %v12519, %v12829
  %v13160 = vmul.f32 %v12520, %v12831
  %v13161 = vmul.f32 %v12521, %v12833
  %v13162 = vmul.f32 %v12522, %v12835
  %v13163 = vmul.f32 %v12523, %v12837
  %v13164 = vmul.f32 %v12524, %v12839
  %v13165 = vmul.f32 %v12525, %v12841
  %v13166 = vmul.f32 %v12526, %v12843
  %v13167 = vmul.f32 %v12527, %v12845
  %v13168 = vmul.f32 %v12528, %v12847
  %v13169 = vmul.f32 %v12529, %v12849
  %v13170 = vmul.f32 %v12530, %v12851
  %v13171 = vmul.f32 %v12531, %v12853
  %v13172 = vmul.f32 %v12532, %v12855
  %v13173 = vmul.f32 %v12533, %v12857
  %v13174 = vmul.f32 %v12534, %v12859
  %v13175 = vmul.f32 %v12535, %v12861
  %v13176 = vmul.f32 %v12536, %v12863
  %v13177 = vmul.f32 %v12537, %v12865
  %v13178 = vmul.f32 %v12538, %v12867
  %v13179 = vmul.f32 %v12539, %v12869
  %v13180 = vmul.f32 %v12540, %v12871
  %v13181 = vmul.f32 %v12541, %v12873
  %v13182 = vmul.f32 %v12542, %v12875
  %v13183 = vmul.f32 %v12543, %v12877
  %v13184 = vmul.f32 %v12544, %v12879
  %v13185 = vmul.f32 %v12545, %v12881
  %v13186 = vmul.f32 %v12546, %v12883
  %v13187 = vmul.f32 %v12547, %v12885
  %v13188 = vmul.f32 %v12548, %v12887
  %v13189 = vmul.f32 %v12549, %v12889
  %v13190 = vmul.f32 %v12550, %v12891
  %v13191 = vmul.f32 %v12551, %v12893
  %v13192 = vmul.f32 %v12552, %v12895
  %v13193 = vmul.f32 %v12553, %v12897
  %v13194 = vmul.f32 %v12554, %v12899
  %v13195 = vmul.f32 %v12555, %v12901
  %v13196 = vmul.f32 %v12556, %v12903
  %v13197 = vmul.f32 %v12557, %v12905
  %v13198 = vmul.f32 %v12558, %v12907
  %v13199 = vmul.f32 %v12559, %v12909
  %v13200 = vmul.f32 %v12560, %v12911
  %v13201 = vmul.f32 %v12561, %v12913
  %v13202 = vmul.f32 %v12562, %v12915
  %v13203 = vmul.f32 %v12563, %v12917
  %v13204 = vmul.f32 %v12564, %v12919
  %v13205 = vmul.f32 %v12565, %v12921
  %v13206 = vmul.f32 %v12566, %v12923
  %v13207 = vmul.f32 %v12567, %v12925
  %v13208 = vmul.f32 %v12568, %v12927
  %v13209 = vmul.f32 %v12569, %v12929
  %v13210 = vmul.f32 %v12570, %v12931
  %v13211 = vmul.f32 %v12571, %v12933
  %v13212 = vmul.f32 %v12572, %v12935
  %v13213 = vmul.f32 %v12573, %v12937
  %v13214 = vmul.f32 %v12574, %v12939
  %v13215 = vmul.f32 %v12575, %v12941
  %v13216 = vmul.f32 %v12576, %v12943
  %v13217 = vmul.f32 %v12577, %v12945
  %v13218 = vmul.f32 %v12578, %v12947
  %v13219 = vmul.f32 %v12579, %v12949
  %v13220 = vmul.f32 %v12580, %v12951
  %v13221 = vmul.f32 %v12581, %v12953
  %v13222 = vmul.f32 %v12582, %v12955
  %v13223 = vmul.f32 %v12583, %v12957
  %v13224 = vmul.f32 %v12584, %v12959
  %v13225 = vmul.f32 %v12585, %v12961
  %v13226 = vmul.f32 %v12586, %v12963
  %v13227 = vmul.f32 %v12587, %v12965
  %v13228 = vmul.f32 %v12588, %v12967
  %v13229 = vmul.f32 %v12589, %v12969
  %v13230 = vmul.f32 %v12590, %v12971
  %v13231 = vmul.f32 %v12591, %v12973
  %v13232 = vmul.f32 %v12592, %v12975
  %v13233 = vmul.f32 %v12593, %v12977
  %vm13234 = vcmask 523520
  %v13235 = vsel %vm13234, %v13106, 0.0
  %v13236 = vsel %vm13234, %v13107, 0.0
  %v13237 = vadd.f32 %v13235, %v13236
  %v13238 = vrot.slane %v13237, 4
  %v13239 = vadd.f32 %v13237, %v13238
  %v13240 = vrot.slane %v13239, 2
  %v13241 = vadd.f32 %v13239, %v13240
  %v13242 = vrot.slane %v13241, 1
  %v13243 = vadd.f32 %v13241, %v13242
  %v13244 = vsel %vm13234, %v13108, 0.0
  %v13245 = vsel %vm13234, %v13109, 0.0
  %v13246 = vadd.f32 %v13244, %v13245
  %v13247 = vrot.slane %v13246, 4
  %v13248 = vadd.f32 %v13246, %v13247
  %v13249 = vrot.slane %v13248, 2
  %v13250 = vadd.f32 %v13248, %v13249
  %v13251 = vrot.slane %v13250, 1
  %v13252 = vadd.f32 %v13250, %v13251
  %v13253 = vsel %vm13234, %v13110, 0.0
  %v13254 = vsel %vm13234, %v13111, 0.0
  %v13255 = vadd.f32 %v13253, %v13254
  %v13256 = vrot.slane %v13255, 4
  %v13257 = vadd.f32 %v13255, %v13256
  %v13258 = vrot.slane %v13257, 2
  %v13259 = vadd.f32 %v13257, %v13258
  %v13260 = vrot.slane %v13259, 1
  %v13261 = vadd.f32 %v13259, %v13260
  %v13262 = vsel %vm13234, %v13112, 0.0
  %v13263 = vsel %vm13234, %v13113, 0.0
  %v13264 = vadd.f32 %v13262, %v13263
  %v13265 = vrot.slane %v13264, 4
  %v13266 = vadd.f32 %v13264, %v13265
  %v13267 = vrot.slane %v13266, 2
  %v13268 = vadd.f32 %v13266, %v13267
  %v13269 = vrot.slane %v13268, 1
  %v13270 = vadd.f32 %v13268, %v13269
  %v13271 = vsel %vm13234, %v13114, 0.0
  %v13272 = vsel %vm13234, %v13115, 0.0
  %v13273 = vadd.f32 %v13271, %v13272
  %v13274 = vrot.slane %v13273, 4
  %v13275 = vadd.f32 %v13273, %v13274
  %v13276 = vrot.slane %v13275, 2
  %v13277 = vadd.f32 %v13275, %v13276
  %v13278 = vrot.slane %v13277, 1
  %v13279 = vadd.f32 %v13277, %v13278
  %v13280 = vsel %vm13234, %v13116, 0.0
  %v13281 = vsel %vm13234, %v13117, 0.0
  %v13282 = vadd.f32 %v13280, %v13281
  %v13283 = vrot.slane %v13282, 4
  %v13284 = vadd.f32 %v13282, %v13283
  %v13285 = vrot.slane %v13284, 2
  %v13286 = vadd.f32 %v13284, %v13285
  %v13287 = vrot.slane %v13286, 1
  %v13288 = vadd.f32 %v13286, %v13287
  %v13289 = vsel %vm13234, %v13118, 0.0
  %v13290 = vsel %vm13234, %v13119, 0.0
  %v13291 = vadd.f32 %v13289, %v13290
  %v13292 = vrot.slane %v13291, 4
  %v13293 = vadd.f32 %v13291, %v13292
  %v13294 = vrot.slane %v13293, 2
  %v13295 = vadd.f32 %v13293, %v13294
  %v13296 = vrot.slane %v13295, 1
  %v13297 = vadd.f32 %v13295, %v13296
  %v13298 = vsel %vm13234, %v13120, 0.0
  %v13299 = vsel %vm13234, %v13121, 0.0
  %v13300 = vadd.f32 %v13298, %v13299
  %v13301 = vrot.slane %v13300, 4
  %v13302 = vadd.f32 %v13300, %v13301
  %v13303 = vrot.slane %v13302, 2
  %v13304 = vadd.f32 %v13302, %v13303
  %v13305 = vrot.slane %v13304, 1
  %v13306 = vadd.f32 %v13304, %v13305
  %v13307 = vsel %vm13234, %v13122, 0.0
  %v13308 = vsel %vm13234, %v13123, 0.0
  %v13309 = vadd.f32 %v13307, %v13308
  %v13310 = vrot.slane %v13309, 4
  %v13311 = vadd.f32 %v13309, %v13310
  %v13312 = vrot.slane %v13311, 2
  %v13313 = vadd.f32 %v13311, %v13312
  %v13314 = vrot.slane %v13313, 1
  %v13315 = vadd.f32 %v13313, %v13314
  %v13316 = vsel %vm13234, %v13124, 0.0
  %v13317 = vsel %vm13234, %v13125, 0.0
  %v13318 = vadd.f32 %v13316, %v13317
  %v13319 = vrot.slane %v13318, 4
  %v13320 = vadd.f32 %v13318, %v13319
  %v13321 = vrot.slane %v13320, 2
  %v13322 = vadd.f32 %v13320, %v13321
  %v13323 = vrot.slane %v13322, 1
  %v13324 = vadd.f32 %v13322, %v13323
  %v13325 = vsel %vm13234, %v13126, 0.0
  %v13326 = vsel %vm13234, %v13127, 0.0
  %v13327 = vadd.f32 %v13325, %v13326
  %v13328 = vrot.slane %v13327, 4
  %v13329 = vadd.f32 %v13327, %v13328
  %v13330 = vrot.slane %v13329, 2
  %v13331 = vadd.f32 %v13329, %v13330
  %v13332 = vrot.slane %v13331, 1
  %v13333 = vadd.f32 %v13331, %v13332
  %v13334 = vsel %vm13234, %v13128, 0.0
  %v13335 = vsel %vm13234, %v13129, 0.0
  %v13336 = vadd.f32 %v13334, %v13335
  %v13337 = vrot.slane %v13336, 4
  %v13338 = vadd.f32 %v13336, %v13337
  %v13339 = vrot.slane %v13338, 2
  %v13340 = vadd.f32 %v13338, %v13339
  %v13341 = vrot.slane %v13340, 1
  %v13342 = vadd.f32 %v13340, %v13341
  %v13343 = vsel %vm13234, %v13130, 0.0
  %v13344 = vsel %vm13234, %v13131, 0.0
  %v13345 = vadd.f32 %v13343, %v13344
  %v13346 = vrot.slane %v13345, 4
  %v13347 = vadd.f32 %v13345, %v13346
  %v13348 = vrot.slane %v13347, 2
  %v13349 = vadd.f32 %v13347, %v13348
  %v13350 = vrot.slane %v13349, 1
  %v13351 = vadd.f32 %v13349, %v13350
  %v13352 = vsel %vm13234, %v13132, 0.0
  %v13353 = vsel %vm13234, %v13133, 0.0
  %v13354 = vadd.f32 %v13352, %v13353
  %v13355 = vrot.slane %v13354, 4
  %v13356 = vadd.f32 %v13354, %v13355
  %v13357 = vrot.slane %v13356, 2
  %v13358 = vadd.f32 %v13356, %v13357
  %v13359 = vrot.slane %v13358, 1
  %v13360 = vadd.f32 %v13358, %v13359
  %v13361 = vsel %vm13234, %v13134, 0.0
  %v13362 = vsel %vm13234, %v13135, 0.0
  %v13363 = vadd.f32 %v13361, %v13362
  %v13364 = vrot.slane %v13363, 4
  %v13365 = vadd.f32 %v13363, %v13364
  %v13366 = vrot.slane %v13365, 2
  %v13367 = vadd.f32 %v13365, %v13366
  %v13368 = vrot.slane %v13367, 1
  %v13369 = vadd.f32 %v13367, %v13368
  %v13370 = vsel %vm13234, %v13136, 0.0
  %v13371 = vsel %vm13234, %v13137, 0.0
  %v13372 = vadd.f32 %v13370, %v13371
  %v13373 = vrot.slane %v13372, 4
  %v13374 = vadd.f32 %v13372, %v13373
  %v13375 = vrot.slane %v13374, 2
  %v13376 = vadd.f32 %v13374, %v13375
  %v13377 = vrot.slane %v13376, 1
  %v13378 = vadd.f32 %v13376, %v13377
  %v13379 = vsel %vm13234, %v13138, 0.0
  %v13380 = vsel %vm13234, %v13139, 0.0
  %v13381 = vadd.f32 %v13379, %v13380
  %v13382 = vrot.slane %v13381, 4
  %v13383 = vadd.f32 %v13381, %v13382
  %v13384 = vrot.slane %v13383, 2
  %v13385 = vadd.f32 %v13383, %v13384
  %v13386 = vrot.slane %v13385, 1
  %v13387 = vadd.f32 %v13385, %v13386
  %v13388 = vsel %vm13234, %v13140, 0.0
  %v13389 = vsel %vm13234, %v13141, 0.0
  %v13390 = vadd.f32 %v13388, %v13389
  %v13391 = vrot.slane %v13390, 4
  %v13392 = vadd.f32 %v13390, %v13391
  %v13393 = vrot.slane %v13392, 2
  %v13394 = vadd.f32 %v13392, %v13393
  %v13395 = vrot.slane %v13394, 1
  %v13396 = vadd.f32 %v13394, %v13395
  %v13397 = vsel %vm13234, %v13142, 0.0
  %v13398 = vsel %vm13234, %v13143, 0.0
  %v13399 = vadd.f32 %v13397, %v13398
  %v13400 = vrot.slane %v13399, 4
  %v13401 = vadd.f32 %v13399, %v13400
  %v13402 = vrot.slane %v13401, 2
  %v13403 = vadd.f32 %v13401, %v13402
  %v13404 = vrot.slane %v13403, 1
  %v13405 = vadd.f32 %v13403, %v13404
  %v13406 = vsel %vm13234, %v13144, 0.0
  %v13407 = vsel %vm13234, %v13145, 0.0
  %v13408 = vadd.f32 %v13406, %v13407
  %v13409 = vrot.slane %v13408, 4
  %v13410 = vadd.f32 %v13408, %v13409
  %v13411 = vrot.slane %v13410, 2
  %v13412 = vadd.f32 %v13410, %v13411
  %v13413 = vrot.slane %v13412, 1
  %v13414 = vadd.f32 %v13412, %v13413
  %v13415 = vsel %vm13234, %v13146, 0.0
  %v13416 = vsel %vm13234, %v13147, 0.0
  %v13417 = vadd.f32 %v13415, %v13416
  %v13418 = vrot.slane %v13417, 4
  %v13419 = vadd.f32 %v13417, %v13418
  %v13420 = vrot.slane %v13419, 2
  %v13421 = vadd.f32 %v13419, %v13420
  %v13422 = vrot.slane %v13421, 1
  %v13423 = vadd.f32 %v13421, %v13422
  %v13424 = vsel %vm13234, %v13148, 0.0
  %v13425 = vsel %vm13234, %v13149, 0.0
  %v13426 = vadd.f32 %v13424, %v13425
  %v13427 = vrot.slane %v13426, 4
  %v13428 = vadd.f32 %v13426, %v13427
  %v13429 = vrot.slane %v13428, 2
  %v13430 = vadd.f32 %v13428, %v13429
  %v13431 = vrot.slane %v13430, 1
  %v13432 = vadd.f32 %v13430, %v13431
  %v13433 = vsel %vm13234, %v13150, 0.0
  %v13434 = vsel %vm13234, %v13151, 0.0
  %v13435 = vadd.f32 %v13433, %v13434
  %v13436 = vrot.slane %v13435, 4
  %v13437 = vadd.f32 %v13435, %v13436
  %v13438 = vrot.slane %v13437, 2
  %v13439 = vadd.f32 %v13437, %v13438
  %v13440 = vrot.slane %v13439, 1
  %v13441 = vadd.f32 %v13439, %v13440
  %v13442 = vsel %vm13234, %v13152, 0.0
  %v13443 = vsel %vm13234, %v13153, 0.0
  %v13444 = vadd.f32 %v13442, %v13443
  %v13445 = vrot.slane %v13444, 4
  %v13446 = vadd.f32 %v13444, %v13445
  %v13447 = vrot.slane %v13446, 2
  %v13448 = vadd.f32 %v13446, %v13447
  %v13449 = vrot.slane %v13448, 1
  %v13450 = vadd.f32 %v13448, %v13449
  %v13451 = vsel %vm13234, %v13154, 0.0
  %v13452 = vsel %vm13234, %v13155, 0.0
  %v13453 = vadd.f32 %v13451, %v13452
  %v13454 = vrot.slane %v13453, 4
  %v13455 = vadd.f32 %v13453, %v13454
  %v13456 = vrot.slane %v13455, 2
  %v13457 = vadd.f32 %v13455, %v13456
  %v13458 = vrot.slane %v13457, 1
  %v13459 = vadd.f32 %v13457, %v13458
  %v13460 = vsel %vm13234, %v13156, 0.0
  %v13461 = vsel %vm13234, %v13157, 0.0
  %v13462 = vadd.f32 %v13460, %v13461
  %v13463 = vrot.slane %v13462, 4
  %v13464 = vadd.f32 %v13462, %v13463
  %v13465 = vrot.slane %v13464, 2
  %v13466 = vadd.f32 %v13464, %v13465
  %v13467 = vrot.slane %v13466, 1
  %v13468 = vadd.f32 %v13466, %v13467
  %v13469 = vsel %vm13234, %v13158, 0.0
  %v13470 = vsel %vm13234, %v13159, 0.0
  %v13471 = vadd.f32 %v13469, %v13470
  %v13472 = vrot.slane %v13471, 4
  %v13473 = vadd.f32 %v13471, %v13472
  %v13474 = vrot.slane %v13473, 2
  %v13475 = vadd.f32 %v13473, %v13474
  %v13476 = vrot.slane %v13475, 1
  %v13477 = vadd.f32 %v13475, %v13476
  %v13478 = vsel %vm13234, %v13160, 0.0
  %v13479 = vsel %vm13234, %v13161, 0.0
  %v13480 = vadd.f32 %v13478, %v13479
  %v13481 = vrot.slane %v13480, 4
  %v13482 = vadd.f32 %v13480, %v13481
  %v13483 = vrot.slane %v13482, 2
  %v13484 = vadd.f32 %v13482, %v13483
  %v13485 = vrot.slane %v13484, 1
  %v13486 = vadd.f32 %v13484, %v13485
  %v13487 = vsel %vm13234, %v13162, 0.0
  %v13488 = vsel %vm13234, %v13163, 0.0
  %v13489 = vadd.f32 %v13487, %v13488
  %v13490 = vrot.slane %v13489, 4
  %v13491 = vadd.f32 %v13489, %v13490
  %v13492 = vrot.slane %v13491, 2
  %v13493 = vadd.f32 %v13491, %v13492
  %v13494 = vrot.slane %v13493, 1
  %v13495 = vadd.f32 %v13493, %v13494
  %v13496 = vsel %vm13234, %v13164, 0.0
  %v13497 = vsel %vm13234, %v13165, 0.0
  %v13498 = vadd.f32 %v13496, %v13497
  %v13499 = vrot.slane %v13498, 4
  %v13500 = vadd.f32 %v13498, %v13499
  %v13501 = vrot.slane %v13500, 2
  %v13502 = vadd.f32 %v13500, %v13501
  %v13503 = vrot.slane %v13502, 1
  %v13504 = vadd.f32 %v13502, %v13503
  %v13505 = vsel %vm13234, %v13166, 0.0
  %v13506 = vsel %vm13234, %v13167, 0.0
  %v13507 = vadd.f32 %v13505, %v13506
  %v13508 = vrot.slane %v13507, 4
  %v13509 = vadd.f32 %v13507, %v13508
  %v13510 = vrot.slane %v13509, 2
  %v13511 = vadd.f32 %v13509, %v13510
  %v13512 = vrot.slane %v13511, 1
  %v13513 = vadd.f32 %v13511, %v13512
  %v13514 = vsel %vm13234, %v13168, 0.0
  %v13515 = vsel %vm13234, %v13169, 0.0
  %v13516 = vadd.f32 %v13514, %v13515
  %v13517 = vrot.slane %v13516, 4
  %v13518 = vadd.f32 %v13516, %v13517
  %v13519 = vrot.slane %v13518, 2
  %v13520 = vadd.f32 %v13518, %v13519
  %v13521 = vrot.slane %v13520, 1
  %v13522 = vadd.f32 %v13520, %v13521
  %v13523 = vsel %vm13234, %v13170, 0.0
  %v13524 = vsel %vm13234, %v13171, 0.0
  %v13525 = vadd.f32 %v13523, %v13524
  %v13526 = vrot.slane %v13525, 4
  %v13527 = vadd.f32 %v13525, %v13526
  %v13528 = vrot.slane %v13527, 2
  %v13529 = vadd.f32 %v13527, %v13528
  %v13530 = vrot.slane %v13529, 1
  %v13531 = vadd.f32 %v13529, %v13530
  %v13532 = vsel %vm13234, %v13172, 0.0
  %v13533 = vsel %vm13234, %v13173, 0.0
  %v13534 = vadd.f32 %v13532, %v13533
  %v13535 = vrot.slane %v13534, 4
  %v13536 = vadd.f32 %v13534, %v13535
  %v13537 = vrot.slane %v13536, 2
  %v13538 = vadd.f32 %v13536, %v13537
  %v13539 = vrot.slane %v13538, 1
  %v13540 = vadd.f32 %v13538, %v13539
  %v13541 = vsel %vm13234, %v13174, 0.0
  %v13542 = vsel %vm13234, %v13175, 0.0
  %v13543 = vadd.f32 %v13541, %v13542
  %v13544 = vrot.slane %v13543, 4
  %v13545 = vadd.f32 %v13543, %v13544
  %v13546 = vrot.slane %v13545, 2
  %v13547 = vadd.f32 %v13545, %v13546
  %v13548 = vrot.slane %v13547, 1
  %v13549 = vadd.f32 %v13547, %v13548
  %v13550 = vsel %vm13234, %v13176, 0.0
  %v13551 = vsel %vm13234, %v13177, 0.0
  %v13552 = vadd.f32 %v13550, %v13551
  %v13553 = vrot.slane %v13552, 4
  %v13554 = vadd.f32 %v13552, %v13553
  %v13555 = vrot.slane %v13554, 2
  %v13556 = vadd.f32 %v13554, %v13555
  %v13557 = vrot.slane %v13556, 1
  %v13558 = vadd.f32 %v13556, %v13557
  %v13559 = vsel %vm13234, %v13178, 0.0
  %v13560 = vsel %vm13234, %v13179, 0.0
  %v13561 = vadd.f32 %v13559, %v13560
  %v13562 = vrot.slane %v13561, 4
  %v13563 = vadd.f32 %v13561, %v13562
  %v13564 = vrot.slane %v13563, 2
  %v13565 = vadd.f32 %v13563, %v13564
  %v13566 = vrot.slane %v13565, 1
  %v13567 = vadd.f32 %v13565, %v13566
  %v13568 = vsel %vm13234, %v13180, 0.0
  %v13569 = vsel %vm13234, %v13181, 0.0
  %v13570 = vadd.f32 %v13568, %v13569
  %v13571 = vrot.slane %v13570, 4
  %v13572 = vadd.f32 %v13570, %v13571
  %v13573 = vrot.slane %v13572, 2
  %v13574 = vadd.f32 %v13572, %v13573
  %v13575 = vrot.slane %v13574, 1
  %v13576 = vadd.f32 %v13574, %v13575
  %v13577 = vsel %vm13234, %v13182, 0.0
  %v13578 = vsel %vm13234, %v13183, 0.0
  %v13579 = vadd.f32 %v13577, %v13578
  %v13580 = vrot.slane %v13579, 4
  %v13581 = vadd.f32 %v13579, %v13580
  %v13582 = vrot.slane %v13581, 2
  %v13583 = vadd.f32 %v13581, %v13582
  %v13584 = vrot.slane %v13583, 1
  %v13585 = vadd.f32 %v13583, %v13584
  %v13586 = vsel %vm13234, %v13184, 0.0
  %v13587 = vsel %vm13234, %v13185, 0.0
  %v13588 = vadd.f32 %v13586, %v13587
  %v13589 = vrot.slane %v13588, 4
  %v13590 = vadd.f32 %v13588, %v13589
  %v13591 = vrot.slane %v13590, 2
  %v13592 = vadd.f32 %v13590, %v13591
  %v13593 = vrot.slane %v13592, 1
  %v13594 = vadd.f32 %v13592, %v13593
  %v13595 = vsel %vm13234, %v13186, 0.0
  %v13596 = vsel %vm13234, %v13187, 0.0
  %v13597 = vadd.f32 %v13595, %v13596
  %v13598 = vrot.slane %v13597, 4
  %v13599 = vadd.f32 %v13597, %v13598
  %v13600 = vrot.slane %v13599, 2
  %v13601 = vadd.f32 %v13599, %v13600
  %v13602 = vrot.slane %v13601, 1
  %v13603 = vadd.f32 %v13601, %v13602
  %v13604 = vsel %vm13234, %v13188, 0.0
  %v13605 = vsel %vm13234, %v13189, 0.0
  %v13606 = vadd.f32 %v13604, %v13605
  %v13607 = vrot.slane %v13606, 4
  %v13608 = vadd.f32 %v13606, %v13607
  %v13609 = vrot.slane %v13608, 2
  %v13610 = vadd.f32 %v13608, %v13609
  %v13611 = vrot.slane %v13610, 1
  %v13612 = vadd.f32 %v13610, %v13611
  %v13613 = vsel %vm13234, %v13190, 0.0
  %v13614 = vsel %vm13234, %v13191, 0.0
  %v13615 = vadd.f32 %v13613, %v13614
  %v13616 = vrot.slane %v13615, 4
  %v13617 = vadd.f32 %v13615, %v13616
  %v13618 = vrot.slane %v13617, 2
  %v13619 = vadd.f32 %v13617, %v13618
  %v13620 = vrot.slane %v13619, 1
  %v13621 = vadd.f32 %v13619, %v13620
  %v13622 = vsel %vm13234, %v13192, 0.0
  %v13623 = vsel %vm13234, %v13193, 0.0
  %v13624 = vadd.f32 %v13622, %v13623
  %v13625 = vrot.slane %v13624, 4
  %v13626 = vadd.f32 %v13624, %v13625
  %v13627 = vrot.slane %v13626, 2
  %v13628 = vadd.f32 %v13626, %v13627
  %v13629 = vrot.slane %v13628, 1
  %v13630 = vadd.f32 %v13628, %v13629
  %v13631 = vsel %vm13234, %v13194, 0.0
  %v13632 = vsel %vm13234, %v13195, 0.0
  %v13633 = vadd.f32 %v13631, %v13632
  %v13634 = vrot.slane %v13633, 4
  %v13635 = vadd.f32 %v13633, %v13634
  %v13636 = vrot.slane %v13635, 2
  %v13637 = vadd.f32 %v13635, %v13636
  %v13638 = vrot.slane %v13637, 1
  %v13639 = vadd.f32 %v13637, %v13638
  %v13640 = vsel %vm13234, %v13196, 0.0
  %v13641 = vsel %vm13234, %v13197, 0.0
  %v13642 = vadd.f32 %v13640, %v13641
  %v13643 = vrot.slane %v13642, 4
  %v13644 = vadd.f32 %v13642, %v13643
  %v13645 = vrot.slane %v13644, 2
  %v13646 = vadd.f32 %v13644, %v13645
  %v13647 = vrot.slane %v13646, 1
  %v13648 = vadd.f32 %v13646, %v13647
  %v13649 = vsel %vm13234, %v13198, 0.0
  %v13650 = vsel %vm13234, %v13199, 0.0
  %v13651 = vadd.f32 %v13649, %v13650
  %v13652 = vrot.slane %v13651, 4
  %v13653 = vadd.f32 %v13651, %v13652
  %v13654 = vrot.slane %v13653, 2
  %v13655 = vadd.f32 %v13653, %v13654
  %v13656 = vrot.slane %v13655, 1
  %v13657 = vadd.f32 %v13655, %v13656
  %v13658 = vsel %vm13234, %v13200, 0.0
  %v13659 = vsel %vm13234, %v13201, 0.0
  %v13660 = vadd.f32 %v13658, %v13659
  %v13661 = vrot.slane %v13660, 4
  %v13662 = vadd.f32 %v13660, %v13661
  %v13663 = vrot.slane %v13662, 2
  %v13664 = vadd.f32 %v13662, %v13663
  %v13665 = vrot.slane %v13664, 1
  %v13666 = vadd.f32 %v13664, %v13665
  %v13667 = vsel %vm13234, %v13202, 0.0
  %v13668 = vsel %vm13234, %v13203, 0.0
  %v13669 = vadd.f32 %v13667, %v13668
  %v13670 = vrot.slane %v13669, 4
  %v13671 = vadd.f32 %v13669, %v13670
  %v13672 = vrot.slane %v13671, 2
  %v13673 = vadd.f32 %v13671, %v13672
  %v13674 = vrot.slane %v13673, 1
  %v13675 = vadd.f32 %v13673, %v13674
  %v13676 = vsel %vm13234, %v13204, 0.0
  %v13677 = vsel %vm13234, %v13205, 0.0
  %v13678 = vadd.f32 %v13676, %v13677
  %v13679 = vrot.slane %v13678, 4
  %v13680 = vadd.f32 %v13678, %v13679
  %v13681 = vrot.slane %v13680, 2
  %v13682 = vadd.f32 %v13680, %v13681
  %v13683 = vrot.slane %v13682, 1
  %v13684 = vadd.f32 %v13682, %v13683
  %v13685 = vsel %vm13234, %v13206, 0.0
  %v13686 = vsel %vm13234, %v13207, 0.0
  %v13687 = vadd.f32 %v13685, %v13686
  %v13688 = vrot.slane %v13687, 4
  %v13689 = vadd.f32 %v13687, %v13688
  %v13690 = vrot.slane %v13689, 2
  %v13691 = vadd.f32 %v13689, %v13690
  %v13692 = vrot.slane %v13691, 1
  %v13693 = vadd.f32 %v13691, %v13692
  %v13694 = vsel %vm13234, %v13208, 0.0
  %v13695 = vsel %vm13234, %v13209, 0.0
  %v13696 = vadd.f32 %v13694, %v13695
  %v13697 = vrot.slane %v13696, 4
  %v13698 = vadd.f32 %v13696, %v13697
  %v13699 = vrot.slane %v13698, 2
  %v13700 = vadd.f32 %v13698, %v13699
  %v13701 = vrot.slane %v13700, 1
  %v13702 = vadd.f32 %v13700, %v13701
  %v13703 = vsel %vm13234, %v13210, 0.0
  %v13704 = vsel %vm13234, %v13211, 0.0
  %v13705 = vadd.f32 %v13703, %v13704
  %v13706 = vrot.slane %v13705, 4
  %v13707 = vadd.f32 %v13705, %v13706
  %v13708 = vrot.slane %v13707, 2
  %v13709 = vadd.f32 %v13707, %v13708
  %v13710 = vrot.slane %v13709, 1
  %v13711 = vadd.f32 %v13709, %v13710
  %v13712 = vsel %vm13234, %v13212, 0.0
  %v13713 = vsel %vm13234, %v13213, 0.0
  %v13714 = vadd.f32 %v13712, %v13713
  %v13715 = vrot.slane %v13714, 4
  %v13716 = vadd.f32 %v13714, %v13715
  %v13717 = vrot.slane %v13716, 2
  %v13718 = vadd.f32 %v13716, %v13717
  %v13719 = vrot.slane %v13718, 1
  %v13720 = vadd.f32 %v13718, %v13719
  %v13721 = vsel %vm13234, %v13214, 0.0
  %v13722 = vsel %vm13234, %v13215, 0.0
  %v13723 = vadd.f32 %v13721, %v13722
  %v13724 = vrot.slane %v13723, 4
  %v13725 = vadd.f32 %v13723, %v13724
  %v13726 = vrot.slane %v13725, 2
  %v13727 = vadd.f32 %v13725, %v13726
  %v13728 = vrot.slane %v13727, 1
  %v13729 = vadd.f32 %v13727, %v13728
  %v13730 = vsel %vm13234, %v13216, 0.0
  %v13731 = vsel %vm13234, %v13217, 0.0
  %v13732 = vadd.f32 %v13730, %v13731
  %v13733 = vrot.slane %v13732, 4
  %v13734 = vadd.f32 %v13732, %v13733
  %v13735 = vrot.slane %v13734, 2
  %v13736 = vadd.f32 %v13734, %v13735
  %v13737 = vrot.slane %v13736, 1
  %v13738 = vadd.f32 %v13736, %v13737
  %v13739 = vsel %vm13234, %v13218, 0.0
  %v13740 = vsel %vm13234, %v13219, 0.0
  %v13741 = vadd.f32 %v13739, %v13740
  %v13742 = vrot.slane %v13741, 4
  %v13743 = vadd.f32 %v13741, %v13742
  %v13744 = vrot.slane %v13743, 2
  %v13745 = vadd.f32 %v13743, %v13744
  %v13746 = vrot.slane %v13745, 1
  %v13747 = vadd.f32 %v13745, %v13746
  %v13748 = vsel %vm13234, %v13220, 0.0
  %v13749 = vsel %vm13234, %v13221, 0.0
  %v13750 = vadd.f32 %v13748, %v13749
  %v13751 = vrot.slane %v13750, 4
  %v13752 = vadd.f32 %v13750, %v13751
  %v13753 = vrot.slane %v13752, 2
  %v13754 = vadd.f32 %v13752, %v13753
  %v13755 = vrot.slane %v13754, 1
  %v13756 = vadd.f32 %v13754, %v13755
  %v13757 = vsel %vm13234, %v13222, 0.0
  %v13758 = vsel %vm13234, %v13223, 0.0
  %v13759 = vadd.f32 %v13757, %v13758
  %v13760 = vrot.slane %v13759, 4
  %v13761 = vadd.f32 %v13759, %v13760
  %v13762 = vrot.slane %v13761, 2
  %v13763 = vadd.f32 %v13761, %v13762
  %v13764 = vrot.slane %v13763, 1
  %v13765 = vadd.f32 %v13763, %v13764
  %v13766 = vsel %vm13234, %v13224, 0.0
  %v13767 = vsel %vm13234, %v13225, 0.0
  %v13768 = vadd.f32 %v13766, %v13767
  %v13769 = vrot.slane %v13768, 4
  %v13770 = vadd.f32 %v13768, %v13769
  %v13771 = vrot.slane %v13770, 2
  %v13772 = vadd.f32 %v13770, %v13771
  %v13773 = vrot.slane %v13772, 1
  %v13774 = vadd.f32 %v13772, %v13773
  %v13775 = vsel %vm13234, %v13226, 0.0
  %v13776 = vsel %vm13234, %v13227, 0.0
  %v13777 = vadd.f32 %v13775, %v13776
  %v13778 = vrot.slane %v13777, 4
  %v13779 = vadd.f32 %v13777, %v13778
  %v13780 = vrot.slane %v13779, 2
  %v13781 = vadd.f32 %v13779, %v13780
  %v13782 = vrot.slane %v13781, 1
  %v13783 = vadd.f32 %v13781, %v13782
  %v13784 = vsel %vm13234, %v13228, 0.0
  %v13785 = vsel %vm13234, %v13229, 0.0
  %v13786 = vadd.f32 %v13784, %v13785
  %v13787 = vrot.slane %v13786, 4
  %v13788 = vadd.f32 %v13786, %v13787
  %v13789 = vrot.slane %v13788, 2
  %v13790 = vadd.f32 %v13788, %v13789
  %v13791 = vrot.slane %v13790, 1
  %v13792 = vadd.f32 %v13790, %v13791
  %v13793 = vsel %vm13234, %v13230, 0.0
  %v13794 = vsel %vm13234, %v13231, 0.0
  %v13795 = vadd.f32 %v13793, %v13794
  %v13796 = vrot.slane %v13795, 4
  %v13797 = vadd.f32 %v13795, %v13796
  %v13798 = vrot.slane %v13797, 2
  %v13799 = vadd.f32 %v13797, %v13798
  %v13800 = vrot.slane %v13799, 1
  %v13801 = vadd.f32 %v13799, %v13800
  %v13802 = vsel %vm13234, %v13232, 0.0
  %v13803 = vsel %vm13234, %v13233, 0.0
  %v13804 = vadd.f32 %v13802, %v13803
  %v13805 = vrot.slane %v13804, 4
  %v13806 = vadd.f32 %v13804, %v13805
  %v13807 = vrot.slane %v13806, 2
  %v13808 = vadd.f32 %v13806, %v13807
  %v13809 = vrot.slane %v13808, 1
  %v13810 = vadd.f32 %v13808, %v13809
  %13875 = vrot.lane.b32.xlu0 %v11890, 32
  %v13876 = vpop.permute.xlu0 %13875
  %13877 = vrot.lane.b32.xlu0 %v11891, 32
  %v13878 = vpop.permute.xlu0 %13877
  %13879 = vrot.lane.b32.xlu0 %v11892, 32
  %v13880 = vpop.permute.xlu0 %13879
  %13881 = vrot.lane.b32.xlu0 %v11893, 32
  %v13882 = vpop.permute.xlu0 %13881
  %13883 = vrot.lane.b32.xlu0 %v11894, 32
  %v13884 = vpop.permute.xlu0 %13883
  %13885 = vrot.lane.b32.xlu0 %v11895, 32
  %v13886 = vpop.permute.xlu0 %13885
  %13887 = vrot.lane.b32.xlu0 %v11896, 32
  %v13888 = vpop.permute.xlu0 %13887
  %13889 = vrot.lane.b32.xlu0 %v11897, 32
  %v13890 = vpop.permute.xlu0 %13889
  %13891 = vrot.lane.b32.xlu0 %v11898, 32
  %v13892 = vpop.permute.xlu0 %13891
  %13893 = vrot.lane.b32.xlu0 %v11899, 32
  %v13894 = vpop.permute.xlu0 %13893
  %13895 = vrot.lane.b32.xlu0 %v11900, 32
  %v13896 = vpop.permute.xlu0 %13895
  %13897 = vrot.lane.b32.xlu0 %v11901, 32
  %v13898 = vpop.permute.xlu0 %13897
  %13899 = vrot.lane.b32.xlu0 %v11902, 32
  %v13900 = vpop.permute.xlu0 %13899
  %13901 = vrot.lane.b32.xlu0 %v11903, 32
  %v13902 = vpop.permute.xlu0 %13901
  %13903 = vrot.lane.b32.xlu0 %v11904, 32
  %v13904 = vpop.permute.xlu0 %13903
  %13905 = vrot.lane.b32.xlu0 %v11905, 32
  %v13906 = vpop.permute.xlu0 %13905
  %13907 = vrot.lane.b32.xlu0 %v11906, 32
  %v13908 = vpop.permute.xlu0 %13907
  %13909 = vrot.lane.b32.xlu0 %v11907, 32
  %v13910 = vpop.permute.xlu0 %13909
  %13911 = vrot.lane.b32.xlu0 %v11908, 32
  %v13912 = vpop.permute.xlu0 %13911
  %13913 = vrot.lane.b32.xlu0 %v11909, 32
  %v13914 = vpop.permute.xlu0 %13913
  %13915 = vrot.lane.b32.xlu0 %v11910, 32
  %v13916 = vpop.permute.xlu0 %13915
  %13917 = vrot.lane.b32.xlu0 %v11911, 32
  %v13918 = vpop.permute.xlu0 %13917
  %13919 = vrot.lane.b32.xlu0 %v11912, 32
  %v13920 = vpop.permute.xlu0 %13919
  %13921 = vrot.lane.b32.xlu0 %v11913, 32
  %v13922 = vpop.permute.xlu0 %13921
  %13923 = vrot.lane.b32.xlu0 %v11914, 32
  %v13924 = vpop.permute.xlu0 %13923
  %13925 = vrot.lane.b32.xlu0 %v11915, 32
  %v13926 = vpop.permute.xlu0 %13925
  %13927 = vrot.lane.b32.xlu0 %v11916, 32
  %v13928 = vpop.permute.xlu0 %13927
  %13929 = vrot.lane.b32.xlu0 %v11917, 32
  %v13930 = vpop.permute.xlu0 %13929
  %13931 = vrot.lane.b32.xlu0 %v11918, 32
  %v13932 = vpop.permute.xlu0 %13931
  %13933 = vrot.lane.b32.xlu0 %v11919, 32
  %v13934 = vpop.permute.xlu0 %13933
  %13935 = vrot.lane.b32.xlu0 %v11920, 32
  %v13936 = vpop.permute.xlu0 %13935
  %13937 = vrot.lane.b32.xlu0 %v11921, 32
  %v13938 = vpop.permute.xlu0 %13937
  %13939 = vrot.lane.b32.xlu0 %v11922, 32
  %v13940 = vpop.permute.xlu0 %13939
  %13941 = vrot.lane.b32.xlu0 %v11923, 32
  %v13942 = vpop.permute.xlu0 %13941
  %13943 = vrot.lane.b32.xlu0 %v11924, 32
  %v13944 = vpop.permute.xlu0 %13943
  %13945 = vrot.lane.b32.xlu0 %v11925, 32
  %v13946 = vpop.permute.xlu0 %13945
  %13947 = vrot.lane.b32.xlu0 %v11926, 32
  %v13948 = vpop.permute.xlu0 %13947
  %13949 = vrot.lane.b32.xlu0 %v11927, 32
  %v13950 = vpop.permute.xlu0 %13949
  %13951 = vrot.lane.b32.xlu0 %v11928, 32
  %v13952 = vpop.permute.xlu0 %13951
  %13953 = vrot.lane.b32.xlu0 %v11929, 32
  %v13954 = vpop.permute.xlu0 %13953
  %13955 = vrot.lane.b32.xlu0 %v11930, 32
  %v13956 = vpop.permute.xlu0 %13955
  %13957 = vrot.lane.b32.xlu0 %v11931, 32
  %v13958 = vpop.permute.xlu0 %13957
  %13959 = vrot.lane.b32.xlu0 %v11932, 32
  %v13960 = vpop.permute.xlu0 %13959
  %13961 = vrot.lane.b32.xlu0 %v11933, 32
  %v13962 = vpop.permute.xlu0 %13961
  %13963 = vrot.lane.b32.xlu0 %v11934, 32
  %v13964 = vpop.permute.xlu0 %13963
  %13965 = vrot.lane.b32.xlu0 %v11935, 32
  %v13966 = vpop.permute.xlu0 %13965
  %13967 = vrot.lane.b32.xlu0 %v11936, 32
  %v13968 = vpop.permute.xlu0 %13967
  %13969 = vrot.lane.b32.xlu0 %v11937, 32
  %v13970 = vpop.permute.xlu0 %13969
  %13971 = vrot.lane.b32.xlu0 %v11938, 32
  %v13972 = vpop.permute.xlu0 %13971
  %13973 = vrot.lane.b32.xlu0 %v11939, 32
  %v13974 = vpop.permute.xlu0 %13973
  %13975 = vrot.lane.b32.xlu0 %v11940, 32
  %v13976 = vpop.permute.xlu0 %13975
  %13977 = vrot.lane.b32.xlu0 %v11941, 32
  %v13978 = vpop.permute.xlu0 %13977
  %13979 = vrot.lane.b32.xlu0 %v11942, 32
  %v13980 = vpop.permute.xlu0 %13979
  %13981 = vrot.lane.b32.xlu0 %v11943, 32
  %v13982 = vpop.permute.xlu0 %13981
  %13983 = vrot.lane.b32.xlu0 %v11944, 32
  %v13984 = vpop.permute.xlu0 %13983
  %13985 = vrot.lane.b32.xlu0 %v11945, 32
  %v13986 = vpop.permute.xlu0 %13985
  %13987 = vrot.lane.b32.xlu0 %v11946, 32
  %v13988 = vpop.permute.xlu0 %13987
  %13989 = vrot.lane.b32.xlu0 %v11947, 32
  %v13990 = vpop.permute.xlu0 %13989
  %13991 = vrot.lane.b32.xlu0 %v11948, 32
  %v13992 = vpop.permute.xlu0 %13991
  %13993 = vrot.lane.b32.xlu0 %v11949, 32
  %v13994 = vpop.permute.xlu0 %13993
  %13995 = vrot.lane.b32.xlu0 %v11950, 32
  %v13996 = vpop.permute.xlu0 %13995
  %13997 = vrot.lane.b32.xlu0 %v11951, 32
  %v13998 = vpop.permute.xlu0 %13997
  %13999 = vrot.lane.b32.xlu0 %v11952, 32
  %v14000 = vpop.permute.xlu0 %13999
  %14001 = vrot.lane.b32.xlu0 %v11953, 32
  %v14002 = vpop.permute.xlu0 %14001
  %v14067 = vmul.f32 %v13243, %v13876
  %v14068 = vmul.f32 %v13252, %v13878
  %v14069 = vmul.f32 %v13261, %v13880
  %v14070 = vmul.f32 %v13270, %v13882
  %v14071 = vmul.f32 %v13279, %v13884
  %v14072 = vmul.f32 %v13288, %v13886
  %v14073 = vmul.f32 %v13297, %v13888
  %v14074 = vmul.f32 %v13306, %v13890
  %v14075 = vmul.f32 %v13315, %v13892
  %v14076 = vmul.f32 %v13324, %v13894
  %v14077 = vmul.f32 %v13333, %v13896
  %v14078 = vmul.f32 %v13342, %v13898
  %v14079 = vmul.f32 %v13351, %v13900
  %v14080 = vmul.f32 %v13360, %v13902
  %v14081 = vmul.f32 %v13369, %v13904
  %v14082 = vmul.f32 %v13378, %v13906
  %v14083 = vmul.f32 %v13387, %v13908
  %v14084 = vmul.f32 %v13396, %v13910
  %v14085 = vmul.f32 %v13405, %v13912
  %v14086 = vmul.f32 %v13414, %v13914
  %v14087 = vmul.f32 %v13423, %v13916
  %v14088 = vmul.f32 %v13432, %v13918
  %v14089 = vmul.f32 %v13441, %v13920
  %v14090 = vmul.f32 %v13450, %v13922
  %v14091 = vmul.f32 %v13459, %v13924
  %v14092 = vmul.f32 %v13468, %v13926
  %v14093 = vmul.f32 %v13477, %v13928
  %v14094 = vmul.f32 %v13486, %v13930
  %v14095 = vmul.f32 %v13495, %v13932
  %v14096 = vmul.f32 %v13504, %v13934
  %v14097 = vmul.f32 %v13513, %v13936
  %v14098 = vmul.f32 %v13522, %v13938
  %v14099 = vmul.f32 %v13531, %v13940
  %v14100 = vmul.f32 %v13540, %v13942
  %v14101 = vmul.f32 %v13549, %v13944
  %v14102 = vmul.f32 %v13558, %v13946
  %v14103 = vmul.f32 %v13567, %v13948
  %v14104 = vmul.f32 %v13576, %v13950
  %v14105 = vmul.f32 %v13585, %v13952
  %v14106 = vmul.f32 %v13594, %v13954
  %v14107 = vmul.f32 %v13603, %v13956
  %v14108 = vmul.f32 %v13612, %v13958
  %v14109 = vmul.f32 %v13621, %v13960
  %v14110 = vmul.f32 %v13630, %v13962
  %v14111 = vmul.f32 %v13639, %v13964
  %v14112 = vmul.f32 %v13648, %v13966
  %v14113 = vmul.f32 %v13657, %v13968
  %v14114 = vmul.f32 %v13666, %v13970
  %v14115 = vmul.f32 %v13675, %v13972
  %v14116 = vmul.f32 %v13684, %v13974
  %v14117 = vmul.f32 %v13693, %v13976
  %v14118 = vmul.f32 %v13702, %v13978
  %v14119 = vmul.f32 %v13711, %v13980
  %v14120 = vmul.f32 %v13720, %v13982
  %v14121 = vmul.f32 %v13729, %v13984
  %v14122 = vmul.f32 %v13738, %v13986
  %v14123 = vmul.f32 %v13747, %v13988
  %v14124 = vmul.f32 %v13756, %v13990
  %v14125 = vmul.f32 %v13765, %v13992
  %v14126 = vmul.f32 %v13774, %v13994
  %v14127 = vmul.f32 %v13783, %v13996
  %v14128 = vmul.f32 %v13792, %v13998
  %v14129 = vmul.f32 %v13801, %v14000
  %v14130 = vmul.f32 %v13810, %v14002
  %v14131 = vlaneseq
  %v14132 = vshrl.u32 %v14131, 7
  %v14133 = vsub.s32 5, %v14132
  %v14134 = vrot.slane %v197, %v14133
  %14136 = vrot.lane.b32.xlu0 %v14134, 32
  %v14137 = vpop.permute.xlu0 %14136
  %v14139 = vmul.f32 %v14067, %v14137
  %v14140 = vmul.f32 %v14068, %v14137
  %v14141 = vmul.f32 %v14069, %v14137
  %v14142 = vmul.f32 %v14070, %v14137
  %v14143 = vmul.f32 %v14071, %v14137
  %v14144 = vmul.f32 %v14072, %v14137
  %v14145 = vmul.f32 %v14073, %v14137
  %v14146 = vmul.f32 %v14074, %v14137
  %v14147 = vmul.f32 %v14075, %v14137
  %v14148 = vmul.f32 %v14076, %v14137
  %v14149 = vmul.f32 %v14077, %v14137
  %v14150 = vmul.f32 %v14078, %v14137
  %v14151 = vmul.f32 %v14079, %v14137
  %v14152 = vmul.f32 %v14080, %v14137
  %v14153 = vmul.f32 %v14081, %v14137
  %v14154 = vmul.f32 %v14082, %v14137
  %v14155 = vmul.f32 %v14083, %v14137
  %v14156 = vmul.f32 %v14084, %v14137
  %v14157 = vmul.f32 %v14085, %v14137
  %v14158 = vmul.f32 %v14086, %v14137
  %v14159 = vmul.f32 %v14087, %v14137
  %v14160 = vmul.f32 %v14088, %v14137
  %v14161 = vmul.f32 %v14089, %v14137
  %v14162 = vmul.f32 %v14090, %v14137
  %v14163 = vmul.f32 %v14091, %v14137
  %v14164 = vmul.f32 %v14092, %v14137
  %v14165 = vmul.f32 %v14093, %v14137
  %v14166 = vmul.f32 %v14094, %v14137
  %v14167 = vmul.f32 %v14095, %v14137
  %v14168 = vmul.f32 %v14096, %v14137
  %v14169 = vmul.f32 %v14097, %v14137
  %v14170 = vmul.f32 %v14098, %v14137
  %v14171 = vmul.f32 %v14099, %v14137
  %v14172 = vmul.f32 %v14100, %v14137
  %v14173 = vmul.f32 %v14101, %v14137
  %v14174 = vmul.f32 %v14102, %v14137
  %v14175 = vmul.f32 %v14103, %v14137
  %v14176 = vmul.f32 %v14104, %v14137
  %v14177 = vmul.f32 %v14105, %v14137
  %v14178 = vmul.f32 %v14106, %v14137
  %v14179 = vmul.f32 %v14107, %v14137
  %v14180 = vmul.f32 %v14108, %v14137
  %v14181 = vmul.f32 %v14109, %v14137
  %v14182 = vmul.f32 %v14110, %v14137
  %v14183 = vmul.f32 %v14111, %v14137
  %v14184 = vmul.f32 %v14112, %v14137
  %v14185 = vmul.f32 %v14113, %v14137
  %v14186 = vmul.f32 %v14114, %v14137
  %v14187 = vmul.f32 %v14115, %v14137
  %v14188 = vmul.f32 %v14116, %v14137
  %v14189 = vmul.f32 %v14117, %v14137
  %v14190 = vmul.f32 %v14118, %v14137
  %v14191 = vmul.f32 %v14119, %v14137
  %v14192 = vmul.f32 %v14120, %v14137
  %v14193 = vmul.f32 %v14121, %v14137
  %v14194 = vmul.f32 %v14122, %v14137
  %v14195 = vmul.f32 %v14123, %v14137
  %v14196 = vmul.f32 %v14124, %v14137
  %v14197 = vmul.f32 %v14125, %v14137
  %v14198 = vmul.f32 %v14126, %v14137
  %v14199 = vmul.f32 %v14127, %v14137
  %v14200 = vmul.f32 %v14128, %v14137
  %v14201 = vmul.f32 %v14129, %v14137
  %v14202 = vmul.f32 %v14130, %v14137
  %v14203 = vlaneseq
  %v14204 = vshrl.u32 %v14203, 7
  %v14205 = vsub.s32 6, %v14204
  %v14206 = vrot.slane %v197, %v14205
  %14208 = vrot.lane.b32.xlu0 %v14206, 32
  %v14209 = vpop.permute.xlu0 %14208
  %v14211 = vadd.f32 %v14139, %v14209
  %v14212 = vadd.f32 %v14140, %v14209
  %v14213 = vadd.f32 %v14141, %v14209
  %v14214 = vadd.f32 %v14142, %v14209
  %v14215 = vadd.f32 %v14143, %v14209
  %v14216 = vadd.f32 %v14144, %v14209
  %v14217 = vadd.f32 %v14145, %v14209
  %v14218 = vadd.f32 %v14146, %v14209
  %v14219 = vadd.f32 %v14147, %v14209
  %v14220 = vadd.f32 %v14148, %v14209
  %v14221 = vadd.f32 %v14149, %v14209
  %v14222 = vadd.f32 %v14150, %v14209
  %v14223 = vadd.f32 %v14151, %v14209
  %v14224 = vadd.f32 %v14152, %v14209
  %v14225 = vadd.f32 %v14153, %v14209
  %v14226 = vadd.f32 %v14154, %v14209
  %v14227 = vadd.f32 %v14155, %v14209
  %v14228 = vadd.f32 %v14156, %v14209
  %v14229 = vadd.f32 %v14157, %v14209
  %v14230 = vadd.f32 %v14158, %v14209
  %v14231 = vadd.f32 %v14159, %v14209
  %v14232 = vadd.f32 %v14160, %v14209
  %v14233 = vadd.f32 %v14161, %v14209
  %v14234 = vadd.f32 %v14162, %v14209
  %v14235 = vadd.f32 %v14163, %v14209
  %v14236 = vadd.f32 %v14164, %v14209
  %v14237 = vadd.f32 %v14165, %v14209
  %v14238 = vadd.f32 %v14166, %v14209
  %v14239 = vadd.f32 %v14167, %v14209
  %v14240 = vadd.f32 %v14168, %v14209
  %v14241 = vadd.f32 %v14169, %v14209
  %v14242 = vadd.f32 %v14170, %v14209
  %v14243 = vadd.f32 %v14171, %v14209
  %v14244 = vadd.f32 %v14172, %v14209
  %v14245 = vadd.f32 %v14173, %v14209
  %v14246 = vadd.f32 %v14174, %v14209
  %v14247 = vadd.f32 %v14175, %v14209
  %v14248 = vadd.f32 %v14176, %v14209
  %v14249 = vadd.f32 %v14177, %v14209
  %v14250 = vadd.f32 %v14178, %v14209
  %v14251 = vadd.f32 %v14179, %v14209
  %v14252 = vadd.f32 %v14180, %v14209
  %v14253 = vadd.f32 %v14181, %v14209
  %v14254 = vadd.f32 %v14182, %v14209
  %v14255 = vadd.f32 %v14183, %v14209
  %v14256 = vadd.f32 %v14184, %v14209
  %v14257 = vadd.f32 %v14185, %v14209
  %v14258 = vadd.f32 %v14186, %v14209
  %v14259 = vadd.f32 %v14187, %v14209
  %v14260 = vadd.f32 %v14188, %v14209
  %v14261 = vadd.f32 %v14189, %v14209
  %v14262 = vadd.f32 %v14190, %v14209
  %v14263 = vadd.f32 %v14191, %v14209
  %v14264 = vadd.f32 %v14192, %v14209
  %v14265 = vadd.f32 %v14193, %v14209
  %v14266 = vadd.f32 %v14194, %v14209
  %v14267 = vadd.f32 %v14195, %v14209
  %v14268 = vadd.f32 %v14196, %v14209
  %v14269 = vadd.f32 %v14197, %v14209
  %v14270 = vadd.f32 %v14198, %v14209
  %v14271 = vadd.f32 %v14199, %v14209
  %v14272 = vadd.f32 %v14200, %v14209
  %v14273 = vadd.f32 %v14201, %v14209
  %v14274 = vadd.f32 %v14202, %v14209
  %v14275 = vmax.f32 %v14211, 0.0
  %v14276 = vmax.f32 %v14212, 0.0
  %v14277 = vmax.f32 %v14213, 0.0
  %v14278 = vmax.f32 %v14214, 0.0
  %v14279 = vmax.f32 %v14215, 0.0
  %v14280 = vmax.f32 %v14216, 0.0
  %v14281 = vmax.f32 %v14217, 0.0
  %v14282 = vmax.f32 %v14218, 0.0
  %v14283 = vmax.f32 %v14219, 0.0
  %v14284 = vmax.f32 %v14220, 0.0
  %v14285 = vmax.f32 %v14221, 0.0
  %v14286 = vmax.f32 %v14222, 0.0
  %v14287 = vmax.f32 %v14223, 0.0
  %v14288 = vmax.f32 %v14224, 0.0
  %v14289 = vmax.f32 %v14225, 0.0
  %v14290 = vmax.f32 %v14226, 0.0
  %v14291 = vmax.f32 %v14227, 0.0
  %v14292 = vmax.f32 %v14228, 0.0
  %v14293 = vmax.f32 %v14229, 0.0
  %v14294 = vmax.f32 %v14230, 0.0
  %v14295 = vmax.f32 %v14231, 0.0
  %v14296 = vmax.f32 %v14232, 0.0
  %v14297 = vmax.f32 %v14233, 0.0
  %v14298 = vmax.f32 %v14234, 0.0
  %v14299 = vmax.f32 %v14235, 0.0
  %v14300 = vmax.f32 %v14236, 0.0
  %v14301 = vmax.f32 %v14237, 0.0
  %v14302 = vmax.f32 %v14238, 0.0
  %v14303 = vmax.f32 %v14239, 0.0
  %v14304 = vmax.f32 %v14240, 0.0
  %v14305 = vmax.f32 %v14241, 0.0
  %v14306 = vmax.f32 %v14242, 0.0
  %v14307 = vmax.f32 %v14243, 0.0
  %v14308 = vmax.f32 %v14244, 0.0
  %v14309 = vmax.f32 %v14245, 0.0
  %v14310 = vmax.f32 %v14246, 0.0
  %v14311 = vmax.f32 %v14247, 0.0
  %v14312 = vmax.f32 %v14248, 0.0
  %v14313 = vmax.f32 %v14249, 0.0
  %v14314 = vmax.f32 %v14250, 0.0
  %v14315 = vmax.f32 %v14251, 0.0
  %v14316 = vmax.f32 %v14252, 0.0
  %v14317 = vmax.f32 %v14253, 0.0
  %v14318 = vmax.f32 %v14254, 0.0
  %v14319 = vmax.f32 %v14255, 0.0
  %v14320 = vmax.f32 %v14256, 0.0
  %v14321 = vmax.f32 %v14257, 0.0
  %v14322 = vmax.f32 %v14258, 0.0
  %v14323 = vmax.f32 %v14259, 0.0
  %v14324 = vmax.f32 %v14260, 0.0
  %v14325 = vmax.f32 %v14261, 0.0
  %v14326 = vmax.f32 %v14262, 0.0
  %v14327 = vmax.f32 %v14263, 0.0
  %v14328 = vmax.f32 %v14264, 0.0
  %v14329 = vmax.f32 %v14265, 0.0
  %v14330 = vmax.f32 %v14266, 0.0
  %v14331 = vmax.f32 %v14267, 0.0
  %v14332 = vmax.f32 %v14268, 0.0
  %v14333 = vmax.f32 %v14269, 0.0
  %v14334 = vmax.f32 %v14270, 0.0
  %v14335 = vmax.f32 %v14271, 0.0
  %v14336 = vmax.f32 %v14272, 0.0
  %v14337 = vmax.f32 %v14273, 0.0
  %v14338 = vmax.f32 %v14274, 0.0
  %v14403 = vrot.slane %v14276, 7
  %vm14404 = vcmask 1041409
  %v14405 = vsel %vm14404, %v14403, %v14275
  %v14406 = vrot.slane %v14277, 6
  %vm14407 = vcmask 1042434
  %v14408 = vsel %vm14407, %v14406, %v14405
  %v14409 = vrot.slane %v14278, 5
  %vm14410 = vcmask 1043459
  %v14411 = vsel %vm14410, %v14409, %v14408
  %v14412 = vrot.slane %v14279, 4
  %vm14413 = vcmask 1044484
  %v14414 = vsel %vm14413, %v14412, %v14411
  %v14415 = vrot.slane %v14280, 3
  %vm14416 = vcmask 1045509
  %v14417 = vsel %vm14416, %v14415, %v14414
  %v14418 = vrot.slane %v14281, 2
  %vm14419 = vcmask 1046534
  %v14420 = vsel %vm14419, %v14418, %v14417
  %v14421 = vrot.slane %v14282, 1
  %vm14422 = vcmask 1047559
  %v14423 = vsel %vm14422, %v14421, %v14420
  %v14424 = vrot.slane %v14284, 7
  %v14425 = vsel %vm14404, %v14424, %v14283
  %v14426 = vrot.slane %v14285, 6
  %v14427 = vsel %vm14407, %v14426, %v14425
  %v14428 = vrot.slane %v14286, 5
  %v14429 = vsel %vm14410, %v14428, %v14427
  %v14430 = vrot.slane %v14287, 4
  %v14431 = vsel %vm14413, %v14430, %v14429
  %v14432 = vrot.slane %v14288, 3
  %v14433 = vsel %vm14416, %v14432, %v14431
  %v14434 = vrot.slane %v14289, 2
  %v14435 = vsel %vm14419, %v14434, %v14433
  %v14436 = vrot.slane %v14290, 1
  %v14437 = vsel %vm14422, %v14436, %v14435
  %v14438 = vrot.slane %v14292, 7
  %v14439 = vsel %vm14404, %v14438, %v14291
  %v14440 = vrot.slane %v14293, 6
  %v14441 = vsel %vm14407, %v14440, %v14439
  %v14442 = vrot.slane %v14294, 5
  %v14443 = vsel %vm14410, %v14442, %v14441
  %v14444 = vrot.slane %v14295, 4
  %v14445 = vsel %vm14413, %v14444, %v14443
  %v14446 = vrot.slane %v14296, 3
  %v14447 = vsel %vm14416, %v14446, %v14445
  %v14448 = vrot.slane %v14297, 2
  %v14449 = vsel %vm14419, %v14448, %v14447
  %v14450 = vrot.slane %v14298, 1
  %v14451 = vsel %vm14422, %v14450, %v14449
  %v14452 = vrot.slane %v14300, 7
  %v14453 = vsel %vm14404, %v14452, %v14299
  %v14454 = vrot.slane %v14301, 6
  %v14455 = vsel %vm14407, %v14454, %v14453
  %v14456 = vrot.slane %v14302, 5
  %v14457 = vsel %vm14410, %v14456, %v14455
  %v14458 = vrot.slane %v14303, 4
  %v14459 = vsel %vm14413, %v14458, %v14457
  %v14460 = vrot.slane %v14304, 3
  %v14461 = vsel %vm14416, %v14460, %v14459
  %v14462 = vrot.slane %v14305, 2
  %v14463 = vsel %vm14419, %v14462, %v14461
  %v14464 = vrot.slane %v14306, 1
  %v14465 = vsel %vm14422, %v14464, %v14463
  %v14466 = vrot.slane %v14308, 7
  %v14467 = vsel %vm14404, %v14466, %v14307
  %v14468 = vrot.slane %v14309, 6
  %v14469 = vsel %vm14407, %v14468, %v14467
  %v14470 = vrot.slane %v14310, 5
  %v14471 = vsel %vm14410, %v14470, %v14469
  %v14472 = vrot.slane %v14311, 4
  %v14473 = vsel %vm14413, %v14472, %v14471
  %v14474 = vrot.slane %v14312, 3
  %v14475 = vsel %vm14416, %v14474, %v14473
  %v14476 = vrot.slane %v14313, 2
  %v14477 = vsel %vm14419, %v14476, %v14475
  %v14478 = vrot.slane %v14314, 1
  %v14479 = vsel %vm14422, %v14478, %v14477
  %v14480 = vrot.slane %v14316, 7
  %v14481 = vsel %vm14404, %v14480, %v14315
  %v14482 = vrot.slane %v14317, 6
  %v14483 = vsel %vm14407, %v14482, %v14481
  %v14484 = vrot.slane %v14318, 5
  %v14485 = vsel %vm14410, %v14484, %v14483
  %v14486 = vrot.slane %v14319, 4
  %v14487 = vsel %vm14413, %v14486, %v14485
  %v14488 = vrot.slane %v14320, 3
  %v14489 = vsel %vm14416, %v14488, %v14487
  %v14490 = vrot.slane %v14321, 2
  %v14491 = vsel %vm14419, %v14490, %v14489
  %v14492 = vrot.slane %v14322, 1
  %v14493 = vsel %vm14422, %v14492, %v14491
  %v14494 = vrot.slane %v14324, 7
  %v14495 = vsel %vm14404, %v14494, %v14323
  %v14496 = vrot.slane %v14325, 6
  %v14497 = vsel %vm14407, %v14496, %v14495
  %v14498 = vrot.slane %v14326, 5
  %v14499 = vsel %vm14410, %v14498, %v14497
  %v14500 = vrot.slane %v14327, 4
  %v14501 = vsel %vm14413, %v14500, %v14499
  %v14502 = vrot.slane %v14328, 3
  %v14503 = vsel %vm14416, %v14502, %v14501
  %v14504 = vrot.slane %v14329, 2
  %v14505 = vsel %vm14419, %v14504, %v14503
  %v14506 = vrot.slane %v14330, 1
  %v14507 = vsel %vm14422, %v14506, %v14505
  %v14508 = vrot.slane %v14332, 7
  %v14509 = vsel %vm14404, %v14508, %v14331
  %v14510 = vrot.slane %v14333, 6
  %v14511 = vsel %vm14407, %v14510, %v14509
  %v14512 = vrot.slane %v14334, 5
  %v14513 = vsel %vm14410, %v14512, %v14511
  %v14514 = vrot.slane %v14335, 4
  %v14515 = vsel %vm14413, %v14514, %v14513
  %v14516 = vrot.slane %v14336, 3
  %v14517 = vsel %vm14416, %v14516, %v14515
  %v14518 = vrot.slane %v14337, 2
  %v14519 = vsel %vm14419, %v14518, %v14517
  %v14520 = vrot.slane %v14338, 1
  %v14521 = vsel %vm14422, %v14520, %v14519
  %14522 = vrot.lane.b32.xlu0 %v14423, 96
  %v14523 = vpop.permute.xlu0 %14522
  %14524 = vrot.lane.b32.xlu0 %v14437, 96
  %v14525 = vpop.permute.xlu0 %14524
  %14526 = vrot.lane.b32.xlu0 %v14451, 96
  %v14527 = vpop.permute.xlu0 %14526
  %14528 = vrot.lane.b32.xlu0 %v14465, 96
  %v14529 = vpop.permute.xlu0 %14528
  %14530 = vrot.lane.b32.xlu0 %v14479, 96
  %v14531 = vpop.permute.xlu0 %14530
  %14532 = vrot.lane.b32.xlu0 %v14493, 96
  %v14533 = vpop.permute.xlu0 %14532
  %14534 = vrot.lane.b32.xlu0 %v14507, 96
  %v14535 = vpop.permute.xlu0 %14534
  %14536 = vrot.lane.b32.xlu0 %v14521, 96
  %v14537 = vpop.permute.xlu0 %14536
  %14538 = vrot.lane.b32.xlu0 %v191, 32
  %v14539 = vpop.permute.xlu0 %14538
  %14540 = vrot.lane.b32.xlu0 %v192, 32
  %v14541 = vpop.permute.xlu0 %14540
  %14542 = vrot.lane.b32.xlu0 %v193, 32
  %v14543 = vpop.permute.xlu0 %14542
  %14544 = vrot.lane.b32.xlu0 %v194, 32
  %v14545 = vpop.permute.xlu0 %14544
  %v14550 = vsel %vm199, %v14523, 0
  %v14552 = vsel %vm199, %v14525, 0
  %v14554 = vsel %vm199, %v14527, 0
  %v14556 = vsel %vm199, %v14529, 0
  %v14558 = vsel %vm199, %v14531, 0
  %v14560 = vsel %vm199, %v14533, 0
  %v14562 = vsel %vm199, %v14535, 0
  %v14564 = vsel %vm199, %v14537, 0
  %14566 = vmatprep.subr.mxu0 0.0
  %14567 = vmatpush1.msra.mxu0 %v14539
  %14568 = vmatprep.subr.mxu0 0.0
  %14569 = vmatpush1.msra.mxu0 %v14541
  %14570 = vmatprep.subr.mxu0 0.0
  %14571 = vmatpush1.msra.mxu0 %v14543
  %14572 = vmatprep.subr.mxu0 0.0
  %14573 = vmatpush1.msra.mxu0 %v14545
  %14574 = vmatprep.subr.mxu0 0.0
  %14575 = vmatpush1.msra.mxu0 0.0
  %14576 = vmatprep.subr.mxu0 0.0
  %14577 = vmatpush1.msra.mxu0 0.0
  %14578 = vmatprep.subr.mxu0 0.0
  %14579 = vmatpush1.msra.mxu0 0.0
  %14580 = vmatprep.subr.mxu0 0.0
  %14581 = vmatpush1.msra.mxu0 0.0
  %14582 = vmatprep.subr.mxu0 0.0
  %14583 = vmatpush1.msra.mxu0 0.0
  %14584 = vmatprep.subr.mxu0 0.0
  %14585 = vmatpush1.msra.mxu0 0.0
  %14586 = vmatprep.subr.mxu0 0.0
  %14587 = vmatpush1.msra.mxu0 0.0
  %14588 = vmatprep.subr.mxu0 0.0
  %14589 = vmatpush1.msra.mxu0 0.0
  %14590 = vmatprep.subr.mxu0 0.0
  %14591 = vmatpush1.msra.mxu0 0.0
  %14592 = vmatprep.subr.mxu0 0.0
  %14593 = vmatpush1.msra.mxu0 0.0
  %14594 = vmatprep.subr.mxu0 0.0
  %14595 = vmatpush1.msra.mxu0 0.0
  %14596 = vmatprep.subr.mxu0 0.0
  %14597 = vmatpush1.msra.mxu0 0.0
  %14598 = vmatprep.subr.mxu0 0.0
  %14599 = vmatpush1.msra.mxu0 0.0
  %14600 = vmatprep.subr.mxu0 0.0
  %14601 = vmatpush1.msra.mxu0 0.0
  %14602 = vmatprep.subr.mxu0 0.0
  %14603 = vmatpush1.msra.mxu0 0.0
  %14604 = vmatprep.subr.mxu0 0.0
  %14605 = vmatpush1.msra.mxu0 0.0
  %14606 = vmatprep.subr.mxu0 0.0
  %14607 = vmatpush1.msra.mxu0 0.0
  %14608 = vmatprep.subr.mxu0 0.0
  %14609 = vmatpush1.msra.mxu0 0.0
  %14610 = vmatprep.subr.mxu0 0.0
  %14611 = vmatpush1.msra.mxu0 0.0
  %14612 = vmatprep.subr.mxu0 0.0
  %14613 = vmatpush1.msra.mxu0 0.0
  %14614 = vmatprep.subr.mxu0 0.0
  %14615 = vmatpush1.msra.mxu0 0.0
  %14616 = vmatprep.subr.mxu0 0.0
  %14617 = vmatpush1.msra.mxu0 0.0
  %14618 = vmatprep.subr.mxu0 0.0
  %14619 = vmatpush1.msra.mxu0 0.0
  %14620 = vmatprep.subr.mxu0 0.0
  %14621 = vmatpush1.msra.mxu0 0.0
  %14622 = vmatprep.subr.mxu0 0.0
  %14623 = vmatpush1.msra.mxu0 0.0
  %14624 = vmatprep.subr.mxu0 0.0
  %14625 = vmatpush1.msra.mxu0 0.0
  %14626 = vmatprep.subr.mxu0 0.0
  %14627 = vmatpush1.msra.mxu0 0.0
  %14628 = vmatprep.subr.mxu0 0.0
  %14629 = vmatpush1.msra.mxu0 0.0
  %14630 = vmatprep.mubr.f32.mxu0 0.0
  %14631 = vmatmul.mubr.f32.gmra.mrb[0].mxu0 %v14550
  %v14632 = vpop.f32.mrb[0].mxu0
  %v14633 = vadd.f32 0.0, %v14632
  %v14634 = vpop.f32.mrb[0].mxu0
  %14635 = vmatprep.mubr.f32.mxu0 0.0
  %14636 = vmatmul.mubr.f32.gmra.mrb[0].mxu0 %v14552
  %v14637 = vpop.f32.mrb[0].mxu0
  %v14638 = vadd.f32 0.0, %v14637
  %v14639 = vpop.f32.mrb[0].mxu0
  %14640 = vmatprep.mubr.f32.mxu0 0.0
  %14641 = vmatmul.mubr.f32.gmra.mrb[0].mxu0 %v14554
  %v14642 = vpop.f32.mrb[0].mxu0
  %v14643 = vadd.f32 0.0, %v14642
  %v14644 = vpop.f32.mrb[0].mxu0
  %14645 = vmatprep.mubr.f32.mxu0 0.0
  %14646 = vmatmul.mubr.f32.gmra.mrb[0].mxu0 %v14556
  %v14647 = vpop.f32.mrb[0].mxu0
  %v14648 = vadd.f32 0.0, %v14647
  %v14649 = vpop.f32.mrb[0].mxu0
  %14650 = vmatprep.mubr.f32.mxu0 0.0
  %14651 = vmatmul.mubr.f32.gmra.mrb[0].mxu0 %v14558
  %v14652 = vpop.f32.mrb[0].mxu0
  %v14653 = vadd.f32 0.0, %v14652
  %v14654 = vpop.f32.mrb[0].mxu0
  %14655 = vmatprep.mubr.f32.mxu0 0.0
  %14656 = vmatmul.mubr.f32.gmra.mrb[0].mxu0 %v14560
  %v14657 = vpop.f32.mrb[0].mxu0
  %v14658 = vadd.f32 0.0, %v14657
  %v14659 = vpop.f32.mrb[0].mxu0
  %14660 = vmatprep.mubr.f32.mxu0 0.0
  %14661 = vmatmul.mubr.f32.gmra.mrb[0].mxu0 %v14562
  %v14662 = vpop.f32.mrb[0].mxu0
  %v14663 = vadd.f32 0.0, %v14662
  %v14664 = vpop.f32.mrb[0].mxu0
  %14665 = vmatprep.mubr.f32.mxu0 0.0
  %14666 = vmatmul.mubr.f32.gmra.mrb[0].mxu0 %v14564
  %v14667 = vpop.f32.mrb[0].mxu0
  %v14668 = vadd.f32 0.0, %v14667
  %v14669 = vpop.f32.mrb[0].mxu0
  %14670 = vdwg.mxu0
  %v14671 = vlaneseq
  %v14672 = vshrl.u32 %v14671, 7
  %v14673 = vsub.s32 7, %v14672
  %v14674 = vrot.slane %v197, %v14673
  %v14675 = vmul.f32 %v14633, %v14674
  %v14676 = vmul.f32 %v14638, %v14674
  %v14677 = vmul.f32 %v14643, %v14674
  %v14678 = vmul.f32 %v14648, %v14674
  %v14679 = vmul.f32 %v14653, %v14674
  %v14680 = vmul.f32 %v14658, %v14674
  %v14681 = vmul.f32 %v14663, %v14674
  %v14682 = vmul.f32 %v14668, %v14674
  %v14683 = vlaneseq
  %v14684 = vshrl.u32 %v14683, 7
  %v14685 = vsub.s32 0, %v14684
  %v14686 = vrot.slane %v198, %v14685
  %v14687 = vadd.f32 %v14675, %v14686
  %v14688 = vadd.f32 %v14676, %v14686
  %v14689 = vadd.f32 %v14677, %v14686
  %v14690 = vadd.f32 %v14678, %v14686
  %v14691 = vadd.f32 %v14679, %v14686
  %v14692 = vadd.f32 %v14680, %v14686
  %v14693 = vadd.f32 %v14681, %v14686
  %v14694 = vadd.f32 %v14682, %v14686
  %v14695 = vadd.f32 %v14687, %v35
  %v14696 = vadd.f32 %v14688, %v36
  %v14697 = vadd.f32 %v14689, %v37
  %v14698 = vadd.f32 %v14690, %v38
  %v14699 = vadd.f32 %v14691, %v39
  %v14700 = vadd.f32 %v14692, %v40
  %v14701 = vadd.f32 %v14693, %v41
  %v14702 = vadd.f32 %v14694, %v42
  %v14703 = vmax.f32 %v14695, 0.0
  %v14704 = vmax.f32 %v14696, 0.0
  %v14705 = vmax.f32 %v14697, 0.0
  %v14706 = vmax.f32 %v14698, 0.0
  %v14707 = vmax.f32 %v14699, 0.0
  %v14708 = vmax.f32 %v14700, 0.0
  %v14709 = vmax.f32 %v14701, 0.0
  %v14710 = vmax.f32 %v14702, 0.0
  %14711 = vst.msk [vmem:[%s7] sm:$0xff] %vm199, %v14703
  %14712 = vst.msk [vmem:[%s7 + $0x8] sm:$0xff] %vm199, %v14704
  %14713 = vst.msk [vmem:[%s7 + $0x10] sm:$0xff] %vm199, %v14705
  %14714 = vst.msk [vmem:[%s7 + $0x18] sm:$0xff] %vm199, %v14706
  %14715 = vst.msk [vmem:[%s7 + $0x20] sm:$0xff] %vm199, %v14707
  %14716 = vst.msk [vmem:[%s7 + $0x28] sm:$0xff] %vm199, %v14708
  %14717 = vst.msk [vmem:[%s7 + $0x30] sm:$0xff] %vm199, %v14709
  %14718 = vst.msk [vmem:[%s7 + $0x38] sm:$0xff] %vm199, %v14710
  // Predicated region
  $region30: #{tpu_custom_call.1} parent=0 // pred_check
    _
  $region31: #{tpu_custom_call.1} parent=0 // pred_check_branch
    %14720 = sbr.rel (0) target = $region33
  $region32: #{tpu_custom_call.1} parent=0 // pred_region
    _
  $region33: #{tpu_custom_call.1} parent=0 // pred_fallthru
    _
  // Predicated region
  $region34: #{tpu_custom_call.1} parent=0 // pred_check
    _
  $region35: #{tpu_custom_call.1} parent=0 // pred_check_branch
    %14722 = sbr.rel (0) target = $region37
  $region36: #{tpu_custom_call.1} parent=0 // pred_region
    _
  $region37: #{tpu_custom_call.1} parent=0 // pred_fallthru
    _

</llo_original>
